<compile_context>
chip_gen: v7x
topology: tpu7x:2x2x1
jax: 0.10.0
libtpu: 0.0.40
codegen_flags: <defaults>
</compile_context>

<pallas_src>
import functools

import jax
import jax.numpy as jnp
from jax.experimental import pallas as pl
from jax.experimental.pallas import tpu as pltpu

INPUT_CHANNEL = 8
N_READS_PER_SITE = 20     # SummaryStatsAggregator is constructed with 20 reads/site
N_SITES = 2


# --------------------------------- kernel ------------------------------------
def summary_stats_kernel(x_ref, o_ref, *, R):
    """x_ref: (R, C, TB)  ->  o_ref: (5, C, TB) = [mean, var, max, min, median]."""
    f32 = jnp.float32
    inv_r = 1.0 / float(R)
    inv_rm1 = 1.0 / float(R - 1)          # torch.var default: unbiased
    thr = float((R + 1) // 2)             # lower-median rank threshold

    def ld(r):
        # One read = one lane-dense (C, TB) slab; upcast if the input is bf16.
        return x_ref[r].astype(f32)

    # ---- pass 1: sum / max / min (single sweep over reads) ------------------
    x0 = ld(0)
    s, mx, mn = x0, x0, x0
    for r in range(1, R):
        xr = ld(r)
        s = s + xr
        mx = jnp.maximum(mx, xr)
        mn = jnp.minimum(mn, xr)
    mean = s * inv_r

    # ---- pass 2: unbiased variance (two-pass; mean broadcast is free here) --
    ss = jnp.zeros_like(mean)
    for r in range(R):
        d = ld(r) - mean
        ss = ss + d * d
    var = ss * inv_rm1

    # Store the cheap stats now (full-width slab stores) to keep register
    # pressure low during the median.
    o_ref[0] = mean.astype(o_ref.dtype)
    o_ref[1] = var.astype(o_ref.dtype)
    o_ref[2] = mx.astype(o_ref.dtype)
    o_ref[3] = mn.astype(o_ref.dtype)

    # ---- lower median (torch.median semantics) via rank counts --------------
    # count_r = #{r' : x[r'] <= x[r]}; the lower median is the smallest x[r]
    # with count_r >= (R+1)//2.  count_r is consumed immediately, so only a
    # handful of (C, TB) slabs are ever live.
    med = jnp.full_like(mean, jnp.inf)
    for r in range(R):
        xr = ld(r)
        cnt = jnp.zeros_like(xr)
        for rp in range(R):
            cnt = cnt + (ld(rp) <= xr).astype(f32)
        med = jnp.minimum(med, jnp.where(cnt >= thr, xr, jnp.inf))
    o_ref[4] = med.astype(o_ref.dtype)


# --------------------------------- wrapper -----------------------------------
def _pick_site_tile(n_sites, tile_sites):
    if tile_sites is not None:
        tb = tile_sites
    else:
        # Largest lane-dense tile (multiple of 128, capped at 1024) dividing the
        # number of sites, preferring >=2 grid steps so the "parallel" axis can
        # shard across TensorCores on v7x; otherwise one full block (demo size).
        tb = n_sites
        for cand in (1024, 512, 256, 128):
            if n_sites % cand == 0 and n_sites // cand >= 2:
                tb = cand
                break
    assert n_sites % tb == 0, "site tile must divide the number of sites"
    assert tb % 128 == 0 or tb == n_sites, "site tile must be lane-dense or full"
    return tb


def summary_stats_probability(x, *, n_reads=N_READS_PER_SITE, tile_sites=None):
    """x: (B * n_reads, C) -> (B, 5*C), matching SummaryStatsProbability.forward."""
    n_rows, C = x.shape
    assert n_rows % n_reads == 0
    B = n_rows // n_reads

    # Lane-dense layout: (R, C, B).  Sites fill the lane dimension so every
    # per-read slab is dense in the vreg; the transpose is one XLA layout pass
    # outside the kernel (net win vs. the XLU/VPU cost of the (B, R, C) layout).
    x_rcb = jnp.transpose(x.reshape(B, n_reads, C), (1, 2, 0))

    TB = _pick_site_tile(B, tile_sites)
    grid = (B // TB,)

    out = pl.pallas_call(
        functools.partial(summary_stats_kernel, R=n_reads),
        grid=grid,
        in_specs=[pl.BlockSpec((n_reads, C, TB), lambda i: (0, 0, i))],
        out_specs=pl.BlockSpec((5, C, TB), lambda i: (0, 0, i)),
        out_shape=jax.ShapeDtypeStruct((5, C, B), jnp.float32),
        compiler_params=pltpu.CompilerParams(
            dimension_semantics=("parallel",)),
    )(x_rcb)

    # (5, C, B) -> (B, 5*C) == torch.cat([mean, var, max, min, median], axis=1).
    return jnp.transpose(out, (2, 0, 1)).reshape(B, 5 * C)


# --------------------------- pure-JAX reference -------------------------------
def reference(x, *, n_reads=N_READS_PER_SITE):
    N, C = x.shape
    B = N // n_reads
    x3 = x.reshape(B, n_reads, C).astype(jnp.float32)
    mean = jnp.mean(x3, axis=1)
    var = jnp.var(x3, axis=1, ddof=1)                         # torch.var unbiased
    mx = jnp.max(x3, axis=1)
    mn = jnp.min(x3, axis=1)
    med = jnp.sort(x3, axis=1)[:, (n_reads - 1) // 2, :]      # torch lower median
    return jnp.concatenate([mean, var, mx, mn, med], axis=1)


# ----------------------------------- main -------------------------------------
if __name__ == "__main__":
    key = jax.random.PRNGKey(0)
    # input as the module expects it: (B * n_reads_per_site, input_channel)
    x = jax.random.uniform(
        key, (N_SITES * N_READS_PER_SITE, INPUT_CHANNEL), jnp.float32)

    out = summary_stats_probability(x)
    out = jax.block_until_ready(out)

    ref = reference(x)
    assert out.shape == (N_SITES, 5 * INPUT_CHANNEL), out.shape
    assert jnp.allclose(out, ref, atol=1e-5, rtol=1e-5), (
        float(jnp.max(jnp.abs(out - ref))))

    print("KERNEL_OK")
</pallas_src>

<mosaic_0001>
module attributes {stable_mosaic.version = 11 : i64} {
  func.func @summary_stats_kernel(%arg0: i32, %arg1: memref<20x8x2xf32, #tpu.memory_space<vmem>>, %arg2: memref<5x8x2xf32, #tpu.memory_space<vmem>>) attributes {dimension_semantics = [#tpu.dimension_semantics<parallel>], iteration_bounds = array<i64: 1>, scalar_prefetch = 0 : i64, scratch_operands = 0 : i64, tpu.core_type = #tpu.core_type<tc>, window_params = [{transform_indices = @transform_0, window_bounds = array<i64: 20, 8, 2>}, {transform_indices = @transform_1, window_bounds = array<i64: 5, 8, 2>}]} {
    %c0 = arith.constant 0 : index
    %c0_0 = arith.constant 0 : index
    %c0_1 = arith.constant 0 : index
    %0 = vector.load %arg1[%c0, %c0_0, %c0_1] : memref<20x8x2xf32, #tpu.memory_space<vmem>>, vector<1x8x2xf32>
    %1 = vector.shape_cast %0 : vector<1x8x2xf32> to vector<8x2xf32>
    %c1 = arith.constant 1 : index
    %c0_2 = arith.constant 0 : index
    %c0_3 = arith.constant 0 : index
    %2 = vector.load %arg1[%c1, %c0_2, %c0_3] : memref<20x8x2xf32, #tpu.memory_space<vmem>>, vector<1x8x2xf32>
    %3 = vector.shape_cast %2 : vector<1x8x2xf32> to vector<8x2xf32>
    %4 = arith.addf %1, %3 : vector<8x2xf32>
    %5 = arith.maximumf %1, %3 : vector<8x2xf32>
    %6 = arith.minimumf %1, %3 : vector<8x2xf32>
    %c2 = arith.constant 2 : index
    %c0_4 = arith.constant 0 : index
    %c0_5 = arith.constant 0 : index
    %7 = vector.load %arg1[%c2, %c0_4, %c0_5] : memref<20x8x2xf32, #tpu.memory_space<vmem>>, vector<1x8x2xf32>
    %8 = vector.shape_cast %7 : vector<1x8x2xf32> to vector<8x2xf32>
    %9 = arith.addf %4, %8 : vector<8x2xf32>
    %10 = arith.maximumf %5, %8 : vector<8x2xf32>
    %11 = arith.minimumf %6, %8 : vector<8x2xf32>
    %c3 = arith.constant 3 : index
    %c0_6 = arith.constant 0 : index
    %c0_7 = arith.constant 0 : index
    %12 = vector.load %arg1[%c3, %c0_6, %c0_7] : memref<20x8x2xf32, #tpu.memory_space<vmem>>, vector<1x8x2xf32>
    %13 = vector.shape_cast %12 : vector<1x8x2xf32> to vector<8x2xf32>
    %14 = arith.addf %9, %13 : vector<8x2xf32>
    %15 = arith.maximumf %10, %13 : vector<8x2xf32>
    %16 = arith.minimumf %11, %13 : vector<8x2xf32>
    %c4 = arith.constant 4 : index
    %c0_8 = arith.constant 0 : index
    %c0_9 = arith.constant 0 : index
    %17 = vector.load %arg1[%c4, %c0_8, %c0_9] : memref<20x8x2xf32, #tpu.memory_space<vmem>>, vector<1x8x2xf32>
    %18 = vector.shape_cast %17 : vector<1x8x2xf32> to vector<8x2xf32>
    %19 = arith.addf %14, %18 : vector<8x2xf32>
    %20 = arith.maximumf %15, %18 : vector<8x2xf32>
    %21 = arith.minimumf %16, %18 : vector<8x2xf32>
    %c5 = arith.constant 5 : index
    %c0_10 = arith.constant 0 : index
    %c0_11 = arith.constant 0 : index
    %22 = vector.load %arg1[%c5, %c0_10, %c0_11] : memref<20x8x2xf32, #tpu.memory_space<vmem>>, vector<1x8x2xf32>
    %23 = vector.shape_cast %22 : vector<1x8x2xf32> to vector<8x2xf32>
    %24 = arith.addf %19, %23 : vector<8x2xf32>
    %25 = arith.maximumf %20, %23 : vector<8x2xf32>
    %26 = arith.minimumf %21, %23 : vector<8x2xf32>
    %c6 = arith.constant 6 : index
    %c0_12 = arith.constant 0 : index
    %c0_13 = arith.constant 0 : index
    %27 = vector.load %arg1[%c6, %c0_12, %c0_13] : memref<20x8x2xf32, #tpu.memory_space<vmem>>, vector<1x8x2xf32>
    %28 = vector.shape_cast %27 : vector<1x8x2xf32> to vector<8x2xf32>
    %29 = arith.addf %24, %28 : vector<8x2xf32>
    %30 = arith.maximumf %25, %28 : vector<8x2xf32>
    %31 = arith.minimumf %26, %28 : vector<8x2xf32>
    %c7 = arith.constant 7 : index
    %c0_14 = arith.constant 0 : index
    %c0_15 = arith.constant 0 : index
    %32 = vector.load %arg1[%c7, %c0_14, %c0_15] : memref<20x8x2xf32, #tpu.memory_space<vmem>>, vector<1x8x2xf32>
    %33 = vector.shape_cast %32 : vector<1x8x2xf32> to vector<8x2xf32>
    %34 = arith.addf %29, %33 : vector<8x2xf32>
    %35 = arith.maximumf %30, %33 : vector<8x2xf32>
    %36 = arith.minimumf %31, %33 : vector<8x2xf32>
    %c8 = arith.constant 8 : index
    %c0_16 = arith.constant 0 : index
    %c0_17 = arith.constant 0 : index
    %37 = vector.load %arg1[%c8, %c0_16, %c0_17] : memref<20x8x2xf32, #tpu.memory_space<vmem>>, vector<1x8x2xf32>
    %38 = vector.shape_cast %37 : vector<1x8x2xf32> to vector<8x2xf32>
    %39 = arith.addf %34, %38 : vector<8x2xf32>
    %40 = arith.maximumf %35, %38 : vector<8x2xf32>
    %41 = arith.minimumf %36, %38 : vector<8x2xf32>
    %c9 = arith.constant 9 : index
    %c0_18 = arith.constant 0 : index
    %c0_19 = arith.constant 0 : index
    %42 = vector.load %arg1[%c9, %c0_18, %c0_19] : memref<20x8x2xf32, #tpu.memory_space<vmem>>, vector<1x8x2xf32>
    %43 = vector.shape_cast %42 : vector<1x8x2xf32> to vector<8x2xf32>
    %44 = arith.addf %39, %43 : vector<8x2xf32>
    %45 = arith.maximumf %40, %43 : vector<8x2xf32>
    %46 = arith.minimumf %41, %43 : vector<8x2xf32>
    %c10 = arith.constant 10 : index
    %c0_20 = arith.constant 0 : index
    %c0_21 = arith.constant 0 : index
    %47 = vector.load %arg1[%c10, %c0_20, %c0_21] : memref<20x8x2xf32, #tpu.memory_space<vmem>>, vector<1x8x2xf32>
    %48 = vector.shape_cast %47 : vector<1x8x2xf32> to vector<8x2xf32>
    %49 = arith.addf %44, %48 : vector<8x2xf32>
    %50 = arith.maximumf %45, %48 : vector<8x2xf32>
    %51 = arith.minimumf %46, %48 : vector<8x2xf32>
    %c11 = arith.constant 11 : index
    %c0_22 = arith.constant 0 : index
    %c0_23 = arith.constant 0 : index
    %52 = vector.load %arg1[%c11, %c0_22, %c0_23] : memref<20x8x2xf32, #tpu.memory_space<vmem>>, vector<1x8x2xf32>
    %53 = vector.shape_cast %52 : vector<1x8x2xf32> to vector<8x2xf32>
    %54 = arith.addf %49, %53 : vector<8x2xf32>
    %55 = arith.maximumf %50, %53 : vector<8x2xf32>
    %56 = arith.minimumf %51, %53 : vector<8x2xf32>
    %c12 = arith.constant 12 : index
    %c0_24 = arith.constant 0 : index
    %c0_25 = arith.constant 0 : index
    %57 = vector.load %arg1[%c12, %c0_24, %c0_25] : memref<20x8x2xf32, #tpu.memory_space<vmem>>, vector<1x8x2xf32>
    %58 = vector.shape_cast %57 : vector<1x8x2xf32> to vector<8x2xf32>
    %59 = arith.addf %54, %58 : vector<8x2xf32>
    %60 = arith.maximumf %55, %58 : vector<8x2xf32>
    %61 = arith.minimumf %56, %58 : vector<8x2xf32>
    %c13 = arith.constant 13 : index
    %c0_26 = arith.constant 0 : index
    %c0_27 = arith.constant 0 : index
    %62 = vector.load %arg1[%c13, %c0_26, %c0_27] : memref<20x8x2xf32, #tpu.memory_space<vmem>>, vector<1x8x2xf32>
    %63 = vector.shape_cast %62 : vector<1x8x2xf32> to vector<8x2xf32>
    %64 = arith.addf %59, %63 : vector<8x2xf32>
    %65 = arith.maximumf %60, %63 : vector<8x2xf32>
    %66 = arith.minimumf %61, %63 : vector<8x2xf32>
    %c14 = arith.constant 14 : index
    %c0_28 = arith.constant 0 : index
    %c0_29 = arith.constant 0 : index
    %67 = vector.load %arg1[%c14, %c0_28, %c0_29] : memref<20x8x2xf32, #tpu.memory_space<vmem>>, vector<1x8x2xf32>
    %68 = vector.shape_cast %67 : vector<1x8x2xf32> to vector<8x2xf32>
    %69 = arith.addf %64, %68 : vector<8x2xf32>
    %70 = arith.maximumf %65, %68 : vector<8x2xf32>
    %71 = arith.minimumf %66, %68 : vector<8x2xf32>
    %c15 = arith.constant 15 : index
    %c0_30 = arith.constant 0 : index
    %c0_31 = arith.constant 0 : index
    %72 = vector.load %arg1[%c15, %c0_30, %c0_31] : memref<20x8x2xf32, #tpu.memory_space<vmem>>, vector<1x8x2xf32>
    %73 = vector.shape_cast %72 : vector<1x8x2xf32> to vector<8x2xf32>
    %74 = arith.addf %69, %73 : vector<8x2xf32>
    %75 = arith.maximumf %70, %73 : vector<8x2xf32>
    %76 = arith.minimumf %71, %73 : vector<8x2xf32>
    %c16 = arith.constant 16 : index
    %c0_32 = arith.constant 0 : index
    %c0_33 = arith.constant 0 : index
    %77 = vector.load %arg1[%c16, %c0_32, %c0_33] : memref<20x8x2xf32, #tpu.memory_space<vmem>>, vector<1x8x2xf32>
    %78 = vector.shape_cast %77 : vector<1x8x2xf32> to vector<8x2xf32>
    %79 = arith.addf %74, %78 : vector<8x2xf32>
    %80 = arith.maximumf %75, %78 : vector<8x2xf32>
    %81 = arith.minimumf %76, %78 : vector<8x2xf32>
    %c17 = arith.constant 17 : index
    %c0_34 = arith.constant 0 : index
    %c0_35 = arith.constant 0 : index
    %82 = vector.load %arg1[%c17, %c0_34, %c0_35] : memref<20x8x2xf32, #tpu.memory_space<vmem>>, vector<1x8x2xf32>
    %83 = vector.shape_cast %82 : vector<1x8x2xf32> to vector<8x2xf32>
    %84 = arith.addf %79, %83 : vector<8x2xf32>
    %85 = arith.maximumf %80, %83 : vector<8x2xf32>
    %86 = arith.minimumf %81, %83 : vector<8x2xf32>
    %c18 = arith.constant 18 : index
    %c0_36 = arith.constant 0 : index
    %c0_37 = arith.constant 0 : index
    %87 = vector.load %arg1[%c18, %c0_36, %c0_37] : memref<20x8x2xf32, #tpu.memory_space<vmem>>, vector<1x8x2xf32>
    %88 = vector.shape_cast %87 : vector<1x8x2xf32> to vector<8x2xf32>
    %89 = arith.addf %84, %88 : vector<8x2xf32>
    %90 = arith.maximumf %85, %88 : vector<8x2xf32>
    %91 = arith.minimumf %86, %88 : vector<8x2xf32>
    %c19 = arith.constant 19 : index
    %c0_38 = arith.constant 0 : index
    %c0_39 = arith.constant 0 : index
    %92 = vector.load %arg1[%c19, %c0_38, %c0_39] : memref<20x8x2xf32, #tpu.memory_space<vmem>>, vector<1x8x2xf32>
    %93 = vector.shape_cast %92 : vector<1x8x2xf32> to vector<8x2xf32>
    %94 = arith.addf %89, %93 : vector<8x2xf32>
    %95 = arith.maximumf %90, %93 : vector<8x2xf32>
    %96 = arith.minimumf %91, %93 : vector<8x2xf32>
    %cst = arith.constant 5.000000e-02 : f32
    %97 = vector.broadcast %cst : f32 to vector<8x2xf32>
    %98 = arith.mulf %94, %97 : vector<8x2xf32>
    %cst_40 = arith.constant 0.000000e+00 : f32
    %99 = vector.broadcast %cst_40 : f32 to vector<8x2xf32>
    %c0_41 = arith.constant 0 : index
    %c0_42 = arith.constant 0 : index
    %c0_43 = arith.constant 0 : index
    %100 = vector.load %arg1[%c0_41, %c0_42, %c0_43] : memref<20x8x2xf32, #tpu.memory_space<vmem>>, vector<1x8x2xf32>
    %101 = vector.shape_cast %100 : vector<1x8x2xf32> to vector<8x2xf32>
    %102 = arith.subf %101, %98 : vector<8x2xf32>
    %103 = arith.mulf %102, %102 : vector<8x2xf32>
    %104 = arith.addf %99, %103 : vector<8x2xf32>
    %c1_44 = arith.constant 1 : index
    %c0_45 = arith.constant 0 : index
    %c0_46 = arith.constant 0 : index
    %105 = vector.load %arg1[%c1_44, %c0_45, %c0_46] : memref<20x8x2xf32, #tpu.memory_space<vmem>>, vector<1x8x2xf32>
    %106 = vector.shape_cast %105 : vector<1x8x2xf32> to vector<8x2xf32>
    %107 = arith.subf %106, %98 : vector<8x2xf32>
    %108 = arith.mulf %107, %107 : vector<8x2xf32>
    %109 = arith.addf %104, %108 : vector<8x2xf32>
    %c2_47 = arith.constant 2 : index
    %c0_48 = arith.constant 0 : index
    %c0_49 = arith.constant 0 : index
    %110 = vector.load %arg1[%c2_47, %c0_48, %c0_49] : memref<20x8x2xf32, #tpu.memory_space<vmem>>, vector<1x8x2xf32>
    %111 = vector.shape_cast %110 : vector<1x8x2xf32> to vector<8x2xf32>
    %112 = arith.subf %111, %98 : vector<8x2xf32>
    %113 = arith.mulf %112, %112 : vector<8x2xf32>
    %114 = arith.addf %109, %113 : vector<8x2xf32>
    %c3_50 = arith.constant 3 : index
    %c0_51 = arith.constant 0 : index
    %c0_52 = arith.constant 0 : index
    %115 = vector.load %arg1[%c3_50, %c0_51, %c0_52] : memref<20x8x2xf32, #tpu.memory_space<vmem>>, vector<1x8x2xf32>
    %116 = vector.shape_cast %115 : vector<1x8x2xf32> to vector<8x2xf32>
    %117 = arith.subf %116, %98 : vector<8x2xf32>
    %118 = arith.mulf %117, %117 : vector<8x2xf32>
    %119 = arith.addf %114, %118 : vector<8x2xf32>
    %c4_53 = arith.constant 4 : index
    %c0_54 = arith.constant 0 : index
    %c0_55 = arith.constant 0 : index
    %120 = vector.load %arg1[%c4_53, %c0_54, %c0_55] : memref<20x8x2xf32, #tpu.memory_space<vmem>>, vector<1x8x2xf32>
    %121 = vector.shape_cast %120 : vector<1x8x2xf32> to vector<8x2xf32>
    %122 = arith.subf %121, %98 : vector<8x2xf32>
    %123 = arith.mulf %122, %122 : vector<8x2xf32>
    %124 = arith.addf %119, %123 : vector<8x2xf32>
    %c5_56 = arith.constant 5 : index
    %c0_57 = arith.constant 0 : index
    %c0_58 = arith.constant 0 : index
    %125 = vector.load %arg1[%c5_56, %c0_57, %c0_58] : memref<20x8x2xf32, #tpu.memory_space<vmem>>, vector<1x8x2xf32>
    %126 = vector.shape_cast %125 : vector<1x8x2xf32> to vector<8x2xf32>
    %127 = arith.subf %126, %98 : vector<8x2xf32>
    %128 = arith.mulf %127, %127 : vector<8x2xf32>
    %129 = arith.addf %124, %128 : vector<8x2xf32>
    %c6_59 = arith.constant 6 : index
    %c0_60 = arith.constant 0 : index
    %c0_61 = arith.constant 0 : index
    %130 = vector.load %arg1[%c6_59, %c0_60, %c0_61] : memref<20x8x2xf32, #tpu.memory_space<vmem>>, vector<1x8x2xf32>
    %131 = vector.shape_cast %130 : vector<1x8x2xf32> to vector<8x2xf32>
    %132 = arith.subf %131, %98 : vector<8x2xf32>
    %133 = arith.mulf %132, %132 : vector<8x2xf32>
    %134 = arith.addf %129, %133 : vector<8x2xf32>
    %c7_62 = arith.constant 7 : index
    %c0_63 = arith.constant 0 : index
    %c0_64 = arith.constant 0 : index
    %135 = vector.load %arg1[%c7_62, %c0_63, %c0_64] : memref<20x8x2xf32, #tpu.memory_space<vmem>>, vector<1x8x2xf32>
    %136 = vector.shape_cast %135 : vector<1x8x2xf32> to vector<8x2xf32>
    %137 = arith.subf %136, %98 : vector<8x2xf32>
    %138 = arith.mulf %137, %137 : vector<8x2xf32>
    %139 = arith.addf %134, %138 : vector<8x2xf32>
    %c8_65 = arith.constant 8 : index
    %c0_66 = arith.constant 0 : index
    %c0_67 = arith.constant 0 : index
    %140 = vector.load %arg1[%c8_65, %c0_66, %c0_67] : memref<20x8x2xf32, #tpu.memory_space<vmem>>, vector<1x8x2xf32>
    %141 = vector.shape_cast %140 : vector<1x8x2xf32> to vector<8x2xf32>
    %142 = arith.subf %141, %98 : vector<8x2xf32>
    %143 = arith.mulf %142, %142 : vector<8x2xf32>
    %144 = arith.addf %139, %143 : vector<8x2xf32>
    %c9_68 = arith.constant 9 : index
    %c0_69 = arith.constant 0 : index
    %c0_70 = arith.constant 0 : index
    %145 = vector.load %arg1[%c9_68, %c0_69, %c0_70] : memref<20x8x2xf32, #tpu.memory_space<vmem>>, vector<1x8x2xf32>
    %146 = vector.shape_cast %145 : vector<1x8x2xf32> to vector<8x2xf32>
    %147 = arith.subf %146, %98 : vector<8x2xf32>
    %148 = arith.mulf %147, %147 : vector<8x2xf32>
    %149 = arith.addf %144, %148 : vector<8x2xf32>
    %c10_71 = arith.constant 10 : index
    %c0_72 = arith.constant 0 : index
    %c0_73 = arith.constant 0 : index
    %150 = vector.load %arg1[%c10_71, %c0_72, %c0_73] : memref<20x8x2xf32, #tpu.memory_space<vmem>>, vector<1x8x2xf32>
    %151 = vector.shape_cast %150 : vector<1x8x2xf32> to vector<8x2xf32>
    %152 = arith.subf %151, %98 : vector<8x2xf32>
    %153 = arith.mulf %152, %152 : vector<8x2xf32>
    %154 = arith.addf %149, %153 : vector<8x2xf32>
    %c11_74 = arith.constant 11 : index
    %c0_75 = arith.constant 0 : index
    %c0_76 = arith.constant 0 : index
    %155 = vector.load %arg1[%c11_74, %c0_75, %c0_76] : memref<20x8x2xf32, #tpu.memory_space<vmem>>, vector<1x8x2xf32>
    %156 = vector.shape_cast %155 : vector<1x8x2xf32> to vector<8x2xf32>
    %157 = arith.subf %156, %98 : vector<8x2xf32>
    %158 = arith.mulf %157, %157 : vector<8x2xf32>
    %159 = arith.addf %154, %158 : vector<8x2xf32>
    %c12_77 = arith.constant 12 : index
    %c0_78 = arith.constant 0 : index
    %c0_79 = arith.constant 0 : index
    %160 = vector.load %arg1[%c12_77, %c0_78, %c0_79] : memref<20x8x2xf32, #tpu.memory_space<vmem>>, vector<1x8x2xf32>
    %161 = vector.shape_cast %160 : vector<1x8x2xf32> to vector<8x2xf32>
    %162 = arith.subf %161, %98 : vector<8x2xf32>
    %163 = arith.mulf %162, %162 : vector<8x2xf32>
    %164 = arith.addf %159, %163 : vector<8x2xf32>
    %c13_80 = arith.constant 13 : index
    %c0_81 = arith.constant 0 : index
    %c0_82 = arith.constant 0 : index
    %165 = vector.load %arg1[%c13_80, %c0_81, %c0_82] : memref<20x8x2xf32, #tpu.memory_space<vmem>>, vector<1x8x2xf32>
    %166 = vector.shape_cast %165 : vector<1x8x2xf32> to vector<8x2xf32>
    %167 = arith.subf %166, %98 : vector<8x2xf32>
    %168 = arith.mulf %167, %167 : vector<8x2xf32>
    %169 = arith.addf %164, %168 : vector<8x2xf32>
    %c14_83 = arith.constant 14 : index
    %c0_84 = arith.constant 0 : index
    %c0_85 = arith.constant 0 : index
    %170 = vector.load %arg1[%c14_83, %c0_84, %c0_85] : memref<20x8x2xf32, #tpu.memory_space<vmem>>, vector<1x8x2xf32>
    %171 = vector.shape_cast %170 : vector<1x8x2xf32> to vector<8x2xf32>
    %172 = arith.subf %171, %98 : vector<8x2xf32>
    %173 = arith.mulf %172, %172 : vector<8x2xf32>
    %174 = arith.addf %169, %173 : vector<8x2xf32>
    %c15_86 = arith.constant 15 : index
    %c0_87 = arith.constant 0 : index
    %c0_88 = arith.constant 0 : index
    %175 = vector.load %arg1[%c15_86, %c0_87, %c0_88] : memref<20x8x2xf32, #tpu.memory_space<vmem>>, vector<1x8x2xf32>
    %176 = vector.shape_cast %175 : vector<1x8x2xf32> to vector<8x2xf32>
    %177 = arith.subf %176, %98 : vector<8x2xf32>
    %178 = arith.mulf %177, %177 : vector<8x2xf32>
    %179 = arith.addf %174, %178 : vector<8x2xf32>
    %c16_89 = arith.constant 16 : index
    %c0_90 = arith.constant 0 : index
    %c0_91 = arith.constant 0 : index
    %180 = vector.load %arg1[%c16_89, %c0_90, %c0_91] : memref<20x8x2xf32, #tpu.memory_space<vmem>>, vector<1x8x2xf32>
    %181 = vector.shape_cast %180 : vector<1x8x2xf32> to vector<8x2xf32>
    %182 = arith.subf %181, %98 : vector<8x2xf32>
    %183 = arith.mulf %182, %182 : vector<8x2xf32>
    %184 = arith.addf %179, %183 : vector<8x2xf32>
    %c17_92 = arith.constant 17 : index
    %c0_93 = arith.constant 0 : index
    %c0_94 = arith.constant 0 : index
    %185 = vector.load %arg1[%c17_92, %c0_93, %c0_94] : memref<20x8x2xf32, #tpu.memory_space<vmem>>, vector<1x8x2xf32>
    %186 = vector.shape_cast %185 : vector<1x8x2xf32> to vector<8x2xf32>
    %187 = arith.subf %186, %98 : vector<8x2xf32>
    %188 = arith.mulf %187, %187 : vector<8x2xf32>
    %189 = arith.addf %184, %188 : vector<8x2xf32>
    %c18_95 = arith.constant 18 : index
    %c0_96 = arith.constant 0 : index
    %c0_97 = arith.constant 0 : index
    %190 = vector.load %arg1[%c18_95, %c0_96, %c0_97] : memref<20x8x2xf32, #tpu.memory_space<vmem>>, vector<1x8x2xf32>
    %191 = vector.shape_cast %190 : vector<1x8x2xf32> to vector<8x2xf32>
    %192 = arith.subf %191, %98 : vector<8x2xf32>
    %193 = arith.mulf %192, %192 : vector<8x2xf32>
    %194 = arith.addf %189, %193 : vector<8x2xf32>
    %c19_98 = arith.constant 19 : index
    %c0_99 = arith.constant 0 : index
    %c0_100 = arith.constant 0 : index
    %195 = vector.load %arg1[%c19_98, %c0_99, %c0_100] : memref<20x8x2xf32, #tpu.memory_space<vmem>>, vector<1x8x2xf32>
    %196 = vector.shape_cast %195 : vector<1x8x2xf32> to vector<8x2xf32>
    %197 = arith.subf %196, %98 : vector<8x2xf32>
    %198 = arith.mulf %197, %197 : vector<8x2xf32>
    %199 = arith.addf %194, %198 : vector<8x2xf32>
    %cst_101 = arith.constant 0.0526315793 : f32
    %200 = vector.broadcast %cst_101 : f32 to vector<8x2xf32>
    %201 = arith.mulf %199, %200 : vector<8x2xf32>
    %c0_102 = arith.constant 0 : index
    %c0_103 = arith.constant 0 : index
    %c0_104 = arith.constant 0 : index
    %202 = vector.load %arg2[%c0_102, %c0_103, %c0_104] : memref<5x8x2xf32, #tpu.memory_space<vmem>>, vector<1x8x2xf32>
    %203 = vector.shape_cast %202 : vector<1x8x2xf32> to vector<8x2xf32>
    %204 = vector.shape_cast %98 : vector<8x2xf32> to vector<1x8x2xf32>
    tpu.vector_store %arg2[%c0_102, %c0_103, %c0_104], %204 {strides = array<i32>} : memref<5x8x2xf32, #tpu.memory_space<vmem>>, vector<1x8x2xf32>,
    %c1_105 = arith.constant 1 : index
    %c0_106 = arith.constant 0 : index
    %c0_107 = arith.constant 0 : index
    %205 = vector.load %arg2[%c1_105, %c0_106, %c0_107] : memref<5x8x2xf32, #tpu.memory_space<vmem>>, vector<1x8x2xf32>
    %206 = vector.shape_cast %205 : vector<1x8x2xf32> to vector<8x2xf32>
    %207 = vector.shape_cast %201 : vector<8x2xf32> to vector<1x8x2xf32>
    tpu.vector_store %arg2[%c1_105, %c0_106, %c0_107], %207 {strides = array<i32>} : memref<5x8x2xf32, #tpu.memory_space<vmem>>, vector<1x8x2xf32>,
    %c2_108 = arith.constant 2 : index
    %c0_109 = arith.constant 0 : index
    %c0_110 = arith.constant 0 : index
    %208 = vector.load %arg2[%c2_108, %c0_109, %c0_110] : memref<5x8x2xf32, #tpu.memory_space<vmem>>, vector<1x8x2xf32>
    %209 = vector.shape_cast %208 : vector<1x8x2xf32> to vector<8x2xf32>
    %210 = vector.shape_cast %95 : vector<8x2xf32> to vector<1x8x2xf32>
    tpu.vector_store %arg2[%c2_108, %c0_109, %c0_110], %210 {strides = array<i32>} : memref<5x8x2xf32, #tpu.memory_space<vmem>>, vector<1x8x2xf32>,
    %c3_111 = arith.constant 3 : index
    %c0_112 = arith.constant 0 : index
    %c0_113 = arith.constant 0 : index
    %211 = vector.load %arg2[%c3_111, %c0_112, %c0_113] : memref<5x8x2xf32, #tpu.memory_space<vmem>>, vector<1x8x2xf32>
    %212 = vector.shape_cast %211 : vector<1x8x2xf32> to vector<8x2xf32>
    %213 = vector.shape_cast %96 : vector<8x2xf32> to vector<1x8x2xf32>
    tpu.vector_store %arg2[%c3_111, %c0_112, %c0_113], %213 {strides = array<i32>} : memref<5x8x2xf32, #tpu.memory_space<vmem>>, vector<1x8x2xf32>,
    %cst_114 = arith.constant 0x7F800000 : f32
    %214 = vector.broadcast %cst_114 : f32 to vector<8x2xf32>
    %c0_115 = arith.constant 0 : index
    %c0_116 = arith.constant 0 : index
    %c0_117 = arith.constant 0 : index
    %215 = vector.load %arg1[%c0_115, %c0_116, %c0_117] : memref<20x8x2xf32, #tpu.memory_space<vmem>>, vector<1x8x2xf32>
    %216 = vector.shape_cast %215 : vector<1x8x2xf32> to vector<8x2xf32>
    %cst_118 = arith.constant 0.000000e+00 : f32
    %217 = vector.broadcast %cst_118 : f32 to vector<8x2xf32>
    %c0_119 = arith.constant 0 : index
    %c0_120 = arith.constant 0 : index
    %c0_121 = arith.constant 0 : index
    %218 = vector.load %arg1[%c0_119, %c0_120, %c0_121] : memref<20x8x2xf32, #tpu.memory_space<vmem>>, vector<1x8x2xf32>
    %219 = vector.shape_cast %218 : vector<1x8x2xf32> to vector<8x2xf32>
    %220 = arith.cmpf ole, %219, %216 : vector<8x2xf32>
    %221 = arith.extui %220 : vector<8x2xi1> to vector<8x2xi32>
    %222 = arith.sitofp %221 : vector<8x2xi32> to vector<8x2xf32>
    %223 = arith.addf %217, %222 : vector<8x2xf32>
    %c1_122 = arith.constant 1 : index
    %c0_123 = arith.constant 0 : index
    %c0_124 = arith.constant 0 : index
    %224 = vector.load %arg1[%c1_122, %c0_123, %c0_124] : memref<20x8x2xf32, #tpu.memory_space<vmem>>, vector<1x8x2xf32>
    %225 = vector.shape_cast %224 : vector<1x8x2xf32> to vector<8x2xf32>
    %226 = arith.cmpf ole, %225, %216 : vector<8x2xf32>
    %227 = arith.extui %226 : vector<8x2xi1> to vector<8x2xi32>
    %228 = arith.sitofp %227 : vector<8x2xi32> to vector<8x2xf32>
    %229 = arith.addf %223, %228 : vector<8x2xf32>
    %c2_125 = arith.constant 2 : index
    %c0_126 = arith.constant 0 : index
    %c0_127 = arith.constant 0 : index
    %230 = vector.load %arg1[%c2_125, %c0_126, %c0_127] : memref<20x8x2xf32, #tpu.memory_space<vmem>>, vector<1x8x2xf32>
    %231 = vector.shape_cast %230 : vector<1x8x2xf32> to vector<8x2xf32>
    %232 = arith.cmpf ole, %231, %216 : vector<8x2xf32>
    %233 = arith.extui %232 : vector<8x2xi1> to vector<8x2xi32>
    %234 = arith.sitofp %233 : vector<8x2xi32> to vector<8x2xf32>
    %235 = arith.addf %229, %234 : vector<8x2xf32>
    %c3_128 = arith.constant 3 : index
    %c0_129 = arith.constant 0 : index
    %c0_130 = arith.constant 0 : index
    %236 = vector.load %arg1[%c3_128, %c0_129, %c0_130] : memref<20x8x2xf32, #tpu.memory_space<vmem>>, vector<1x8x2xf32>
    %237 = vector.shape_cast %236 : vector<1x8x2xf32> to vector<8x2xf32>
    %238 = arith.cmpf ole, %237, %216 : vector<8x2xf32>
    %239 = arith.extui %238 : vector<8x2xi1> to vector<8x2xi32>
    %240 = arith.sitofp %239 : vector<8x2xi32> to vector<8x2xf32>
    %241 = arith.addf %235, %240 : vector<8x2xf32>
    %c4_131 = arith.constant 4 : index
    %c0_132 = arith.constant 0 : index
    %c0_133 = arith.constant 0 : index
    %242 = vector.load %arg1[%c4_131, %c0_132, %c0_133] : memref<20x8x2xf32, #tpu.memory_space<vmem>>, vector<1x8x2xf32>
    %243 = vector.shape_cast %242 : vector<1x8x2xf32> to vector<8x2xf32>
    %244 = arith.cmpf ole, %243, %216 : vector<8x2xf32>
    %245 = arith.extui %244 : vector<8x2xi1> to vector<8x2xi32>
    %246 = arith.sitofp %245 : vector<8x2xi32> to vector<8x2xf32>
    %247 = arith.addf %241, %246 : vector<8x2xf32>
    %c5_134 = arith.constant 5 : index
    %c0_135 = arith.constant 0 : index
    %c0_136 = arith.constant 0 : index
    %248 = vector.load %arg1[%c5_134, %c0_135, %c0_136] : memref<20x8x2xf32, #tpu.memory_space<vmem>>, vector<1x8x2xf32>
    %249 = vector.shape_cast %248 : vector<1x8x2xf32> to vector<8x2xf32>
    %250 = arith.cmpf ole, %249, %216 : vector<8x2xf32>
    %251 = arith.extui %250 : vector<8x2xi1> to vector<8x2xi32>
    %252 = arith.sitofp %251 : vector<8x2xi32> to vector<8x2xf32>
    %253 = arith.addf %247, %252 : vector<8x2xf32>
    %c6_137 = arith.constant 6 : index
    %c0_138 = arith.constant 0 : index
    %c0_139 = arith.constant 0 : index
    %254 = vector.load %arg1[%c6_137, %c0_138, %c0_139] : memref<20x8x2xf32, #tpu.memory_space<vmem>>, vector<1x8x2xf32>
    %255 = vector.shape_cast %254 : vector<1x8x2xf32> to vector<8x2xf32>
    %256 = arith.cmpf ole, %255, %216 : vector<8x2xf32>
    %257 = arith.extui %256 : vector<8x2xi1> to vector<8x2xi32>
    %258 = arith.sitofp %257 : vector<8x2xi32> to vector<8x2xf32>
    %259 = arith.addf %253, %258 : vector<8x2xf32>
    %c7_140 = arith.constant 7 : index
    %c0_141 = arith.constant 0 : index
    %c0_142 = arith.constant 0 : index
    %260 = vector.load %arg1[%c7_140, %c0_141, %c0_142] : memref<20x8x2xf32, #tpu.memory_space<vmem>>, vector<1x8x2xf32>
    %261 = vector.shape_cast %260 : vector<1x8x2xf32> to vector<8x2xf32>
    %262 = arith.cmpf ole, %261, %216 : vector<8x2xf32>
    %263 = arith.extui %262 : vector<8x2xi1> to vector<8x2xi32>
    %264 = arith.sitofp %263 : vector<8x2xi32> to vector<8x2xf32>
    %265 = arith.addf %259, %264 : vector<8x2xf32>
    %c8_143 = arith.constant 8 : index
    %c0_144 = arith.constant 0 : index
    %c0_145 = arith.constant 0 : index
    %266 = vector.load %arg1[%c8_143, %c0_144, %c0_145] : memref<20x8x2xf32, #tpu.memory_space<vmem>>, vector<1x8x2xf32>
    %267 = vector.shape_cast %266 : vector<1x8x2xf32> to vector<8x2xf32>
    %268 = arith.cmpf ole, %267, %216 : vector<8x2xf32>
    %269 = arith.extui %268 : vector<8x2xi1> to vector<8x2xi32>
    %270 = arith.sitofp %269 : vector<8x2xi32> to vector<8x2xf32>
    %271 = arith.addf %265, %270 : vector<8x2xf32>
    %c9_146 = arith.constant 9 : index
    %c0_147 = arith.constant 0 : index
    %c0_148 = arith.constant 0 : index
    %272 = vector.load %arg1[%c9_146, %c0_147, %c0_148] : memref<20x8x2xf32, #tpu.memory_space<vmem>>, vector<1x8x2xf32>
    %273 = vector.shape_cast %272 : vector<1x8x2xf32> to vector<8x2xf32>
    %274 = arith.cmpf ole, %273, %216 : vector<8x2xf32>
    %275 = arith.extui %274 : vector<8x2xi1> to vector<8x2xi32>
    %276 = arith.sitofp %275 : vector<8x2xi32> to vector<8x2xf32>
    %277 = arith.addf %271, %276 : vector<8x2xf32>
    %c10_149 = arith.constant 10 : index
    %c0_150 = arith.constant 0 : index
    %c0_151 = arith.constant 0 : index
    %278 = vector.load %arg1[%c10_149, %c0_150, %c0_151] : memref<20x8x2xf32, #tpu.memory_space<vmem>>, vector<1x8x2xf32>
    %279 = vector.shape_cast %278 : vector<1x8x2xf32> to vector<8x2xf32>
    %280 = arith.cmpf ole, %279, %216 : vector<8x2xf32>
    %281 = arith.extui %280 : vector<8x2xi1> to vector<8x2xi32>
    %282 = arith.sitofp %281 : vector<8x2xi32> to vector<8x2xf32>
    %283 = arith.addf %277, %282 : vector<8x2xf32>
    %c11_152 = arith.constant 11 : index
    %c0_153 = arith.constant 0 : index
    %c0_154 = arith.constant 0 : index
    %284 = vector.load %arg1[%c11_152, %c0_153, %c0_154] : memref<20x8x2xf32, #tpu.memory_space<vmem>>, vector<1x8x2xf32>
    %285 = vector.shape_cast %284 : vector<1x8x2xf32> to vector<8x2xf32>
    %286 = arith.cmpf ole, %285, %216 : vector<8x2xf32>
    %287 = arith.extui %286 : vector<8x2xi1> to vector<8x2xi32>
    %288 = arith.sitofp %287 : vector<8x2xi32> to vector<8x2xf32>
    %289 = arith.addf %283, %288 : vector<8x2xf32>
    %c12_155 = arith.constant 12 : index
    %c0_156 = arith.constant 0 : index
    %c0_157 = arith.constant 0 : index
    %290 = vector.load %arg1[%c12_155, %c0_156, %c0_157] : memref<20x8x2xf32, #tpu.memory_space<vmem>>, vector<1x8x2xf32>
    %291 = vector.shape_cast %290 : vector<1x8x2xf32> to vector<8x2xf32>
    %292 = arith.cmpf ole, %291, %216 : vector<8x2xf32>
    %293 = arith.extui %292 : vector<8x2xi1> to vector<8x2xi32>
    %294 = arith.sitofp %293 : vector<8x2xi32> to vector<8x2xf32>
    %295 = arith.addf %289, %294 : vector<8x2xf32>
    %c13_158 = arith.constant 13 : index
    %c0_159 = arith.constant 0 : index
    %c0_160 = arith.constant 0 : index
    %296 = vector.load %arg1[%c13_158, %c0_159, %c0_160] : memref<20x8x2xf32, #tpu.memory_space<vmem>>, vector<1x8x2xf32>
    %297 = vector.shape_cast %296 : vector<1x8x2xf32> to vector<8x2xf32>
    %298 = arith.cmpf ole, %297, %216 : vector<8x2xf32>
    %299 = arith.extui %298 : vector<8x2xi1> to vector<8x2xi32>
    %300 = arith.sitofp %299 : vector<8x2xi32> to vector<8x2xf32>
    %301 = arith.addf %295, %300 : vector<8x2xf32>
    %c14_161 = arith.constant 14 : index
    %c0_162 = arith.constant 0 : index
    %c0_163 = arith.constant 0 : index
    %302 = vector.load %arg1[%c14_161, %c0_162, %c0_163] : memref<20x8x2xf32, #tpu.memory_space<vmem>>, vector<1x8x2xf32>
    %303 = vector.shape_cast %302 : vector<1x8x2xf32> to vector<8x2xf32>
    %304 = arith.cmpf ole, %303, %216 : vector<8x2xf32>
    %305 = arith.extui %304 : vector<8x2xi1> to vector<8x2xi32>
    %306 = arith.sitofp %305 : vector<8x2xi32> to vector<8x2xf32>
    %307 = arith.addf %301, %306 : vector<8x2xf32>
    %c15_164 = arith.constant 15 : index
    %c0_165 = arith.constant 0 : index
    %c0_166 = arith.constant 0 : index
    %308 = vector.load %arg1[%c15_164, %c0_165, %c0_166] : memref<20x8x2xf32, #tpu.memory_space<vmem>>, vector<1x8x2xf32>
    %309 = vector.shape_cast %308 : vector<1x8x2xf32> to vector<8x2xf32>
    %310 = arith.cmpf ole, %309, %216 : vector<8x2xf32>
    %311 = arith.extui %310 : vector<8x2xi1> to vector<8x2xi32>
    %312 = arith.sitofp %311 : vector<8x2xi32> to vector<8x2xf32>
    %313 = arith.addf %307, %312 : vector<8x2xf32>
    %c16_167 = arith.constant 16 : index
    %c0_168 = arith.constant 0 : index
    %c0_169 = arith.constant 0 : index
    %314 = vector.load %arg1[%c16_167, %c0_168, %c0_169] : memref<20x8x2xf32, #tpu.memory_space<vmem>>, vector<1x8x2xf32>
    %315 = vector.shape_cast %314 : vector<1x8x2xf32> to vector<8x2xf32>
    %316 = arith.cmpf ole, %315, %216 : vector<8x2xf32>
    %317 = arith.extui %316 : vector<8x2xi1> to vector<8x2xi32>
    %318 = arith.sitofp %317 : vector<8x2xi32> to vector<8x2xf32>
    %319 = arith.addf %313, %318 : vector<8x2xf32>
    %c17_170 = arith.constant 17 : index
    %c0_171 = arith.constant 0 : index
    %c0_172 = arith.constant 0 : index
    %320 = vector.load %arg1[%c17_170, %c0_171, %c0_172] : memref<20x8x2xf32, #tpu.memory_space<vmem>>, vector<1x8x2xf32>
    %321 = vector.shape_cast %320 : vector<1x8x2xf32> to vector<8x2xf32>
    %322 = arith.cmpf ole, %321, %216 : vector<8x2xf32>
    %323 = arith.extui %322 : vector<8x2xi1> to vector<8x2xi32>
    %324 = arith.sitofp %323 : vector<8x2xi32> to vector<8x2xf32>
    %325 = arith.addf %319, %324 : vector<8x2xf32>
    %c18_173 = arith.constant 18 : index
    %c0_174 = arith.constant 0 : index
    %c0_175 = arith.constant 0 : index
    %326 = vector.load %arg1[%c18_173, %c0_174, %c0_175] : memref<20x8x2xf32, #tpu.memory_space<vmem>>, vector<1x8x2xf32>
    %327 = vector.shape_cast %326 : vector<1x8x2xf32> to vector<8x2xf32>
    %328 = arith.cmpf ole, %327, %216 : vector<8x2xf32>
    %329 = arith.extui %328 : vector<8x2xi1> to vector<8x2xi32>
    %330 = arith.sitofp %329 : vector<8x2xi32> to vector<8x2xf32>
    %331 = arith.addf %325, %330 : vector<8x2xf32>
    %c19_176 = arith.constant 19 : index
    %c0_177 = arith.constant 0 : index
    %c0_178 = arith.constant 0 : index
    %332 = vector.load %arg1[%c19_176, %c0_177, %c0_178] : memref<20x8x2xf32, #tpu.memory_space<vmem>>, vector<1x8x2xf32>
    %333 = vector.shape_cast %332 : vector<1x8x2xf32> to vector<8x2xf32>
    %334 = arith.cmpf ole, %333, %216 : vector<8x2xf32>
    %335 = arith.extui %334 : vector<8x2xi1> to vector<8x2xi32>
    %336 = arith.sitofp %335 : vector<8x2xi32> to vector<8x2xf32>
    %337 = arith.addf %331, %336 : vector<8x2xf32>
    %cst_179 = arith.constant 1.000000e+01 : f32
    %338 = vector.broadcast %cst_179 : f32 to vector<8x2xf32>
    %339 = arith.cmpf oge, %337, %338 : vector<8x2xf32>
    %cst_180 = arith.constant 0x7F800000 : f32
    %340 = vector.broadcast %cst_180 : f32 to vector<8x2xf32>
    %341 = arith.select %339, %216, %340 : vector<8x2xi1>, vector<8x2xf32>
    %342 = arith.minimumf %214, %341 : vector<8x2xf32>
    %c1_181 = arith.constant 1 : index
    %c0_182 = arith.constant 0 : index
    %c0_183 = arith.constant 0 : index
    %343 = vector.load %arg1[%c1_181, %c0_182, %c0_183] : memref<20x8x2xf32, #tpu.memory_space<vmem>>, vector<1x8x2xf32>
    %344 = vector.shape_cast %343 : vector<1x8x2xf32> to vector<8x2xf32>
    %cst_184 = arith.constant 0.000000e+00 : f32
    %345 = vector.broadcast %cst_184 : f32 to vector<8x2xf32>
    %c0_185 = arith.constant 0 : index
    %c0_186 = arith.constant 0 : index
    %c0_187 = arith.constant 0 : index
    %346 = vector.load %arg1[%c0_185, %c0_186, %c0_187] : memref<20x8x2xf32, #tpu.memory_space<vmem>>, vector<1x8x2xf32>
    %347 = vector.shape_cast %346 : vector<1x8x2xf32> to vector<8x2xf32>
    %348 = arith.cmpf ole, %347, %344 : vector<8x2xf32>
    %349 = arith.extui %348 : vector<8x2xi1> to vector<8x2xi32>
    %350 = arith.sitofp %349 : vector<8x2xi32> to vector<8x2xf32>
    %351 = arith.addf %345, %350 : vector<8x2xf32>
    %c1_188 = arith.constant 1 : index
    %c0_189 = arith.constant 0 : index
    %c0_190 = arith.constant 0 : index
    %352 = vector.load %arg1[%c1_188, %c0_189, %c0_190] : memref<20x8x2xf32, #tpu.memory_space<vmem>>, vector<1x8x2xf32>
    %353 = vector.shape_cast %352 : vector<1x8x2xf32> to vector<8x2xf32>
    %354 = arith.cmpf ole, %353, %344 : vector<8x2xf32>
    %355 = arith.extui %354 : vector<8x2xi1> to vector<8x2xi32>
    %356 = arith.sitofp %355 : vector<8x2xi32> to vector<8x2xf32>
    %357 = arith.addf %351, %356 : vector<8x2xf32>
    %c2_191 = arith.constant 2 : index
    %c0_192 = arith.constant 0 : index
    %c0_193 = arith.constant 0 : index
    %358 = vector.load %arg1[%c2_191, %c0_192, %c0_193] : memref<20x8x2xf32, #tpu.memory_space<vmem>>, vector<1x8x2xf32>
    %359 = vector.shape_cast %358 : vector<1x8x2xf32> to vector<8x2xf32>
    %360 = arith.cmpf ole, %359, %344 : vector<8x2xf32>
    %361 = arith.extui %360 : vector<8x2xi1> to vector<8x2xi32>
    %362 = arith.sitofp %361 : vector<8x2xi32> to vector<8x2xf32>
    %363 = arith.addf %357, %362 : vector<8x2xf32>
    %c3_194 = arith.constant 3 : index
    %c0_195 = arith.constant 0 : index
    %c0_196 = arith.constant 0 : index
    %364 = vector.load %arg1[%c3_194, %c0_195, %c0_196] : memref<20x8x2xf32, #tpu.memory_space<vmem>>, vector<1x8x2xf32>
    %365 = vector.shape_cast %364 : vector<1x8x2xf32> to vector<8x2xf32>
    %366 = arith.cmpf ole, %365, %344 : vector<8x2xf32>
    %367 = arith.extui %366 : vector<8x2xi1> to vector<8x2xi32>
    %368 = arith.sitofp %367 : vector<8x2xi32> to vector<8x2xf32>
    %369 = arith.addf %363, %368 : vector<8x2xf32>
    %c4_197 = arith.constant 4 : index
    %c0_198 = arith.constant 0 : index
    %c0_199 = arith.constant 0 : index
    %370 = vector.load %arg1[%c4_197, %c0_198, %c0_199] : memref<20x8x2xf32, #tpu.memory_space<vmem>>, vector<1x8x2xf32>
    %371 = vector.shape_cast %370 : vector<1x8x2xf32> to vector<8x2xf32>
    %372 = arith.cmpf ole, %371, %344 : vector<8x2xf32>
    %373 = arith.extui %372 : vector<8x2xi1> to vector<8x2xi32>
    %374 = arith.sitofp %373 : vector<8x2xi32> to vector<8x2xf32>
    %375 = arith.addf %369, %374 : vector<8x2xf32>
    %c5_200 = arith.constant 5 : index
    %c0_201 = arith.constant 0 : index
    %c0_202 = arith.constant 0 : index
    %376 = vector.load %arg1[%c5_200, %c0_201, %c0_202] : memref<20x8x2xf32, #tpu.memory_space<vmem>>, vector<1x8x2xf32>
    %377 = vector.shape_cast %376 : vector<1x8x2xf32> to vector<8x2xf32>
    %378 = arith.cmpf ole, %377, %344 : vector<8x2xf32>
    %379 = arith.extui %378 : vector<8x2xi1> to vector<8x2xi32>
    %380 = arith.sitofp %379 : vector<8x2xi32> to vector<8x2xf32>
    %381 = arith.addf %375, %380 : vector<8x2xf32>
    %c6_203 = arith.constant 6 : index
    %c0_204 = arith.constant 0 : index
    %c0_205 = arith.constant 0 : index
    %382 = vector.load %arg1[%c6_203, %c0_204, %c0_205] : memref<20x8x2xf32, #tpu.memory_space<vmem>>, vector<1x8x2xf32>
    %383 = vector.shape_cast %382 : vector<1x8x2xf32> to vector<8x2xf32>
    %384 = arith.cmpf ole, %383, %344 : vector<8x2xf32>
    %385 = arith.extui %384 : vector<8x2xi1> to vector<8x2xi32>
    %386 = arith.sitofp %385 : vector<8x2xi32> to vector<8x2xf32>
    %387 = arith.addf %381, %386 : vector<8x2xf32>
    %c7_206 = arith.constant 7 : index
    %c0_207 = arith.constant 0 : index
    %c0_208 = arith.constant 0 : index
    %388 = vector.load %arg1[%c7_206, %c0_207, %c0_208] : memref<20x8x2xf32, #tpu.memory_space<vmem>>, vector<1x8x2xf32>
    %389 = vector.shape_cast %388 : vector<1x8x2xf32> to vector<8x2xf32>
    %390 = arith.cmpf ole, %389, %344 : vector<8x2xf32>
    %391 = arith.extui %390 : vector<8x2xi1> to vector<8x2xi32>
    %392 = arith.sitofp %391 : vector<8x2xi32> to vector<8x2xf32>
    %393 = arith.addf %387, %392 : vector<8x2xf32>
    %c8_209 = arith.constant 8 : index
    %c0_210 = arith.constant 0 : index
    %c0_211 = arith.constant 0 : index
    %394 = vector.load %arg1[%c8_209, %c0_210, %c0_211] : memref<20x8x2xf32, #tpu.memory_space<vmem>>, vector<1x8x2xf32>
    %395 = vector.shape_cast %394 : vector<1x8x2xf32> to vector<8x2xf32>
    %396 = arith.cmpf ole, %395, %344 : vector<8x2xf32>
    %397 = arith.extui %396 : vector<8x2xi1> to vector<8x2xi32>
    %398 = arith.sitofp %397 : vector<8x2xi32> to vector<8x2xf32>
    %399 = arith.addf %393, %398 : vector<8x2xf32>
    %c9_212 = arith.constant 9 : index
    %c0_213 = arith.constant 0 : index
    %c0_214 = arith.constant 0 : index
    %400 = vector.load %arg1[%c9_212, %c0_213, %c0_214] : memref<20x8x2xf32, #tpu.memory_space<vmem>>, vector<1x8x2xf32>
    %401 = vector.shape_cast %400 : vector<1x8x2xf32> to vector<8x2xf32>
    %402 = arith.cmpf ole, %401, %344 : vector<8x2xf32>
    %403 = arith.extui %402 : vector<8x2xi1> to vector<8x2xi32>
    %404 = arith.sitofp %403 : vector<8x2xi32> to vector<8x2xf32>
    %405 = arith.addf %399, %404 : vector<8x2xf32>
    %c10_215 = arith.constant 10 : index
    %c0_216 = arith.constant 0 : index
    %c0_217 = arith.constant 0 : index
    %406 = vector.load %arg1[%c10_215, %c0_216, %c0_217] : memref<20x8x2xf32, #tpu.memory_space<vmem>>, vector<1x8x2xf32>
    %407 = vector.shape_cast %406 : vector<1x8x2xf32> to vector<8x2xf32>
    %408 = arith.cmpf ole, %407, %344 : vector<8x2xf32>
    %409 = arith.extui %408 : vector<8x2xi1> to vector<8x2xi32>
    %410 = arith.sitofp %409 : vector<8x2xi32> to vector<8x2xf32>
    %411 = arith.addf %405, %410 : vector<8x2xf32>
    %c11_218 = arith.constant 11 : index
    %c0_219 = arith.constant 0 : index
    %c0_220 = arith.constant 0 : index
    %412 = vector.load %arg1[%c11_218, %c0_219, %c0_220] : memref<20x8x2xf32, #tpu.memory_space<vmem>>, vector<1x8x2xf32>
    %413 = vector.shape_cast %412 : vector<1x8x2xf32> to vector<8x2xf32>
    %414 = arith.cmpf ole, %413, %344 : vector<8x2xf32>
    %415 = arith.extui %414 : vector<8x2xi1> to vector<8x2xi32>
    %416 = arith.sitofp %415 : vector<8x2xi32> to vector<8x2xf32>
    %417 = arith.addf %411, %416 : vector<8x2xf32>
    %c12_221 = arith.constant 12 : index
    %c0_222 = arith.constant 0 : index
    %c0_223 = arith.constant 0 : index
    %418 = vector.load %arg1[%c12_221, %c0_222, %c0_223] : memref<20x8x2xf32, #tpu.memory_space<vmem>>, vector<1x8x2xf32>
    %419 = vector.shape_cast %418 : vector<1x8x2xf32> to vector<8x2xf32>
    %420 = arith.cmpf ole, %419, %344 : vector<8x2xf32>
    %421 = arith.extui %420 : vector<8x2xi1> to vector<8x2xi32>
    %422 = arith.sitofp %421 : vector<8x2xi32> to vector<8x2xf32>
    %423 = arith.addf %417, %422 : vector<8x2xf32>
    %c13_224 = arith.constant 13 : index
    %c0_225 = arith.constant 0 : index
    %c0_226 = arith.constant 0 : index
    %424 = vector.load %arg1[%c13_224, %c0_225, %c0_226] : memref<20x8x2xf32, #tpu.memory_space<vmem>>, vector<1x8x2xf32>
    %425 = vector.shape_cast %424 : vector<1x8x2xf32> to vector<8x2xf32>
    %426 = arith.cmpf ole, %425, %344 : vector<8x2xf32>
    %427 = arith.extui %426 : vector<8x2xi1> to vector<8x2xi32>
    %428 = arith.sitofp %427 : vector<8x2xi32> to vector<8x2xf32>
    %429 = arith.addf %423, %428 : vector<8x2xf32>
    %c14_227 = arith.constant 14 : index
    %c0_228 = arith.constant 0 : index
    %c0_229 = arith.constant 0 : index
    %430 = vector.load %arg1[%c14_227, %c0_228, %c0_229] : memref<20x8x2xf32, #tpu.memory_space<vmem>>, vector<1x8x2xf32>
    %431 = vector.shape_cast %430 : vector<1x8x2xf32> to vector<8x2xf32>
    %432 = arith.cmpf ole, %431, %344 : vector<8x2xf32>
    %433 = arith.extui %432 : vector<8x2xi1> to vector<8x2xi32>
    %434 = arith.sitofp %433 : vector<8x2xi32> to vector<8x2xf32>
    %435 = arith.addf %429, %434 : vector<8x2xf32>
    %c15_230 = arith.constant 15 : index
    %c0_231 = arith.constant 0 : index
    %c0_232 = arith.constant 0 : index
    %436 = vector.load %arg1[%c15_230, %c0_231, %c0_232] : memref<20x8x2xf32, #tpu.memory_space<vmem>>, vector<1x8x2xf32>
    %437 = vector.shape_cast %436 : vector<1x8x2xf32> to vector<8x2xf32>
    %438 = arith.cmpf ole, %437, %344 : vector<8x2xf32>
    %439 = arith.extui %438 : vector<8x2xi1> to vector<8x2xi32>
    %440 = arith.sitofp %439 : vector<8x2xi32> to vector<8x2xf32>
    %441 = arith.addf %435, %440 : vector<8x2xf32>
    %c16_233 = arith.constant 16 : index
    %c0_234 = arith.constant 0 : index
    %c0_235 = arith.constant 0 : index
    %442 = vector.load %arg1[%c16_233, %c0_234, %c0_235] : memref<20x8x2xf32, #tpu.memory_space<vmem>>, vector<1x8x2xf32>
    %443 = vector.shape_cast %442 : vector<1x8x2xf32> to vector<8x2xf32>
    %444 = arith.cmpf ole, %443, %344 : vector<8x2xf32>
    %445 = arith.extui %444 : vector<8x2xi1> to vector<8x2xi32>
    %446 = arith.sitofp %445 : vector<8x2xi32> to vector<8x2xf32>
    %447 = arith.addf %441, %446 : vector<8x2xf32>
    %c17_236 = arith.constant 17 : index
    %c0_237 = arith.constant 0 : index
    %c0_238 = arith.constant 0 : index
    %448 = vector.load %arg1[%c17_236, %c0_237, %c0_238] : memref<20x8x2xf32, #tpu.memory_space<vmem>>, vector<1x8x2xf32>
    %449 = vector.shape_cast %448 : vector<1x8x2xf32> to vector<8x2xf32>
    %450 = arith.cmpf ole, %449, %344 : vector<8x2xf32>
    %451 = arith.extui %450 : vector<8x2xi1> to vector<8x2xi32>
    %452 = arith.sitofp %451 : vector<8x2xi32> to vector<8x2xf32>
    %453 = arith.addf %447, %452 : vector<8x2xf32>
    %c18_239 = arith.constant 18 : index
    %c0_240 = arith.constant 0 : index
    %c0_241 = arith.constant 0 : index
    %454 = vector.load %arg1[%c18_239, %c0_240, %c0_241] : memref<20x8x2xf32, #tpu.memory_space<vmem>>, vector<1x8x2xf32>
    %455 = vector.shape_cast %454 : vector<1x8x2xf32> to vector<8x2xf32>
    %456 = arith.cmpf ole, %455, %344 : vector<8x2xf32>
    %457 = arith.extui %456 : vector<8x2xi1> to vector<8x2xi32>
    %458 = arith.sitofp %457 : vector<8x2xi32> to vector<8x2xf32>
    %459 = arith.addf %453, %458 : vector<8x2xf32>
    %c19_242 = arith.constant 19 : index
    %c0_243 = arith.constant 0 : index
    %c0_244 = arith.constant 0 : index
    %460 = vector.load %arg1[%c19_242, %c0_243, %c0_244] : memref<20x8x2xf32, #tpu.memory_space<vmem>>, vector<1x8x2xf32>
    %461 = vector.shape_cast %460 : vector<1x8x2xf32> to vector<8x2xf32>
    %462 = arith.cmpf ole, %461, %344 : vector<8x2xf32>
    %463 = arith.extui %462 : vector<8x2xi1> to vector<8x2xi32>
    %464 = arith.sitofp %463 : vector<8x2xi32> to vector<8x2xf32>
    %465 = arith.addf %459, %464 : vector<8x2xf32>
    %cst_245 = arith.constant 1.000000e+01 : f32
    %466 = vector.broadcast %cst_245 : f32 to vector<8x2xf32>
    %467 = arith.cmpf oge, %465, %466 : vector<8x2xf32>
    %cst_246 = arith.constant 0x7F800000 : f32
    %468 = vector.broadcast %cst_246 : f32 to vector<8x2xf32>
    %469 = arith.select %467, %344, %468 : vector<8x2xi1>, vector<8x2xf32>
    %470 = arith.minimumf %342, %469 : vector<8x2xf32>
    %c2_247 = arith.constant 2 : index
    %c0_248 = arith.constant 0 : index
    %c0_249 = arith.constant 0 : index
    %471 = vector.load %arg1[%c2_247, %c0_248, %c0_249] : memref<20x8x2xf32, #tpu.memory_space<vmem>>, vector<1x8x2xf32>
    %472 = vector.shape_cast %471 : vector<1x8x2xf32> to vector<8x2xf32>
    %cst_250 = arith.constant 0.000000e+00 : f32
    %473 = vector.broadcast %cst_250 : f32 to vector<8x2xf32>
    %c0_251 = arith.constant 0 : index
    %c0_252 = arith.constant 0 : index
    %c0_253 = arith.constant 0 : index
    %474 = vector.load %arg1[%c0_251, %c0_252, %c0_253] : memref<20x8x2xf32, #tpu.memory_space<vmem>>, vector<1x8x2xf32>
    %475 = vector.shape_cast %474 : vector<1x8x2xf32> to vector<8x2xf32>
    %476 = arith.cmpf ole, %475, %472 : vector<8x2xf32>
    %477 = arith.extui %476 : vector<8x2xi1> to vector<8x2xi32>
    %478 = arith.sitofp %477 : vector<8x2xi32> to vector<8x2xf32>
    %479 = arith.addf %473, %478 : vector<8x2xf32>
    %c1_254 = arith.constant 1 : index
    %c0_255 = arith.constant 0 : index
    %c0_256 = arith.constant 0 : index
    %480 = vector.load %arg1[%c1_254, %c0_255, %c0_256] : memref<20x8x2xf32, #tpu.memory_space<vmem>>, vector<1x8x2xf32>
    %481 = vector.shape_cast %480 : vector<1x8x2xf32> to vector<8x2xf32>
    %482 = arith.cmpf ole, %481, %472 : vector<8x2xf32>
    %483 = arith.extui %482 : vector<8x2xi1> to vector<8x2xi32>
    %484 = arith.sitofp %483 : vector<8x2xi32> to vector<8x2xf32>
    %485 = arith.addf %479, %484 : vector<8x2xf32>
    %c2_257 = arith.constant 2 : index
    %c0_258 = arith.constant 0 : index
    %c0_259 = arith.constant 0 : index
    %486 = vector.load %arg1[%c2_257, %c0_258, %c0_259] : memref<20x8x2xf32, #tpu.memory_space<vmem>>, vector<1x8x2xf32>
    %487 = vector.shape_cast %486 : vector<1x8x2xf32> to vector<8x2xf32>
    %488 = arith.cmpf ole, %487, %472 : vector<8x2xf32>
    %489 = arith.extui %488 : vector<8x2xi1> to vector<8x2xi32>
    %490 = arith.sitofp %489 : vector<8x2xi32> to vector<8x2xf32>
    %491 = arith.addf %485, %490 : vector<8x2xf32>
    %c3_260 = arith.constant 3 : index
    %c0_261 = arith.constant 0 : index
    %c0_262 = arith.constant 0 : index
    %492 = vector.load %arg1[%c3_260, %c0_261, %c0_262] : memref<20x8x2xf32, #tpu.memory_space<vmem>>, vector<1x8x2xf32>
    %493 = vector.shape_cast %492 : vector<1x8x2xf32> to vector<8x2xf32>
    %494 = arith.cmpf ole, %493, %472 : vector<8x2xf32>
    %495 = arith.extui %494 : vector<8x2xi1> to vector<8x2xi32>
    %496 = arith.sitofp %495 : vector<8x2xi32> to vector<8x2xf32>
    %497 = arith.addf %491, %496 : vector<8x2xf32>
    %c4_263 = arith.constant 4 : index
    %c0_264 = arith.constant 0 : index
    %c0_265 = arith.constant 0 : index
    %498 = vector.load %arg1[%c4_263, %c0_264, %c0_265] : memref<20x8x2xf32, #tpu.memory_space<vmem>>, vector<1x8x2xf32>
    %499 = vector.shape_cast %498 : vector<1x8x2xf32> to vector<8x2xf32>
    %500 = arith.cmpf ole, %499, %472 : vector<8x2xf32>
    %501 = arith.extui %500 : vector<8x2xi1> to vector<8x2xi32>
    %502 = arith.sitofp %501 : vector<8x2xi32> to vector<8x2xf32>
    %503 = arith.addf %497, %502 : vector<8x2xf32>
    %c5_266 = arith.constant 5 : index
    %c0_267 = arith.constant 0 : index
    %c0_268 = arith.constant 0 : index
    %504 = vector.load %arg1[%c5_266, %c0_267, %c0_268] : memref<20x8x2xf32, #tpu.memory_space<vmem>>, vector<1x8x2xf32>
    %505 = vector.shape_cast %504 : vector<1x8x2xf32> to vector<8x2xf32>
    %506 = arith.cmpf ole, %505, %472 : vector<8x2xf32>
    %507 = arith.extui %506 : vector<8x2xi1> to vector<8x2xi32>
    %508 = arith.sitofp %507 : vector<8x2xi32> to vector<8x2xf32>
    %509 = arith.addf %503, %508 : vector<8x2xf32>
    %c6_269 = arith.constant 6 : index
    %c0_270 = arith.constant 0 : index
    %c0_271 = arith.constant 0 : index
    %510 = vector.load %arg1[%c6_269, %c0_270, %c0_271] : memref<20x8x2xf32, #tpu.memory_space<vmem>>, vector<1x8x2xf32>
    %511 = vector.shape_cast %510 : vector<1x8x2xf32> to vector<8x2xf32>
    %512 = arith.cmpf ole, %511, %472 : vector<8x2xf32>
    %513 = arith.extui %512 : vector<8x2xi1> to vector<8x2xi32>
    %514 = arith.sitofp %513 : vector<8x2xi32> to vector<8x2xf32>
    %515 = arith.addf %509, %514 : vector<8x2xf32>
    %c7_272 = arith.constant 7 : index
    %c0_273 = arith.constant 0 : index
    %c0_274 = arith.constant 0 : index
    %516 = vector.load %arg1[%c7_272, %c0_273, %c0_274] : memref<20x8x2xf32, #tpu.memory_space<vmem>>, vector<1x8x2xf32>
    %517 = vector.shape_cast %516 : vector<1x8x2xf32> to vector<8x2xf32>
    %518 = arith.cmpf ole, %517, %472 : vector<8x2xf32>
    %519 = arith.extui %518 : vector<8x2xi1> to vector<8x2xi32>
    %520 = arith.sitofp %519 : vector<8x2xi32> to vector<8x2xf32>
    %521 = arith.addf %515, %520 : vector<8x2xf32>
    %c8_275 = arith.constant 8 : index
    %c0_276 = arith.constant 0 : index
    %c0_277 = arith.constant 0 : index
    %522 = vector.load %arg1[%c8_275, %c0_276, %c0_277] : memref<20x8x2xf32, #tpu.memory_space<vmem>>, vector<1x8x2xf32>
    %523 = vector.shape_cast %522 : vector<1x8x2xf32> to vector<8x2xf32>
    %524 = arith.cmpf ole, %523, %472 : vector<8x2xf32>
    %525 = arith.extui %524 : vector<8x2xi1> to vector<8x2xi32>
    %526 = arith.sitofp %525 : vector<8x2xi32> to vector<8x2xf32>
    %527 = arith.addf %521, %526 : vector<8x2xf32>
    %c9_278 = arith.constant 9 : index
    %c0_279 = arith.constant 0 : index
    %c0_280 = arith.constant 0 : index
    %528 = vector.load %arg1[%c9_278, %c0_279, %c0_280] : memref<20x8x2xf32, #tpu.memory_space<vmem>>, vector<1x8x2xf32>
    %529 = vector.shape_cast %528 : vector<1x8x2xf32> to vector<8x2xf32>
    %530 = arith.cmpf ole, %529, %472 : vector<8x2xf32>
    %531 = arith.extui %530 : vector<8x2xi1> to vector<8x2xi32>
    %532 = arith.sitofp %531 : vector<8x2xi32> to vector<8x2xf32>
    %533 = arith.addf %527, %532 : vector<8x2xf32>
    %c10_281 = arith.constant 10 : index
    %c0_282 = arith.constant 0 : index
    %c0_283 = arith.constant 0 : index
    %534 = vector.load %arg1[%c10_281, %c0_282, %c0_283] : memref<20x8x2xf32, #tpu.memory_space<vmem>>, vector<1x8x2xf32>
    %535 = vector.shape_cast %534 : vector<1x8x2xf32> to vector<8x2xf32>
    %536 = arith.cmpf ole, %535, %472 : vector<8x2xf32>
    %537 = arith.extui %536 : vector<8x2xi1> to vector<8x2xi32>
    %538 = arith.sitofp %537 : vector<8x2xi32> to vector<8x2xf32>
    %539 = arith.addf %533, %538 : vector<8x2xf32>
    %c11_284 = arith.constant 11 : index
    %c0_285 = arith.constant 0 : index
    %c0_286 = arith.constant 0 : index
    %540 = vector.load %arg1[%c11_284, %c0_285, %c0_286] : memref<20x8x2xf32, #tpu.memory_space<vmem>>, vector<1x8x2xf32>
    %541 = vector.shape_cast %540 : vector<1x8x2xf32> to vector<8x2xf32>
    %542 = arith.cmpf ole, %541, %472 : vector<8x2xf32>
    %543 = arith.extui %542 : vector<8x2xi1> to vector<8x2xi32>
    %544 = arith.sitofp %543 : vector<8x2xi32> to vector<8x2xf32>
    %545 = arith.addf %539, %544 : vector<8x2xf32>
    %c12_287 = arith.constant 12 : index
    %c0_288 = arith.constant 0 : index
    %c0_289 = arith.constant 0 : index
    %546 = vector.load %arg1[%c12_287, %c0_288, %c0_289] : memref<20x8x2xf32, #tpu.memory_space<vmem>>, vector<1x8x2xf32>
    %547 = vector.shape_cast %546 : vector<1x8x2xf32> to vector<8x2xf32>
    %548 = arith.cmpf ole, %547, %472 : vector<8x2xf32>
    %549 = arith.extui %548 : vector<8x2xi1> to vector<8x2xi32>
    %550 = arith.sitofp %549 : vector<8x2xi32> to vector<8x2xf32>
    %551 = arith.addf %545, %550 : vector<8x2xf32>
    %c13_290 = arith.constant 13 : index
    %c0_291 = arith.constant 0 : index
    %c0_292 = arith.constant 0 : index
    %552 = vector.load %arg1[%c13_290, %c0_291, %c0_292] : memref<20x8x2xf32, #tpu.memory_space<vmem>>, vector<1x8x2xf32>
    %553 = vector.shape_cast %552 : vector<1x8x2xf32> to vector<8x2xf32>
    %554 = arith.cmpf ole, %553, %472 : vector<8x2xf32>
    %555 = arith.extui %554 : vector<8x2xi1> to vector<8x2xi32>
    %556 = arith.sitofp %555 : vector<8x2xi32> to vector<8x2xf32>
    %557 = arith.addf %551, %556 : vector<8x2xf32>
    %c14_293 = arith.constant 14 : index
    %c0_294 = arith.constant 0 : index
    %c0_295 = arith.constant 0 : index
    %558 = vector.load %arg1[%c14_293, %c0_294, %c0_295] : memref<20x8x2xf32, #tpu.memory_space<vmem>>, vector<1x8x2xf32>
    %559 = vector.shape_cast %558 : vector<1x8x2xf32> to vector<8x2xf32>
    %560 = arith.cmpf ole, %559, %472 : vector<8x2xf32>
    %561 = arith.extui %560 : vector<8x2xi1> to vector<8x2xi32>
    %562 = arith.sitofp %561 : vector<8x2xi32> to vector<8x2xf32>
    %563 = arith.addf %557, %562 : vector<8x2xf32>
    %c15_296 = arith.constant 15 : index
    %c0_297 = arith.constant 0 : index
    %c0_298 = arith.constant 0 : index
    %564 = vector.load %arg1[%c15_296, %c0_297, %c0_298] : memref<20x8x2xf32, #tpu.memory_space<vmem>>, vector<1x8x2xf32>
    %565 = vector.shape_cast %564 : vector<1x8x2xf32> to vector<8x2xf32>
    %566 = arith.cmpf ole, %565, %472 : vector<8x2xf32>
    %567 = arith.extui %566 : vector<8x2xi1> to vector<8x2xi32>
    %568 = arith.sitofp %567 : vector<8x2xi32> to vector<8x2xf32>
    %569 = arith.addf %563, %568 : vector<8x2xf32>
    %c16_299 = arith.constant 16 : index
    %c0_300 = arith.constant 0 : index
    %c0_301 = arith.constant 0 : index
    %570 = vector.load %arg1[%c16_299, %c0_300, %c0_301] : memref<20x8x2xf32, #tpu.memory_space<vmem>>, vector<1x8x2xf32>
    %571 = vector.shape_cast %570 : vector<1x8x2xf32> to vector<8x2xf32>
    %572 = arith.cmpf ole, %571, %472 : vector<8x2xf32>
    %573 = arith.extui %572 : vector<8x2xi1> to vector<8x2xi32>
    %574 = arith.sitofp %573 : vector<8x2xi32> to vector<8x2xf32>
    %575 = arith.addf %569, %574 : vector<8x2xf32>
    %c17_302 = arith.constant 17 : index
    %c0_303 = arith.constant 0 : index
    %c0_304 = arith.constant 0 : index
    %576 = vector.load %arg1[%c17_302, %c0_303, %c0_304] : memref<20x8x2xf32, #tpu.memory_space<vmem>>, vector<1x8x2xf32>
    %577 = vector.shape_cast %576 : vector<1x8x2xf32> to vector<8x2xf32>
    %578 = arith.cmpf ole, %577, %472 : vector<8x2xf32>
    %579 = arith.extui %578 : vector<8x2xi1> to vector<8x2xi32>
    %580 = arith.sitofp %579 : vector<8x2xi32> to vector<8x2xf32>
    %581 = arith.addf %575, %580 : vector<8x2xf32>
    %c18_305 = arith.constant 18 : index
    %c0_306 = arith.constant 0 : index
    %c0_307 = arith.constant 0 : index
    %582 = vector.load %arg1[%c18_305, %c0_306, %c0_307] : memref<20x8x2xf32, #tpu.memory_space<vmem>>, vector<1x8x2xf32>
    %583 = vector.shape_cast %582 : vector<1x8x2xf32> to vector<8x2xf32>
    %584 = arith.cmpf ole, %583, %472 : vector<8x2xf32>
    %585 = arith.extui %584 : vector<8x2xi1> to vector<8x2xi32>
    %586 = arith.sitofp %585 : vector<8x2xi32> to vector<8x2xf32>
    %587 = arith.addf %581, %586 : vector<8x2xf32>
    %c19_308 = arith.constant 19 : index
    %c0_309 = arith.constant 0 : index
    %c0_310 = arith.constant 0 : index
    %588 = vector.load %arg1[%c19_308, %c0_309, %c0_310] : memref<20x8x2xf32, #tpu.memory_space<vmem>>, vector<1x8x2xf32>
    %589 = vector.shape_cast %588 : vector<1x8x2xf32> to vector<8x2xf32>
    %590 = arith.cmpf ole, %589, %472 : vector<8x2xf32>
    %591 = arith.extui %590 : vector<8x2xi1> to vector<8x2xi32>
    %592 = arith.sitofp %591 : vector<8x2xi32> to vector<8x2xf32>
    %593 = arith.addf %587, %592 : vector<8x2xf32>
    %cst_311 = arith.constant 1.000000e+01 : f32
    %594 = vector.broadcast %cst_311 : f32 to vector<8x2xf32>
    %595 = arith.cmpf oge, %593, %594 : vector<8x2xf32>
    %cst_312 = arith.constant 0x7F800000 : f32
    %596 = vector.broadcast %cst_312 : f32 to vector<8x2xf32>
    %597 = arith.select %595, %472, %596 : vector<8x2xi1>, vector<8x2xf32>
    %598 = arith.minimumf %470, %597 : vector<8x2xf32>
    %c3_313 = arith.constant 3 : index
    %c0_314 = arith.constant 0 : index
    %c0_315 = arith.constant 0 : index
    %599 = vector.load %arg1[%c3_313, %c0_314, %c0_315] : memref<20x8x2xf32, #tpu.memory_space<vmem>>, vector<1x8x2xf32>
    %600 = vector.shape_cast %599 : vector<1x8x2xf32> to vector<8x2xf32>
    %cst_316 = arith.constant 0.000000e+00 : f32
    %601 = vector.broadcast %cst_316 : f32 to vector<8x2xf32>
    %c0_317 = arith.constant 0 : index
    %c0_318 = arith.constant 0 : index
    %c0_319 = arith.constant 0 : index
    %602 = vector.load %arg1[%c0_317, %c0_318, %c0_319] : memref<20x8x2xf32, #tpu.memory_space<vmem>>, vector<1x8x2xf32>
    %603 = vector.shape_cast %602 : vector<1x8x2xf32> to vector<8x2xf32>
    %604 = arith.cmpf ole, %603, %600 : vector<8x2xf32>
    %605 = arith.extui %604 : vector<8x2xi1> to vector<8x2xi32>
    %606 = arith.sitofp %605 : vector<8x2xi32> to vector<8x2xf32>
    %607 = arith.addf %601, %606 : vector<8x2xf32>
    %c1_320 = arith.constant 1 : index
    %c0_321 = arith.constant 0 : index
    %c0_322 = arith.constant 0 : index
    %608 = vector.load %arg1[%c1_320, %c0_321, %c0_322] : memref<20x8x2xf32, #tpu.memory_space<vmem>>, vector<1x8x2xf32>
    %609 = vector.shape_cast %608 : vector<1x8x2xf32> to vector<8x2xf32>
    %610 = arith.cmpf ole, %609, %600 : vector<8x2xf32>
    %611 = arith.extui %610 : vector<8x2xi1> to vector<8x2xi32>
    %612 = arith.sitofp %611 : vector<8x2xi32> to vector<8x2xf32>
    %613 = arith.addf %607, %612 : vector<8x2xf32>
    %c2_323 = arith.constant 2 : index
    %c0_324 = arith.constant 0 : index
    %c0_325 = arith.constant 0 : index
    %614 = vector.load %arg1[%c2_323, %c0_324, %c0_325] : memref<20x8x2xf32, #tpu.memory_space<vmem>>, vector<1x8x2xf32>
    %615 = vector.shape_cast %614 : vector<1x8x2xf32> to vector<8x2xf32>
    %616 = arith.cmpf ole, %615, %600 : vector<8x2xf32>
    %617 = arith.extui %616 : vector<8x2xi1> to vector<8x2xi32>
    %618 = arith.sitofp %617 : vector<8x2xi32> to vector<8x2xf32>
    %619 = arith.addf %613, %618 : vector<8x2xf32>
    %c3_326 = arith.constant 3 : index
    %c0_327 = arith.constant 0 : index
    %c0_328 = arith.constant 0 : index
    %620 = vector.load %arg1[%c3_326, %c0_327, %c0_328] : memref<20x8x2xf32, #tpu.memory_space<vmem>>, vector<1x8x2xf32>
    %621 = vector.shape_cast %620 : vector<1x8x2xf32> to vector<8x2xf32>
    %622 = arith.cmpf ole, %621, %600 : vector<8x2xf32>
    %623 = arith.extui %622 : vector<8x2xi1> to vector<8x2xi32>
    %624 = arith.sitofp %623 : vector<8x2xi32> to vector<8x2xf32>
    %625 = arith.addf %619, %624 : vector<8x2xf32>
    %c4_329 = arith.constant 4 : index
    %c0_330 = arith.constant 0 : index
    %c0_331 = arith.constant 0 : index
    %626 = vector.load %arg1[%c4_329, %c0_330, %c0_331] : memref<20x8x2xf32, #tpu.memory_space<vmem>>, vector<1x8x2xf32>
    %627 = vector.shape_cast %626 : vector<1x8x2xf32> to vector<8x2xf32>
    %628 = arith.cmpf ole, %627, %600 : vector<8x2xf32>
    %629 = arith.extui %628 : vector<8x2xi1> to vector<8x2xi32>
    %630 = arith.sitofp %629 : vector<8x2xi32> to vector<8x2xf32>
    %631 = arith.addf %625, %630 : vector<8x2xf32>
    %c5_332 = arith.constant 5 : index
    %c0_333 = arith.constant 0 : index
    %c0_334 = arith.constant 0 : index
    %632 = vector.load %arg1[%c5_332, %c0_333, %c0_334] : memref<20x8x2xf32, #tpu.memory_space<vmem>>, vector<1x8x2xf32>
    %633 = vector.shape_cast %632 : vector<1x8x2xf32> to vector<8x2xf32>
    %634 = arith.cmpf ole, %633, %600 : vector<8x2xf32>
    %635 = arith.extui %634 : vector<8x2xi1> to vector<8x2xi32>
    %636 = arith.sitofp %635 : vector<8x2xi32> to vector<8x2xf32>
    %637 = arith.addf %631, %636 : vector<8x2xf32>
    %c6_335 = arith.constant 6 : index
    %c0_336 = arith.constant 0 : index
    %c0_337 = arith.constant 0 : index
    %638 = vector.load %arg1[%c6_335, %c0_336, %c0_337] : memref<20x8x2xf32, #tpu.memory_space<vmem>>, vector<1x8x2xf32>
    %639 = vector.shape_cast %638 : vector<1x8x2xf32> to vector<8x2xf32>
    %640 = arith.cmpf ole, %639, %600 : vector<8x2xf32>
    %641 = arith.extui %640 : vector<8x2xi1> to vector<8x2xi32>
    %642 = arith.sitofp %641 : vector<8x2xi32> to vector<8x2xf32>
    %643 = arith.addf %637, %642 : vector<8x2xf32>
    %c7_338 = arith.constant 7 : index
    %c0_339 = arith.constant 0 : index
    %c0_340 = arith.constant 0 : index
    %644 = vector.load %arg1[%c7_338, %c0_339, %c0_340] : memref<20x8x2xf32, #tpu.memory_space<vmem>>, vector<1x8x2xf32>
    %645 = vector.shape_cast %644 : vector<1x8x2xf32> to vector<8x2xf32>
    %646 = arith.cmpf ole, %645, %600 : vector<8x2xf32>
    %647 = arith.extui %646 : vector<8x2xi1> to vector<8x2xi32>
    %648 = arith.sitofp %647 : vector<8x2xi32> to vector<8x2xf32>
    %649 = arith.addf %643, %648 : vector<8x2xf32>
    %c8_341 = arith.constant 8 : index
    %c0_342 = arith.constant 0 : index
    %c0_343 = arith.constant 0 : index
    %650 = vector.load %arg1[%c8_341, %c0_342, %c0_343] : memref<20x8x2xf32, #tpu.memory_space<vmem>>, vector<1x8x2xf32>
    %651 = vector.shape_cast %650 : vector<1x8x2xf32> to vector<8x2xf32>
    %652 = arith.cmpf ole, %651, %600 : vector<8x2xf32>
    %653 = arith.extui %652 : vector<8x2xi1> to vector<8x2xi32>
    %654 = arith.sitofp %653 : vector<8x2xi32> to vector<8x2xf32>
    %655 = arith.addf %649, %654 : vector<8x2xf32>
    %c9_344 = arith.constant 9 : index
    %c0_345 = arith.constant 0 : index
    %c0_346 = arith.constant 0 : index
    %656 = vector.load %arg1[%c9_344, %c0_345, %c0_346] : memref<20x8x2xf32, #tpu.memory_space<vmem>>, vector<1x8x2xf32>
    %657 = vector.shape_cast %656 : vector<1x8x2xf32> to vector<8x2xf32>
    %658 = arith.cmpf ole, %657, %600 : vector<8x2xf32>
    %659 = arith.extui %658 : vector<8x2xi1> to vector<8x2xi32>
    %660 = arith.sitofp %659 : vector<8x2xi32> to vector<8x2xf32>
    %661 = arith.addf %655, %660 : vector<8x2xf32>
    %c10_347 = arith.constant 10 : index
    %c0_348 = arith.constant 0 : index
    %c0_349 = arith.constant 0 : index
    %662 = vector.load %arg1[%c10_347, %c0_348, %c0_349] : memref<20x8x2xf32, #tpu.memory_space<vmem>>, vector<1x8x2xf32>
    %663 = vector.shape_cast %662 : vector<1x8x2xf32> to vector<8x2xf32>
    %664 = arith.cmpf ole, %663, %600 : vector<8x2xf32>
    %665 = arith.extui %664 : vector<8x2xi1> to vector<8x2xi32>
    %666 = arith.sitofp %665 : vector<8x2xi32> to vector<8x2xf32>
    %667 = arith.addf %661, %666 : vector<8x2xf32>
    %c11_350 = arith.constant 11 : index
    %c0_351 = arith.constant 0 : index
    %c0_352 = arith.constant 0 : index
    %668 = vector.load %arg1[%c11_350, %c0_351, %c0_352] : memref<20x8x2xf32, #tpu.memory_space<vmem>>, vector<1x8x2xf32>
    %669 = vector.shape_cast %668 : vector<1x8x2xf32> to vector<8x2xf32>
    %670 = arith.cmpf ole, %669, %600 : vector<8x2xf32>
    %671 = arith.extui %670 : vector<8x2xi1> to vector<8x2xi32>
    %672 = arith.sitofp %671 : vector<8x2xi32> to vector<8x2xf32>
    %673 = arith.addf %667, %672 : vector<8x2xf32>
    %c12_353 = arith.constant 12 : index
    %c0_354 = arith.constant 0 : index
    %c0_355 = arith.constant 0 : index
    %674 = vector.load %arg1[%c12_353, %c0_354, %c0_355] : memref<20x8x2xf32, #tpu.memory_space<vmem>>, vector<1x8x2xf32>
    %675 = vector.shape_cast %674 : vector<1x8x2xf32> to vector<8x2xf32>
    %676 = arith.cmpf ole, %675, %600 : vector<8x2xf32>
    %677 = arith.extui %676 : vector<8x2xi1> to vector<8x2xi32>
    %678 = arith.sitofp %677 : vector<8x2xi32> to vector<8x2xf32>
    %679 = arith.addf %673, %678 : vector<8x2xf32>
    %c13_356 = arith.constant 13 : index
    %c0_357 = arith.constant 0 : index
    %c0_358 = arith.constant 0 : index
    %680 = vector.load %arg1[%c13_356, %c0_357, %c0_358] : memref<20x8x2xf32, #tpu.memory_space<vmem>>, vector<1x8x2xf32>
    %681 = vector.shape_cast %680 : vector<1x8x2xf32> to vector<8x2xf32>
    %682 = arith.cmpf ole, %681, %600 : vector<8x2xf32>
    %683 = arith.extui %682 : vector<8x2xi1> to vector<8x2xi32>
    %684 = arith.sitofp %683 : vector<8x2xi32> to vector<8x2xf32>
    %685 = arith.addf %679, %684 : vector<8x2xf32>
    %c14_359 = arith.constant 14 : index
    %c0_360 = arith.constant 0 : index
    %c0_361 = arith.constant 0 : index
    %686 = vector.load %arg1[%c14_359, %c0_360, %c0_361] : memref<20x8x2xf32, #tpu.memory_space<vmem>>, vector<1x8x2xf32>
    %687 = vector.shape_cast %686 : vector<1x8x2xf32> to vector<8x2xf32>
    %688 = arith.cmpf ole, %687, %600 : vector<8x2xf32>
    %689 = arith.extui %688 : vector<8x2xi1> to vector<8x2xi32>
    %690 = arith.sitofp %689 : vector<8x2xi32> to vector<8x2xf32>
    %691 = arith.addf %685, %690 : vector<8x2xf32>
    %c15_362 = arith.constant 15 : index
    %c0_363 = arith.constant 0 : index
    %c0_364 = arith.constant 0 : index
    %692 = vector.load %arg1[%c15_362, %c0_363, %c0_364] : memref<20x8x2xf32, #tpu.memory_space<vmem>>, vector<1x8x2xf32>
    %693 = vector.shape_cast %692 : vector<1x8x2xf32> to vector<8x2xf32>
    %694 = arith.cmpf ole, %693, %600 : vector<8x2xf32>
    %695 = arith.extui %694 : vector<8x2xi1> to vector<8x2xi32>
    %696 = arith.sitofp %695 : vector<8x2xi32> to vector<8x2xf32>
    %697 = arith.addf %691, %696 : vector<8x2xf32>
    %c16_365 = arith.constant 16 : index
    %c0_366 = arith.constant 0 : index
    %c0_367 = arith.constant 0 : index
    %698 = vector.load %arg1[%c16_365, %c0_366, %c0_367] : memref<20x8x2xf32, #tpu.memory_space<vmem>>, vector<1x8x2xf32>
    %699 = vector.shape_cast %698 : vector<1x8x2xf32> to vector<8x2xf32>
    %700 = arith.cmpf ole, %699, %600 : vector<8x2xf32>
    %701 = arith.extui %700 : vector<8x2xi1> to vector<8x2xi32>
    %702 = arith.sitofp %701 : vector<8x2xi32> to vector<8x2xf32>
    %703 = arith.addf %697, %702 : vector<8x2xf32>
    %c17_368 = arith.constant 17 : index
    %c0_369 = arith.constant 0 : index
    %c0_370 = arith.constant 0 : index
    %704 = vector.load %arg1[%c17_368, %c0_369, %c0_370] : memref<20x8x2xf32, #tpu.memory_space<vmem>>, vector<1x8x2xf32>
    %705 = vector.shape_cast %704 : vector<1x8x2xf32> to vector<8x2xf32>
    %706 = arith.cmpf ole, %705, %600 : vector<8x2xf32>
    %707 = arith.extui %706 : vector<8x2xi1> to vector<8x2xi32>
    %708 = arith.sitofp %707 : vector<8x2xi32> to vector<8x2xf32>
    %709 = arith.addf %703, %708 : vector<8x2xf32>
    %c18_371 = arith.constant 18 : index
    %c0_372 = arith.constant 0 : index
    %c0_373 = arith.constant 0 : index
    %710 = vector.load %arg1[%c18_371, %c0_372, %c0_373] : memref<20x8x2xf32, #tpu.memory_space<vmem>>, vector<1x8x2xf32>
    %711 = vector.shape_cast %710 : vector<1x8x2xf32> to vector<8x2xf32>
    %712 = arith.cmpf ole, %711, %600 : vector<8x2xf32>
    %713 = arith.extui %712 : vector<8x2xi1> to vector<8x2xi32>
    %714 = arith.sitofp %713 : vector<8x2xi32> to vector<8x2xf32>
    %715 = arith.addf %709, %714 : vector<8x2xf32>
    %c19_374 = arith.constant 19 : index
    %c0_375 = arith.constant 0 : index
    %c0_376 = arith.constant 0 : index
    %716 = vector.load %arg1[%c19_374, %c0_375, %c0_376] : memref<20x8x2xf32, #tpu.memory_space<vmem>>, vector<1x8x2xf32>
    %717 = vector.shape_cast %716 : vector<1x8x2xf32> to vector<8x2xf32>
    %718 = arith.cmpf ole, %717, %600 : vector<8x2xf32>
    %719 = arith.extui %718 : vector<8x2xi1> to vector<8x2xi32>
    %720 = arith.sitofp %719 : vector<8x2xi32> to vector<8x2xf32>
    %721 = arith.addf %715, %720 : vector<8x2xf32>
    %cst_377 = arith.constant 1.000000e+01 : f32
    %722 = vector.broadcast %cst_377 : f32 to vector<8x2xf32>
    %723 = arith.cmpf oge, %721, %722 : vector<8x2xf32>
    %cst_378 = arith.constant 0x7F800000 : f32
    %724 = vector.broadcast %cst_378 : f32 to vector<8x2xf32>
    %725 = arith.select %723, %600, %724 : vector<8x2xi1>, vector<8x2xf32>
    %726 = arith.minimumf %598, %725 : vector<8x2xf32>
    %c4_379 = arith.constant 4 : index
    %c0_380 = arith.constant 0 : index
    %c0_381 = arith.constant 0 : index
    %727 = vector.load %arg1[%c4_379, %c0_380, %c0_381] : memref<20x8x2xf32, #tpu.memory_space<vmem>>, vector<1x8x2xf32>
    %728 = vector.shape_cast %727 : vector<1x8x2xf32> to vector<8x2xf32>
    %cst_382 = arith.constant 0.000000e+00 : f32
    %729 = vector.broadcast %cst_382 : f32 to vector<8x2xf32>
    %c0_383 = arith.constant 0 : index
    %c0_384 = arith.constant 0 : index
    %c0_385 = arith.constant 0 : index
    %730 = vector.load %arg1[%c0_383, %c0_384, %c0_385] : memref<20x8x2xf32, #tpu.memory_space<vmem>>, vector<1x8x2xf32>
    %731 = vector.shape_cast %730 : vector<1x8x2xf32> to vector<8x2xf32>
    %732 = arith.cmpf ole, %731, %728 : vector<8x2xf32>
    %733 = arith.extui %732 : vector<8x2xi1> to vector<8x2xi32>
    %734 = arith.sitofp %733 : vector<8x2xi32> to vector<8x2xf32>
    %735 = arith.addf %729, %734 : vector<8x2xf32>
    %c1_386 = arith.constant 1 : index
    %c0_387 = arith.constant 0 : index
    %c0_388 = arith.constant 0 : index
    %736 = vector.load %arg1[%c1_386, %c0_387, %c0_388] : memref<20x8x2xf32, #tpu.memory_space<vmem>>, vector<1x8x2xf32>
    %737 = vector.shape_cast %736 : vector<1x8x2xf32> to vector<8x2xf32>
    %738 = arith.cmpf ole, %737, %728 : vector<8x2xf32>
    %739 = arith.extui %738 : vector<8x2xi1> to vector<8x2xi32>
    %740 = arith.sitofp %739 : vector<8x2xi32> to vector<8x2xf32>
    %741 = arith.addf %735, %740 : vector<8x2xf32>
    %c2_389 = arith.constant 2 : index
    %c0_390 = arith.constant 0 : index
    %c0_391 = arith.constant 0 : index
    %742 = vector.load %arg1[%c2_389, %c0_390, %c0_391] : memref<20x8x2xf32, #tpu.memory_space<vmem>>, vector<1x8x2xf32>
    %743 = vector.shape_cast %742 : vector<1x8x2xf32> to vector<8x2xf32>
    %744 = arith.cmpf ole, %743, %728 : vector<8x2xf32>
    %745 = arith.extui %744 : vector<8x2xi1> to vector<8x2xi32>
    %746 = arith.sitofp %745 : vector<8x2xi32> to vector<8x2xf32>
    %747 = arith.addf %741, %746 : vector<8x2xf32>
    %c3_392 = arith.constant 3 : index
    %c0_393 = arith.constant 0 : index
    %c0_394 = arith.constant 0 : index
    %748 = vector.load %arg1[%c3_392, %c0_393, %c0_394] : memref<20x8x2xf32, #tpu.memory_space<vmem>>, vector<1x8x2xf32>
    %749 = vector.shape_cast %748 : vector<1x8x2xf32> to vector<8x2xf32>
    %750 = arith.cmpf ole, %749, %728 : vector<8x2xf32>
    %751 = arith.extui %750 : vector<8x2xi1> to vector<8x2xi32>
    %752 = arith.sitofp %751 : vector<8x2xi32> to vector<8x2xf32>
    %753 = arith.addf %747, %752 : vector<8x2xf32>
    %c4_395 = arith.constant 4 : index
    %c0_396 = arith.constant 0 : index
    %c0_397 = arith.constant 0 : index
    %754 = vector.load %arg1[%c4_395, %c0_396, %c0_397] : memref<20x8x2xf32, #tpu.memory_space<vmem>>, vector<1x8x2xf32>
    %755 = vector.shape_cast %754 : vector<1x8x2xf32> to vector<8x2xf32>
    %756 = arith.cmpf ole, %755, %728 : vector<8x2xf32>
    %757 = arith.extui %756 : vector<8x2xi1> to vector<8x2xi32>
    %758 = arith.sitofp %757 : vector<8x2xi32> to vector<8x2xf32>
    %759 = arith.addf %753, %758 : vector<8x2xf32>
    %c5_398 = arith.constant 5 : index
    %c0_399 = arith.constant 0 : index
    %c0_400 = arith.constant 0 : index
    %760 = vector.load %arg1[%c5_398, %c0_399, %c0_400] : memref<20x8x2xf32, #tpu.memory_space<vmem>>, vector<1x8x2xf32>
    %761 = vector.shape_cast %760 : vector<1x8x2xf32> to vector<8x2xf32>
    %762 = arith.cmpf ole, %761, %728 : vector<8x2xf32>
    %763 = arith.extui %762 : vector<8x2xi1> to vector<8x2xi32>
    %764 = arith.sitofp %763 : vector<8x2xi32> to vector<8x2xf32>
    %765 = arith.addf %759, %764 : vector<8x2xf32>
    %c6_401 = arith.constant 6 : index
    %c0_402 = arith.constant 0 : index
    %c0_403 = arith.constant 0 : index
    %766 = vector.load %arg1[%c6_401, %c0_402, %c0_403] : memref<20x8x2xf32, #tpu.memory_space<vmem>>, vector<1x8x2xf32>
    %767 = vector.shape_cast %766 : vector<1x8x2xf32> to vector<8x2xf32>
    %768 = arith.cmpf ole, %767, %728 : vector<8x2xf32>
    %769 = arith.extui %768 : vector<8x2xi1> to vector<8x2xi32>
    %770 = arith.sitofp %769 : vector<8x2xi32> to vector<8x2xf32>
    %771 = arith.addf %765, %770 : vector<8x2xf32>
    %c7_404 = arith.constant 7 : index
    %c0_405 = arith.constant 0 : index
    %c0_406 = arith.constant 0 : index
    %772 = vector.load %arg1[%c7_404, %c0_405, %c0_406] : memref<20x8x2xf32, #tpu.memory_space<vmem>>, vector<1x8x2xf32>
    %773 = vector.shape_cast %772 : vector<1x8x2xf32> to vector<8x2xf32>
    %774 = arith.cmpf ole, %773, %728 : vector<8x2xf32>
    %775 = arith.extui %774 : vector<8x2xi1> to vector<8x2xi32>
    %776 = arith.sitofp %775 : vector<8x2xi32> to vector<8x2xf32>
    %777 = arith.addf %771, %776 : vector<8x2xf32>
    %c8_407 = arith.constant 8 : index
    %c0_408 = arith.constant 0 : index
    %c0_409 = arith.constant 0 : index
    %778 = vector.load %arg1[%c8_407, %c0_408, %c0_409] : memref<20x8x2xf32, #tpu.memory_space<vmem>>, vector<1x8x2xf32>
    %779 = vector.shape_cast %778 : vector<1x8x2xf32> to vector<8x2xf32>
    %780 = arith.cmpf ole, %779, %728 : vector<8x2xf32>
    %781 = arith.extui %780 : vector<8x2xi1> to vector<8x2xi32>
    %782 = arith.sitofp %781 : vector<8x2xi32> to vector<8x2xf32>
    %783 = arith.addf %777, %782 : vector<8x2xf32>
    %c9_410 = arith.constant 9 : index
    %c0_411 = arith.constant 0 : index
    %c0_412 = arith.constant 0 : index
    %784 = vector.load %arg1[%c9_410, %c0_411, %c0_412] : memref<20x8x2xf32, #tpu.memory_space<vmem>>, vector<1x8x2xf32>
    %785 = vector.shape_cast %784 : vector<1x8x2xf32> to vector<8x2xf32>
    %786 = arith.cmpf ole, %785, %728 : vector<8x2xf32>
    %787 = arith.extui %786 : vector<8x2xi1> to vector<8x2xi32>
    %788 = arith.sitofp %787 : vector<8x2xi32> to vector<8x2xf32>
    %789 = arith.addf %783, %788 : vector<8x2xf32>
    %c10_413 = arith.constant 10 : index
    %c0_414 = arith.constant 0 : index
    %c0_415 = arith.constant 0 : index
    %790 = vector.load %arg1[%c10_413, %c0_414, %c0_415] : memref<20x8x2xf32, #tpu.memory_space<vmem>>, vector<1x8x2xf32>
    %791 = vector.shape_cast %790 : vector<1x8x2xf32> to vector<8x2xf32>
    %792 = arith.cmpf ole, %791, %728 : vector<8x2xf32>
    %793 = arith.extui %792 : vector<8x2xi1> to vector<8x2xi32>
    %794 = arith.sitofp %793 : vector<8x2xi32> to vector<8x2xf32>
    %795 = arith.addf %789, %794 : vector<8x2xf32>
    %c11_416 = arith.constant 11 : index
    %c0_417 = arith.constant 0 : index
    %c0_418 = arith.constant 0 : index
    %796 = vector.load %arg1[%c11_416, %c0_417, %c0_418] : memref<20x8x2xf32, #tpu.memory_space<vmem>>, vector<1x8x2xf32>
    %797 = vector.shape_cast %796 : vector<1x8x2xf32> to vector<8x2xf32>
    %798 = arith.cmpf ole, %797, %728 : vector<8x2xf32>
    %799 = arith.extui %798 : vector<8x2xi1> to vector<8x2xi32>
    %800 = arith.sitofp %799 : vector<8x2xi32> to vector<8x2xf32>
    %801 = arith.addf %795, %800 : vector<8x2xf32>
    %c12_419 = arith.constant 12 : index
    %c0_420 = arith.constant 0 : index
    %c0_421 = arith.constant 0 : index
    %802 = vector.load %arg1[%c12_419, %c0_420, %c0_421] : memref<20x8x2xf32, #tpu.memory_space<vmem>>, vector<1x8x2xf32>
    %803 = vector.shape_cast %802 : vector<1x8x2xf32> to vector<8x2xf32>
    %804 = arith.cmpf ole, %803, %728 : vector<8x2xf32>
    %805 = arith.extui %804 : vector<8x2xi1> to vector<8x2xi32>
    %806 = arith.sitofp %805 : vector<8x2xi32> to vector<8x2xf32>
    %807 = arith.addf %801, %806 : vector<8x2xf32>
    %c13_422 = arith.constant 13 : index
    %c0_423 = arith.constant 0 : index
    %c0_424 = arith.constant 0 : index
    %808 = vector.load %arg1[%c13_422, %c0_423, %c0_424] : memref<20x8x2xf32, #tpu.memory_space<vmem>>, vector<1x8x2xf32>
    %809 = vector.shape_cast %808 : vector<1x8x2xf32> to vector<8x2xf32>
    %810 = arith.cmpf ole, %809, %728 : vector<8x2xf32>
    %811 = arith.extui %810 : vector<8x2xi1> to vector<8x2xi32>
    %812 = arith.sitofp %811 : vector<8x2xi32> to vector<8x2xf32>
    %813 = arith.addf %807, %812 : vector<8x2xf32>
    %c14_425 = arith.constant 14 : index
    %c0_426 = arith.constant 0 : index
    %c0_427 = arith.constant 0 : index
    %814 = vector.load %arg1[%c14_425, %c0_426, %c0_427] : memref<20x8x2xf32, #tpu.memory_space<vmem>>, vector<1x8x2xf32>
    %815 = vector.shape_cast %814 : vector<1x8x2xf32> to vector<8x2xf32>
    %816 = arith.cmpf ole, %815, %728 : vector<8x2xf32>
    %817 = arith.extui %816 : vector<8x2xi1> to vector<8x2xi32>
    %818 = arith.sitofp %817 : vector<8x2xi32> to vector<8x2xf32>
    %819 = arith.addf %813, %818 : vector<8x2xf32>
    %c15_428 = arith.constant 15 : index
    %c0_429 = arith.constant 0 : index
    %c0_430 = arith.constant 0 : index
    %820 = vector.load %arg1[%c15_428, %c0_429, %c0_430] : memref<20x8x2xf32, #tpu.memory_space<vmem>>, vector<1x8x2xf32>
    %821 = vector.shape_cast %820 : vector<1x8x2xf32> to vector<8x2xf32>
    %822 = arith.cmpf ole, %821, %728 : vector<8x2xf32>
    %823 = arith.extui %822 : vector<8x2xi1> to vector<8x2xi32>
    %824 = arith.sitofp %823 : vector<8x2xi32> to vector<8x2xf32>
    %825 = arith.addf %819, %824 : vector<8x2xf32>
    %c16_431 = arith.constant 16 : index
    %c0_432 = arith.constant 0 : index
    %c0_433 = arith.constant 0 : index
    %826 = vector.load %arg1[%c16_431, %c0_432, %c0_433] : memref<20x8x2xf32, #tpu.memory_space<vmem>>, vector<1x8x2xf32>
    %827 = vector.shape_cast %826 : vector<1x8x2xf32> to vector<8x2xf32>
    %828 = arith.cmpf ole, %827, %728 : vector<8x2xf32>
    %829 = arith.extui %828 : vector<8x2xi1> to vector<8x2xi32>
    %830 = arith.sitofp %829 : vector<8x2xi32> to vector<8x2xf32>
    %831 = arith.addf %825, %830 : vector<8x2xf32>
    %c17_434 = arith.constant 17 : index
    %c0_435 = arith.constant 0 : index
    %c0_436 = arith.constant 0 : index
    %832 = vector.load %arg1[%c17_434, %c0_435, %c0_436] : memref<20x8x2xf32, #tpu.memory_space<vmem>>, vector<1x8x2xf32>
    %833 = vector.shape_cast %832 : vector<1x8x2xf32> to vector<8x2xf32>
    %834 = arith.cmpf ole, %833, %728 : vector<8x2xf32>
    %835 = arith.extui %834 : vector<8x2xi1> to vector<8x2xi32>
    %836 = arith.sitofp %835 : vector<8x2xi32> to vector<8x2xf32>
    %837 = arith.addf %831, %836 : vector<8x2xf32>
    %c18_437 = arith.constant 18 : index
    %c0_438 = arith.constant 0 : index
    %c0_439 = arith.constant 0 : index
    %838 = vector.load %arg1[%c18_437, %c0_438, %c0_439] : memref<20x8x2xf32, #tpu.memory_space<vmem>>, vector<1x8x2xf32>
    %839 = vector.shape_cast %838 : vector<1x8x2xf32> to vector<8x2xf32>
    %840 = arith.cmpf ole, %839, %728 : vector<8x2xf32>
    %841 = arith.extui %840 : vector<8x2xi1> to vector<8x2xi32>
    %842 = arith.sitofp %841 : vector<8x2xi32> to vector<8x2xf32>
    %843 = arith.addf %837, %842 : vector<8x2xf32>
    %c19_440 = arith.constant 19 : index
    %c0_441 = arith.constant 0 : index
    %c0_442 = arith.constant 0 : index
    %844 = vector.load %arg1[%c19_440, %c0_441, %c0_442] : memref<20x8x2xf32, #tpu.memory_space<vmem>>, vector<1x8x2xf32>
    %845 = vector.shape_cast %844 : vector<1x8x2xf32> to vector<8x2xf32>
    %846 = arith.cmpf ole, %845, %728 : vector<8x2xf32>
    %847 = arith.extui %846 : vector<8x2xi1> to vector<8x2xi32>
    %848 = arith.sitofp %847 : vector<8x2xi32> to vector<8x2xf32>
    %849 = arith.addf %843, %848 : vector<8x2xf32>
    %cst_443 = arith.constant 1.000000e+01 : f32
    %850 = vector.broadcast %cst_443 : f32 to vector<8x2xf32>
    %851 = arith.cmpf oge, %849, %850 : vector<8x2xf32>
    %cst_444 = arith.constant 0x7F800000 : f32
    %852 = vector.broadcast %cst_444 : f32 to vector<8x2xf32>
    %853 = arith.select %851, %728, %852 : vector<8x2xi1>, vector<8x2xf32>
    %854 = arith.minimumf %726, %853 : vector<8x2xf32>
    %c5_445 = arith.constant 5 : index
    %c0_446 = arith.constant 0 : index
    %c0_447 = arith.constant 0 : index
    %855 = vector.load %arg1[%c5_445, %c0_446, %c0_447] : memref<20x8x2xf32, #tpu.memory_space<vmem>>, vector<1x8x2xf32>
    %856 = vector.shape_cast %855 : vector<1x8x2xf32> to vector<8x2xf32>
    %cst_448 = arith.constant 0.000000e+00 : f32
    %857 = vector.broadcast %cst_448 : f32 to vector<8x2xf32>
    %c0_449 = arith.constant 0 : index
    %c0_450 = arith.constant 0 : index
    %c0_451 = arith.constant 0 : index
    %858 = vector.load %arg1[%c0_449, %c0_450, %c0_451] : memref<20x8x2xf32, #tpu.memory_space<vmem>>, vector<1x8x2xf32>
    %859 = vector.shape_cast %858 : vector<1x8x2xf32> to vector<8x2xf32>
    %860 = arith.cmpf ole, %859, %856 : vector<8x2xf32>
    %861 = arith.extui %860 : vector<8x2xi1> to vector<8x2xi32>
    %862 = arith.sitofp %861 : vector<8x2xi32> to vector<8x2xf32>
    %863 = arith.addf %857, %862 : vector<8x2xf32>
    %c1_452 = arith.constant 1 : index
    %c0_453 = arith.constant 0 : index
    %c0_454 = arith.constant 0 : index
    %864 = vector.load %arg1[%c1_452, %c0_453, %c0_454] : memref<20x8x2xf32, #tpu.memory_space<vmem>>, vector<1x8x2xf32>
    %865 = vector.shape_cast %864 : vector<1x8x2xf32> to vector<8x2xf32>
    %866 = arith.cmpf ole, %865, %856 : vector<8x2xf32>
    %867 = arith.extui %866 : vector<8x2xi1> to vector<8x2xi32>
    %868 = arith.sitofp %867 : vector<8x2xi32> to vector<8x2xf32>
    %869 = arith.addf %863, %868 : vector<8x2xf32>
    %c2_455 = arith.constant 2 : index
    %c0_456 = arith.constant 0 : index
    %c0_457 = arith.constant 0 : index
    %870 = vector.load %arg1[%c2_455, %c0_456, %c0_457] : memref<20x8x2xf32, #tpu.memory_space<vmem>>, vector<1x8x2xf32>
    %871 = vector.shape_cast %870 : vector<1x8x2xf32> to vector<8x2xf32>
    %872 = arith.cmpf ole, %871, %856 : vector<8x2xf32>
    %873 = arith.extui %872 : vector<8x2xi1> to vector<8x2xi32>
    %874 = arith.sitofp %873 : vector<8x2xi32> to vector<8x2xf32>
    %875 = arith.addf %869, %874 : vector<8x2xf32>
    %c3_458 = arith.constant 3 : index
    %c0_459 = arith.constant 0 : index
    %c0_460 = arith.constant 0 : index
    %876 = vector.load %arg1[%c3_458, %c0_459, %c0_460] : memref<20x8x2xf32, #tpu.memory_space<vmem>>, vector<1x8x2xf32>
    %877 = vector.shape_cast %876 : vector<1x8x2xf32> to vector<8x2xf32>
    %878 = arith.cmpf ole, %877, %856 : vector<8x2xf32>
    %879 = arith.extui %878 : vector<8x2xi1> to vector<8x2xi32>
    %880 = arith.sitofp %879 : vector<8x2xi32> to vector<8x2xf32>
    %881 = arith.addf %875, %880 : vector<8x2xf32>
    %c4_461 = arith.constant 4 : index
    %c0_462 = arith.constant 0 : index
    %c0_463 = arith.constant 0 : index
    %882 = vector.load %arg1[%c4_461, %c0_462, %c0_463] : memref<20x8x2xf32, #tpu.memory_space<vmem>>, vector<1x8x2xf32>
    %883 = vector.shape_cast %882 : vector<1x8x2xf32> to vector<8x2xf32>
    %884 = arith.cmpf ole, %883, %856 : vector<8x2xf32>
    %885 = arith.extui %884 : vector<8x2xi1> to vector<8x2xi32>
    %886 = arith.sitofp %885 : vector<8x2xi32> to vector<8x2xf32>
    %887 = arith.addf %881, %886 : vector<8x2xf32>
    %c5_464 = arith.constant 5 : index
    %c0_465 = arith.constant 0 : index
    %c0_466 = arith.constant 0 : index
    %888 = vector.load %arg1[%c5_464, %c0_465, %c0_466] : memref<20x8x2xf32, #tpu.memory_space<vmem>>, vector<1x8x2xf32>
    %889 = vector.shape_cast %888 : vector<1x8x2xf32> to vector<8x2xf32>
    %890 = arith.cmpf ole, %889, %856 : vector<8x2xf32>
    %891 = arith.extui %890 : vector<8x2xi1> to vector<8x2xi32>
    %892 = arith.sitofp %891 : vector<8x2xi32> to vector<8x2xf32>
    %893 = arith.addf %887, %892 : vector<8x2xf32>
    %c6_467 = arith.constant 6 : index
    %c0_468 = arith.constant 0 : index
    %c0_469 = arith.constant 0 : index
    %894 = vector.load %arg1[%c6_467, %c0_468, %c0_469] : memref<20x8x2xf32, #tpu.memory_space<vmem>>, vector<1x8x2xf32>
    %895 = vector.shape_cast %894 : vector<1x8x2xf32> to vector<8x2xf32>
    %896 = arith.cmpf ole, %895, %856 : vector<8x2xf32>
    %897 = arith.extui %896 : vector<8x2xi1> to vector<8x2xi32>
    %898 = arith.sitofp %897 : vector<8x2xi32> to vector<8x2xf32>
    %899 = arith.addf %893, %898 : vector<8x2xf32>
    %c7_470 = arith.constant 7 : index
    %c0_471 = arith.constant 0 : index
    %c0_472 = arith.constant 0 : index
    %900 = vector.load %arg1[%c7_470, %c0_471, %c0_472] : memref<20x8x2xf32, #tpu.memory_space<vmem>>, vector<1x8x2xf32>
    %901 = vector.shape_cast %900 : vector<1x8x2xf32> to vector<8x2xf32>
    %902 = arith.cmpf ole, %901, %856 : vector<8x2xf32>
    %903 = arith.extui %902 : vector<8x2xi1> to vector<8x2xi32>
    %904 = arith.sitofp %903 : vector<8x2xi32> to vector<8x2xf32>
    %905 = arith.addf %899, %904 : vector<8x2xf32>
    %c8_473 = arith.constant 8 : index
    %c0_474 = arith.constant 0 : index
    %c0_475 = arith.constant 0 : index
    %906 = vector.load %arg1[%c8_473, %c0_474, %c0_475] : memref<20x8x2xf32, #tpu.memory_space<vmem>>, vector<1x8x2xf32>
    %907 = vector.shape_cast %906 : vector<1x8x2xf32> to vector<8x2xf32>
    %908 = arith.cmpf ole, %907, %856 : vector<8x2xf32>
    %909 = arith.extui %908 : vector<8x2xi1> to vector<8x2xi32>
    %910 = arith.sitofp %909 : vector<8x2xi32> to vector<8x2xf32>
    %911 = arith.addf %905, %910 : vector<8x2xf32>
    %c9_476 = arith.constant 9 : index
    %c0_477 = arith.constant 0 : index
    %c0_478 = arith.constant 0 : index
    %912 = vector.load %arg1[%c9_476, %c0_477, %c0_478] : memref<20x8x2xf32, #tpu.memory_space<vmem>>, vector<1x8x2xf32>
    %913 = vector.shape_cast %912 : vector<1x8x2xf32> to vector<8x2xf32>
    %914 = arith.cmpf ole, %913, %856 : vector<8x2xf32>
    %915 = arith.extui %914 : vector<8x2xi1> to vector<8x2xi32>
    %916 = arith.sitofp %915 : vector<8x2xi32> to vector<8x2xf32>
    %917 = arith.addf %911, %916 : vector<8x2xf32>
    %c10_479 = arith.constant 10 : index
    %c0_480 = arith.constant 0 : index
    %c0_481 = arith.constant 0 : index
    %918 = vector.load %arg1[%c10_479, %c0_480, %c0_481] : memref<20x8x2xf32, #tpu.memory_space<vmem>>, vector<1x8x2xf32>
    %919 = vector.shape_cast %918 : vector<1x8x2xf32> to vector<8x2xf32>
    %920 = arith.cmpf ole, %919, %856 : vector<8x2xf32>
    %921 = arith.extui %920 : vector<8x2xi1> to vector<8x2xi32>
    %922 = arith.sitofp %921 : vector<8x2xi32> to vector<8x2xf32>
    %923 = arith.addf %917, %922 : vector<8x2xf32>
    %c11_482 = arith.constant 11 : index
    %c0_483 = arith.constant 0 : index
    %c0_484 = arith.constant 0 : index
    %924 = vector.load %arg1[%c11_482, %c0_483, %c0_484] : memref<20x8x2xf32, #tpu.memory_space<vmem>>, vector<1x8x2xf32>
    %925 = vector.shape_cast %924 : vector<1x8x2xf32> to vector<8x2xf32>
    %926 = arith.cmpf ole, %925, %856 : vector<8x2xf32>
    %927 = arith.extui %926 : vector<8x2xi1> to vector<8x2xi32>
    %928 = arith.sitofp %927 : vector<8x2xi32> to vector<8x2xf32>
    %929 = arith.addf %923, %928 : vector<8x2xf32>
    %c12_485 = arith.constant 12 : index
    %c0_486 = arith.constant 0 : index
    %c0_487 = arith.constant 0 : index
    %930 = vector.load %arg1[%c12_485, %c0_486, %c0_487] : memref<20x8x2xf32, #tpu.memory_space<vmem>>, vector<1x8x2xf32>
    %931 = vector.shape_cast %930 : vector<1x8x2xf32> to vector<8x2xf32>
    %932 = arith.cmpf ole, %931, %856 : vector<8x2xf32>
    %933 = arith.extui %932 : vector<8x2xi1> to vector<8x2xi32>
    %934 = arith.sitofp %933 : vector<8x2xi32> to vector<8x2xf32>
    %935 = arith.addf %929, %934 : vector<8x2xf32>
    %c13_488 = arith.constant 13 : index
    %c0_489 = arith.constant 0 : index
    %c0_490 = arith.constant 0 : index
    %936 = vector.load %arg1[%c13_488, %c0_489, %c0_490] : memref<20x8x2xf32, #tpu.memory_space<vmem>>, vector<1x8x2xf32>
    %937 = vector.shape_cast %936 : vector<1x8x2xf32> to vector<8x2xf32>
    %938 = arith.cmpf ole, %937, %856 : vector<8x2xf32>
    %939 = arith.extui %938 : vector<8x2xi1> to vector<8x2xi32>
    %940 = arith.sitofp %939 : vector<8x2xi32> to vector<8x2xf32>
    %941 = arith.addf %935, %940 : vector<8x2xf32>
    %c14_491 = arith.constant 14 : index
    %c0_492 = arith.constant 0 : index
    %c0_493 = arith.constant 0 : index
    %942 = vector.load %arg1[%c14_491, %c0_492, %c0_493] : memref<20x8x2xf32, #tpu.memory_space<vmem>>, vector<1x8x2xf32>
    %943 = vector.shape_cast %942 : vector<1x8x2xf32> to vector<8x2xf32>
    %944 = arith.cmpf ole, %943, %856 : vector<8x2xf32>
    %945 = arith.extui %944 : vector<8x2xi1> to vector<8x2xi32>
    %946 = arith.sitofp %945 : vector<8x2xi32> to vector<8x2xf32>
    %947 = arith.addf %941, %946 : vector<8x2xf32>
    %c15_494 = arith.constant 15 : index
    %c0_495 = arith.constant 0 : index
    %c0_496 = arith.constant 0 : index
    %948 = vector.load %arg1[%c15_494, %c0_495, %c0_496] : memref<20x8x2xf32, #tpu.memory_space<vmem>>, vector<1x8x2xf32>
    %949 = vector.shape_cast %948 : vector<1x8x2xf32> to vector<8x2xf32>
    %950 = arith.cmpf ole, %949, %856 : vector<8x2xf32>
    %951 = arith.extui %950 : vector<8x2xi1> to vector<8x2xi32>
    %952 = arith.sitofp %951 : vector<8x2xi32> to vector<8x2xf32>
    %953 = arith.addf %947, %952 : vector<8x2xf32>
    %c16_497 = arith.constant 16 : index
    %c0_498 = arith.constant 0 : index
    %c0_499 = arith.constant 0 : index
    %954 = vector.load %arg1[%c16_497, %c0_498, %c0_499] : memref<20x8x2xf32, #tpu.memory_space<vmem>>, vector<1x8x2xf32>
    %955 = vector.shape_cast %954 : vector<1x8x2xf32> to vector<8x2xf32>
    %956 = arith.cmpf ole, %955, %856 : vector<8x2xf32>
    %957 = arith.extui %956 : vector<8x2xi1> to vector<8x2xi32>
    %958 = arith.sitofp %957 : vector<8x2xi32> to vector<8x2xf32>
    %959 = arith.addf %953, %958 : vector<8x2xf32>
    %c17_500 = arith.constant 17 : index
    %c0_501 = arith.constant 0 : index
    %c0_502 = arith.constant 0 : index
    %960 = vector.load %arg1[%c17_500, %c0_501, %c0_502] : memref<20x8x2xf32, #tpu.memory_space<vmem>>, vector<1x8x2xf32>
    %961 = vector.shape_cast %960 : vector<1x8x2xf32> to vector<8x2xf32>
    %962 = arith.cmpf ole, %961, %856 : vector<8x2xf32>
    %963 = arith.extui %962 : vector<8x2xi1> to vector<8x2xi32>
    %964 = arith.sitofp %963 : vector<8x2xi32> to vector<8x2xf32>
    %965 = arith.addf %959, %964 : vector<8x2xf32>
    %c18_503 = arith.constant 18 : index
    %c0_504 = arith.constant 0 : index
    %c0_505 = arith.constant 0 : index
    %966 = vector.load %arg1[%c18_503, %c0_504, %c0_505] : memref<20x8x2xf32, #tpu.memory_space<vmem>>, vector<1x8x2xf32>
    %967 = vector.shape_cast %966 : vector<1x8x2xf32> to vector<8x2xf32>
    %968 = arith.cmpf ole, %967, %856 : vector<8x2xf32>
    %969 = arith.extui %968 : vector<8x2xi1> to vector<8x2xi32>
    %970 = arith.sitofp %969 : vector<8x2xi32> to vector<8x2xf32>
    %971 = arith.addf %965, %970 : vector<8x2xf32>
    %c19_506 = arith.constant 19 : index
    %c0_507 = arith.constant 0 : index
    %c0_508 = arith.constant 0 : index
    %972 = vector.load %arg1[%c19_506, %c0_507, %c0_508] : memref<20x8x2xf32, #tpu.memory_space<vmem>>, vector<1x8x2xf32>
    %973 = vector.shape_cast %972 : vector<1x8x2xf32> to vector<8x2xf32>
    %974 = arith.cmpf ole, %973, %856 : vector<8x2xf32>
    %975 = arith.extui %974 : vector<8x2xi1> to vector<8x2xi32>
    %976 = arith.sitofp %975 : vector<8x2xi32> to vector<8x2xf32>
    %977 = arith.addf %971, %976 : vector<8x2xf32>
    %cst_509 = arith.constant 1.000000e+01 : f32
    %978 = vector.broadcast %cst_509 : f32 to vector<8x2xf32>
    %979 = arith.cmpf oge, %977, %978 : vector<8x2xf32>
    %cst_510 = arith.constant 0x7F800000 : f32
    %980 = vector.broadcast %cst_510 : f32 to vector<8x2xf32>
    %981 = arith.select %979, %856, %980 : vector<8x2xi1>, vector<8x2xf32>
    %982 = arith.minimumf %854, %981 : vector<8x2xf32>
    %c6_511 = arith.constant 6 : index
    %c0_512 = arith.constant 0 : index
    %c0_513 = arith.constant 0 : index
    %983 = vector.load %arg1[%c6_511, %c0_512, %c0_513] : memref<20x8x2xf32, #tpu.memory_space<vmem>>, vector<1x8x2xf32>
    %984 = vector.shape_cast %983 : vector<1x8x2xf32> to vector<8x2xf32>
    %cst_514 = arith.constant 0.000000e+00 : f32
    %985 = vector.broadcast %cst_514 : f32 to vector<8x2xf32>
    %c0_515 = arith.constant 0 : index
    %c0_516 = arith.constant 0 : index
    %c0_517 = arith.constant 0 : index
    %986 = vector.load %arg1[%c0_515, %c0_516, %c0_517] : memref<20x8x2xf32, #tpu.memory_space<vmem>>, vector<1x8x2xf32>
    %987 = vector.shape_cast %986 : vector<1x8x2xf32> to vector<8x2xf32>
    %988 = arith.cmpf ole, %987, %984 : vector<8x2xf32>
    %989 = arith.extui %988 : vector<8x2xi1> to vector<8x2xi32>
    %990 = arith.sitofp %989 : vector<8x2xi32> to vector<8x2xf32>
    %991 = arith.addf %985, %990 : vector<8x2xf32>
    %c1_518 = arith.constant 1 : index
    %c0_519 = arith.constant 0 : index
    %c0_520 = arith.constant 0 : index
    %992 = vector.load %arg1[%c1_518, %c0_519, %c0_520] : memref<20x8x2xf32, #tpu.memory_space<vmem>>, vector<1x8x2xf32>
    %993 = vector.shape_cast %992 : vector<1x8x2xf32> to vector<8x2xf32>
    %994 = arith.cmpf ole, %993, %984 : vector<8x2xf32>
    %995 = arith.extui %994 : vector<8x2xi1> to vector<8x2xi32>
    %996 = arith.sitofp %995 : vector<8x2xi32> to vector<8x2xf32>
    %997 = arith.addf %991, %996 : vector<8x2xf32>
    %c2_521 = arith.constant 2 : index
    %c0_522 = arith.constant 0 : index
    %c0_523 = arith.constant 0 : index
    %998 = vector.load %arg1[%c2_521, %c0_522, %c0_523] : memref<20x8x2xf32, #tpu.memory_space<vmem>>, vector<1x8x2xf32>
    %999 = vector.shape_cast %998 : vector<1x8x2xf32> to vector<8x2xf32>
    %1000 = arith.cmpf ole, %999, %984 : vector<8x2xf32>
    %1001 = arith.extui %1000 : vector<8x2xi1> to vector<8x2xi32>
    %1002 = arith.sitofp %1001 : vector<8x2xi32> to vector<8x2xf32>
    %1003 = arith.addf %997, %1002 : vector<8x2xf32>
    %c3_524 = arith.constant 3 : index
    %c0_525 = arith.constant 0 : index
    %c0_526 = arith.constant 0 : index
    %1004 = vector.load %arg1[%c3_524, %c0_525, %c0_526] : memref<20x8x2xf32, #tpu.memory_space<vmem>>, vector<1x8x2xf32>
    %1005 = vector.shape_cast %1004 : vector<1x8x2xf32> to vector<8x2xf32>
    %1006 = arith.cmpf ole, %1005, %984 : vector<8x2xf32>
    %1007 = arith.extui %1006 : vector<8x2xi1> to vector<8x2xi32>
    %1008 = arith.sitofp %1007 : vector<8x2xi32> to vector<8x2xf32>
    %1009 = arith.addf %1003, %1008 : vector<8x2xf32>
    %c4_527 = arith.constant 4 : index
    %c0_528 = arith.constant 0 : index
    %c0_529 = arith.constant 0 : index
    %1010 = vector.load %arg1[%c4_527, %c0_528, %c0_529] : memref<20x8x2xf32, #tpu.memory_space<vmem>>, vector<1x8x2xf32>
    %1011 = vector.shape_cast %1010 : vector<1x8x2xf32> to vector<8x2xf32>
    %1012 = arith.cmpf ole, %1011, %984 : vector<8x2xf32>
    %1013 = arith.extui %1012 : vector<8x2xi1> to vector<8x2xi32>
    %1014 = arith.sitofp %1013 : vector<8x2xi32> to vector<8x2xf32>
    %1015 = arith.addf %1009, %1014 : vector<8x2xf32>
    %c5_530 = arith.constant 5 : index
    %c0_531 = arith.constant 0 : index
    %c0_532 = arith.constant 0 : index
    %1016 = vector.load %arg1[%c5_530, %c0_531, %c0_532] : memref<20x8x2xf32, #tpu.memory_space<vmem>>, vector<1x8x2xf32>
    %1017 = vector.shape_cast %1016 : vector<1x8x2xf32> to vector<8x2xf32>
    %1018 = arith.cmpf ole, %1017, %984 : vector<8x2xf32>
    %1019 = arith.extui %1018 : vector<8x2xi1> to vector<8x2xi32>
    %1020 = arith.sitofp %1019 : vector<8x2xi32> to vector<8x2xf32>
    %1021 = arith.addf %1015, %1020 : vector<8x2xf32>
    %c6_533 = arith.constant 6 : index
    %c0_534 = arith.constant 0 : index
    %c0_535 = arith.constant 0 : index
    %1022 = vector.load %arg1[%c6_533, %c0_534, %c0_535] : memref<20x8x2xf32, #tpu.memory_space<vmem>>, vector<1x8x2xf32>
    %1023 = vector.shape_cast %1022 : vector<1x8x2xf32> to vector<8x2xf32>
    %1024 = arith.cmpf ole, %1023, %984 : vector<8x2xf32>
    %1025 = arith.extui %1024 : vector<8x2xi1> to vector<8x2xi32>
    %1026 = arith.sitofp %1025 : vector<8x2xi32> to vector<8x2xf32>
    %1027 = arith.addf %1021, %1026 : vector<8x2xf32>
    %c7_536 = arith.constant 7 : index
    %c0_537 = arith.constant 0 : index
    %c0_538 = arith.constant 0 : index
    %1028 = vector.load %arg1[%c7_536, %c0_537, %c0_538] : memref<20x8x2xf32, #tpu.memory_space<vmem>>, vector<1x8x2xf32>
    %1029 = vector.shape_cast %1028 : vector<1x8x2xf32> to vector<8x2xf32>
    %1030 = arith.cmpf ole, %1029, %984 : vector<8x2xf32>
    %1031 = arith.extui %1030 : vector<8x2xi1> to vector<8x2xi32>
    %1032 = arith.sitofp %1031 : vector<8x2xi32> to vector<8x2xf32>
    %1033 = arith.addf %1027, %1032 : vector<8x2xf32>
    %c8_539 = arith.constant 8 : index
    %c0_540 = arith.constant 0 : index
    %c0_541 = arith.constant 0 : index
    %1034 = vector.load %arg1[%c8_539, %c0_540, %c0_541] : memref<20x8x2xf32, #tpu.memory_space<vmem>>, vector<1x8x2xf32>
    %1035 = vector.shape_cast %1034 : vector<1x8x2xf32> to vector<8x2xf32>
    %1036 = arith.cmpf ole, %1035, %984 : vector<8x2xf32>
    %1037 = arith.extui %1036 : vector<8x2xi1> to vector<8x2xi32>
    %1038 = arith.sitofp %1037 : vector<8x2xi32> to vector<8x2xf32>
    %1039 = arith.addf %1033, %1038 : vector<8x2xf32>
    %c9_542 = arith.constant 9 : index
    %c0_543 = arith.constant 0 : index
    %c0_544 = arith.constant 0 : index
    %1040 = vector.load %arg1[%c9_542, %c0_543, %c0_544] : memref<20x8x2xf32, #tpu.memory_space<vmem>>, vector<1x8x2xf32>
    %1041 = vector.shape_cast %1040 : vector<1x8x2xf32> to vector<8x2xf32>
    %1042 = arith.cmpf ole, %1041, %984 : vector<8x2xf32>
    %1043 = arith.extui %1042 : vector<8x2xi1> to vector<8x2xi32>
    %1044 = arith.sitofp %1043 : vector<8x2xi32> to vector<8x2xf32>
    %1045 = arith.addf %1039, %1044 : vector<8x2xf32>
    %c10_545 = arith.constant 10 : index
    %c0_546 = arith.constant 0 : index
    %c0_547 = arith.constant 0 : index
    %1046 = vector.load %arg1[%c10_545, %c0_546, %c0_547] : memref<20x8x2xf32, #tpu.memory_space<vmem>>, vector<1x8x2xf32>
    %1047 = vector.shape_cast %1046 : vector<1x8x2xf32> to vector<8x2xf32>
    %1048 = arith.cmpf ole, %1047, %984 : vector<8x2xf32>
    %1049 = arith.extui %1048 : vector<8x2xi1> to vector<8x2xi32>
    %1050 = arith.sitofp %1049 : vector<8x2xi32> to vector<8x2xf32>
    %1051 = arith.addf %1045, %1050 : vector<8x2xf32>
    %c11_548 = arith.constant 11 : index
    %c0_549 = arith.constant 0 : index
    %c0_550 = arith.constant 0 : index
    %1052 = vector.load %arg1[%c11_548, %c0_549, %c0_550] : memref<20x8x2xf32, #tpu.memory_space<vmem>>, vector<1x8x2xf32>
    %1053 = vector.shape_cast %1052 : vector<1x8x2xf32> to vector<8x2xf32>
    %1054 = arith.cmpf ole, %1053, %984 : vector<8x2xf32>
    %1055 = arith.extui %1054 : vector<8x2xi1> to vector<8x2xi32>
    %1056 = arith.sitofp %1055 : vector<8x2xi32> to vector<8x2xf32>
    %1057 = arith.addf %1051, %1056 : vector<8x2xf32>
    %c12_551 = arith.constant 12 : index
    %c0_552 = arith.constant 0 : index
    %c0_553 = arith.constant 0 : index
    %1058 = vector.load %arg1[%c12_551, %c0_552, %c0_553] : memref<20x8x2xf32, #tpu.memory_space<vmem>>, vector<1x8x2xf32>
    %1059 = vector.shape_cast %1058 : vector<1x8x2xf32> to vector<8x2xf32>
    %1060 = arith.cmpf ole, %1059, %984 : vector<8x2xf32>
    %1061 = arith.extui %1060 : vector<8x2xi1> to vector<8x2xi32>
    %1062 = arith.sitofp %1061 : vector<8x2xi32> to vector<8x2xf32>
    %1063 = arith.addf %1057, %1062 : vector<8x2xf32>
    %c13_554 = arith.constant 13 : index
    %c0_555 = arith.constant 0 : index
    %c0_556 = arith.constant 0 : index
    %1064 = vector.load %arg1[%c13_554, %c0_555, %c0_556] : memref<20x8x2xf32, #tpu.memory_space<vmem>>, vector<1x8x2xf32>
    %1065 = vector.shape_cast %1064 : vector<1x8x2xf32> to vector<8x2xf32>
    %1066 = arith.cmpf ole, %1065, %984 : vector<8x2xf32>
    %1067 = arith.extui %1066 : vector<8x2xi1> to vector<8x2xi32>
    %1068 = arith.sitofp %1067 : vector<8x2xi32> to vector<8x2xf32>
    %1069 = arith.addf %1063, %1068 : vector<8x2xf32>
    %c14_557 = arith.constant 14 : index
    %c0_558 = arith.constant 0 : index
    %c0_559 = arith.constant 0 : index
    %1070 = vector.load %arg1[%c14_557, %c0_558, %c0_559] : memref<20x8x2xf32, #tpu.memory_space<vmem>>, vector<1x8x2xf32>
    %1071 = vector.shape_cast %1070 : vector<1x8x2xf32> to vector<8x2xf32>
    %1072 = arith.cmpf ole, %1071, %984 : vector<8x2xf32>
    %1073 = arith.extui %1072 : vector<8x2xi1> to vector<8x2xi32>
    %1074 = arith.sitofp %1073 : vector<8x2xi32> to vector<8x2xf32>
    %1075 = arith.addf %1069, %1074 : vector<8x2xf32>
    %c15_560 = arith.constant 15 : index
    %c0_561 = arith.constant 0 : index
    %c0_562 = arith.constant 0 : index
    %1076 = vector.load %arg1[%c15_560, %c0_561, %c0_562] : memref<20x8x2xf32, #tpu.memory_space<vmem>>, vector<1x8x2xf32>
    %1077 = vector.shape_cast %1076 : vector<1x8x2xf32> to vector<8x2xf32>
    %1078 = arith.cmpf ole, %1077, %984 : vector<8x2xf32>
    %1079 = arith.extui %1078 : vector<8x2xi1> to vector<8x2xi32>
    %1080 = arith.sitofp %1079 : vector<8x2xi32> to vector<8x2xf32>
    %1081 = arith.addf %1075, %1080 : vector<8x2xf32>
    %c16_563 = arith.constant 16 : index
    %c0_564 = arith.constant 0 : index
    %c0_565 = arith.constant 0 : index
    %1082 = vector.load %arg1[%c16_563, %c0_564, %c0_565] : memref<20x8x2xf32, #tpu.memory_space<vmem>>, vector<1x8x2xf32>
    %1083 = vector.shape_cast %1082 : vector<1x8x2xf32> to vector<8x2xf32>
    %1084 = arith.cmpf ole, %1083, %984 : vector<8x2xf32>
    %1085 = arith.extui %1084 : vector<8x2xi1> to vector<8x2xi32>
    %1086 = arith.sitofp %1085 : vector<8x2xi32> to vector<8x2xf32>
    %1087 = arith.addf %1081, %1086 : vector<8x2xf32>
    %c17_566 = arith.constant 17 : index
    %c0_567 = arith.constant 0 : index
    %c0_568 = arith.constant 0 : index
    %1088 = vector.load %arg1[%c17_566, %c0_567, %c0_568] : memref<20x8x2xf32, #tpu.memory_space<vmem>>, vector<1x8x2xf32>
    %1089 = vector.shape_cast %1088 : vector<1x8x2xf32> to vector<8x2xf32>
    %1090 = arith.cmpf ole, %1089, %984 : vector<8x2xf32>
    %1091 = arith.extui %1090 : vector<8x2xi1> to vector<8x2xi32>
    %1092 = arith.sitofp %1091 : vector<8x2xi32> to vector<8x2xf32>
    %1093 = arith.addf %1087, %1092 : vector<8x2xf32>
    %c18_569 = arith.constant 18 : index
    %c0_570 = arith.constant 0 : index
    %c0_571 = arith.constant 0 : index
    %1094 = vector.load %arg1[%c18_569, %c0_570, %c0_571] : memref<20x8x2xf32, #tpu.memory_space<vmem>>, vector<1x8x2xf32>
    %1095 = vector.shape_cast %1094 : vector<1x8x2xf32> to vector<8x2xf32>
    %1096 = arith.cmpf ole, %1095, %984 : vector<8x2xf32>
    %1097 = arith.extui %1096 : vector<8x2xi1> to vector<8x2xi32>
    %1098 = arith.sitofp %1097 : vector<8x2xi32> to vector<8x2xf32>
    %1099 = arith.addf %1093, %1098 : vector<8x2xf32>
    %c19_572 = arith.constant 19 : index
    %c0_573 = arith.constant 0 : index
    %c0_574 = arith.constant 0 : index
    %1100 = vector.load %arg1[%c19_572, %c0_573, %c0_574] : memref<20x8x2xf32, #tpu.memory_space<vmem>>, vector<1x8x2xf32>
    %1101 = vector.shape_cast %1100 : vector<1x8x2xf32> to vector<8x2xf32>
    %1102 = arith.cmpf ole, %1101, %984 : vector<8x2xf32>
    %1103 = arith.extui %1102 : vector<8x2xi1> to vector<8x2xi32>
    %1104 = arith.sitofp %1103 : vector<8x2xi32> to vector<8x2xf32>
    %1105 = arith.addf %1099, %1104 : vector<8x2xf32>
    %cst_575 = arith.constant 1.000000e+01 : f32
    %1106 = vector.broadcast %cst_575 : f32 to vector<8x2xf32>
    %1107 = arith.cmpf oge, %1105, %1106 : vector<8x2xf32>
    %cst_576 = arith.constant 0x7F800000 : f32
    %1108 = vector.broadcast %cst_576 : f32 to vector<8x2xf32>
    %1109 = arith.select %1107, %984, %1108 : vector<8x2xi1>, vector<8x2xf32>
    %1110 = arith.minimumf %982, %1109 : vector<8x2xf32>
    %c7_577 = arith.constant 7 : index
    %c0_578 = arith.constant 0 : index
    %c0_579 = arith.constant 0 : index
    %1111 = vector.load %arg1[%c7_577, %c0_578, %c0_579] : memref<20x8x2xf32, #tpu.memory_space<vmem>>, vector<1x8x2xf32>
    %1112 = vector.shape_cast %1111 : vector<1x8x2xf32> to vector<8x2xf32>
    %cst_580 = arith.constant 0.000000e+00 : f32
    %1113 = vector.broadcast %cst_580 : f32 to vector<8x2xf32>
    %c0_581 = arith.constant 0 : index
    %c0_582 = arith.constant 0 : index
    %c0_583 = arith.constant 0 : index
    %1114 = vector.load %arg1[%c0_581, %c0_582, %c0_583] : memref<20x8x2xf32, #tpu.memory_space<vmem>>, vector<1x8x2xf32>
    %1115 = vector.shape_cast %1114 : vector<1x8x2xf32> to vector<8x2xf32>
    %1116 = arith.cmpf ole, %1115, %1112 : vector<8x2xf32>
    %1117 = arith.extui %1116 : vector<8x2xi1> to vector<8x2xi32>
    %1118 = arith.sitofp %1117 : vector<8x2xi32> to vector<8x2xf32>
    %1119 = arith.addf %1113, %1118 : vector<8x2xf32>
    %c1_584 = arith.constant 1 : index
    %c0_585 = arith.constant 0 : index
    %c0_586 = arith.constant 0 : index
    %1120 = vector.load %arg1[%c1_584, %c0_585, %c0_586] : memref<20x8x2xf32, #tpu.memory_space<vmem>>, vector<1x8x2xf32>
    %1121 = vector.shape_cast %1120 : vector<1x8x2xf32> to vector<8x2xf32>
    %1122 = arith.cmpf ole, %1121, %1112 : vector<8x2xf32>
    %1123 = arith.extui %1122 : vector<8x2xi1> to vector<8x2xi32>
    %1124 = arith.sitofp %1123 : vector<8x2xi32> to vector<8x2xf32>
    %1125 = arith.addf %1119, %1124 : vector<8x2xf32>
    %c2_587 = arith.constant 2 : index
    %c0_588 = arith.constant 0 : index
    %c0_589 = arith.constant 0 : index
    %1126 = vector.load %arg1[%c2_587, %c0_588, %c0_589] : memref<20x8x2xf32, #tpu.memory_space<vmem>>, vector<1x8x2xf32>
    %1127 = vector.shape_cast %1126 : vector<1x8x2xf32> to vector<8x2xf32>
    %1128 = arith.cmpf ole, %1127, %1112 : vector<8x2xf32>
    %1129 = arith.extui %1128 : vector<8x2xi1> to vector<8x2xi32>
    %1130 = arith.sitofp %1129 : vector<8x2xi32> to vector<8x2xf32>
    %1131 = arith.addf %1125, %1130 : vector<8x2xf32>
    %c3_590 = arith.constant 3 : index
    %c0_591 = arith.constant 0 : index
    %c0_592 = arith.constant 0 : index
    %1132 = vector.load %arg1[%c3_590, %c0_591, %c0_592] : memref<20x8x2xf32, #tpu.memory_space<vmem>>, vector<1x8x2xf32>
    %1133 = vector.shape_cast %1132 : vector<1x8x2xf32> to vector<8x2xf32>
    %1134 = arith.cmpf ole, %1133, %1112 : vector<8x2xf32>
    %1135 = arith.extui %1134 : vector<8x2xi1> to vector<8x2xi32>
    %1136 = arith.sitofp %1135 : vector<8x2xi32> to vector<8x2xf32>
    %1137 = arith.addf %1131, %1136 : vector<8x2xf32>
    %c4_593 = arith.constant 4 : index
    %c0_594 = arith.constant 0 : index
    %c0_595 = arith.constant 0 : index
    %1138 = vector.load %arg1[%c4_593, %c0_594, %c0_595] : memref<20x8x2xf32, #tpu.memory_space<vmem>>, vector<1x8x2xf32>
    %1139 = vector.shape_cast %1138 : vector<1x8x2xf32> to vector<8x2xf32>
    %1140 = arith.cmpf ole, %1139, %1112 : vector<8x2xf32>
    %1141 = arith.extui %1140 : vector<8x2xi1> to vector<8x2xi32>
    %1142 = arith.sitofp %1141 : vector<8x2xi32> to vector<8x2xf32>
    %1143 = arith.addf %1137, %1142 : vector<8x2xf32>
    %c5_596 = arith.constant 5 : index
    %c0_597 = arith.constant 0 : index
    %c0_598 = arith.constant 0 : index
    %1144 = vector.load %arg1[%c5_596, %c0_597, %c0_598] : memref<20x8x2xf32, #tpu.memory_space<vmem>>, vector<1x8x2xf32>
    %1145 = vector.shape_cast %1144 : vector<1x8x2xf32> to vector<8x2xf32>
    %1146 = arith.cmpf ole, %1145, %1112 : vector<8x2xf32>
    %1147 = arith.extui %1146 : vector<8x2xi1> to vector<8x2xi32>
    %1148 = arith.sitofp %1147 : vector<8x2xi32> to vector<8x2xf32>
    %1149 = arith.addf %1143, %1148 : vector<8x2xf32>
    %c6_599 = arith.constant 6 : index
    %c0_600 = arith.constant 0 : index
    %c0_601 = arith.constant 0 : index
    %1150 = vector.load %arg1[%c6_599, %c0_600, %c0_601] : memref<20x8x2xf32, #tpu.memory_space<vmem>>, vector<1x8x2xf32>
    %1151 = vector.shape_cast %1150 : vector<1x8x2xf32> to vector<8x2xf32>
    %1152 = arith.cmpf ole, %1151, %1112 : vector<8x2xf32>
    %1153 = arith.extui %1152 : vector<8x2xi1> to vector<8x2xi32>
    %1154 = arith.sitofp %1153 : vector<8x2xi32> to vector<8x2xf32>
    %1155 = arith.addf %1149, %1154 : vector<8x2xf32>
    %c7_602 = arith.constant 7 : index
    %c0_603 = arith.constant 0 : index
    %c0_604 = arith.constant 0 : index
    %1156 = vector.load %arg1[%c7_602, %c0_603, %c0_604] : memref<20x8x2xf32, #tpu.memory_space<vmem>>, vector<1x8x2xf32>
    %1157 = vector.shape_cast %1156 : vector<1x8x2xf32> to vector<8x2xf32>
    %1158 = arith.cmpf ole, %1157, %1112 : vector<8x2xf32>
    %1159 = arith.extui %1158 : vector<8x2xi1> to vector<8x2xi32>
    %1160 = arith.sitofp %1159 : vector<8x2xi32> to vector<8x2xf32>
    %1161 = arith.addf %1155, %1160 : vector<8x2xf32>
    %c8_605 = arith.constant 8 : index
    %c0_606 = arith.constant 0 : index
    %c0_607 = arith.constant 0 : index
    %1162 = vector.load %arg1[%c8_605, %c0_606, %c0_607] : memref<20x8x2xf32, #tpu.memory_space<vmem>>, vector<1x8x2xf32>
    %1163 = vector.shape_cast %1162 : vector<1x8x2xf32> to vector<8x2xf32>
    %1164 = arith.cmpf ole, %1163, %1112 : vector<8x2xf32>
    %1165 = arith.extui %1164 : vector<8x2xi1> to vector<8x2xi32>
    %1166 = arith.sitofp %1165 : vector<8x2xi32> to vector<8x2xf32>
    %1167 = arith.addf %1161, %1166 : vector<8x2xf32>
    %c9_608 = arith.constant 9 : index
    %c0_609 = arith.constant 0 : index
    %c0_610 = arith.constant 0 : index
    %1168 = vector.load %arg1[%c9_608, %c0_609, %c0_610] : memref<20x8x2xf32, #tpu.memory_space<vmem>>, vector<1x8x2xf32>
    %1169 = vector.shape_cast %1168 : vector<1x8x2xf32> to vector<8x2xf32>
    %1170 = arith.cmpf ole, %1169, %1112 : vector<8x2xf32>
    %1171 = arith.extui %1170 : vector<8x2xi1> to vector<8x2xi32>
    %1172 = arith.sitofp %1171 : vector<8x2xi32> to vector<8x2xf32>
    %1173 = arith.addf %1167, %1172 : vector<8x2xf32>
    %c10_611 = arith.constant 10 : index
    %c0_612 = arith.constant 0 : index
    %c0_613 = arith.constant 0 : index
    %1174 = vector.load %arg1[%c10_611, %c0_612, %c0_613] : memref<20x8x2xf32, #tpu.memory_space<vmem>>, vector<1x8x2xf32>
    %1175 = vector.shape_cast %1174 : vector<1x8x2xf32> to vector<8x2xf32>
    %1176 = arith.cmpf ole, %1175, %1112 : vector<8x2xf32>
    %1177 = arith.extui %1176 : vector<8x2xi1> to vector<8x2xi32>
    %1178 = arith.sitofp %1177 : vector<8x2xi32> to vector<8x2xf32>
    %1179 = arith.addf %1173, %1178 : vector<8x2xf32>
    %c11_614 = arith.constant 11 : index
    %c0_615 = arith.constant 0 : index
    %c0_616 = arith.constant 0 : index
    %1180 = vector.load %arg1[%c11_614, %c0_615, %c0_616] : memref<20x8x2xf32, #tpu.memory_space<vmem>>, vector<1x8x2xf32>
    %1181 = vector.shape_cast %1180 : vector<1x8x2xf32> to vector<8x2xf32>
    %1182 = arith.cmpf ole, %1181, %1112 : vector<8x2xf32>
    %1183 = arith.extui %1182 : vector<8x2xi1> to vector<8x2xi32>
    %1184 = arith.sitofp %1183 : vector<8x2xi32> to vector<8x2xf32>
    %1185 = arith.addf %1179, %1184 : vector<8x2xf32>
    %c12_617 = arith.constant 12 : index
    %c0_618 = arith.constant 0 : index
    %c0_619 = arith.constant 0 : index
    %1186 = vector.load %arg1[%c12_617, %c0_618, %c0_619] : memref<20x8x2xf32, #tpu.memory_space<vmem>>, vector<1x8x2xf32>
    %1187 = vector.shape_cast %1186 : vector<1x8x2xf32> to vector<8x2xf32>
    %1188 = arith.cmpf ole, %1187, %1112 : vector<8x2xf32>
    %1189 = arith.extui %1188 : vector<8x2xi1> to vector<8x2xi32>
    %1190 = arith.sitofp %1189 : vector<8x2xi32> to vector<8x2xf32>
    %1191 = arith.addf %1185, %1190 : vector<8x2xf32>
    %c13_620 = arith.constant 13 : index
    %c0_621 = arith.constant 0 : index
    %c0_622 = arith.constant 0 : index
    %1192 = vector.load %arg1[%c13_620, %c0_621, %c0_622] : memref<20x8x2xf32, #tpu.memory_space<vmem>>, vector<1x8x2xf32>
    %1193 = vector.shape_cast %1192 : vector<1x8x2xf32> to vector<8x2xf32>
    %1194 = arith.cmpf ole, %1193, %1112 : vector<8x2xf32>
    %1195 = arith.extui %1194 : vector<8x2xi1> to vector<8x2xi32>
    %1196 = arith.sitofp %1195 : vector<8x2xi32> to vector<8x2xf32>
    %1197 = arith.addf %1191, %1196 : vector<8x2xf32>
    %c14_623 = arith.constant 14 : index
    %c0_624 = arith.constant 0 : index
    %c0_625 = arith.constant 0 : index
    %1198 = vector.load %arg1[%c14_623, %c0_624, %c0_625] : memref<20x8x2xf32, #tpu.memory_space<vmem>>, vector<1x8x2xf32>
    %1199 = vector.shape_cast %1198 : vector<1x8x2xf32> to vector<8x2xf32>
    %1200 = arith.cmpf ole, %1199, %1112 : vector<8x2xf32>
    %1201 = arith.extui %1200 : vector<8x2xi1> to vector<8x2xi32>
    %1202 = arith.sitofp %1201 : vector<8x2xi32> to vector<8x2xf32>
    %1203 = arith.addf %1197, %1202 : vector<8x2xf32>
    %c15_626 = arith.constant 15 : index
    %c0_627 = arith.constant 0 : index
    %c0_628 = arith.constant 0 : index
    %1204 = vector.load %arg1[%c15_626, %c0_627, %c0_628] : memref<20x8x2xf32, #tpu.memory_space<vmem>>, vector<1x8x2xf32>
    %1205 = vector.shape_cast %1204 : vector<1x8x2xf32> to vector<8x2xf32>
    %1206 = arith.cmpf ole, %1205, %1112 : vector<8x2xf32>
    %1207 = arith.extui %1206 : vector<8x2xi1> to vector<8x2xi32>
    %1208 = arith.sitofp %1207 : vector<8x2xi32> to vector<8x2xf32>
    %1209 = arith.addf %1203, %1208 : vector<8x2xf32>
    %c16_629 = arith.constant 16 : index
    %c0_630 = arith.constant 0 : index
    %c0_631 = arith.constant 0 : index
    %1210 = vector.load %arg1[%c16_629, %c0_630, %c0_631] : memref<20x8x2xf32, #tpu.memory_space<vmem>>, vector<1x8x2xf32>
    %1211 = vector.shape_cast %1210 : vector<1x8x2xf32> to vector<8x2xf32>
    %1212 = arith.cmpf ole, %1211, %1112 : vector<8x2xf32>
    %1213 = arith.extui %1212 : vector<8x2xi1> to vector<8x2xi32>
    %1214 = arith.sitofp %1213 : vector<8x2xi32> to vector<8x2xf32>
    %1215 = arith.addf %1209, %1214 : vector<8x2xf32>
    %c17_632 = arith.constant 17 : index
    %c0_633 = arith.constant 0 : index
    %c0_634 = arith.constant 0 : index
    %1216 = vector.load %arg1[%c17_632, %c0_633, %c0_634] : memref<20x8x2xf32, #tpu.memory_space<vmem>>, vector<1x8x2xf32>
    %1217 = vector.shape_cast %1216 : vector<1x8x2xf32> to vector<8x2xf32>
    %1218 = arith.cmpf ole, %1217, %1112 : vector<8x2xf32>
    %1219 = arith.extui %1218 : vector<8x2xi1> to vector<8x2xi32>
    %1220 = arith.sitofp %1219 : vector<8x2xi32> to vector<8x2xf32>
    %1221 = arith.addf %1215, %1220 : vector<8x2xf32>
    %c18_635 = arith.constant 18 : index
    %c0_636 = arith.constant 0 : index
    %c0_637 = arith.constant 0 : index
    %1222 = vector.load %arg1[%c18_635, %c0_636, %c0_637] : memref<20x8x2xf32, #tpu.memory_space<vmem>>, vector<1x8x2xf32>
    %1223 = vector.shape_cast %1222 : vector<1x8x2xf32> to vector<8x2xf32>
    %1224 = arith.cmpf ole, %1223, %1112 : vector<8x2xf32>
    %1225 = arith.extui %1224 : vector<8x2xi1> to vector<8x2xi32>
    %1226 = arith.sitofp %1225 : vector<8x2xi32> to vector<8x2xf32>
    %1227 = arith.addf %1221, %1226 : vector<8x2xf32>
    %c19_638 = arith.constant 19 : index
    %c0_639 = arith.constant 0 : index
    %c0_640 = arith.constant 0 : index
    %1228 = vector.load %arg1[%c19_638, %c0_639, %c0_640] : memref<20x8x2xf32, #tpu.memory_space<vmem>>, vector<1x8x2xf32>
    %1229 = vector.shape_cast %1228 : vector<1x8x2xf32> to vector<8x2xf32>
    %1230 = arith.cmpf ole, %1229, %1112 : vector<8x2xf32>
    %1231 = arith.extui %1230 : vector<8x2xi1> to vector<8x2xi32>
    %1232 = arith.sitofp %1231 : vector<8x2xi32> to vector<8x2xf32>
    %1233 = arith.addf %1227, %1232 : vector<8x2xf32>
    %cst_641 = arith.constant 1.000000e+01 : f32
    %1234 = vector.broadcast %cst_641 : f32 to vector<8x2xf32>
    %1235 = arith.cmpf oge, %1233, %1234 : vector<8x2xf32>
    %cst_642 = arith.constant 0x7F800000 : f32
    %1236 = vector.broadcast %cst_642 : f32 to vector<8x2xf32>
    %1237 = arith.select %1235, %1112, %1236 : vector<8x2xi1>, vector<8x2xf32>
    %1238 = arith.minimumf %1110, %1237 : vector<8x2xf32>
    %c8_643 = arith.constant 8 : index
    %c0_644 = arith.constant 0 : index
    %c0_645 = arith.constant 0 : index
    %1239 = vector.load %arg1[%c8_643, %c0_644, %c0_645] : memref<20x8x2xf32, #tpu.memory_space<vmem>>, vector<1x8x2xf32>
    %1240 = vector.shape_cast %1239 : vector<1x8x2xf32> to vector<8x2xf32>
    %cst_646 = arith.constant 0.000000e+00 : f32
    %1241 = vector.broadcast %cst_646 : f32 to vector<8x2xf32>
    %c0_647 = arith.constant 0 : index
    %c0_648 = arith.constant 0 : index
    %c0_649 = arith.constant 0 : index
    %1242 = vector.load %arg1[%c0_647, %c0_648, %c0_649] : memref<20x8x2xf32, #tpu.memory_space<vmem>>, vector<1x8x2xf32>
    %1243 = vector.shape_cast %1242 : vector<1x8x2xf32> to vector<8x2xf32>
    %1244 = arith.cmpf ole, %1243, %1240 : vector<8x2xf32>
    %1245 = arith.extui %1244 : vector<8x2xi1> to vector<8x2xi32>
    %1246 = arith.sitofp %1245 : vector<8x2xi32> to vector<8x2xf32>
    %1247 = arith.addf %1241, %1246 : vector<8x2xf32>
    %c1_650 = arith.constant 1 : index
    %c0_651 = arith.constant 0 : index
    %c0_652 = arith.constant 0 : index
    %1248 = vector.load %arg1[%c1_650, %c0_651, %c0_652] : memref<20x8x2xf32, #tpu.memory_space<vmem>>, vector<1x8x2xf32>
    %1249 = vector.shape_cast %1248 : vector<1x8x2xf32> to vector<8x2xf32>
    %1250 = arith.cmpf ole, %1249, %1240 : vector<8x2xf32>
    %1251 = arith.extui %1250 : vector<8x2xi1> to vector<8x2xi32>
    %1252 = arith.sitofp %1251 : vector<8x2xi32> to vector<8x2xf32>
    %1253 = arith.addf %1247, %1252 : vector<8x2xf32>
    %c2_653 = arith.constant 2 : index
    %c0_654 = arith.constant 0 : index
    %c0_655 = arith.constant 0 : index
    %1254 = vector.load %arg1[%c2_653, %c0_654, %c0_655] : memref<20x8x2xf32, #tpu.memory_space<vmem>>, vector<1x8x2xf32>
    %1255 = vector.shape_cast %1254 : vector<1x8x2xf32> to vector<8x2xf32>
    %1256 = arith.cmpf ole, %1255, %1240 : vector<8x2xf32>
    %1257 = arith.extui %1256 : vector<8x2xi1> to vector<8x2xi32>
    %1258 = arith.sitofp %1257 : vector<8x2xi32> to vector<8x2xf32>
    %1259 = arith.addf %1253, %1258 : vector<8x2xf32>
    %c3_656 = arith.constant 3 : index
    %c0_657 = arith.constant 0 : index
    %c0_658 = arith.constant 0 : index
    %1260 = vector.load %arg1[%c3_656, %c0_657, %c0_658] : memref<20x8x2xf32, #tpu.memory_space<vmem>>, vector<1x8x2xf32>
    %1261 = vector.shape_cast %1260 : vector<1x8x2xf32> to vector<8x2xf32>
    %1262 = arith.cmpf ole, %1261, %1240 : vector<8x2xf32>
    %1263 = arith.extui %1262 : vector<8x2xi1> to vector<8x2xi32>
    %1264 = arith.sitofp %1263 : vector<8x2xi32> to vector<8x2xf32>
    %1265 = arith.addf %1259, %1264 : vector<8x2xf32>
    %c4_659 = arith.constant 4 : index
    %c0_660 = arith.constant 0 : index
    %c0_661 = arith.constant 0 : index
    %1266 = vector.load %arg1[%c4_659, %c0_660, %c0_661] : memref<20x8x2xf32, #tpu.memory_space<vmem>>, vector<1x8x2xf32>
    %1267 = vector.shape_cast %1266 : vector<1x8x2xf32> to vector<8x2xf32>
    %1268 = arith.cmpf ole, %1267, %1240 : vector<8x2xf32>
    %1269 = arith.extui %1268 : vector<8x2xi1> to vector<8x2xi32>
    %1270 = arith.sitofp %1269 : vector<8x2xi32> to vector<8x2xf32>
    %1271 = arith.addf %1265, %1270 : vector<8x2xf32>
    %c5_662 = arith.constant 5 : index
    %c0_663 = arith.constant 0 : index
    %c0_664 = arith.constant 0 : index
    %1272 = vector.load %arg1[%c5_662, %c0_663, %c0_664] : memref<20x8x2xf32, #tpu.memory_space<vmem>>, vector<1x8x2xf32>
    %1273 = vector.shape_cast %1272 : vector<1x8x2xf32> to vector<8x2xf32>
    %1274 = arith.cmpf ole, %1273, %1240 : vector<8x2xf32>
    %1275 = arith.extui %1274 : vector<8x2xi1> to vector<8x2xi32>
    %1276 = arith.sitofp %1275 : vector<8x2xi32> to vector<8x2xf32>
    %1277 = arith.addf %1271, %1276 : vector<8x2xf32>
    %c6_665 = arith.constant 6 : index
    %c0_666 = arith.constant 0 : index
    %c0_667 = arith.constant 0 : index
    %1278 = vector.load %arg1[%c6_665, %c0_666, %c0_667] : memref<20x8x2xf32, #tpu.memory_space<vmem>>, vector<1x8x2xf32>
    %1279 = vector.shape_cast %1278 : vector<1x8x2xf32> to vector<8x2xf32>
    %1280 = arith.cmpf ole, %1279, %1240 : vector<8x2xf32>
    %1281 = arith.extui %1280 : vector<8x2xi1> to vector<8x2xi32>
    %1282 = arith.sitofp %1281 : vector<8x2xi32> to vector<8x2xf32>
    %1283 = arith.addf %1277, %1282 : vector<8x2xf32>
    %c7_668 = arith.constant 7 : index
    %c0_669 = arith.constant 0 : index
    %c0_670 = arith.constant 0 : index
    %1284 = vector.load %arg1[%c7_668, %c0_669, %c0_670] : memref<20x8x2xf32, #tpu.memory_space<vmem>>, vector<1x8x2xf32>
    %1285 = vector.shape_cast %1284 : vector<1x8x2xf32> to vector<8x2xf32>
    %1286 = arith.cmpf ole, %1285, %1240 : vector<8x2xf32>
    %1287 = arith.extui %1286 : vector<8x2xi1> to vector<8x2xi32>
    %1288 = arith.sitofp %1287 : vector<8x2xi32> to vector<8x2xf32>
    %1289 = arith.addf %1283, %1288 : vector<8x2xf32>
    %c8_671 = arith.constant 8 : index
    %c0_672 = arith.constant 0 : index
    %c0_673 = arith.constant 0 : index
    %1290 = vector.load %arg1[%c8_671, %c0_672, %c0_673] : memref<20x8x2xf32, #tpu.memory_space<vmem>>, vector<1x8x2xf32>
    %1291 = vector.shape_cast %1290 : vector<1x8x2xf32> to vector<8x2xf32>
    %1292 = arith.cmpf ole, %1291, %1240 : vector<8x2xf32>
    %1293 = arith.extui %1292 : vector<8x2xi1> to vector<8x2xi32>
    %1294 = arith.sitofp %1293 : vector<8x2xi32> to vector<8x2xf32>
    %1295 = arith.addf %1289, %1294 : vector<8x2xf32>
    %c9_674 = arith.constant 9 : index
    %c0_675 = arith.constant 0 : index
    %c0_676 = arith.constant 0 : index
    %1296 = vector.load %arg1[%c9_674, %c0_675, %c0_676] : memref<20x8x2xf32, #tpu.memory_space<vmem>>, vector<1x8x2xf32>
    %1297 = vector.shape_cast %1296 : vector<1x8x2xf32> to vector<8x2xf32>
    %1298 = arith.cmpf ole, %1297, %1240 : vector<8x2xf32>
    %1299 = arith.extui %1298 : vector<8x2xi1> to vector<8x2xi32>
    %1300 = arith.sitofp %1299 : vector<8x2xi32> to vector<8x2xf32>
    %1301 = arith.addf %1295, %1300 : vector<8x2xf32>
    %c10_677 = arith.constant 10 : index
    %c0_678 = arith.constant 0 : index
    %c0_679 = arith.constant 0 : index
    %1302 = vector.load %arg1[%c10_677, %c0_678, %c0_679] : memref<20x8x2xf32, #tpu.memory_space<vmem>>, vector<1x8x2xf32>
    %1303 = vector.shape_cast %1302 : vector<1x8x2xf32> to vector<8x2xf32>
    %1304 = arith.cmpf ole, %1303, %1240 : vector<8x2xf32>
    %1305 = arith.extui %1304 : vector<8x2xi1> to vector<8x2xi32>
    %1306 = arith.sitofp %1305 : vector<8x2xi32> to vector<8x2xf32>
    %1307 = arith.addf %1301, %1306 : vector<8x2xf32>
    %c11_680 = arith.constant 11 : index
    %c0_681 = arith.constant 0 : index
    %c0_682 = arith.constant 0 : index
    %1308 = vector.load %arg1[%c11_680, %c0_681, %c0_682] : memref<20x8x2xf32, #tpu.memory_space<vmem>>, vector<1x8x2xf32>
    %1309 = vector.shape_cast %1308 : vector<1x8x2xf32> to vector<8x2xf32>
    %1310 = arith.cmpf ole, %1309, %1240 : vector<8x2xf32>
    %1311 = arith.extui %1310 : vector<8x2xi1> to vector<8x2xi32>
    %1312 = arith.sitofp %1311 : vector<8x2xi32> to vector<8x2xf32>
    %1313 = arith.addf %1307, %1312 : vector<8x2xf32>
    %c12_683 = arith.constant 12 : index
    %c0_684 = arith.constant 0 : index
    %c0_685 = arith.constant 0 : index
    %1314 = vector.load %arg1[%c12_683, %c0_684, %c0_685] : memref<20x8x2xf32, #tpu.memory_space<vmem>>, vector<1x8x2xf32>
    %1315 = vector.shape_cast %1314 : vector<1x8x2xf32> to vector<8x2xf32>
    %1316 = arith.cmpf ole, %1315, %1240 : vector<8x2xf32>
    %1317 = arith.extui %1316 : vector<8x2xi1> to vector<8x2xi32>
    %1318 = arith.sitofp %1317 : vector<8x2xi32> to vector<8x2xf32>
    %1319 = arith.addf %1313, %1318 : vector<8x2xf32>
    %c13_686 = arith.constant 13 : index
    %c0_687 = arith.constant 0 : index
    %c0_688 = arith.constant 0 : index
    %1320 = vector.load %arg1[%c13_686, %c0_687, %c0_688] : memref<20x8x2xf32, #tpu.memory_space<vmem>>, vector<1x8x2xf32>
    %1321 = vector.shape_cast %1320 : vector<1x8x2xf32> to vector<8x2xf32>
    %1322 = arith.cmpf ole, %1321, %1240 : vector<8x2xf32>
    %1323 = arith.extui %1322 : vector<8x2xi1> to vector<8x2xi32>
    %1324 = arith.sitofp %1323 : vector<8x2xi32> to vector<8x2xf32>
    %1325 = arith.addf %1319, %1324 : vector<8x2xf32>
    %c14_689 = arith.constant 14 : index
    %c0_690 = arith.constant 0 : index
    %c0_691 = arith.constant 0 : index
    %1326 = vector.load %arg1[%c14_689, %c0_690, %c0_691] : memref<20x8x2xf32, #tpu.memory_space<vmem>>, vector<1x8x2xf32>
    %1327 = vector.shape_cast %1326 : vector<1x8x2xf32> to vector<8x2xf32>
    %1328 = arith.cmpf ole, %1327, %1240 : vector<8x2xf32>
    %1329 = arith.extui %1328 : vector<8x2xi1> to vector<8x2xi32>
    %1330 = arith.sitofp %1329 : vector<8x2xi32> to vector<8x2xf32>
    %1331 = arith.addf %1325, %1330 : vector<8x2xf32>
    %c15_692 = arith.constant 15 : index
    %c0_693 = arith.constant 0 : index
    %c0_694 = arith.constant 0 : index
    %1332 = vector.load %arg1[%c15_692, %c0_693, %c0_694] : memref<20x8x2xf32, #tpu.memory_space<vmem>>, vector<1x8x2xf32>
    %1333 = vector.shape_cast %1332 : vector<1x8x2xf32> to vector<8x2xf32>
    %1334 = arith.cmpf ole, %1333, %1240 : vector<8x2xf32>
    %1335 = arith.extui %1334 : vector<8x2xi1> to vector<8x2xi32>
    %1336 = arith.sitofp %1335 : vector<8x2xi32> to vector<8x2xf32>
    %1337 = arith.addf %1331, %1336 : vector<8x2xf32>
    %c16_695 = arith.constant 16 : index
    %c0_696 = arith.constant 0 : index
    %c0_697 = arith.constant 0 : index
    %1338 = vector.load %arg1[%c16_695, %c0_696, %c0_697] : memref<20x8x2xf32, #tpu.memory_space<vmem>>, vector<1x8x2xf32>
    %1339 = vector.shape_cast %1338 : vector<1x8x2xf32> to vector<8x2xf32>
    %1340 = arith.cmpf ole, %1339, %1240 : vector<8x2xf32>
    %1341 = arith.extui %1340 : vector<8x2xi1> to vector<8x2xi32>
    %1342 = arith.sitofp %1341 : vector<8x2xi32> to vector<8x2xf32>
    %1343 = arith.addf %1337, %1342 : vector<8x2xf32>
    %c17_698 = arith.constant 17 : index
    %c0_699 = arith.constant 0 : index
    %c0_700 = arith.constant 0 : index
    %1344 = vector.load %arg1[%c17_698, %c0_699, %c0_700] : memref<20x8x2xf32, #tpu.memory_space<vmem>>, vector<1x8x2xf32>
    %1345 = vector.shape_cast %1344 : vector<1x8x2xf32> to vector<8x2xf32>
    %1346 = arith.cmpf ole, %1345, %1240 : vector<8x2xf32>
    %1347 = arith.extui %1346 : vector<8x2xi1> to vector<8x2xi32>
    %1348 = arith.sitofp %1347 : vector<8x2xi32> to vector<8x2xf32>
    %1349 = arith.addf %1343, %1348 : vector<8x2xf32>
    %c18_701 = arith.constant 18 : index
    %c0_702 = arith.constant 0 : index
    %c0_703 = arith.constant 0 : index
    %1350 = vector.load %arg1[%c18_701, %c0_702, %c0_703] : memref<20x8x2xf32, #tpu.memory_space<vmem>>, vector<1x8x2xf32>
    %1351 = vector.shape_cast %1350 : vector<1x8x2xf32> to vector<8x2xf32>
    %1352 = arith.cmpf ole, %1351, %1240 : vector<8x2xf32>
    %1353 = arith.extui %1352 : vector<8x2xi1> to vector<8x2xi32>
    %1354 = arith.sitofp %1353 : vector<8x2xi32> to vector<8x2xf32>
    %1355 = arith.addf %1349, %1354 : vector<8x2xf32>
    %c19_704 = arith.constant 19 : index
    %c0_705 = arith.constant 0 : index
    %c0_706 = arith.constant 0 : index
    %1356 = vector.load %arg1[%c19_704, %c0_705, %c0_706] : memref<20x8x2xf32, #tpu.memory_space<vmem>>, vector<1x8x2xf32>
    %1357 = vector.shape_cast %1356 : vector<1x8x2xf32> to vector<8x2xf32>
    %1358 = arith.cmpf ole, %1357, %1240 : vector<8x2xf32>
    %1359 = arith.extui %1358 : vector<8x2xi1> to vector<8x2xi32>
    %1360 = arith.sitofp %1359 : vector<8x2xi32> to vector<8x2xf32>
    %1361 = arith.addf %1355, %1360 : vector<8x2xf32>
    %cst_707 = arith.constant 1.000000e+01 : f32
    %1362 = vector.broadcast %cst_707 : f32 to vector<8x2xf32>
    %1363 = arith.cmpf oge, %1361, %1362 : vector<8x2xf32>
    %cst_708 = arith.constant 0x7F800000 : f32
    %1364 = vector.broadcast %cst_708 : f32 to vector<8x2xf32>
    %1365 = arith.select %1363, %1240, %1364 : vector<8x2xi1>, vector<8x2xf32>
    %1366 = arith.minimumf %1238, %1365 : vector<8x2xf32>
    %c9_709 = arith.constant 9 : index
    %c0_710 = arith.constant 0 : index
    %c0_711 = arith.constant 0 : index
    %1367 = vector.load %arg1[%c9_709, %c0_710, %c0_711] : memref<20x8x2xf32, #tpu.memory_space<vmem>>, vector<1x8x2xf32>
    %1368 = vector.shape_cast %1367 : vector<1x8x2xf32> to vector<8x2xf32>
    %cst_712 = arith.constant 0.000000e+00 : f32
    %1369 = vector.broadcast %cst_712 : f32 to vector<8x2xf32>
    %c0_713 = arith.constant 0 : index
    %c0_714 = arith.constant 0 : index
    %c0_715 = arith.constant 0 : index
    %1370 = vector.load %arg1[%c0_713, %c0_714, %c0_715] : memref<20x8x2xf32, #tpu.memory_space<vmem>>, vector<1x8x2xf32>
    %1371 = vector.shape_cast %1370 : vector<1x8x2xf32> to vector<8x2xf32>
    %1372 = arith.cmpf ole, %1371, %1368 : vector<8x2xf32>
    %1373 = arith.extui %1372 : vector<8x2xi1> to vector<8x2xi32>
    %1374 = arith.sitofp %1373 : vector<8x2xi32> to vector<8x2xf32>
    %1375 = arith.addf %1369, %1374 : vector<8x2xf32>
    %c1_716 = arith.constant 1 : index
    %c0_717 = arith.constant 0 : index
    %c0_718 = arith.constant 0 : index
    %1376 = vector.load %arg1[%c1_716, %c0_717, %c0_718] : memref<20x8x2xf32, #tpu.memory_space<vmem>>, vector<1x8x2xf32>
    %1377 = vector.shape_cast %1376 : vector<1x8x2xf32> to vector<8x2xf32>
    %1378 = arith.cmpf ole, %1377, %1368 : vector<8x2xf32>
    %1379 = arith.extui %1378 : vector<8x2xi1> to vector<8x2xi32>
    %1380 = arith.sitofp %1379 : vector<8x2xi32> to vector<8x2xf32>
    %1381 = arith.addf %1375, %1380 : vector<8x2xf32>
    %c2_719 = arith.constant 2 : index
    %c0_720 = arith.constant 0 : index
    %c0_721 = arith.constant 0 : index
    %1382 = vector.load %arg1[%c2_719, %c0_720, %c0_721] : memref<20x8x2xf32, #tpu.memory_space<vmem>>, vector<1x8x2xf32>
    %1383 = vector.shape_cast %1382 : vector<1x8x2xf32> to vector<8x2xf32>
    %1384 = arith.cmpf ole, %1383, %1368 : vector<8x2xf32>
    %1385 = arith.extui %1384 : vector<8x2xi1> to vector<8x2xi32>
    %1386 = arith.sitofp %1385 : vector<8x2xi32> to vector<8x2xf32>
    %1387 = arith.addf %1381, %1386 : vector<8x2xf32>
    %c3_722 = arith.constant 3 : index
    %c0_723 = arith.constant 0 : index
    %c0_724 = arith.constant 0 : index
    %1388 = vector.load %arg1[%c3_722, %c0_723, %c0_724] : memref<20x8x2xf32, #tpu.memory_space<vmem>>, vector<1x8x2xf32>
    %1389 = vector.shape_cast %1388 : vector<1x8x2xf32> to vector<8x2xf32>
    %1390 = arith.cmpf ole, %1389, %1368 : vector<8x2xf32>
    %1391 = arith.extui %1390 : vector<8x2xi1> to vector<8x2xi32>
    %1392 = arith.sitofp %1391 : vector<8x2xi32> to vector<8x2xf32>
    %1393 = arith.addf %1387, %1392 : vector<8x2xf32>
    %c4_725 = arith.constant 4 : index
    %c0_726 = arith.constant 0 : index
    %c0_727 = arith.constant 0 : index
    %1394 = vector.load %arg1[%c4_725, %c0_726, %c0_727] : memref<20x8x2xf32, #tpu.memory_space<vmem>>, vector<1x8x2xf32>
    %1395 = vector.shape_cast %1394 : vector<1x8x2xf32> to vector<8x2xf32>
    %1396 = arith.cmpf ole, %1395, %1368 : vector<8x2xf32>
    %1397 = arith.extui %1396 : vector<8x2xi1> to vector<8x2xi32>
    %1398 = arith.sitofp %1397 : vector<8x2xi32> to vector<8x2xf32>
    %1399 = arith.addf %1393, %1398 : vector<8x2xf32>
    %c5_728 = arith.constant 5 : index
    %c0_729 = arith.constant 0 : index
    %c0_730 = arith.constant 0 : index
    %1400 = vector.load %arg1[%c5_728, %c0_729, %c0_730] : memref<20x8x2xf32, #tpu.memory_space<vmem>>, vector<1x8x2xf32>
    %1401 = vector.shape_cast %1400 : vector<1x8x2xf32> to vector<8x2xf32>
    %1402 = arith.cmpf ole, %1401, %1368 : vector<8x2xf32>
    %1403 = arith.extui %1402 : vector<8x2xi1> to vector<8x2xi32>
    %1404 = arith.sitofp %1403 : vector<8x2xi32> to vector<8x2xf32>
    %1405 = arith.addf %1399, %1404 : vector<8x2xf32>
    %c6_731 = arith.constant 6 : index
    %c0_732 = arith.constant 0 : index
    %c0_733 = arith.constant 0 : index
    %1406 = vector.load %arg1[%c6_731, %c0_732, %c0_733] : memref<20x8x2xf32, #tpu.memory_space<vmem>>, vector<1x8x2xf32>
    %1407 = vector.shape_cast %1406 : vector<1x8x2xf32> to vector<8x2xf32>
    %1408 = arith.cmpf ole, %1407, %1368 : vector<8x2xf32>
    %1409 = arith.extui %1408 : vector<8x2xi1> to vector<8x2xi32>
    %1410 = arith.sitofp %1409 : vector<8x2xi32> to vector<8x2xf32>
    %1411 = arith.addf %1405, %1410 : vector<8x2xf32>
    %c7_734 = arith.constant 7 : index
    %c0_735 = arith.constant 0 : index
    %c0_736 = arith.constant 0 : index
    %1412 = vector.load %arg1[%c7_734, %c0_735, %c0_736] : memref<20x8x2xf32, #tpu.memory_space<vmem>>, vector<1x8x2xf32>
    %1413 = vector.shape_cast %1412 : vector<1x8x2xf32> to vector<8x2xf32>
    %1414 = arith.cmpf ole, %1413, %1368 : vector<8x2xf32>
    %1415 = arith.extui %1414 : vector<8x2xi1> to vector<8x2xi32>
    %1416 = arith.sitofp %1415 : vector<8x2xi32> to vector<8x2xf32>
    %1417 = arith.addf %1411, %1416 : vector<8x2xf32>
    %c8_737 = arith.constant 8 : index
    %c0_738 = arith.constant 0 : index
    %c0_739 = arith.constant 0 : index
    %1418 = vector.load %arg1[%c8_737, %c0_738, %c0_739] : memref<20x8x2xf32, #tpu.memory_space<vmem>>, vector<1x8x2xf32>
    %1419 = vector.shape_cast %1418 : vector<1x8x2xf32> to vector<8x2xf32>
    %1420 = arith.cmpf ole, %1419, %1368 : vector<8x2xf32>
    %1421 = arith.extui %1420 : vector<8x2xi1> to vector<8x2xi32>
    %1422 = arith.sitofp %1421 : vector<8x2xi32> to vector<8x2xf32>
    %1423 = arith.addf %1417, %1422 : vector<8x2xf32>
    %c9_740 = arith.constant 9 : index
    %c0_741 = arith.constant 0 : index
    %c0_742 = arith.constant 0 : index
    %1424 = vector.load %arg1[%c9_740, %c0_741, %c0_742] : memref<20x8x2xf32, #tpu.memory_space<vmem>>, vector<1x8x2xf32>
    %1425 = vector.shape_cast %1424 : vector<1x8x2xf32> to vector<8x2xf32>
    %1426 = arith.cmpf ole, %1425, %1368 : vector<8x2xf32>
    %1427 = arith.extui %1426 : vector<8x2xi1> to vector<8x2xi32>
    %1428 = arith.sitofp %1427 : vector<8x2xi32> to vector<8x2xf32>
    %1429 = arith.addf %1423, %1428 : vector<8x2xf32>
    %c10_743 = arith.constant 10 : index
    %c0_744 = arith.constant 0 : index
    %c0_745 = arith.constant 0 : index
    %1430 = vector.load %arg1[%c10_743, %c0_744, %c0_745] : memref<20x8x2xf32, #tpu.memory_space<vmem>>, vector<1x8x2xf32>
    %1431 = vector.shape_cast %1430 : vector<1x8x2xf32> to vector<8x2xf32>
    %1432 = arith.cmpf ole, %1431, %1368 : vector<8x2xf32>
    %1433 = arith.extui %1432 : vector<8x2xi1> to vector<8x2xi32>
    %1434 = arith.sitofp %1433 : vector<8x2xi32> to vector<8x2xf32>
    %1435 = arith.addf %1429, %1434 : vector<8x2xf32>
    %c11_746 = arith.constant 11 : index
    %c0_747 = arith.constant 0 : index
    %c0_748 = arith.constant 0 : index
    %1436 = vector.load %arg1[%c11_746, %c0_747, %c0_748] : memref<20x8x2xf32, #tpu.memory_space<vmem>>, vector<1x8x2xf32>
    %1437 = vector.shape_cast %1436 : vector<1x8x2xf32> to vector<8x2xf32>
    %1438 = arith.cmpf ole, %1437, %1368 : vector<8x2xf32>
    %1439 = arith.extui %1438 : vector<8x2xi1> to vector<8x2xi32>
    %1440 = arith.sitofp %1439 : vector<8x2xi32> to vector<8x2xf32>
    %1441 = arith.addf %1435, %1440 : vector<8x2xf32>
    %c12_749 = arith.constant 12 : index
    %c0_750 = arith.constant 0 : index
    %c0_751 = arith.constant 0 : index
    %1442 = vector.load %arg1[%c12_749, %c0_750, %c0_751] : memref<20x8x2xf32, #tpu.memory_space<vmem>>, vector<1x8x2xf32>
    %1443 = vector.shape_cast %1442 : vector<1x8x2xf32> to vector<8x2xf32>
    %1444 = arith.cmpf ole, %1443, %1368 : vector<8x2xf32>
    %1445 = arith.extui %1444 : vector<8x2xi1> to vector<8x2xi32>
    %1446 = arith.sitofp %1445 : vector<8x2xi32> to vector<8x2xf32>
    %1447 = arith.addf %1441, %1446 : vector<8x2xf32>
    %c13_752 = arith.constant 13 : index
    %c0_753 = arith.constant 0 : index
    %c0_754 = arith.constant 0 : index
    %1448 = vector.load %arg1[%c13_752, %c0_753, %c0_754] : memref<20x8x2xf32, #tpu.memory_space<vmem>>, vector<1x8x2xf32>
    %1449 = vector.shape_cast %1448 : vector<1x8x2xf32> to vector<8x2xf32>
    %1450 = arith.cmpf ole, %1449, %1368 : vector<8x2xf32>
    %1451 = arith.extui %1450 : vector<8x2xi1> to vector<8x2xi32>
    %1452 = arith.sitofp %1451 : vector<8x2xi32> to vector<8x2xf32>
    %1453 = arith.addf %1447, %1452 : vector<8x2xf32>
    %c14_755 = arith.constant 14 : index
    %c0_756 = arith.constant 0 : index
    %c0_757 = arith.constant 0 : index
    %1454 = vector.load %arg1[%c14_755, %c0_756, %c0_757] : memref<20x8x2xf32, #tpu.memory_space<vmem>>, vector<1x8x2xf32>
    %1455 = vector.shape_cast %1454 : vector<1x8x2xf32> to vector<8x2xf32>
    %1456 = arith.cmpf ole, %1455, %1368 : vector<8x2xf32>
    %1457 = arith.extui %1456 : vector<8x2xi1> to vector<8x2xi32>
    %1458 = arith.sitofp %1457 : vector<8x2xi32> to vector<8x2xf32>
    %1459 = arith.addf %1453, %1458 : vector<8x2xf32>
    %c15_758 = arith.constant 15 : index
    %c0_759 = arith.constant 0 : index
    %c0_760 = arith.constant 0 : index
    %1460 = vector.load %arg1[%c15_758, %c0_759, %c0_760] : memref<20x8x2xf32, #tpu.memory_space<vmem>>, vector<1x8x2xf32>
    %1461 = vector.shape_cast %1460 : vector<1x8x2xf32> to vector<8x2xf32>
    %1462 = arith.cmpf ole, %1461, %1368 : vector<8x2xf32>
    %1463 = arith.extui %1462 : vector<8x2xi1> to vector<8x2xi32>
    %1464 = arith.sitofp %1463 : vector<8x2xi32> to vector<8x2xf32>
    %1465 = arith.addf %1459, %1464 : vector<8x2xf32>
    %c16_761 = arith.constant 16 : index
    %c0_762 = arith.constant 0 : index
    %c0_763 = arith.constant 0 : index
    %1466 = vector.load %arg1[%c16_761, %c0_762, %c0_763] : memref<20x8x2xf32, #tpu.memory_space<vmem>>, vector<1x8x2xf32>
    %1467 = vector.shape_cast %1466 : vector<1x8x2xf32> to vector<8x2xf32>
    %1468 = arith.cmpf ole, %1467, %1368 : vector<8x2xf32>
    %1469 = arith.extui %1468 : vector<8x2xi1> to vector<8x2xi32>
    %1470 = arith.sitofp %1469 : vector<8x2xi32> to vector<8x2xf32>
    %1471 = arith.addf %1465, %1470 : vector<8x2xf32>
    %c17_764 = arith.constant 17 : index
    %c0_765 = arith.constant 0 : index
    %c0_766 = arith.constant 0 : index
    %1472 = vector.load %arg1[%c17_764, %c0_765, %c0_766] : memref<20x8x2xf32, #tpu.memory_space<vmem>>, vector<1x8x2xf32>
    %1473 = vector.shape_cast %1472 : vector<1x8x2xf32> to vector<8x2xf32>
    %1474 = arith.cmpf ole, %1473, %1368 : vector<8x2xf32>
    %1475 = arith.extui %1474 : vector<8x2xi1> to vector<8x2xi32>
    %1476 = arith.sitofp %1475 : vector<8x2xi32> to vector<8x2xf32>
    %1477 = arith.addf %1471, %1476 : vector<8x2xf32>
    %c18_767 = arith.constant 18 : index
    %c0_768 = arith.constant 0 : index
    %c0_769 = arith.constant 0 : index
    %1478 = vector.load %arg1[%c18_767, %c0_768, %c0_769] : memref<20x8x2xf32, #tpu.memory_space<vmem>>, vector<1x8x2xf32>
    %1479 = vector.shape_cast %1478 : vector<1x8x2xf32> to vector<8x2xf32>
    %1480 = arith.cmpf ole, %1479, %1368 : vector<8x2xf32>
    %1481 = arith.extui %1480 : vector<8x2xi1> to vector<8x2xi32>
    %1482 = arith.sitofp %1481 : vector<8x2xi32> to vector<8x2xf32>
    %1483 = arith.addf %1477, %1482 : vector<8x2xf32>
    %c19_770 = arith.constant 19 : index
    %c0_771 = arith.constant 0 : index
    %c0_772 = arith.constant 0 : index
    %1484 = vector.load %arg1[%c19_770, %c0_771, %c0_772] : memref<20x8x2xf32, #tpu.memory_space<vmem>>, vector<1x8x2xf32>
    %1485 = vector.shape_cast %1484 : vector<1x8x2xf32> to vector<8x2xf32>
    %1486 = arith.cmpf ole, %1485, %1368 : vector<8x2xf32>
    %1487 = arith.extui %1486 : vector<8x2xi1> to vector<8x2xi32>
    %1488 = arith.sitofp %1487 : vector<8x2xi32> to vector<8x2xf32>
    %1489 = arith.addf %1483, %1488 : vector<8x2xf32>
    %cst_773 = arith.constant 1.000000e+01 : f32
    %1490 = vector.broadcast %cst_773 : f32 to vector<8x2xf32>
    %1491 = arith.cmpf oge, %1489, %1490 : vector<8x2xf32>
    %cst_774 = arith.constant 0x7F800000 : f32
    %1492 = vector.broadcast %cst_774 : f32 to vector<8x2xf32>
    %1493 = arith.select %1491, %1368, %1492 : vector<8x2xi1>, vector<8x2xf32>
    %1494 = arith.minimumf %1366, %1493 : vector<8x2xf32>
    %c10_775 = arith.constant 10 : index
    %c0_776 = arith.constant 0 : index
    %c0_777 = arith.constant 0 : index
    %1495 = vector.load %arg1[%c10_775, %c0_776, %c0_777] : memref<20x8x2xf32, #tpu.memory_space<vmem>>, vector<1x8x2xf32>
    %1496 = vector.shape_cast %1495 : vector<1x8x2xf32> to vector<8x2xf32>
    %cst_778 = arith.constant 0.000000e+00 : f32
    %1497 = vector.broadcast %cst_778 : f32 to vector<8x2xf32>
    %c0_779 = arith.constant 0 : index
    %c0_780 = arith.constant 0 : index
    %c0_781 = arith.constant 0 : index
    %1498 = vector.load %arg1[%c0_779, %c0_780, %c0_781] : memref<20x8x2xf32, #tpu.memory_space<vmem>>, vector<1x8x2xf32>
    %1499 = vector.shape_cast %1498 : vector<1x8x2xf32> to vector<8x2xf32>
    %1500 = arith.cmpf ole, %1499, %1496 : vector<8x2xf32>
    %1501 = arith.extui %1500 : vector<8x2xi1> to vector<8x2xi32>
    %1502 = arith.sitofp %1501 : vector<8x2xi32> to vector<8x2xf32>
    %1503 = arith.addf %1497, %1502 : vector<8x2xf32>
    %c1_782 = arith.constant 1 : index
    %c0_783 = arith.constant 0 : index
    %c0_784 = arith.constant 0 : index
    %1504 = vector.load %arg1[%c1_782, %c0_783, %c0_784] : memref<20x8x2xf32, #tpu.memory_space<vmem>>, vector<1x8x2xf32>
    %1505 = vector.shape_cast %1504 : vector<1x8x2xf32> to vector<8x2xf32>
    %1506 = arith.cmpf ole, %1505, %1496 : vector<8x2xf32>
    %1507 = arith.extui %1506 : vector<8x2xi1> to vector<8x2xi32>
    %1508 = arith.sitofp %1507 : vector<8x2xi32> to vector<8x2xf32>
    %1509 = arith.addf %1503, %1508 : vector<8x2xf32>
    %c2_785 = arith.constant 2 : index
    %c0_786 = arith.constant 0 : index
    %c0_787 = arith.constant 0 : index
    %1510 = vector.load %arg1[%c2_785, %c0_786, %c0_787] : memref<20x8x2xf32, #tpu.memory_space<vmem>>, vector<1x8x2xf32>
    %1511 = vector.shape_cast %1510 : vector<1x8x2xf32> to vector<8x2xf32>
    %1512 = arith.cmpf ole, %1511, %1496 : vector<8x2xf32>
    %1513 = arith.extui %1512 : vector<8x2xi1> to vector<8x2xi32>
    %1514 = arith.sitofp %1513 : vector<8x2xi32> to vector<8x2xf32>
    %1515 = arith.addf %1509, %1514 : vector<8x2xf32>
    %c3_788 = arith.constant 3 : index
    %c0_789 = arith.constant 0 : index
    %c0_790 = arith.constant 0 : index
    %1516 = vector.load %arg1[%c3_788, %c0_789, %c0_790] : memref<20x8x2xf32, #tpu.memory_space<vmem>>, vector<1x8x2xf32>
    %1517 = vector.shape_cast %1516 : vector<1x8x2xf32> to vector<8x2xf32>
    %1518 = arith.cmpf ole, %1517, %1496 : vector<8x2xf32>
    %1519 = arith.extui %1518 : vector<8x2xi1> to vector<8x2xi32>
    %1520 = arith.sitofp %1519 : vector<8x2xi32> to vector<8x2xf32>
    %1521 = arith.addf %1515, %1520 : vector<8x2xf32>
    %c4_791 = arith.constant 4 : index
    %c0_792 = arith.constant 0 : index
    %c0_793 = arith.constant 0 : index
    %1522 = vector.load %arg1[%c4_791, %c0_792, %c0_793] : memref<20x8x2xf32, #tpu.memory_space<vmem>>, vector<1x8x2xf32>
    %1523 = vector.shape_cast %1522 : vector<1x8x2xf32> to vector<8x2xf32>
    %1524 = arith.cmpf ole, %1523, %1496 : vector<8x2xf32>
    %1525 = arith.extui %1524 : vector<8x2xi1> to vector<8x2xi32>
    %1526 = arith.sitofp %1525 : vector<8x2xi32> to vector<8x2xf32>
    %1527 = arith.addf %1521, %1526 : vector<8x2xf32>
    %c5_794 = arith.constant 5 : index
    %c0_795 = arith.constant 0 : index
    %c0_796 = arith.constant 0 : index
    %1528 = vector.load %arg1[%c5_794, %c0_795, %c0_796] : memref<20x8x2xf32, #tpu.memory_space<vmem>>, vector<1x8x2xf32>
    %1529 = vector.shape_cast %1528 : vector<1x8x2xf32> to vector<8x2xf32>
    %1530 = arith.cmpf ole, %1529, %1496 : vector<8x2xf32>
    %1531 = arith.extui %1530 : vector<8x2xi1> to vector<8x2xi32>
    %1532 = arith.sitofp %1531 : vector<8x2xi32> to vector<8x2xf32>
    %1533 = arith.addf %1527, %1532 : vector<8x2xf32>
    %c6_797 = arith.constant 6 : index
    %c0_798 = arith.constant 0 : index
    %c0_799 = arith.constant 0 : index
    %1534 = vector.load %arg1[%c6_797, %c0_798, %c0_799] : memref<20x8x2xf32, #tpu.memory_space<vmem>>, vector<1x8x2xf32>
    %1535 = vector.shape_cast %1534 : vector<1x8x2xf32> to vector<8x2xf32>
    %1536 = arith.cmpf ole, %1535, %1496 : vector<8x2xf32>
    %1537 = arith.extui %1536 : vector<8x2xi1> to vector<8x2xi32>
    %1538 = arith.sitofp %1537 : vector<8x2xi32> to vector<8x2xf32>
    %1539 = arith.addf %1533, %1538 : vector<8x2xf32>
    %c7_800 = arith.constant 7 : index
    %c0_801 = arith.constant 0 : index
    %c0_802 = arith.constant 0 : index
    %1540 = vector.load %arg1[%c7_800, %c0_801, %c0_802] : memref<20x8x2xf32, #tpu.memory_space<vmem>>, vector<1x8x2xf32>
    %1541 = vector.shape_cast %1540 : vector<1x8x2xf32> to vector<8x2xf32>
    %1542 = arith.cmpf ole, %1541, %1496 : vector<8x2xf32>
    %1543 = arith.extui %1542 : vector<8x2xi1> to vector<8x2xi32>
    %1544 = arith.sitofp %1543 : vector<8x2xi32> to vector<8x2xf32>
    %1545 = arith.addf %1539, %1544 : vector<8x2xf32>
    %c8_803 = arith.constant 8 : index
    %c0_804 = arith.constant 0 : index
    %c0_805 = arith.constant 0 : index
    %1546 = vector.load %arg1[%c8_803, %c0_804, %c0_805] : memref<20x8x2xf32, #tpu.memory_space<vmem>>, vector<1x8x2xf32>
    %1547 = vector.shape_cast %1546 : vector<1x8x2xf32> to vector<8x2xf32>
    %1548 = arith.cmpf ole, %1547, %1496 : vector<8x2xf32>
    %1549 = arith.extui %1548 : vector<8x2xi1> to vector<8x2xi32>
    %1550 = arith.sitofp %1549 : vector<8x2xi32> to vector<8x2xf32>
    %1551 = arith.addf %1545, %1550 : vector<8x2xf32>
    %c9_806 = arith.constant 9 : index
    %c0_807 = arith.constant 0 : index
    %c0_808 = arith.constant 0 : index
    %1552 = vector.load %arg1[%c9_806, %c0_807, %c0_808] : memref<20x8x2xf32, #tpu.memory_space<vmem>>, vector<1x8x2xf32>
    %1553 = vector.shape_cast %1552 : vector<1x8x2xf32> to vector<8x2xf32>
    %1554 = arith.cmpf ole, %1553, %1496 : vector<8x2xf32>
    %1555 = arith.extui %1554 : vector<8x2xi1> to vector<8x2xi32>
    %1556 = arith.sitofp %1555 : vector<8x2xi32> to vector<8x2xf32>
    %1557 = arith.addf %1551, %1556 : vector<8x2xf32>
    %c10_809 = arith.constant 10 : index
    %c0_810 = arith.constant 0 : index
    %c0_811 = arith.constant 0 : index
    %1558 = vector.load %arg1[%c10_809, %c0_810, %c0_811] : memref<20x8x2xf32, #tpu.memory_space<vmem>>, vector<1x8x2xf32>
    %1559 = vector.shape_cast %1558 : vector<1x8x2xf32> to vector<8x2xf32>
    %1560 = arith.cmpf ole, %1559, %1496 : vector<8x2xf32>
    %1561 = arith.extui %1560 : vector<8x2xi1> to vector<8x2xi32>
    %1562 = arith.sitofp %1561 : vector<8x2xi32> to vector<8x2xf32>
    %1563 = arith.addf %1557, %1562 : vector<8x2xf32>
    %c11_812 = arith.constant 11 : index
    %c0_813 = arith.constant 0 : index
    %c0_814 = arith.constant 0 : index
    %1564 = vector.load %arg1[%c11_812, %c0_813, %c0_814] : memref<20x8x2xf32, #tpu.memory_space<vmem>>, vector<1x8x2xf32>
    %1565 = vector.shape_cast %1564 : vector<1x8x2xf32> to vector<8x2xf32>
    %1566 = arith.cmpf ole, %1565, %1496 : vector<8x2xf32>
    %1567 = arith.extui %1566 : vector<8x2xi1> to vector<8x2xi32>
    %1568 = arith.sitofp %1567 : vector<8x2xi32> to vector<8x2xf32>
    %1569 = arith.addf %1563, %1568 : vector<8x2xf32>
    %c12_815 = arith.constant 12 : index
    %c0_816 = arith.constant 0 : index
    %c0_817 = arith.constant 0 : index
    %1570 = vector.load %arg1[%c12_815, %c0_816, %c0_817] : memref<20x8x2xf32, #tpu.memory_space<vmem>>, vector<1x8x2xf32>
    %1571 = vector.shape_cast %1570 : vector<1x8x2xf32> to vector<8x2xf32>
    %1572 = arith.cmpf ole, %1571, %1496 : vector<8x2xf32>
    %1573 = arith.extui %1572 : vector<8x2xi1> to vector<8x2xi32>
    %1574 = arith.sitofp %1573 : vector<8x2xi32> to vector<8x2xf32>
    %1575 = arith.addf %1569, %1574 : vector<8x2xf32>
    %c13_818 = arith.constant 13 : index
    %c0_819 = arith.constant 0 : index
    %c0_820 = arith.constant 0 : index
    %1576 = vector.load %arg1[%c13_818, %c0_819, %c0_820] : memref<20x8x2xf32, #tpu.memory_space<vmem>>, vector<1x8x2xf32>
    %1577 = vector.shape_cast %1576 : vector<1x8x2xf32> to vector<8x2xf32>
    %1578 = arith.cmpf ole, %1577, %1496 : vector<8x2xf32>
    %1579 = arith.extui %1578 : vector<8x2xi1> to vector<8x2xi32>
    %1580 = arith.sitofp %1579 : vector<8x2xi32> to vector<8x2xf32>
    %1581 = arith.addf %1575, %1580 : vector<8x2xf32>
    %c14_821 = arith.constant 14 : index
    %c0_822 = arith.constant 0 : index
    %c0_823 = arith.constant 0 : index
    %1582 = vector.load %arg1[%c14_821, %c0_822, %c0_823] : memref<20x8x2xf32, #tpu.memory_space<vmem>>, vector<1x8x2xf32>
    %1583 = vector.shape_cast %1582 : vector<1x8x2xf32> to vector<8x2xf32>
    %1584 = arith.cmpf ole, %1583, %1496 : vector<8x2xf32>
    %1585 = arith.extui %1584 : vector<8x2xi1> to vector<8x2xi32>
    %1586 = arith.sitofp %1585 : vector<8x2xi32> to vector<8x2xf32>
    %1587 = arith.addf %1581, %1586 : vector<8x2xf32>
    %c15_824 = arith.constant 15 : index
    %c0_825 = arith.constant 0 : index
    %c0_826 = arith.constant 0 : index
    %1588 = vector.load %arg1[%c15_824, %c0_825, %c0_826] : memref<20x8x2xf32, #tpu.memory_space<vmem>>, vector<1x8x2xf32>
    %1589 = vector.shape_cast %1588 : vector<1x8x2xf32> to vector<8x2xf32>
    %1590 = arith.cmpf ole, %1589, %1496 : vector<8x2xf32>
    %1591 = arith.extui %1590 : vector<8x2xi1> to vector<8x2xi32>
    %1592 = arith.sitofp %1591 : vector<8x2xi32> to vector<8x2xf32>
    %1593 = arith.addf %1587, %1592 : vector<8x2xf32>
    %c16_827 = arith.constant 16 : index
    %c0_828 = arith.constant 0 : index
    %c0_829 = arith.constant 0 : index
    %1594 = vector.load %arg1[%c16_827, %c0_828, %c0_829] : memref<20x8x2xf32, #tpu.memory_space<vmem>>, vector<1x8x2xf32>
    %1595 = vector.shape_cast %1594 : vector<1x8x2xf32> to vector<8x2xf32>
    %1596 = arith.cmpf ole, %1595, %1496 : vector<8x2xf32>
    %1597 = arith.extui %1596 : vector<8x2xi1> to vector<8x2xi32>
    %1598 = arith.sitofp %1597 : vector<8x2xi32> to vector<8x2xf32>
    %1599 = arith.addf %1593, %1598 : vector<8x2xf32>
    %c17_830 = arith.constant 17 : index
    %c0_831 = arith.constant 0 : index
    %c0_832 = arith.constant 0 : index
    %1600 = vector.load %arg1[%c17_830, %c0_831, %c0_832] : memref<20x8x2xf32, #tpu.memory_space<vmem>>, vector<1x8x2xf32>
    %1601 = vector.shape_cast %1600 : vector<1x8x2xf32> to vector<8x2xf32>
    %1602 = arith.cmpf ole, %1601, %1496 : vector<8x2xf32>
    %1603 = arith.extui %1602 : vector<8x2xi1> to vector<8x2xi32>
    %1604 = arith.sitofp %1603 : vector<8x2xi32> to vector<8x2xf32>
    %1605 = arith.addf %1599, %1604 : vector<8x2xf32>
    %c18_833 = arith.constant 18 : index
    %c0_834 = arith.constant 0 : index
    %c0_835 = arith.constant 0 : index
    %1606 = vector.load %arg1[%c18_833, %c0_834, %c0_835] : memref<20x8x2xf32, #tpu.memory_space<vmem>>, vector<1x8x2xf32>
    %1607 = vector.shape_cast %1606 : vector<1x8x2xf32> to vector<8x2xf32>
    %1608 = arith.cmpf ole, %1607, %1496 : vector<8x2xf32>
    %1609 = arith.extui %1608 : vector<8x2xi1> to vector<8x2xi32>
    %1610 = arith.sitofp %1609 : vector<8x2xi32> to vector<8x2xf32>
    %1611 = arith.addf %1605, %1610 : vector<8x2xf32>
    %c19_836 = arith.constant 19 : index
    %c0_837 = arith.constant 0 : index
    %c0_838 = arith.constant 0 : index
    %1612 = vector.load %arg1[%c19_836, %c0_837, %c0_838] : memref<20x8x2xf32, #tpu.memory_space<vmem>>, vector<1x8x2xf32>
    %1613 = vector.shape_cast %1612 : vector<1x8x2xf32> to vector<8x2xf32>
    %1614 = arith.cmpf ole, %1613, %1496 : vector<8x2xf32>
    %1615 = arith.extui %1614 : vector<8x2xi1> to vector<8x2xi32>
    %1616 = arith.sitofp %1615 : vector<8x2xi32> to vector<8x2xf32>
    %1617 = arith.addf %1611, %1616 : vector<8x2xf32>
    %cst_839 = arith.constant 1.000000e+01 : f32
    %1618 = vector.broadcast %cst_839 : f32 to vector<8x2xf32>
    %1619 = arith.cmpf oge, %1617, %1618 : vector<8x2xf32>
    %cst_840 = arith.constant 0x7F800000 : f32
    %1620 = vector.broadcast %cst_840 : f32 to vector<8x2xf32>
    %1621 = arith.select %1619, %1496, %1620 : vector<8x2xi1>, vector<8x2xf32>
    %1622 = arith.minimumf %1494, %1621 : vector<8x2xf32>
    %c11_841 = arith.constant 11 : index
    %c0_842 = arith.constant 0 : index
    %c0_843 = arith.constant 0 : index
    %1623 = vector.load %arg1[%c11_841, %c0_842, %c0_843] : memref<20x8x2xf32, #tpu.memory_space<vmem>>, vector<1x8x2xf32>
    %1624 = vector.shape_cast %1623 : vector<1x8x2xf32> to vector<8x2xf32>
    %cst_844 = arith.constant 0.000000e+00 : f32
    %1625 = vector.broadcast %cst_844 : f32 to vector<8x2xf32>
    %c0_845 = arith.constant 0 : index
    %c0_846 = arith.constant 0 : index
    %c0_847 = arith.constant 0 : index
    %1626 = vector.load %arg1[%c0_845, %c0_846, %c0_847] : memref<20x8x2xf32, #tpu.memory_space<vmem>>, vector<1x8x2xf32>
    %1627 = vector.shape_cast %1626 : vector<1x8x2xf32> to vector<8x2xf32>
    %1628 = arith.cmpf ole, %1627, %1624 : vector<8x2xf32>
    %1629 = arith.extui %1628 : vector<8x2xi1> to vector<8x2xi32>
    %1630 = arith.sitofp %1629 : vector<8x2xi32> to vector<8x2xf32>
    %1631 = arith.addf %1625, %1630 : vector<8x2xf32>
    %c1_848 = arith.constant 1 : index
    %c0_849 = arith.constant 0 : index
    %c0_850 = arith.constant 0 : index
    %1632 = vector.load %arg1[%c1_848, %c0_849, %c0_850] : memref<20x8x2xf32, #tpu.memory_space<vmem>>, vector<1x8x2xf32>
    %1633 = vector.shape_cast %1632 : vector<1x8x2xf32> to vector<8x2xf32>
    %1634 = arith.cmpf ole, %1633, %1624 : vector<8x2xf32>
    %1635 = arith.extui %1634 : vector<8x2xi1> to vector<8x2xi32>
    %1636 = arith.sitofp %1635 : vector<8x2xi32> to vector<8x2xf32>
    %1637 = arith.addf %1631, %1636 : vector<8x2xf32>
    %c2_851 = arith.constant 2 : index
    %c0_852 = arith.constant 0 : index
    %c0_853 = arith.constant 0 : index
    %1638 = vector.load %arg1[%c2_851, %c0_852, %c0_853] : memref<20x8x2xf32, #tpu.memory_space<vmem>>, vector<1x8x2xf32>
    %1639 = vector.shape_cast %1638 : vector<1x8x2xf32> to vector<8x2xf32>
    %1640 = arith.cmpf ole, %1639, %1624 : vector<8x2xf32>
    %1641 = arith.extui %1640 : vector<8x2xi1> to vector<8x2xi32>
    %1642 = arith.sitofp %1641 : vector<8x2xi32> to vector<8x2xf32>
    %1643 = arith.addf %1637, %1642 : vector<8x2xf32>
    %c3_854 = arith.constant 3 : index
    %c0_855 = arith.constant 0 : index
    %c0_856 = arith.constant 0 : index
    %1644 = vector.load %arg1[%c3_854, %c0_855, %c0_856] : memref<20x8x2xf32, #tpu.memory_space<vmem>>, vector<1x8x2xf32>
    %1645 = vector.shape_cast %1644 : vector<1x8x2xf32> to vector<8x2xf32>
    %1646 = arith.cmpf ole, %1645, %1624 : vector<8x2xf32>
    %1647 = arith.extui %1646 : vector<8x2xi1> to vector<8x2xi32>
    %1648 = arith.sitofp %1647 : vector<8x2xi32> to vector<8x2xf32>
    %1649 = arith.addf %1643, %1648 : vector<8x2xf32>
    %c4_857 = arith.constant 4 : index
    %c0_858 = arith.constant 0 : index
    %c0_859 = arith.constant 0 : index
    %1650 = vector.load %arg1[%c4_857, %c0_858, %c0_859] : memref<20x8x2xf32, #tpu.memory_space<vmem>>, vector<1x8x2xf32>
    %1651 = vector.shape_cast %1650 : vector<1x8x2xf32> to vector<8x2xf32>
    %1652 = arith.cmpf ole, %1651, %1624 : vector<8x2xf32>
    %1653 = arith.extui %1652 : vector<8x2xi1> to vector<8x2xi32>
    %1654 = arith.sitofp %1653 : vector<8x2xi32> to vector<8x2xf32>
    %1655 = arith.addf %1649, %1654 : vector<8x2xf32>
    %c5_860 = arith.constant 5 : index
    %c0_861 = arith.constant 0 : index
    %c0_862 = arith.constant 0 : index
    %1656 = vector.load %arg1[%c5_860, %c0_861, %c0_862] : memref<20x8x2xf32, #tpu.memory_space<vmem>>, vector<1x8x2xf32>
    %1657 = vector.shape_cast %1656 : vector<1x8x2xf32> to vector<8x2xf32>
    %1658 = arith.cmpf ole, %1657, %1624 : vector<8x2xf32>
    %1659 = arith.extui %1658 : vector<8x2xi1> to vector<8x2xi32>
    %1660 = arith.sitofp %1659 : vector<8x2xi32> to vector<8x2xf32>
    %1661 = arith.addf %1655, %1660 : vector<8x2xf32>
    %c6_863 = arith.constant 6 : index
    %c0_864 = arith.constant 0 : index
    %c0_865 = arith.constant 0 : index
    %1662 = vector.load %arg1[%c6_863, %c0_864, %c0_865] : memref<20x8x2xf32, #tpu.memory_space<vmem>>, vector<1x8x2xf32>
    %1663 = vector.shape_cast %1662 : vector<1x8x2xf32> to vector<8x2xf32>
    %1664 = arith.cmpf ole, %1663, %1624 : vector<8x2xf32>
    %1665 = arith.extui %1664 : vector<8x2xi1> to vector<8x2xi32>
    %1666 = arith.sitofp %1665 : vector<8x2xi32> to vector<8x2xf32>
    %1667 = arith.addf %1661, %1666 : vector<8x2xf32>
    %c7_866 = arith.constant 7 : index
    %c0_867 = arith.constant 0 : index
    %c0_868 = arith.constant 0 : index
    %1668 = vector.load %arg1[%c7_866, %c0_867, %c0_868] : memref<20x8x2xf32, #tpu.memory_space<vmem>>, vector<1x8x2xf32>
    %1669 = vector.shape_cast %1668 : vector<1x8x2xf32> to vector<8x2xf32>
    %1670 = arith.cmpf ole, %1669, %1624 : vector<8x2xf32>
    %1671 = arith.extui %1670 : vector<8x2xi1> to vector<8x2xi32>
    %1672 = arith.sitofp %1671 : vector<8x2xi32> to vector<8x2xf32>
    %1673 = arith.addf %1667, %1672 : vector<8x2xf32>
    %c8_869 = arith.constant 8 : index
    %c0_870 = arith.constant 0 : index
    %c0_871 = arith.constant 0 : index
    %1674 = vector.load %arg1[%c8_869, %c0_870, %c0_871] : memref<20x8x2xf32, #tpu.memory_space<vmem>>, vector<1x8x2xf32>
    %1675 = vector.shape_cast %1674 : vector<1x8x2xf32> to vector<8x2xf32>
    %1676 = arith.cmpf ole, %1675, %1624 : vector<8x2xf32>
    %1677 = arith.extui %1676 : vector<8x2xi1> to vector<8x2xi32>
    %1678 = arith.sitofp %1677 : vector<8x2xi32> to vector<8x2xf32>
    %1679 = arith.addf %1673, %1678 : vector<8x2xf32>
    %c9_872 = arith.constant 9 : index
    %c0_873 = arith.constant 0 : index
    %c0_874 = arith.constant 0 : index
    %1680 = vector.load %arg1[%c9_872, %c0_873, %c0_874] : memref<20x8x2xf32, #tpu.memory_space<vmem>>, vector<1x8x2xf32>
    %1681 = vector.shape_cast %1680 : vector<1x8x2xf32> to vector<8x2xf32>
    %1682 = arith.cmpf ole, %1681, %1624 : vector<8x2xf32>
    %1683 = arith.extui %1682 : vector<8x2xi1> to vector<8x2xi32>
    %1684 = arith.sitofp %1683 : vector<8x2xi32> to vector<8x2xf32>
    %1685 = arith.addf %1679, %1684 : vector<8x2xf32>
    %c10_875 = arith.constant 10 : index
    %c0_876 = arith.constant 0 : index
    %c0_877 = arith.constant 0 : index
    %1686 = vector.load %arg1[%c10_875, %c0_876, %c0_877] : memref<20x8x2xf32, #tpu.memory_space<vmem>>, vector<1x8x2xf32>
    %1687 = vector.shape_cast %1686 : vector<1x8x2xf32> to vector<8x2xf32>
    %1688 = arith.cmpf ole, %1687, %1624 : vector<8x2xf32>
    %1689 = arith.extui %1688 : vector<8x2xi1> to vector<8x2xi32>
    %1690 = arith.sitofp %1689 : vector<8x2xi32> to vector<8x2xf32>
    %1691 = arith.addf %1685, %1690 : vector<8x2xf32>
    %c11_878 = arith.constant 11 : index
    %c0_879 = arith.constant 0 : index
    %c0_880 = arith.constant 0 : index
    %1692 = vector.load %arg1[%c11_878, %c0_879, %c0_880] : memref<20x8x2xf32, #tpu.memory_space<vmem>>, vector<1x8x2xf32>
    %1693 = vector.shape_cast %1692 : vector<1x8x2xf32> to vector<8x2xf32>
    %1694 = arith.cmpf ole, %1693, %1624 : vector<8x2xf32>
    %1695 = arith.extui %1694 : vector<8x2xi1> to vector<8x2xi32>
    %1696 = arith.sitofp %1695 : vector<8x2xi32> to vector<8x2xf32>
    %1697 = arith.addf %1691, %1696 : vector<8x2xf32>
    %c12_881 = arith.constant 12 : index
    %c0_882 = arith.constant 0 : index
    %c0_883 = arith.constant 0 : index
    %1698 = vector.load %arg1[%c12_881, %c0_882, %c0_883] : memref<20x8x2xf32, #tpu.memory_space<vmem>>, vector<1x8x2xf32>
    %1699 = vector.shape_cast %1698 : vector<1x8x2xf32> to vector<8x2xf32>
    %1700 = arith.cmpf ole, %1699, %1624 : vector<8x2xf32>
    %1701 = arith.extui %1700 : vector<8x2xi1> to vector<8x2xi32>
    %1702 = arith.sitofp %1701 : vector<8x2xi32> to vector<8x2xf32>
    %1703 = arith.addf %1697, %1702 : vector<8x2xf32>
    %c13_884 = arith.constant 13 : index
    %c0_885 = arith.constant 0 : index
    %c0_886 = arith.constant 0 : index
    %1704 = vector.load %arg1[%c13_884, %c0_885, %c0_886] : memref<20x8x2xf32, #tpu.memory_space<vmem>>, vector<1x8x2xf32>
    %1705 = vector.shape_cast %1704 : vector<1x8x2xf32> to vector<8x2xf32>
    %1706 = arith.cmpf ole, %1705, %1624 : vector<8x2xf32>
    %1707 = arith.extui %1706 : vector<8x2xi1> to vector<8x2xi32>
    %1708 = arith.sitofp %1707 : vector<8x2xi32> to vector<8x2xf32>
    %1709 = arith.addf %1703, %1708 : vector<8x2xf32>
    %c14_887 = arith.constant 14 : index
    %c0_888 = arith.constant 0 : index
    %c0_889 = arith.constant 0 : index
    %1710 = vector.load %arg1[%c14_887, %c0_888, %c0_889] : memref<20x8x2xf32, #tpu.memory_space<vmem>>, vector<1x8x2xf32>
    %1711 = vector.shape_cast %1710 : vector<1x8x2xf32> to vector<8x2xf32>
    %1712 = arith.cmpf ole, %1711, %1624 : vector<8x2xf32>
    %1713 = arith.extui %1712 : vector<8x2xi1> to vector<8x2xi32>
    %1714 = arith.sitofp %1713 : vector<8x2xi32> to vector<8x2xf32>
    %1715 = arith.addf %1709, %1714 : vector<8x2xf32>
    %c15_890 = arith.constant 15 : index
    %c0_891 = arith.constant 0 : index
    %c0_892 = arith.constant 0 : index
    %1716 = vector.load %arg1[%c15_890, %c0_891, %c0_892] : memref<20x8x2xf32, #tpu.memory_space<vmem>>, vector<1x8x2xf32>
    %1717 = vector.shape_cast %1716 : vector<1x8x2xf32> to vector<8x2xf32>
    %1718 = arith.cmpf ole, %1717, %1624 : vector<8x2xf32>
    %1719 = arith.extui %1718 : vector<8x2xi1> to vector<8x2xi32>
    %1720 = arith.sitofp %1719 : vector<8x2xi32> to vector<8x2xf32>
    %1721 = arith.addf %1715, %1720 : vector<8x2xf32>
    %c16_893 = arith.constant 16 : index
    %c0_894 = arith.constant 0 : index
    %c0_895 = arith.constant 0 : index
    %1722 = vector.load %arg1[%c16_893, %c0_894, %c0_895] : memref<20x8x2xf32, #tpu.memory_space<vmem>>, vector<1x8x2xf32>
    %1723 = vector.shape_cast %1722 : vector<1x8x2xf32> to vector<8x2xf32>
    %1724 = arith.cmpf ole, %1723, %1624 : vector<8x2xf32>
    %1725 = arith.extui %1724 : vector<8x2xi1> to vector<8x2xi32>
    %1726 = arith.sitofp %1725 : vector<8x2xi32> to vector<8x2xf32>
    %1727 = arith.addf %1721, %1726 : vector<8x2xf32>
    %c17_896 = arith.constant 17 : index
    %c0_897 = arith.constant 0 : index
    %c0_898 = arith.constant 0 : index
    %1728 = vector.load %arg1[%c17_896, %c0_897, %c0_898] : memref<20x8x2xf32, #tpu.memory_space<vmem>>, vector<1x8x2xf32>
    %1729 = vector.shape_cast %1728 : vector<1x8x2xf32> to vector<8x2xf32>
    %1730 = arith.cmpf ole, %1729, %1624 : vector<8x2xf32>
    %1731 = arith.extui %1730 : vector<8x2xi1> to vector<8x2xi32>
    %1732 = arith.sitofp %1731 : vector<8x2xi32> to vector<8x2xf32>
    %1733 = arith.addf %1727, %1732 : vector<8x2xf32>
    %c18_899 = arith.constant 18 : index
    %c0_900 = arith.constant 0 : index
    %c0_901 = arith.constant 0 : index
    %1734 = vector.load %arg1[%c18_899, %c0_900, %c0_901] : memref<20x8x2xf32, #tpu.memory_space<vmem>>, vector<1x8x2xf32>
    %1735 = vector.shape_cast %1734 : vector<1x8x2xf32> to vector<8x2xf32>
    %1736 = arith.cmpf ole, %1735, %1624 : vector<8x2xf32>
    %1737 = arith.extui %1736 : vector<8x2xi1> to vector<8x2xi32>
    %1738 = arith.sitofp %1737 : vector<8x2xi32> to vector<8x2xf32>
    %1739 = arith.addf %1733, %1738 : vector<8x2xf32>
    %c19_902 = arith.constant 19 : index
    %c0_903 = arith.constant 0 : index
    %c0_904 = arith.constant 0 : index
    %1740 = vector.load %arg1[%c19_902, %c0_903, %c0_904] : memref<20x8x2xf32, #tpu.memory_space<vmem>>, vector<1x8x2xf32>
    %1741 = vector.shape_cast %1740 : vector<1x8x2xf32> to vector<8x2xf32>
    %1742 = arith.cmpf ole, %1741, %1624 : vector<8x2xf32>
    %1743 = arith.extui %1742 : vector<8x2xi1> to vector<8x2xi32>
    %1744 = arith.sitofp %1743 : vector<8x2xi32> to vector<8x2xf32>
    %1745 = arith.addf %1739, %1744 : vector<8x2xf32>
    %cst_905 = arith.constant 1.000000e+01 : f32
    %1746 = vector.broadcast %cst_905 : f32 to vector<8x2xf32>
    %1747 = arith.cmpf oge, %1745, %1746 : vector<8x2xf32>
    %cst_906 = arith.constant 0x7F800000 : f32
    %1748 = vector.broadcast %cst_906 : f32 to vector<8x2xf32>
    %1749 = arith.select %1747, %1624, %1748 : vector<8x2xi1>, vector<8x2xf32>
    %1750 = arith.minimumf %1622, %1749 : vector<8x2xf32>
    %c12_907 = arith.constant 12 : index
    %c0_908 = arith.constant 0 : index
    %c0_909 = arith.constant 0 : index
    %1751 = vector.load %arg1[%c12_907, %c0_908, %c0_909] : memref<20x8x2xf32, #tpu.memory_space<vmem>>, vector<1x8x2xf32>
    %1752 = vector.shape_cast %1751 : vector<1x8x2xf32> to vector<8x2xf32>
    %cst_910 = arith.constant 0.000000e+00 : f32
    %1753 = vector.broadcast %cst_910 : f32 to vector<8x2xf32>
    %c0_911 = arith.constant 0 : index
    %c0_912 = arith.constant 0 : index
    %c0_913 = arith.constant 0 : index
    %1754 = vector.load %arg1[%c0_911, %c0_912, %c0_913] : memref<20x8x2xf32, #tpu.memory_space<vmem>>, vector<1x8x2xf32>
    %1755 = vector.shape_cast %1754 : vector<1x8x2xf32> to vector<8x2xf32>
    %1756 = arith.cmpf ole, %1755, %1752 : vector<8x2xf32>
    %1757 = arith.extui %1756 : vector<8x2xi1> to vector<8x2xi32>
    %1758 = arith.sitofp %1757 : vector<8x2xi32> to vector<8x2xf32>
    %1759 = arith.addf %1753, %1758 : vector<8x2xf32>
    %c1_914 = arith.constant 1 : index
    %c0_915 = arith.constant 0 : index
    %c0_916 = arith.constant 0 : index
    %1760 = vector.load %arg1[%c1_914, %c0_915, %c0_916] : memref<20x8x2xf32, #tpu.memory_space<vmem>>, vector<1x8x2xf32>
    %1761 = vector.shape_cast %1760 : vector<1x8x2xf32> to vector<8x2xf32>
    %1762 = arith.cmpf ole, %1761, %1752 : vector<8x2xf32>
    %1763 = arith.extui %1762 : vector<8x2xi1> to vector<8x2xi32>
    %1764 = arith.sitofp %1763 : vector<8x2xi32> to vector<8x2xf32>
    %1765 = arith.addf %1759, %1764 : vector<8x2xf32>
    %c2_917 = arith.constant 2 : index
    %c0_918 = arith.constant 0 : index
    %c0_919 = arith.constant 0 : index
    %1766 = vector.load %arg1[%c2_917, %c0_918, %c0_919] : memref<20x8x2xf32, #tpu.memory_space<vmem>>, vector<1x8x2xf32>
    %1767 = vector.shape_cast %1766 : vector<1x8x2xf32> to vector<8x2xf32>
    %1768 = arith.cmpf ole, %1767, %1752 : vector<8x2xf32>
    %1769 = arith.extui %1768 : vector<8x2xi1> to vector<8x2xi32>
    %1770 = arith.sitofp %1769 : vector<8x2xi32> to vector<8x2xf32>
    %1771 = arith.addf %1765, %1770 : vector<8x2xf32>
    %c3_920 = arith.constant 3 : index
    %c0_921 = arith.constant 0 : index
    %c0_922 = arith.constant 0 : index
    %1772 = vector.load %arg1[%c3_920, %c0_921, %c0_922] : memref<20x8x2xf32, #tpu.memory_space<vmem>>, vector<1x8x2xf32>
    %1773 = vector.shape_cast %1772 : vector<1x8x2xf32> to vector<8x2xf32>
    %1774 = arith.cmpf ole, %1773, %1752 : vector<8x2xf32>
    %1775 = arith.extui %1774 : vector<8x2xi1> to vector<8x2xi32>
    %1776 = arith.sitofp %1775 : vector<8x2xi32> to vector<8x2xf32>
    %1777 = arith.addf %1771, %1776 : vector<8x2xf32>
    %c4_923 = arith.constant 4 : index
    %c0_924 = arith.constant 0 : index
    %c0_925 = arith.constant 0 : index
    %1778 = vector.load %arg1[%c4_923, %c0_924, %c0_925] : memref<20x8x2xf32, #tpu.memory_space<vmem>>, vector<1x8x2xf32>
    %1779 = vector.shape_cast %1778 : vector<1x8x2xf32> to vector<8x2xf32>
    %1780 = arith.cmpf ole, %1779, %1752 : vector<8x2xf32>
    %1781 = arith.extui %1780 : vector<8x2xi1> to vector<8x2xi32>
    %1782 = arith.sitofp %1781 : vector<8x2xi32> to vector<8x2xf32>
    %1783 = arith.addf %1777, %1782 : vector<8x2xf32>
    %c5_926 = arith.constant 5 : index
    %c0_927 = arith.constant 0 : index
    %c0_928 = arith.constant 0 : index
    %1784 = vector.load %arg1[%c5_926, %c0_927, %c0_928] : memref<20x8x2xf32, #tpu.memory_space<vmem>>, vector<1x8x2xf32>
    %1785 = vector.shape_cast %1784 : vector<1x8x2xf32> to vector<8x2xf32>
    %1786 = arith.cmpf ole, %1785, %1752 : vector<8x2xf32>
    %1787 = arith.extui %1786 : vector<8x2xi1> to vector<8x2xi32>
    %1788 = arith.sitofp %1787 : vector<8x2xi32> to vector<8x2xf32>
    %1789 = arith.addf %1783, %1788 : vector<8x2xf32>
    %c6_929 = arith.constant 6 : index
    %c0_930 = arith.constant 0 : index
    %c0_931 = arith.constant 0 : index
    %1790 = vector.load %arg1[%c6_929, %c0_930, %c0_931] : memref<20x8x2xf32, #tpu.memory_space<vmem>>, vector<1x8x2xf32>
    %1791 = vector.shape_cast %1790 : vector<1x8x2xf32> to vector<8x2xf32>
    %1792 = arith.cmpf ole, %1791, %1752 : vector<8x2xf32>
    %1793 = arith.extui %1792 : vector<8x2xi1> to vector<8x2xi32>
    %1794 = arith.sitofp %1793 : vector<8x2xi32> to vector<8x2xf32>
    %1795 = arith.addf %1789, %1794 : vector<8x2xf32>
    %c7_932 = arith.constant 7 : index
    %c0_933 = arith.constant 0 : index
    %c0_934 = arith.constant 0 : index
    %1796 = vector.load %arg1[%c7_932, %c0_933, %c0_934] : memref<20x8x2xf32, #tpu.memory_space<vmem>>, vector<1x8x2xf32>
    %1797 = vector.shape_cast %1796 : vector<1x8x2xf32> to vector<8x2xf32>
    %1798 = arith.cmpf ole, %1797, %1752 : vector<8x2xf32>
    %1799 = arith.extui %1798 : vector<8x2xi1> to vector<8x2xi32>
    %1800 = arith.sitofp %1799 : vector<8x2xi32> to vector<8x2xf32>
    %1801 = arith.addf %1795, %1800 : vector<8x2xf32>
    %c8_935 = arith.constant 8 : index
    %c0_936 = arith.constant 0 : index
    %c0_937 = arith.constant 0 : index
    %1802 = vector.load %arg1[%c8_935, %c0_936, %c0_937] : memref<20x8x2xf32, #tpu.memory_space<vmem>>, vector<1x8x2xf32>
    %1803 = vector.shape_cast %1802 : vector<1x8x2xf32> to vector<8x2xf32>
    %1804 = arith.cmpf ole, %1803, %1752 : vector<8x2xf32>
    %1805 = arith.extui %1804 : vector<8x2xi1> to vector<8x2xi32>
    %1806 = arith.sitofp %1805 : vector<8x2xi32> to vector<8x2xf32>
    %1807 = arith.addf %1801, %1806 : vector<8x2xf32>
    %c9_938 = arith.constant 9 : index
    %c0_939 = arith.constant 0 : index
    %c0_940 = arith.constant 0 : index
    %1808 = vector.load %arg1[%c9_938, %c0_939, %c0_940] : memref<20x8x2xf32, #tpu.memory_space<vmem>>, vector<1x8x2xf32>
    %1809 = vector.shape_cast %1808 : vector<1x8x2xf32> to vector<8x2xf32>
    %1810 = arith.cmpf ole, %1809, %1752 : vector<8x2xf32>
    %1811 = arith.extui %1810 : vector<8x2xi1> to vector<8x2xi32>
    %1812 = arith.sitofp %1811 : vector<8x2xi32> to vector<8x2xf32>
    %1813 = arith.addf %1807, %1812 : vector<8x2xf32>
    %c10_941 = arith.constant 10 : index
    %c0_942 = arith.constant 0 : index
    %c0_943 = arith.constant 0 : index
    %1814 = vector.load %arg1[%c10_941, %c0_942, %c0_943] : memref<20x8x2xf32, #tpu.memory_space<vmem>>, vector<1x8x2xf32>
    %1815 = vector.shape_cast %1814 : vector<1x8x2xf32> to vector<8x2xf32>
    %1816 = arith.cmpf ole, %1815, %1752 : vector<8x2xf32>
    %1817 = arith.extui %1816 : vector<8x2xi1> to vector<8x2xi32>
    %1818 = arith.sitofp %1817 : vector<8x2xi32> to vector<8x2xf32>
    %1819 = arith.addf %1813, %1818 : vector<8x2xf32>
    %c11_944 = arith.constant 11 : index
    %c0_945 = arith.constant 0 : index
    %c0_946 = arith.constant 0 : index
    %1820 = vector.load %arg1[%c11_944, %c0_945, %c0_946] : memref<20x8x2xf32, #tpu.memory_space<vmem>>, vector<1x8x2xf32>
    %1821 = vector.shape_cast %1820 : vector<1x8x2xf32> to vector<8x2xf32>
    %1822 = arith.cmpf ole, %1821, %1752 : vector<8x2xf32>
    %1823 = arith.extui %1822 : vector<8x2xi1> to vector<8x2xi32>
    %1824 = arith.sitofp %1823 : vector<8x2xi32> to vector<8x2xf32>
    %1825 = arith.addf %1819, %1824 : vector<8x2xf32>
    %c12_947 = arith.constant 12 : index
    %c0_948 = arith.constant 0 : index
    %c0_949 = arith.constant 0 : index
    %1826 = vector.load %arg1[%c12_947, %c0_948, %c0_949] : memref<20x8x2xf32, #tpu.memory_space<vmem>>, vector<1x8x2xf32>
    %1827 = vector.shape_cast %1826 : vector<1x8x2xf32> to vector<8x2xf32>
    %1828 = arith.cmpf ole, %1827, %1752 : vector<8x2xf32>
    %1829 = arith.extui %1828 : vector<8x2xi1> to vector<8x2xi32>
    %1830 = arith.sitofp %1829 : vector<8x2xi32> to vector<8x2xf32>
    %1831 = arith.addf %1825, %1830 : vector<8x2xf32>
    %c13_950 = arith.constant 13 : index
    %c0_951 = arith.constant 0 : index
    %c0_952 = arith.constant 0 : index
    %1832 = vector.load %arg1[%c13_950, %c0_951, %c0_952] : memref<20x8x2xf32, #tpu.memory_space<vmem>>, vector<1x8x2xf32>
    %1833 = vector.shape_cast %1832 : vector<1x8x2xf32> to vector<8x2xf32>
    %1834 = arith.cmpf ole, %1833, %1752 : vector<8x2xf32>
    %1835 = arith.extui %1834 : vector<8x2xi1> to vector<8x2xi32>
    %1836 = arith.sitofp %1835 : vector<8x2xi32> to vector<8x2xf32>
    %1837 = arith.addf %1831, %1836 : vector<8x2xf32>
    %c14_953 = arith.constant 14 : index
    %c0_954 = arith.constant 0 : index
    %c0_955 = arith.constant 0 : index
    %1838 = vector.load %arg1[%c14_953, %c0_954, %c0_955] : memref<20x8x2xf32, #tpu.memory_space<vmem>>, vector<1x8x2xf32>
    %1839 = vector.shape_cast %1838 : vector<1x8x2xf32> to vector<8x2xf32>
    %1840 = arith.cmpf ole, %1839, %1752 : vector<8x2xf32>
    %1841 = arith.extui %1840 : vector<8x2xi1> to vector<8x2xi32>
    %1842 = arith.sitofp %1841 : vector<8x2xi32> to vector<8x2xf32>
    %1843 = arith.addf %1837, %1842 : vector<8x2xf32>
    %c15_956 = arith.constant 15 : index
    %c0_957 = arith.constant 0 : index
    %c0_958 = arith.constant 0 : index
    %1844 = vector.load %arg1[%c15_956, %c0_957, %c0_958] : memref<20x8x2xf32, #tpu.memory_space<vmem>>, vector<1x8x2xf32>
    %1845 = vector.shape_cast %1844 : vector<1x8x2xf32> to vector<8x2xf32>
    %1846 = arith.cmpf ole, %1845, %1752 : vector<8x2xf32>
    %1847 = arith.extui %1846 : vector<8x2xi1> to vector<8x2xi32>
    %1848 = arith.sitofp %1847 : vector<8x2xi32> to vector<8x2xf32>
    %1849 = arith.addf %1843, %1848 : vector<8x2xf32>
    %c16_959 = arith.constant 16 : index
    %c0_960 = arith.constant 0 : index
    %c0_961 = arith.constant 0 : index
    %1850 = vector.load %arg1[%c16_959, %c0_960, %c0_961] : memref<20x8x2xf32, #tpu.memory_space<vmem>>, vector<1x8x2xf32>
    %1851 = vector.shape_cast %1850 : vector<1x8x2xf32> to vector<8x2xf32>
    %1852 = arith.cmpf ole, %1851, %1752 : vector<8x2xf32>
    %1853 = arith.extui %1852 : vector<8x2xi1> to vector<8x2xi32>
    %1854 = arith.sitofp %1853 : vector<8x2xi32> to vector<8x2xf32>
    %1855 = arith.addf %1849, %1854 : vector<8x2xf32>
    %c17_962 = arith.constant 17 : index
    %c0_963 = arith.constant 0 : index
    %c0_964 = arith.constant 0 : index
    %1856 = vector.load %arg1[%c17_962, %c0_963, %c0_964] : memref<20x8x2xf32, #tpu.memory_space<vmem>>, vector<1x8x2xf32>
    %1857 = vector.shape_cast %1856 : vector<1x8x2xf32> to vector<8x2xf32>
    %1858 = arith.cmpf ole, %1857, %1752 : vector<8x2xf32>
    %1859 = arith.extui %1858 : vector<8x2xi1> to vector<8x2xi32>
    %1860 = arith.sitofp %1859 : vector<8x2xi32> to vector<8x2xf32>
    %1861 = arith.addf %1855, %1860 : vector<8x2xf32>
    %c18_965 = arith.constant 18 : index
    %c0_966 = arith.constant 0 : index
    %c0_967 = arith.constant 0 : index
    %1862 = vector.load %arg1[%c18_965, %c0_966, %c0_967] : memref<20x8x2xf32, #tpu.memory_space<vmem>>, vector<1x8x2xf32>
    %1863 = vector.shape_cast %1862 : vector<1x8x2xf32> to vector<8x2xf32>
    %1864 = arith.cmpf ole, %1863, %1752 : vector<8x2xf32>
    %1865 = arith.extui %1864 : vector<8x2xi1> to vector<8x2xi32>
    %1866 = arith.sitofp %1865 : vector<8x2xi32> to vector<8x2xf32>
    %1867 = arith.addf %1861, %1866 : vector<8x2xf32>
    %c19_968 = arith.constant 19 : index
    %c0_969 = arith.constant 0 : index
    %c0_970 = arith.constant 0 : index
    %1868 = vector.load %arg1[%c19_968, %c0_969, %c0_970] : memref<20x8x2xf32, #tpu.memory_space<vmem>>, vector<1x8x2xf32>
    %1869 = vector.shape_cast %1868 : vector<1x8x2xf32> to vector<8x2xf32>
    %1870 = arith.cmpf ole, %1869, %1752 : vector<8x2xf32>
    %1871 = arith.extui %1870 : vector<8x2xi1> to vector<8x2xi32>
    %1872 = arith.sitofp %1871 : vector<8x2xi32> to vector<8x2xf32>
    %1873 = arith.addf %1867, %1872 : vector<8x2xf32>
    %cst_971 = arith.constant 1.000000e+01 : f32
    %1874 = vector.broadcast %cst_971 : f32 to vector<8x2xf32>
    %1875 = arith.cmpf oge, %1873, %1874 : vector<8x2xf32>
    %cst_972 = arith.constant 0x7F800000 : f32
    %1876 = vector.broadcast %cst_972 : f32 to vector<8x2xf32>
    %1877 = arith.select %1875, %1752, %1876 : vector<8x2xi1>, vector<8x2xf32>
    %1878 = arith.minimumf %1750, %1877 : vector<8x2xf32>
    %c13_973 = arith.constant 13 : index
    %c0_974 = arith.constant 0 : index
    %c0_975 = arith.constant 0 : index
    %1879 = vector.load %arg1[%c13_973, %c0_974, %c0_975] : memref<20x8x2xf32, #tpu.memory_space<vmem>>, vector<1x8x2xf32>
    %1880 = vector.shape_cast %1879 : vector<1x8x2xf32> to vector<8x2xf32>
    %cst_976 = arith.constant 0.000000e+00 : f32
    %1881 = vector.broadcast %cst_976 : f32 to vector<8x2xf32>
    %c0_977 = arith.constant 0 : index
    %c0_978 = arith.constant 0 : index
    %c0_979 = arith.constant 0 : index
    %1882 = vector.load %arg1[%c0_977, %c0_978, %c0_979] : memref<20x8x2xf32, #tpu.memory_space<vmem>>, vector<1x8x2xf32>
    %1883 = vector.shape_cast %1882 : vector<1x8x2xf32> to vector<8x2xf32>
    %1884 = arith.cmpf ole, %1883, %1880 : vector<8x2xf32>
    %1885 = arith.extui %1884 : vector<8x2xi1> to vector<8x2xi32>
    %1886 = arith.sitofp %1885 : vector<8x2xi32> to vector<8x2xf32>
    %1887 = arith.addf %1881, %1886 : vector<8x2xf32>
    %c1_980 = arith.constant 1 : index
    %c0_981 = arith.constant 0 : index
    %c0_982 = arith.constant 0 : index
    %1888 = vector.load %arg1[%c1_980, %c0_981, %c0_982] : memref<20x8x2xf32, #tpu.memory_space<vmem>>, vector<1x8x2xf32>
    %1889 = vector.shape_cast %1888 : vector<1x8x2xf32> to vector<8x2xf32>
    %1890 = arith.cmpf ole, %1889, %1880 : vector<8x2xf32>
    %1891 = arith.extui %1890 : vector<8x2xi1> to vector<8x2xi32>
    %1892 = arith.sitofp %1891 : vector<8x2xi32> to vector<8x2xf32>
    %1893 = arith.addf %1887, %1892 : vector<8x2xf32>
    %c2_983 = arith.constant 2 : index
    %c0_984 = arith.constant 0 : index
    %c0_985 = arith.constant 0 : index
    %1894 = vector.load %arg1[%c2_983, %c0_984, %c0_985] : memref<20x8x2xf32, #tpu.memory_space<vmem>>, vector<1x8x2xf32>
    %1895 = vector.shape_cast %1894 : vector<1x8x2xf32> to vector<8x2xf32>
    %1896 = arith.cmpf ole, %1895, %1880 : vector<8x2xf32>
    %1897 = arith.extui %1896 : vector<8x2xi1> to vector<8x2xi32>
    %1898 = arith.sitofp %1897 : vector<8x2xi32> to vector<8x2xf32>
    %1899 = arith.addf %1893, %1898 : vector<8x2xf32>
    %c3_986 = arith.constant 3 : index
    %c0_987 = arith.constant 0 : index
    %c0_988 = arith.constant 0 : index
    %1900 = vector.load %arg1[%c3_986, %c0_987, %c0_988] : memref<20x8x2xf32, #tpu.memory_space<vmem>>, vector<1x8x2xf32>
    %1901 = vector.shape_cast %1900 : vector<1x8x2xf32> to vector<8x2xf32>
    %1902 = arith.cmpf ole, %1901, %1880 : vector<8x2xf32>
    %1903 = arith.extui %1902 : vector<8x2xi1> to vector<8x2xi32>
    %1904 = arith.sitofp %1903 : vector<8x2xi32> to vector<8x2xf32>
    %1905 = arith.addf %1899, %1904 : vector<8x2xf32>
    %c4_989 = arith.constant 4 : index
    %c0_990 = arith.constant 0 : index
    %c0_991 = arith.constant 0 : index
    %1906 = vector.load %arg1[%c4_989, %c0_990, %c0_991] : memref<20x8x2xf32, #tpu.memory_space<vmem>>, vector<1x8x2xf32>
    %1907 = vector.shape_cast %1906 : vector<1x8x2xf32> to vector<8x2xf32>
    %1908 = arith.cmpf ole, %1907, %1880 : vector<8x2xf32>
    %1909 = arith.extui %1908 : vector<8x2xi1> to vector<8x2xi32>
    %1910 = arith.sitofp %1909 : vector<8x2xi32> to vector<8x2xf32>
    %1911 = arith.addf %1905, %1910 : vector<8x2xf32>
    %c5_992 = arith.constant 5 : index
    %c0_993 = arith.constant 0 : index
    %c0_994 = arith.constant 0 : index
    %1912 = vector.load %arg1[%c5_992, %c0_993, %c0_994] : memref<20x8x2xf32, #tpu.memory_space<vmem>>, vector<1x8x2xf32>
    %1913 = vector.shape_cast %1912 : vector<1x8x2xf32> to vector<8x2xf32>
    %1914 = arith.cmpf ole, %1913, %1880 : vector<8x2xf32>
    %1915 = arith.extui %1914 : vector<8x2xi1> to vector<8x2xi32>
    %1916 = arith.sitofp %1915 : vector<8x2xi32> to vector<8x2xf32>
    %1917 = arith.addf %1911, %1916 : vector<8x2xf32>
    %c6_995 = arith.constant 6 : index
    %c0_996 = arith.constant 0 : index
    %c0_997 = arith.constant 0 : index
    %1918 = vector.load %arg1[%c6_995, %c0_996, %c0_997] : memref<20x8x2xf32, #tpu.memory_space<vmem>>, vector<1x8x2xf32>
    %1919 = vector.shape_cast %1918 : vector<1x8x2xf32> to vector<8x2xf32>
    %1920 = arith.cmpf ole, %1919, %1880 : vector<8x2xf32>
    %1921 = arith.extui %1920 : vector<8x2xi1> to vector<8x2xi32>
    %1922 = arith.sitofp %1921 : vector<8x2xi32> to vector<8x2xf32>
    %1923 = arith.addf %1917, %1922 : vector<8x2xf32>
    %c7_998 = arith.constant 7 : index
    %c0_999 = arith.constant 0 : index
    %c0_1000 = arith.constant 0 : index
    %1924 = vector.load %arg1[%c7_998, %c0_999, %c0_1000] : memref<20x8x2xf32, #tpu.memory_space<vmem>>, vector<1x8x2xf32>
    %1925 = vector.shape_cast %1924 : vector<1x8x2xf32> to vector<8x2xf32>
    %1926 = arith.cmpf ole, %1925, %1880 : vector<8x2xf32>
    %1927 = arith.extui %1926 : vector<8x2xi1> to vector<8x2xi32>
    %1928 = arith.sitofp %1927 : vector<8x2xi32> to vector<8x2xf32>
    %1929 = arith.addf %1923, %1928 : vector<8x2xf32>
    %c8_1001 = arith.constant 8 : index
    %c0_1002 = arith.constant 0 : index
    %c0_1003 = arith.constant 0 : index
    %1930 = vector.load %arg1[%c8_1001, %c0_1002, %c0_1003] : memref<20x8x2xf32, #tpu.memory_space<vmem>>, vector<1x8x2xf32>
    %1931 = vector.shape_cast %1930 : vector<1x8x2xf32> to vector<8x2xf32>
    %1932 = arith.cmpf ole, %1931, %1880 : vector<8x2xf32>
    %1933 = arith.extui %1932 : vector<8x2xi1> to vector<8x2xi32>
    %1934 = arith.sitofp %1933 : vector<8x2xi32> to vector<8x2xf32>
    %1935 = arith.addf %1929, %1934 : vector<8x2xf32>
    %c9_1004 = arith.constant 9 : index
    %c0_1005 = arith.constant 0 : index
    %c0_1006 = arith.constant 0 : index
    %1936 = vector.load %arg1[%c9_1004, %c0_1005, %c0_1006] : memref<20x8x2xf32, #tpu.memory_space<vmem>>, vector<1x8x2xf32>
    %1937 = vector.shape_cast %1936 : vector<1x8x2xf32> to vector<8x2xf32>
    %1938 = arith.cmpf ole, %1937, %1880 : vector<8x2xf32>
    %1939 = arith.extui %1938 : vector<8x2xi1> to vector<8x2xi32>
    %1940 = arith.sitofp %1939 : vector<8x2xi32> to vector<8x2xf32>
    %1941 = arith.addf %1935, %1940 : vector<8x2xf32>
    %c10_1007 = arith.constant 10 : index
    %c0_1008 = arith.constant 0 : index
    %c0_1009 = arith.constant 0 : index
    %1942 = vector.load %arg1[%c10_1007, %c0_1008, %c0_1009] : memref<20x8x2xf32, #tpu.memory_space<vmem>>, vector<1x8x2xf32>
    %1943 = vector.shape_cast %1942 : vector<1x8x2xf32> to vector<8x2xf32>
    %1944 = arith.cmpf ole, %1943, %1880 : vector<8x2xf32>
    %1945 = arith.extui %1944 : vector<8x2xi1> to vector<8x2xi32>
    %1946 = arith.sitofp %1945 : vector<8x2xi32> to vector<8x2xf32>
    %1947 = arith.addf %1941, %1946 : vector<8x2xf32>
    %c11_1010 = arith.constant 11 : index
    %c0_1011 = arith.constant 0 : index
    %c0_1012 = arith.constant 0 : index
    %1948 = vector.load %arg1[%c11_1010, %c0_1011, %c0_1012] : memref<20x8x2xf32, #tpu.memory_space<vmem>>, vector<1x8x2xf32>
    %1949 = vector.shape_cast %1948 : vector<1x8x2xf32> to vector<8x2xf32>
    %1950 = arith.cmpf ole, %1949, %1880 : vector<8x2xf32>
    %1951 = arith.extui %1950 : vector<8x2xi1> to vector<8x2xi32>
    %1952 = arith.sitofp %1951 : vector<8x2xi32> to vector<8x2xf32>
    %1953 = arith.addf %1947, %1952 : vector<8x2xf32>
    %c12_1013 = arith.constant 12 : index
    %c0_1014 = arith.constant 0 : index
    %c0_1015 = arith.constant 0 : index
    %1954 = vector.load %arg1[%c12_1013, %c0_1014, %c0_1015] : memref<20x8x2xf32, #tpu.memory_space<vmem>>, vector<1x8x2xf32>
    %1955 = vector.shape_cast %1954 : vector<1x8x2xf32> to vector<8x2xf32>
    %1956 = arith.cmpf ole, %1955, %1880 : vector<8x2xf32>
    %1957 = arith.extui %1956 : vector<8x2xi1> to vector<8x2xi32>
    %1958 = arith.sitofp %1957 : vector<8x2xi32> to vector<8x2xf32>
    %1959 = arith.addf %1953, %1958 : vector<8x2xf32>
    %c13_1016 = arith.constant 13 : index
    %c0_1017 = arith.constant 0 : index
    %c0_1018 = arith.constant 0 : index
    %1960 = vector.load %arg1[%c13_1016, %c0_1017, %c0_1018] : memref<20x8x2xf32, #tpu.memory_space<vmem>>, vector<1x8x2xf32>
    %1961 = vector.shape_cast %1960 : vector<1x8x2xf32> to vector<8x2xf32>
    %1962 = arith.cmpf ole, %1961, %1880 : vector<8x2xf32>
    %1963 = arith.extui %1962 : vector<8x2xi1> to vector<8x2xi32>
    %1964 = arith.sitofp %1963 : vector<8x2xi32> to vector<8x2xf32>
    %1965 = arith.addf %1959, %1964 : vector<8x2xf32>
    %c14_1019 = arith.constant 14 : index
    %c0_1020 = arith.constant 0 : index
    %c0_1021 = arith.constant 0 : index
    %1966 = vector.load %arg1[%c14_1019, %c0_1020, %c0_1021] : memref<20x8x2xf32, #tpu.memory_space<vmem>>, vector<1x8x2xf32>
    %1967 = vector.shape_cast %1966 : vector<1x8x2xf32> to vector<8x2xf32>
    %1968 = arith.cmpf ole, %1967, %1880 : vector<8x2xf32>
    %1969 = arith.extui %1968 : vector<8x2xi1> to vector<8x2xi32>
    %1970 = arith.sitofp %1969 : vector<8x2xi32> to vector<8x2xf32>
    %1971 = arith.addf %1965, %1970 : vector<8x2xf32>
    %c15_1022 = arith.constant 15 : index
    %c0_1023 = arith.constant 0 : index
    %c0_1024 = arith.constant 0 : index
    %1972 = vector.load %arg1[%c15_1022, %c0_1023, %c0_1024] : memref<20x8x2xf32, #tpu.memory_space<vmem>>, vector<1x8x2xf32>
    %1973 = vector.shape_cast %1972 : vector<1x8x2xf32> to vector<8x2xf32>
    %1974 = arith.cmpf ole, %1973, %1880 : vector<8x2xf32>
    %1975 = arith.extui %1974 : vector<8x2xi1> to vector<8x2xi32>
    %1976 = arith.sitofp %1975 : vector<8x2xi32> to vector<8x2xf32>
    %1977 = arith.addf %1971, %1976 : vector<8x2xf32>
    %c16_1025 = arith.constant 16 : index
    %c0_1026 = arith.constant 0 : index
    %c0_1027 = arith.constant 0 : index
    %1978 = vector.load %arg1[%c16_1025, %c0_1026, %c0_1027] : memref<20x8x2xf32, #tpu.memory_space<vmem>>, vector<1x8x2xf32>
    %1979 = vector.shape_cast %1978 : vector<1x8x2xf32> to vector<8x2xf32>
    %1980 = arith.cmpf ole, %1979, %1880 : vector<8x2xf32>
    %1981 = arith.extui %1980 : vector<8x2xi1> to vector<8x2xi32>
    %1982 = arith.sitofp %1981 : vector<8x2xi32> to vector<8x2xf32>
    %1983 = arith.addf %1977, %1982 : vector<8x2xf32>
    %c17_1028 = arith.constant 17 : index
    %c0_1029 = arith.constant 0 : index
    %c0_1030 = arith.constant 0 : index
    %1984 = vector.load %arg1[%c17_1028, %c0_1029, %c0_1030] : memref<20x8x2xf32, #tpu.memory_space<vmem>>, vector<1x8x2xf32>
    %1985 = vector.shape_cast %1984 : vector<1x8x2xf32> to vector<8x2xf32>
    %1986 = arith.cmpf ole, %1985, %1880 : vector<8x2xf32>
    %1987 = arith.extui %1986 : vector<8x2xi1> to vector<8x2xi32>
    %1988 = arith.sitofp %1987 : vector<8x2xi32> to vector<8x2xf32>
    %1989 = arith.addf %1983, %1988 : vector<8x2xf32>
    %c18_1031 = arith.constant 18 : index
    %c0_1032 = arith.constant 0 : index
    %c0_1033 = arith.constant 0 : index
    %1990 = vector.load %arg1[%c18_1031, %c0_1032, %c0_1033] : memref<20x8x2xf32, #tpu.memory_space<vmem>>, vector<1x8x2xf32>
    %1991 = vector.shape_cast %1990 : vector<1x8x2xf32> to vector<8x2xf32>
    %1992 = arith.cmpf ole, %1991, %1880 : vector<8x2xf32>
    %1993 = arith.extui %1992 : vector<8x2xi1> to vector<8x2xi32>
    %1994 = arith.sitofp %1993 : vector<8x2xi32> to vector<8x2xf32>
    %1995 = arith.addf %1989, %1994 : vector<8x2xf32>
    %c19_1034 = arith.constant 19 : index
    %c0_1035 = arith.constant 0 : index
    %c0_1036 = arith.constant 0 : index
    %1996 = vector.load %arg1[%c19_1034, %c0_1035, %c0_1036] : memref<20x8x2xf32, #tpu.memory_space<vmem>>, vector<1x8x2xf32>
    %1997 = vector.shape_cast %1996 : vector<1x8x2xf32> to vector<8x2xf32>
    %1998 = arith.cmpf ole, %1997, %1880 : vector<8x2xf32>
    %1999 = arith.extui %1998 : vector<8x2xi1> to vector<8x2xi32>
    %2000 = arith.sitofp %1999 : vector<8x2xi32> to vector<8x2xf32>
    %2001 = arith.addf %1995, %2000 : vector<8x2xf32>
    %cst_1037 = arith.constant 1.000000e+01 : f32
    %2002 = vector.broadcast %cst_1037 : f32 to vector<8x2xf32>
    %2003 = arith.cmpf oge, %2001, %2002 : vector<8x2xf32>
    %cst_1038 = arith.constant 0x7F800000 : f32
    %2004 = vector.broadcast %cst_1038 : f32 to vector<8x2xf32>
    %2005 = arith.select %2003, %1880, %2004 : vector<8x2xi1>, vector<8x2xf32>
    %2006 = arith.minimumf %1878, %2005 : vector<8x2xf32>
    %c14_1039 = arith.constant 14 : index
    %c0_1040 = arith.constant 0 : index
    %c0_1041 = arith.constant 0 : index
    %2007 = vector.load %arg1[%c14_1039, %c0_1040, %c0_1041] : memref<20x8x2xf32, #tpu.memory_space<vmem>>, vector<1x8x2xf32>
    %2008 = vector.shape_cast %2007 : vector<1x8x2xf32> to vector<8x2xf32>
    %cst_1042 = arith.constant 0.000000e+00 : f32
    %2009 = vector.broadcast %cst_1042 : f32 to vector<8x2xf32>
    %c0_1043 = arith.constant 0 : index
    %c0_1044 = arith.constant 0 : index
    %c0_1045 = arith.constant 0 : index
    %2010 = vector.load %arg1[%c0_1043, %c0_1044, %c0_1045] : memref<20x8x2xf32, #tpu.memory_space<vmem>>, vector<1x8x2xf32>
    %2011 = vector.shape_cast %2010 : vector<1x8x2xf32> to vector<8x2xf32>
    %2012 = arith.cmpf ole, %2011, %2008 : vector<8x2xf32>
    %2013 = arith.extui %2012 : vector<8x2xi1> to vector<8x2xi32>
    %2014 = arith.sitofp %2013 : vector<8x2xi32> to vector<8x2xf32>
    %2015 = arith.addf %2009, %2014 : vector<8x2xf32>
    %c1_1046 = arith.constant 1 : index
    %c0_1047 = arith.constant 0 : index
    %c0_1048 = arith.constant 0 : index
    %2016 = vector.load %arg1[%c1_1046, %c0_1047, %c0_1048] : memref<20x8x2xf32, #tpu.memory_space<vmem>>, vector<1x8x2xf32>
    %2017 = vector.shape_cast %2016 : vector<1x8x2xf32> to vector<8x2xf32>
    %2018 = arith.cmpf ole, %2017, %2008 : vector<8x2xf32>
    %2019 = arith.extui %2018 : vector<8x2xi1> to vector<8x2xi32>
    %2020 = arith.sitofp %2019 : vector<8x2xi32> to vector<8x2xf32>
    %2021 = arith.addf %2015, %2020 : vector<8x2xf32>
    %c2_1049 = arith.constant 2 : index
    %c0_1050 = arith.constant 0 : index
    %c0_1051 = arith.constant 0 : index
    %2022 = vector.load %arg1[%c2_1049, %c0_1050, %c0_1051] : memref<20x8x2xf32, #tpu.memory_space<vmem>>, vector<1x8x2xf32>
    %2023 = vector.shape_cast %2022 : vector<1x8x2xf32> to vector<8x2xf32>
    %2024 = arith.cmpf ole, %2023, %2008 : vector<8x2xf32>
    %2025 = arith.extui %2024 : vector<8x2xi1> to vector<8x2xi32>
    %2026 = arith.sitofp %2025 : vector<8x2xi32> to vector<8x2xf32>
    %2027 = arith.addf %2021, %2026 : vector<8x2xf32>
    %c3_1052 = arith.constant 3 : index
    %c0_1053 = arith.constant 0 : index
    %c0_1054 = arith.constant 0 : index
    %2028 = vector.load %arg1[%c3_1052, %c0_1053, %c0_1054] : memref<20x8x2xf32, #tpu.memory_space<vmem>>, vector<1x8x2xf32>
    %2029 = vector.shape_cast %2028 : vector<1x8x2xf32> to vector<8x2xf32>
    %2030 = arith.cmpf ole, %2029, %2008 : vector<8x2xf32>
    %2031 = arith.extui %2030 : vector<8x2xi1> to vector<8x2xi32>
    %2032 = arith.sitofp %2031 : vector<8x2xi32> to vector<8x2xf32>
    %2033 = arith.addf %2027, %2032 : vector<8x2xf32>
    %c4_1055 = arith.constant 4 : index
    %c0_1056 = arith.constant 0 : index
    %c0_1057 = arith.constant 0 : index
    %2034 = vector.load %arg1[%c4_1055, %c0_1056, %c0_1057] : memref<20x8x2xf32, #tpu.memory_space<vmem>>, vector<1x8x2xf32>
    %2035 = vector.shape_cast %2034 : vector<1x8x2xf32> to vector<8x2xf32>
    %2036 = arith.cmpf ole, %2035, %2008 : vector<8x2xf32>
    %2037 = arith.extui %2036 : vector<8x2xi1> to vector<8x2xi32>
    %2038 = arith.sitofp %2037 : vector<8x2xi32> to vector<8x2xf32>
    %2039 = arith.addf %2033, %2038 : vector<8x2xf32>
    %c5_1058 = arith.constant 5 : index
    %c0_1059 = arith.constant 0 : index
    %c0_1060 = arith.constant 0 : index
    %2040 = vector.load %arg1[%c5_1058, %c0_1059, %c0_1060] : memref<20x8x2xf32, #tpu.memory_space<vmem>>, vector<1x8x2xf32>
    %2041 = vector.shape_cast %2040 : vector<1x8x2xf32> to vector<8x2xf32>
    %2042 = arith.cmpf ole, %2041, %2008 : vector<8x2xf32>
    %2043 = arith.extui %2042 : vector<8x2xi1> to vector<8x2xi32>
    %2044 = arith.sitofp %2043 : vector<8x2xi32> to vector<8x2xf32>
    %2045 = arith.addf %2039, %2044 : vector<8x2xf32>
    %c6_1061 = arith.constant 6 : index
    %c0_1062 = arith.constant 0 : index
    %c0_1063 = arith.constant 0 : index
    %2046 = vector.load %arg1[%c6_1061, %c0_1062, %c0_1063] : memref<20x8x2xf32, #tpu.memory_space<vmem>>, vector<1x8x2xf32>
    %2047 = vector.shape_cast %2046 : vector<1x8x2xf32> to vector<8x2xf32>
    %2048 = arith.cmpf ole, %2047, %2008 : vector<8x2xf32>
    %2049 = arith.extui %2048 : vector<8x2xi1> to vector<8x2xi32>
    %2050 = arith.sitofp %2049 : vector<8x2xi32> to vector<8x2xf32>
    %2051 = arith.addf %2045, %2050 : vector<8x2xf32>
    %c7_1064 = arith.constant 7 : index
    %c0_1065 = arith.constant 0 : index
    %c0_1066 = arith.constant 0 : index
    %2052 = vector.load %arg1[%c7_1064, %c0_1065, %c0_1066] : memref<20x8x2xf32, #tpu.memory_space<vmem>>, vector<1x8x2xf32>
    %2053 = vector.shape_cast %2052 : vector<1x8x2xf32> to vector<8x2xf32>
    %2054 = arith.cmpf ole, %2053, %2008 : vector<8x2xf32>
    %2055 = arith.extui %2054 : vector<8x2xi1> to vector<8x2xi32>
    %2056 = arith.sitofp %2055 : vector<8x2xi32> to vector<8x2xf32>
    %2057 = arith.addf %2051, %2056 : vector<8x2xf32>
    %c8_1067 = arith.constant 8 : index
    %c0_1068 = arith.constant 0 : index
    %c0_1069 = arith.constant 0 : index
    %2058 = vector.load %arg1[%c8_1067, %c0_1068, %c0_1069] : memref<20x8x2xf32, #tpu.memory_space<vmem>>, vector<1x8x2xf32>
    %2059 = vector.shape_cast %2058 : vector<1x8x2xf32> to vector<8x2xf32>
    %2060 = arith.cmpf ole, %2059, %2008 : vector<8x2xf32>
    %2061 = arith.extui %2060 : vector<8x2xi1> to vector<8x2xi32>
    %2062 = arith.sitofp %2061 : vector<8x2xi32> to vector<8x2xf32>
    %2063 = arith.addf %2057, %2062 : vector<8x2xf32>
    %c9_1070 = arith.constant 9 : index
    %c0_1071 = arith.constant 0 : index
    %c0_1072 = arith.constant 0 : index
    %2064 = vector.load %arg1[%c9_1070, %c0_1071, %c0_1072] : memref<20x8x2xf32, #tpu.memory_space<vmem>>, vector<1x8x2xf32>
    %2065 = vector.shape_cast %2064 : vector<1x8x2xf32> to vector<8x2xf32>
    %2066 = arith.cmpf ole, %2065, %2008 : vector<8x2xf32>
    %2067 = arith.extui %2066 : vector<8x2xi1> to vector<8x2xi32>
    %2068 = arith.sitofp %2067 : vector<8x2xi32> to vector<8x2xf32>
    %2069 = arith.addf %2063, %2068 : vector<8x2xf32>
    %c10_1073 = arith.constant 10 : index
    %c0_1074 = arith.constant 0 : index
    %c0_1075 = arith.constant 0 : index
    %2070 = vector.load %arg1[%c10_1073, %c0_1074, %c0_1075] : memref<20x8x2xf32, #tpu.memory_space<vmem>>, vector<1x8x2xf32>
    %2071 = vector.shape_cast %2070 : vector<1x8x2xf32> to vector<8x2xf32>
    %2072 = arith.cmpf ole, %2071, %2008 : vector<8x2xf32>
    %2073 = arith.extui %2072 : vector<8x2xi1> to vector<8x2xi32>
    %2074 = arith.sitofp %2073 : vector<8x2xi32> to vector<8x2xf32>
    %2075 = arith.addf %2069, %2074 : vector<8x2xf32>
    %c11_1076 = arith.constant 11 : index
    %c0_1077 = arith.constant 0 : index
    %c0_1078 = arith.constant 0 : index
    %2076 = vector.load %arg1[%c11_1076, %c0_1077, %c0_1078] : memref<20x8x2xf32, #tpu.memory_space<vmem>>, vector<1x8x2xf32>
    %2077 = vector.shape_cast %2076 : vector<1x8x2xf32> to vector<8x2xf32>
    %2078 = arith.cmpf ole, %2077, %2008 : vector<8x2xf32>
    %2079 = arith.extui %2078 : vector<8x2xi1> to vector<8x2xi32>
    %2080 = arith.sitofp %2079 : vector<8x2xi32> to vector<8x2xf32>
    %2081 = arith.addf %2075, %2080 : vector<8x2xf32>
    %c12_1079 = arith.constant 12 : index
    %c0_1080 = arith.constant 0 : index
    %c0_1081 = arith.constant 0 : index
    %2082 = vector.load %arg1[%c12_1079, %c0_1080, %c0_1081] : memref<20x8x2xf32, #tpu.memory_space<vmem>>, vector<1x8x2xf32>
    %2083 = vector.shape_cast %2082 : vector<1x8x2xf32> to vector<8x2xf32>
    %2084 = arith.cmpf ole, %2083, %2008 : vector<8x2xf32>
    %2085 = arith.extui %2084 : vector<8x2xi1> to vector<8x2xi32>
    %2086 = arith.sitofp %2085 : vector<8x2xi32> to vector<8x2xf32>
    %2087 = arith.addf %2081, %2086 : vector<8x2xf32>
    %c13_1082 = arith.constant 13 : index
    %c0_1083 = arith.constant 0 : index
    %c0_1084 = arith.constant 0 : index
    %2088 = vector.load %arg1[%c13_1082, %c0_1083, %c0_1084] : memref<20x8x2xf32, #tpu.memory_space<vmem>>, vector<1x8x2xf32>
    %2089 = vector.shape_cast %2088 : vector<1x8x2xf32> to vector<8x2xf32>
    %2090 = arith.cmpf ole, %2089, %2008 : vector<8x2xf32>
    %2091 = arith.extui %2090 : vector<8x2xi1> to vector<8x2xi32>
    %2092 = arith.sitofp %2091 : vector<8x2xi32> to vector<8x2xf32>
    %2093 = arith.addf %2087, %2092 : vector<8x2xf32>
    %c14_1085 = arith.constant 14 : index
    %c0_1086 = arith.constant 0 : index
    %c0_1087 = arith.constant 0 : index
    %2094 = vector.load %arg1[%c14_1085, %c0_1086, %c0_1087] : memref<20x8x2xf32, #tpu.memory_space<vmem>>, vector<1x8x2xf32>
    %2095 = vector.shape_cast %2094 : vector<1x8x2xf32> to vector<8x2xf32>
    %2096 = arith.cmpf ole, %2095, %2008 : vector<8x2xf32>
    %2097 = arith.extui %2096 : vector<8x2xi1> to vector<8x2xi32>
    %2098 = arith.sitofp %2097 : vector<8x2xi32> to vector<8x2xf32>
    %2099 = arith.addf %2093, %2098 : vector<8x2xf32>
    %c15_1088 = arith.constant 15 : index
    %c0_1089 = arith.constant 0 : index
    %c0_1090 = arith.constant 0 : index
    %2100 = vector.load %arg1[%c15_1088, %c0_1089, %c0_1090] : memref<20x8x2xf32, #tpu.memory_space<vmem>>, vector<1x8x2xf32>
    %2101 = vector.shape_cast %2100 : vector<1x8x2xf32> to vector<8x2xf32>
    %2102 = arith.cmpf ole, %2101, %2008 : vector<8x2xf32>
    %2103 = arith.extui %2102 : vector<8x2xi1> to vector<8x2xi32>
    %2104 = arith.sitofp %2103 : vector<8x2xi32> to vector<8x2xf32>
    %2105 = arith.addf %2099, %2104 : vector<8x2xf32>
    %c16_1091 = arith.constant 16 : index
    %c0_1092 = arith.constant 0 : index
    %c0_1093 = arith.constant 0 : index
    %2106 = vector.load %arg1[%c16_1091, %c0_1092, %c0_1093] : memref<20x8x2xf32, #tpu.memory_space<vmem>>, vector<1x8x2xf32>
    %2107 = vector.shape_cast %2106 : vector<1x8x2xf32> to vector<8x2xf32>
    %2108 = arith.cmpf ole, %2107, %2008 : vector<8x2xf32>
    %2109 = arith.extui %2108 : vector<8x2xi1> to vector<8x2xi32>
    %2110 = arith.sitofp %2109 : vector<8x2xi32> to vector<8x2xf32>
    %2111 = arith.addf %2105, %2110 : vector<8x2xf32>
    %c17_1094 = arith.constant 17 : index
    %c0_1095 = arith.constant 0 : index
    %c0_1096 = arith.constant 0 : index
    %2112 = vector.load %arg1[%c17_1094, %c0_1095, %c0_1096] : memref<20x8x2xf32, #tpu.memory_space<vmem>>, vector<1x8x2xf32>
    %2113 = vector.shape_cast %2112 : vector<1x8x2xf32> to vector<8x2xf32>
    %2114 = arith.cmpf ole, %2113, %2008 : vector<8x2xf32>
    %2115 = arith.extui %2114 : vector<8x2xi1> to vector<8x2xi32>
    %2116 = arith.sitofp %2115 : vector<8x2xi32> to vector<8x2xf32>
    %2117 = arith.addf %2111, %2116 : vector<8x2xf32>
    %c18_1097 = arith.constant 18 : index
    %c0_1098 = arith.constant 0 : index
    %c0_1099 = arith.constant 0 : index
    %2118 = vector.load %arg1[%c18_1097, %c0_1098, %c0_1099] : memref<20x8x2xf32, #tpu.memory_space<vmem>>, vector<1x8x2xf32>
    %2119 = vector.shape_cast %2118 : vector<1x8x2xf32> to vector<8x2xf32>
    %2120 = arith.cmpf ole, %2119, %2008 : vector<8x2xf32>
    %2121 = arith.extui %2120 : vector<8x2xi1> to vector<8x2xi32>
    %2122 = arith.sitofp %2121 : vector<8x2xi32> to vector<8x2xf32>
    %2123 = arith.addf %2117, %2122 : vector<8x2xf32>
    %c19_1100 = arith.constant 19 : index
    %c0_1101 = arith.constant 0 : index
    %c0_1102 = arith.constant 0 : index
    %2124 = vector.load %arg1[%c19_1100, %c0_1101, %c0_1102] : memref<20x8x2xf32, #tpu.memory_space<vmem>>, vector<1x8x2xf32>
    %2125 = vector.shape_cast %2124 : vector<1x8x2xf32> to vector<8x2xf32>
    %2126 = arith.cmpf ole, %2125, %2008 : vector<8x2xf32>
    %2127 = arith.extui %2126 : vector<8x2xi1> to vector<8x2xi32>
    %2128 = arith.sitofp %2127 : vector<8x2xi32> to vector<8x2xf32>
    %2129 = arith.addf %2123, %2128 : vector<8x2xf32>
    %cst_1103 = arith.constant 1.000000e+01 : f32
    %2130 = vector.broadcast %cst_1103 : f32 to vector<8x2xf32>
    %2131 = arith.cmpf oge, %2129, %2130 : vector<8x2xf32>
    %cst_1104 = arith.constant 0x7F800000 : f32
    %2132 = vector.broadcast %cst_1104 : f32 to vector<8x2xf32>
    %2133 = arith.select %2131, %2008, %2132 : vector<8x2xi1>, vector<8x2xf32>
    %2134 = arith.minimumf %2006, %2133 : vector<8x2xf32>
    %c15_1105 = arith.constant 15 : index
    %c0_1106 = arith.constant 0 : index
    %c0_1107 = arith.constant 0 : index
    %2135 = vector.load %arg1[%c15_1105, %c0_1106, %c0_1107] : memref<20x8x2xf32, #tpu.memory_space<vmem>>, vector<1x8x2xf32>
    %2136 = vector.shape_cast %2135 : vector<1x8x2xf32> to vector<8x2xf32>
    %cst_1108 = arith.constant 0.000000e+00 : f32
    %2137 = vector.broadcast %cst_1108 : f32 to vector<8x2xf32>
    %c0_1109 = arith.constant 0 : index
    %c0_1110 = arith.constant 0 : index
    %c0_1111 = arith.constant 0 : index
    %2138 = vector.load %arg1[%c0_1109, %c0_1110, %c0_1111] : memref<20x8x2xf32, #tpu.memory_space<vmem>>, vector<1x8x2xf32>
    %2139 = vector.shape_cast %2138 : vector<1x8x2xf32> to vector<8x2xf32>
    %2140 = arith.cmpf ole, %2139, %2136 : vector<8x2xf32>
    %2141 = arith.extui %2140 : vector<8x2xi1> to vector<8x2xi32>
    %2142 = arith.sitofp %2141 : vector<8x2xi32> to vector<8x2xf32>
    %2143 = arith.addf %2137, %2142 : vector<8x2xf32>
    %c1_1112 = arith.constant 1 : index
    %c0_1113 = arith.constant 0 : index
    %c0_1114 = arith.constant 0 : index
    %2144 = vector.load %arg1[%c1_1112, %c0_1113, %c0_1114] : memref<20x8x2xf32, #tpu.memory_space<vmem>>, vector<1x8x2xf32>
    %2145 = vector.shape_cast %2144 : vector<1x8x2xf32> to vector<8x2xf32>
    %2146 = arith.cmpf ole, %2145, %2136 : vector<8x2xf32>
    %2147 = arith.extui %2146 : vector<8x2xi1> to vector<8x2xi32>
    %2148 = arith.sitofp %2147 : vector<8x2xi32> to vector<8x2xf32>
    %2149 = arith.addf %2143, %2148 : vector<8x2xf32>
    %c2_1115 = arith.constant 2 : index
    %c0_1116 = arith.constant 0 : index
    %c0_1117 = arith.constant 0 : index
    %2150 = vector.load %arg1[%c2_1115, %c0_1116, %c0_1117] : memref<20x8x2xf32, #tpu.memory_space<vmem>>, vector<1x8x2xf32>
    %2151 = vector.shape_cast %2150 : vector<1x8x2xf32> to vector<8x2xf32>
    %2152 = arith.cmpf ole, %2151, %2136 : vector<8x2xf32>
    %2153 = arith.extui %2152 : vector<8x2xi1> to vector<8x2xi32>
    %2154 = arith.sitofp %2153 : vector<8x2xi32> to vector<8x2xf32>
    %2155 = arith.addf %2149, %2154 : vector<8x2xf32>
    %c3_1118 = arith.constant 3 : index
    %c0_1119 = arith.constant 0 : index
    %c0_1120 = arith.constant 0 : index
    %2156 = vector.load %arg1[%c3_1118, %c0_1119, %c0_1120] : memref<20x8x2xf32, #tpu.memory_space<vmem>>, vector<1x8x2xf32>
    %2157 = vector.shape_cast %2156 : vector<1x8x2xf32> to vector<8x2xf32>
    %2158 = arith.cmpf ole, %2157, %2136 : vector<8x2xf32>
    %2159 = arith.extui %2158 : vector<8x2xi1> to vector<8x2xi32>
    %2160 = arith.sitofp %2159 : vector<8x2xi32> to vector<8x2xf32>
    %2161 = arith.addf %2155, %2160 : vector<8x2xf32>
    %c4_1121 = arith.constant 4 : index
    %c0_1122 = arith.constant 0 : index
    %c0_1123 = arith.constant 0 : index
    %2162 = vector.load %arg1[%c4_1121, %c0_1122, %c0_1123] : memref<20x8x2xf32, #tpu.memory_space<vmem>>, vector<1x8x2xf32>
    %2163 = vector.shape_cast %2162 : vector<1x8x2xf32> to vector<8x2xf32>
    %2164 = arith.cmpf ole, %2163, %2136 : vector<8x2xf32>
    %2165 = arith.extui %2164 : vector<8x2xi1> to vector<8x2xi32>
    %2166 = arith.sitofp %2165 : vector<8x2xi32> to vector<8x2xf32>
    %2167 = arith.addf %2161, %2166 : vector<8x2xf32>
    %c5_1124 = arith.constant 5 : index
    %c0_1125 = arith.constant 0 : index
    %c0_1126 = arith.constant 0 : index
    %2168 = vector.load %arg1[%c5_1124, %c0_1125, %c0_1126] : memref<20x8x2xf32, #tpu.memory_space<vmem>>, vector<1x8x2xf32>
    %2169 = vector.shape_cast %2168 : vector<1x8x2xf32> to vector<8x2xf32>
    %2170 = arith.cmpf ole, %2169, %2136 : vector<8x2xf32>
    %2171 = arith.extui %2170 : vector<8x2xi1> to vector<8x2xi32>
    %2172 = arith.sitofp %2171 : vector<8x2xi32> to vector<8x2xf32>
    %2173 = arith.addf %2167, %2172 : vector<8x2xf32>
    %c6_1127 = arith.constant 6 : index
    %c0_1128 = arith.constant 0 : index
    %c0_1129 = arith.constant 0 : index
    %2174 = vector.load %arg1[%c6_1127, %c0_1128, %c0_1129] : memref<20x8x2xf32, #tpu.memory_space<vmem>>, vector<1x8x2xf32>
    %2175 = vector.shape_cast %2174 : vector<1x8x2xf32> to vector<8x2xf32>
    %2176 = arith.cmpf ole, %2175, %2136 : vector<8x2xf32>
    %2177 = arith.extui %2176 : vector<8x2xi1> to vector<8x2xi32>
    %2178 = arith.sitofp %2177 : vector<8x2xi32> to vector<8x2xf32>
    %2179 = arith.addf %2173, %2178 : vector<8x2xf32>
    %c7_1130 = arith.constant 7 : index
    %c0_1131 = arith.constant 0 : index
    %c0_1132 = arith.constant 0 : index
    %2180 = vector.load %arg1[%c7_1130, %c0_1131, %c0_1132] : memref<20x8x2xf32, #tpu.memory_space<vmem>>, vector<1x8x2xf32>
    %2181 = vector.shape_cast %2180 : vector<1x8x2xf32> to vector<8x2xf32>
    %2182 = arith.cmpf ole, %2181, %2136 : vector<8x2xf32>
    %2183 = arith.extui %2182 : vector<8x2xi1> to vector<8x2xi32>
    %2184 = arith.sitofp %2183 : vector<8x2xi32> to vector<8x2xf32>
    %2185 = arith.addf %2179, %2184 : vector<8x2xf32>
    %c8_1133 = arith.constant 8 : index
    %c0_1134 = arith.constant 0 : index
    %c0_1135 = arith.constant 0 : index
    %2186 = vector.load %arg1[%c8_1133, %c0_1134, %c0_1135] : memref<20x8x2xf32, #tpu.memory_space<vmem>>, vector<1x8x2xf32>
    %2187 = vector.shape_cast %2186 : vector<1x8x2xf32> to vector<8x2xf32>
    %2188 = arith.cmpf ole, %2187, %2136 : vector<8x2xf32>
    %2189 = arith.extui %2188 : vector<8x2xi1> to vector<8x2xi32>
    %2190 = arith.sitofp %2189 : vector<8x2xi32> to vector<8x2xf32>
    %2191 = arith.addf %2185, %2190 : vector<8x2xf32>
    %c9_1136 = arith.constant 9 : index
    %c0_1137 = arith.constant 0 : index
    %c0_1138 = arith.constant 0 : index
    %2192 = vector.load %arg1[%c9_1136, %c0_1137, %c0_1138] : memref<20x8x2xf32, #tpu.memory_space<vmem>>, vector<1x8x2xf32>
    %2193 = vector.shape_cast %2192 : vector<1x8x2xf32> to vector<8x2xf32>
    %2194 = arith.cmpf ole, %2193, %2136 : vector<8x2xf32>
    %2195 = arith.extui %2194 : vector<8x2xi1> to vector<8x2xi32>
    %2196 = arith.sitofp %2195 : vector<8x2xi32> to vector<8x2xf32>
    %2197 = arith.addf %2191, %2196 : vector<8x2xf32>
    %c10_1139 = arith.constant 10 : index
    %c0_1140 = arith.constant 0 : index
    %c0_1141 = arith.constant 0 : index
    %2198 = vector.load %arg1[%c10_1139, %c0_1140, %c0_1141] : memref<20x8x2xf32, #tpu.memory_space<vmem>>, vector<1x8x2xf32>
    %2199 = vector.shape_cast %2198 : vector<1x8x2xf32> to vector<8x2xf32>
    %2200 = arith.cmpf ole, %2199, %2136 : vector<8x2xf32>
    %2201 = arith.extui %2200 : vector<8x2xi1> to vector<8x2xi32>
    %2202 = arith.sitofp %2201 : vector<8x2xi32> to vector<8x2xf32>
    %2203 = arith.addf %2197, %2202 : vector<8x2xf32>
    %c11_1142 = arith.constant 11 : index
    %c0_1143 = arith.constant 0 : index
    %c0_1144 = arith.constant 0 : index
    %2204 = vector.load %arg1[%c11_1142, %c0_1143, %c0_1144] : memref<20x8x2xf32, #tpu.memory_space<vmem>>, vector<1x8x2xf32>
    %2205 = vector.shape_cast %2204 : vector<1x8x2xf32> to vector<8x2xf32>
    %2206 = arith.cmpf ole, %2205, %2136 : vector<8x2xf32>
    %2207 = arith.extui %2206 : vector<8x2xi1> to vector<8x2xi32>
    %2208 = arith.sitofp %2207 : vector<8x2xi32> to vector<8x2xf32>
    %2209 = arith.addf %2203, %2208 : vector<8x2xf32>
    %c12_1145 = arith.constant 12 : index
    %c0_1146 = arith.constant 0 : index
    %c0_1147 = arith.constant 0 : index
    %2210 = vector.load %arg1[%c12_1145, %c0_1146, %c0_1147] : memref<20x8x2xf32, #tpu.memory_space<vmem>>, vector<1x8x2xf32>
    %2211 = vector.shape_cast %2210 : vector<1x8x2xf32> to vector<8x2xf32>
    %2212 = arith.cmpf ole, %2211, %2136 : vector<8x2xf32>
    %2213 = arith.extui %2212 : vector<8x2xi1> to vector<8x2xi32>
    %2214 = arith.sitofp %2213 : vector<8x2xi32> to vector<8x2xf32>
    %2215 = arith.addf %2209, %2214 : vector<8x2xf32>
    %c13_1148 = arith.constant 13 : index
    %c0_1149 = arith.constant 0 : index
    %c0_1150 = arith.constant 0 : index
    %2216 = vector.load %arg1[%c13_1148, %c0_1149, %c0_1150] : memref<20x8x2xf32, #tpu.memory_space<vmem>>, vector<1x8x2xf32>
    %2217 = vector.shape_cast %2216 : vector<1x8x2xf32> to vector<8x2xf32>
    %2218 = arith.cmpf ole, %2217, %2136 : vector<8x2xf32>
    %2219 = arith.extui %2218 : vector<8x2xi1> to vector<8x2xi32>
    %2220 = arith.sitofp %2219 : vector<8x2xi32> to vector<8x2xf32>
    %2221 = arith.addf %2215, %2220 : vector<8x2xf32>
    %c14_1151 = arith.constant 14 : index
    %c0_1152 = arith.constant 0 : index
    %c0_1153 = arith.constant 0 : index
    %2222 = vector.load %arg1[%c14_1151, %c0_1152, %c0_1153] : memref<20x8x2xf32, #tpu.memory_space<vmem>>, vector<1x8x2xf32>
    %2223 = vector.shape_cast %2222 : vector<1x8x2xf32> to vector<8x2xf32>
    %2224 = arith.cmpf ole, %2223, %2136 : vector<8x2xf32>
    %2225 = arith.extui %2224 : vector<8x2xi1> to vector<8x2xi32>
    %2226 = arith.sitofp %2225 : vector<8x2xi32> to vector<8x2xf32>
    %2227 = arith.addf %2221, %2226 : vector<8x2xf32>
    %c15_1154 = arith.constant 15 : index
    %c0_1155 = arith.constant 0 : index
    %c0_1156 = arith.constant 0 : index
    %2228 = vector.load %arg1[%c15_1154, %c0_1155, %c0_1156] : memref<20x8x2xf32, #tpu.memory_space<vmem>>, vector<1x8x2xf32>
    %2229 = vector.shape_cast %2228 : vector<1x8x2xf32> to vector<8x2xf32>
    %2230 = arith.cmpf ole, %2229, %2136 : vector<8x2xf32>
    %2231 = arith.extui %2230 : vector<8x2xi1> to vector<8x2xi32>
    %2232 = arith.sitofp %2231 : vector<8x2xi32> to vector<8x2xf32>
    %2233 = arith.addf %2227, %2232 : vector<8x2xf32>
    %c16_1157 = arith.constant 16 : index
    %c0_1158 = arith.constant 0 : index
    %c0_1159 = arith.constant 0 : index
    %2234 = vector.load %arg1[%c16_1157, %c0_1158, %c0_1159] : memref<20x8x2xf32, #tpu.memory_space<vmem>>, vector<1x8x2xf32>
    %2235 = vector.shape_cast %2234 : vector<1x8x2xf32> to vector<8x2xf32>
    %2236 = arith.cmpf ole, %2235, %2136 : vector<8x2xf32>
    %2237 = arith.extui %2236 : vector<8x2xi1> to vector<8x2xi32>
    %2238 = arith.sitofp %2237 : vector<8x2xi32> to vector<8x2xf32>
    %2239 = arith.addf %2233, %2238 : vector<8x2xf32>
    %c17_1160 = arith.constant 17 : index
    %c0_1161 = arith.constant 0 : index
    %c0_1162 = arith.constant 0 : index
    %2240 = vector.load %arg1[%c17_1160, %c0_1161, %c0_1162] : memref<20x8x2xf32, #tpu.memory_space<vmem>>, vector<1x8x2xf32>
    %2241 = vector.shape_cast %2240 : vector<1x8x2xf32> to vector<8x2xf32>
    %2242 = arith.cmpf ole, %2241, %2136 : vector<8x2xf32>
    %2243 = arith.extui %2242 : vector<8x2xi1> to vector<8x2xi32>
    %2244 = arith.sitofp %2243 : vector<8x2xi32> to vector<8x2xf32>
    %2245 = arith.addf %2239, %2244 : vector<8x2xf32>
    %c18_1163 = arith.constant 18 : index
    %c0_1164 = arith.constant 0 : index
    %c0_1165 = arith.constant 0 : index
    %2246 = vector.load %arg1[%c18_1163, %c0_1164, %c0_1165] : memref<20x8x2xf32, #tpu.memory_space<vmem>>, vector<1x8x2xf32>
    %2247 = vector.shape_cast %2246 : vector<1x8x2xf32> to vector<8x2xf32>
    %2248 = arith.cmpf ole, %2247, %2136 : vector<8x2xf32>
    %2249 = arith.extui %2248 : vector<8x2xi1> to vector<8x2xi32>
    %2250 = arith.sitofp %2249 : vector<8x2xi32> to vector<8x2xf32>
    %2251 = arith.addf %2245, %2250 : vector<8x2xf32>
    %c19_1166 = arith.constant 19 : index
    %c0_1167 = arith.constant 0 : index
    %c0_1168 = arith.constant 0 : index
    %2252 = vector.load %arg1[%c19_1166, %c0_1167, %c0_1168] : memref<20x8x2xf32, #tpu.memory_space<vmem>>, vector<1x8x2xf32>
    %2253 = vector.shape_cast %2252 : vector<1x8x2xf32> to vector<8x2xf32>
    %2254 = arith.cmpf ole, %2253, %2136 : vector<8x2xf32>
    %2255 = arith.extui %2254 : vector<8x2xi1> to vector<8x2xi32>
    %2256 = arith.sitofp %2255 : vector<8x2xi32> to vector<8x2xf32>
    %2257 = arith.addf %2251, %2256 : vector<8x2xf32>
    %cst_1169 = arith.constant 1.000000e+01 : f32
    %2258 = vector.broadcast %cst_1169 : f32 to vector<8x2xf32>
    %2259 = arith.cmpf oge, %2257, %2258 : vector<8x2xf32>
    %cst_1170 = arith.constant 0x7F800000 : f32
    %2260 = vector.broadcast %cst_1170 : f32 to vector<8x2xf32>
    %2261 = arith.select %2259, %2136, %2260 : vector<8x2xi1>, vector<8x2xf32>
    %2262 = arith.minimumf %2134, %2261 : vector<8x2xf32>
    %c16_1171 = arith.constant 16 : index
    %c0_1172 = arith.constant 0 : index
    %c0_1173 = arith.constant 0 : index
    %2263 = vector.load %arg1[%c16_1171, %c0_1172, %c0_1173] : memref<20x8x2xf32, #tpu.memory_space<vmem>>, vector<1x8x2xf32>
    %2264 = vector.shape_cast %2263 : vector<1x8x2xf32> to vector<8x2xf32>
    %cst_1174 = arith.constant 0.000000e+00 : f32
    %2265 = vector.broadcast %cst_1174 : f32 to vector<8x2xf32>
    %c0_1175 = arith.constant 0 : index
    %c0_1176 = arith.constant 0 : index
    %c0_1177 = arith.constant 0 : index
    %2266 = vector.load %arg1[%c0_1175, %c0_1176, %c0_1177] : memref<20x8x2xf32, #tpu.memory_space<vmem>>, vector<1x8x2xf32>
    %2267 = vector.shape_cast %2266 : vector<1x8x2xf32> to vector<8x2xf32>
    %2268 = arith.cmpf ole, %2267, %2264 : vector<8x2xf32>
    %2269 = arith.extui %2268 : vector<8x2xi1> to vector<8x2xi32>
    %2270 = arith.sitofp %2269 : vector<8x2xi32> to vector<8x2xf32>
    %2271 = arith.addf %2265, %2270 : vector<8x2xf32>
    %c1_1178 = arith.constant 1 : index
    %c0_1179 = arith.constant 0 : index
    %c0_1180 = arith.constant 0 : index
    %2272 = vector.load %arg1[%c1_1178, %c0_1179, %c0_1180] : memref<20x8x2xf32, #tpu.memory_space<vmem>>, vector<1x8x2xf32>
    %2273 = vector.shape_cast %2272 : vector<1x8x2xf32> to vector<8x2xf32>
    %2274 = arith.cmpf ole, %2273, %2264 : vector<8x2xf32>
    %2275 = arith.extui %2274 : vector<8x2xi1> to vector<8x2xi32>
    %2276 = arith.sitofp %2275 : vector<8x2xi32> to vector<8x2xf32>
    %2277 = arith.addf %2271, %2276 : vector<8x2xf32>
    %c2_1181 = arith.constant 2 : index
    %c0_1182 = arith.constant 0 : index
    %c0_1183 = arith.constant 0 : index
    %2278 = vector.load %arg1[%c2_1181, %c0_1182, %c0_1183] : memref<20x8x2xf32, #tpu.memory_space<vmem>>, vector<1x8x2xf32>
    %2279 = vector.shape_cast %2278 : vector<1x8x2xf32> to vector<8x2xf32>
    %2280 = arith.cmpf ole, %2279, %2264 : vector<8x2xf32>
    %2281 = arith.extui %2280 : vector<8x2xi1> to vector<8x2xi32>
    %2282 = arith.sitofp %2281 : vector<8x2xi32> to vector<8x2xf32>
    %2283 = arith.addf %2277, %2282 : vector<8x2xf32>
    %c3_1184 = arith.constant 3 : index
    %c0_1185 = arith.constant 0 : index
    %c0_1186 = arith.constant 0 : index
    %2284 = vector.load %arg1[%c3_1184, %c0_1185, %c0_1186] : memref<20x8x2xf32, #tpu.memory_space<vmem>>, vector<1x8x2xf32>
    %2285 = vector.shape_cast %2284 : vector<1x8x2xf32> to vector<8x2xf32>
    %2286 = arith.cmpf ole, %2285, %2264 : vector<8x2xf32>
    %2287 = arith.extui %2286 : vector<8x2xi1> to vector<8x2xi32>
    %2288 = arith.sitofp %2287 : vector<8x2xi32> to vector<8x2xf32>
    %2289 = arith.addf %2283, %2288 : vector<8x2xf32>
    %c4_1187 = arith.constant 4 : index
    %c0_1188 = arith.constant 0 : index
    %c0_1189 = arith.constant 0 : index
    %2290 = vector.load %arg1[%c4_1187, %c0_1188, %c0_1189] : memref<20x8x2xf32, #tpu.memory_space<vmem>>, vector<1x8x2xf32>
    %2291 = vector.shape_cast %2290 : vector<1x8x2xf32> to vector<8x2xf32>
    %2292 = arith.cmpf ole, %2291, %2264 : vector<8x2xf32>
    %2293 = arith.extui %2292 : vector<8x2xi1> to vector<8x2xi32>
    %2294 = arith.sitofp %2293 : vector<8x2xi32> to vector<8x2xf32>
    %2295 = arith.addf %2289, %2294 : vector<8x2xf32>
    %c5_1190 = arith.constant 5 : index
    %c0_1191 = arith.constant 0 : index
    %c0_1192 = arith.constant 0 : index
    %2296 = vector.load %arg1[%c5_1190, %c0_1191, %c0_1192] : memref<20x8x2xf32, #tpu.memory_space<vmem>>, vector<1x8x2xf32>
    %2297 = vector.shape_cast %2296 : vector<1x8x2xf32> to vector<8x2xf32>
    %2298 = arith.cmpf ole, %2297, %2264 : vector<8x2xf32>
    %2299 = arith.extui %2298 : vector<8x2xi1> to vector<8x2xi32>
    %2300 = arith.sitofp %2299 : vector<8x2xi32> to vector<8x2xf32>
    %2301 = arith.addf %2295, %2300 : vector<8x2xf32>
    %c6_1193 = arith.constant 6 : index
    %c0_1194 = arith.constant 0 : index
    %c0_1195 = arith.constant 0 : index
    %2302 = vector.load %arg1[%c6_1193, %c0_1194, %c0_1195] : memref<20x8x2xf32, #tpu.memory_space<vmem>>, vector<1x8x2xf32>
    %2303 = vector.shape_cast %2302 : vector<1x8x2xf32> to vector<8x2xf32>
    %2304 = arith.cmpf ole, %2303, %2264 : vector<8x2xf32>
    %2305 = arith.extui %2304 : vector<8x2xi1> to vector<8x2xi32>
    %2306 = arith.sitofp %2305 : vector<8x2xi32> to vector<8x2xf32>
    %2307 = arith.addf %2301, %2306 : vector<8x2xf32>
    %c7_1196 = arith.constant 7 : index
    %c0_1197 = arith.constant 0 : index
    %c0_1198 = arith.constant 0 : index
    %2308 = vector.load %arg1[%c7_1196, %c0_1197, %c0_1198] : memref<20x8x2xf32, #tpu.memory_space<vmem>>, vector<1x8x2xf32>
    %2309 = vector.shape_cast %2308 : vector<1x8x2xf32> to vector<8x2xf32>
    %2310 = arith.cmpf ole, %2309, %2264 : vector<8x2xf32>
    %2311 = arith.extui %2310 : vector<8x2xi1> to vector<8x2xi32>
    %2312 = arith.sitofp %2311 : vector<8x2xi32> to vector<8x2xf32>
    %2313 = arith.addf %2307, %2312 : vector<8x2xf32>
    %c8_1199 = arith.constant 8 : index
    %c0_1200 = arith.constant 0 : index
    %c0_1201 = arith.constant 0 : index
    %2314 = vector.load %arg1[%c8_1199, %c0_1200, %c0_1201] : memref<20x8x2xf32, #tpu.memory_space<vmem>>, vector<1x8x2xf32>
    %2315 = vector.shape_cast %2314 : vector<1x8x2xf32> to vector<8x2xf32>
    %2316 = arith.cmpf ole, %2315, %2264 : vector<8x2xf32>
    %2317 = arith.extui %2316 : vector<8x2xi1> to vector<8x2xi32>
    %2318 = arith.sitofp %2317 : vector<8x2xi32> to vector<8x2xf32>
    %2319 = arith.addf %2313, %2318 : vector<8x2xf32>
    %c9_1202 = arith.constant 9 : index
    %c0_1203 = arith.constant 0 : index
    %c0_1204 = arith.constant 0 : index
    %2320 = vector.load %arg1[%c9_1202, %c0_1203, %c0_1204] : memref<20x8x2xf32, #tpu.memory_space<vmem>>, vector<1x8x2xf32>
    %2321 = vector.shape_cast %2320 : vector<1x8x2xf32> to vector<8x2xf32>
    %2322 = arith.cmpf ole, %2321, %2264 : vector<8x2xf32>
    %2323 = arith.extui %2322 : vector<8x2xi1> to vector<8x2xi32>
    %2324 = arith.sitofp %2323 : vector<8x2xi32> to vector<8x2xf32>
    %2325 = arith.addf %2319, %2324 : vector<8x2xf32>
    %c10_1205 = arith.constant 10 : index
    %c0_1206 = arith.constant 0 : index
    %c0_1207 = arith.constant 0 : index
    %2326 = vector.load %arg1[%c10_1205, %c0_1206, %c0_1207] : memref<20x8x2xf32, #tpu.memory_space<vmem>>, vector<1x8x2xf32>
    %2327 = vector.shape_cast %2326 : vector<1x8x2xf32> to vector<8x2xf32>
    %2328 = arith.cmpf ole, %2327, %2264 : vector<8x2xf32>
    %2329 = arith.extui %2328 : vector<8x2xi1> to vector<8x2xi32>
    %2330 = arith.sitofp %2329 : vector<8x2xi32> to vector<8x2xf32>
    %2331 = arith.addf %2325, %2330 : vector<8x2xf32>
    %c11_1208 = arith.constant 11 : index
    %c0_1209 = arith.constant 0 : index
    %c0_1210 = arith.constant 0 : index
    %2332 = vector.load %arg1[%c11_1208, %c0_1209, %c0_1210] : memref<20x8x2xf32, #tpu.memory_space<vmem>>, vector<1x8x2xf32>
    %2333 = vector.shape_cast %2332 : vector<1x8x2xf32> to vector<8x2xf32>
    %2334 = arith.cmpf ole, %2333, %2264 : vector<8x2xf32>
    %2335 = arith.extui %2334 : vector<8x2xi1> to vector<8x2xi32>
    %2336 = arith.sitofp %2335 : vector<8x2xi32> to vector<8x2xf32>
    %2337 = arith.addf %2331, %2336 : vector<8x2xf32>
    %c12_1211 = arith.constant 12 : index
    %c0_1212 = arith.constant 0 : index
    %c0_1213 = arith.constant 0 : index
    %2338 = vector.load %arg1[%c12_1211, %c0_1212, %c0_1213] : memref<20x8x2xf32, #tpu.memory_space<vmem>>, vector<1x8x2xf32>
    %2339 = vector.shape_cast %2338 : vector<1x8x2xf32> to vector<8x2xf32>
    %2340 = arith.cmpf ole, %2339, %2264 : vector<8x2xf32>
    %2341 = arith.extui %2340 : vector<8x2xi1> to vector<8x2xi32>
    %2342 = arith.sitofp %2341 : vector<8x2xi32> to vector<8x2xf32>
    %2343 = arith.addf %2337, %2342 : vector<8x2xf32>
    %c13_1214 = arith.constant 13 : index
    %c0_1215 = arith.constant 0 : index
    %c0_1216 = arith.constant 0 : index
    %2344 = vector.load %arg1[%c13_1214, %c0_1215, %c0_1216] : memref<20x8x2xf32, #tpu.memory_space<vmem>>, vector<1x8x2xf32>
    %2345 = vector.shape_cast %2344 : vector<1x8x2xf32> to vector<8x2xf32>
    %2346 = arith.cmpf ole, %2345, %2264 : vector<8x2xf32>
    %2347 = arith.extui %2346 : vector<8x2xi1> to vector<8x2xi32>
    %2348 = arith.sitofp %2347 : vector<8x2xi32> to vector<8x2xf32>
    %2349 = arith.addf %2343, %2348 : vector<8x2xf32>
    %c14_1217 = arith.constant 14 : index
    %c0_1218 = arith.constant 0 : index
    %c0_1219 = arith.constant 0 : index
    %2350 = vector.load %arg1[%c14_1217, %c0_1218, %c0_1219] : memref<20x8x2xf32, #tpu.memory_space<vmem>>, vector<1x8x2xf32>
    %2351 = vector.shape_cast %2350 : vector<1x8x2xf32> to vector<8x2xf32>
    %2352 = arith.cmpf ole, %2351, %2264 : vector<8x2xf32>
    %2353 = arith.extui %2352 : vector<8x2xi1> to vector<8x2xi32>
    %2354 = arith.sitofp %2353 : vector<8x2xi32> to vector<8x2xf32>
    %2355 = arith.addf %2349, %2354 : vector<8x2xf32>
    %c15_1220 = arith.constant 15 : index
    %c0_1221 = arith.constant 0 : index
    %c0_1222 = arith.constant 0 : index
    %2356 = vector.load %arg1[%c15_1220, %c0_1221, %c0_1222] : memref<20x8x2xf32, #tpu.memory_space<vmem>>, vector<1x8x2xf32>
    %2357 = vector.shape_cast %2356 : vector<1x8x2xf32> to vector<8x2xf32>
    %2358 = arith.cmpf ole, %2357, %2264 : vector<8x2xf32>
    %2359 = arith.extui %2358 : vector<8x2xi1> to vector<8x2xi32>
    %2360 = arith.sitofp %2359 : vector<8x2xi32> to vector<8x2xf32>
    %2361 = arith.addf %2355, %2360 : vector<8x2xf32>
    %c16_1223 = arith.constant 16 : index
    %c0_1224 = arith.constant 0 : index
    %c0_1225 = arith.constant 0 : index
    %2362 = vector.load %arg1[%c16_1223, %c0_1224, %c0_1225] : memref<20x8x2xf32, #tpu.memory_space<vmem>>, vector<1x8x2xf32>
    %2363 = vector.shape_cast %2362 : vector<1x8x2xf32> to vector<8x2xf32>
    %2364 = arith.cmpf ole, %2363, %2264 : vector<8x2xf32>
    %2365 = arith.extui %2364 : vector<8x2xi1> to vector<8x2xi32>
    %2366 = arith.sitofp %2365 : vector<8x2xi32> to vector<8x2xf32>
    %2367 = arith.addf %2361, %2366 : vector<8x2xf32>
    %c17_1226 = arith.constant 17 : index
    %c0_1227 = arith.constant 0 : index
    %c0_1228 = arith.constant 0 : index
    %2368 = vector.load %arg1[%c17_1226, %c0_1227, %c0_1228] : memref<20x8x2xf32, #tpu.memory_space<vmem>>, vector<1x8x2xf32>
    %2369 = vector.shape_cast %2368 : vector<1x8x2xf32> to vector<8x2xf32>
    %2370 = arith.cmpf ole, %2369, %2264 : vector<8x2xf32>
    %2371 = arith.extui %2370 : vector<8x2xi1> to vector<8x2xi32>
    %2372 = arith.sitofp %2371 : vector<8x2xi32> to vector<8x2xf32>
    %2373 = arith.addf %2367, %2372 : vector<8x2xf32>
    %c18_1229 = arith.constant 18 : index
    %c0_1230 = arith.constant 0 : index
    %c0_1231 = arith.constant 0 : index
    %2374 = vector.load %arg1[%c18_1229, %c0_1230, %c0_1231] : memref<20x8x2xf32, #tpu.memory_space<vmem>>, vector<1x8x2xf32>
    %2375 = vector.shape_cast %2374 : vector<1x8x2xf32> to vector<8x2xf32>
    %2376 = arith.cmpf ole, %2375, %2264 : vector<8x2xf32>
    %2377 = arith.extui %2376 : vector<8x2xi1> to vector<8x2xi32>
    %2378 = arith.sitofp %2377 : vector<8x2xi32> to vector<8x2xf32>
    %2379 = arith.addf %2373, %2378 : vector<8x2xf32>
    %c19_1232 = arith.constant 19 : index
    %c0_1233 = arith.constant 0 : index
    %c0_1234 = arith.constant 0 : index
    %2380 = vector.load %arg1[%c19_1232, %c0_1233, %c0_1234] : memref<20x8x2xf32, #tpu.memory_space<vmem>>, vector<1x8x2xf32>
    %2381 = vector.shape_cast %2380 : vector<1x8x2xf32> to vector<8x2xf32>
    %2382 = arith.cmpf ole, %2381, %2264 : vector<8x2xf32>
    %2383 = arith.extui %2382 : vector<8x2xi1> to vector<8x2xi32>
    %2384 = arith.sitofp %2383 : vector<8x2xi32> to vector<8x2xf32>
    %2385 = arith.addf %2379, %2384 : vector<8x2xf32>
    %cst_1235 = arith.constant 1.000000e+01 : f32
    %2386 = vector.broadcast %cst_1235 : f32 to vector<8x2xf32>
    %2387 = arith.cmpf oge, %2385, %2386 : vector<8x2xf32>
    %cst_1236 = arith.constant 0x7F800000 : f32
    %2388 = vector.broadcast %cst_1236 : f32 to vector<8x2xf32>
    %2389 = arith.select %2387, %2264, %2388 : vector<8x2xi1>, vector<8x2xf32>
    %2390 = arith.minimumf %2262, %2389 : vector<8x2xf32>
    %c17_1237 = arith.constant 17 : index
    %c0_1238 = arith.constant 0 : index
    %c0_1239 = arith.constant 0 : index
    %2391 = vector.load %arg1[%c17_1237, %c0_1238, %c0_1239] : memref<20x8x2xf32, #tpu.memory_space<vmem>>, vector<1x8x2xf32>
    %2392 = vector.shape_cast %2391 : vector<1x8x2xf32> to vector<8x2xf32>
    %cst_1240 = arith.constant 0.000000e+00 : f32
    %2393 = vector.broadcast %cst_1240 : f32 to vector<8x2xf32>
    %c0_1241 = arith.constant 0 : index
    %c0_1242 = arith.constant 0 : index
    %c0_1243 = arith.constant 0 : index
    %2394 = vector.load %arg1[%c0_1241, %c0_1242, %c0_1243] : memref<20x8x2xf32, #tpu.memory_space<vmem>>, vector<1x8x2xf32>
    %2395 = vector.shape_cast %2394 : vector<1x8x2xf32> to vector<8x2xf32>
    %2396 = arith.cmpf ole, %2395, %2392 : vector<8x2xf32>
    %2397 = arith.extui %2396 : vector<8x2xi1> to vector<8x2xi32>
    %2398 = arith.sitofp %2397 : vector<8x2xi32> to vector<8x2xf32>
    %2399 = arith.addf %2393, %2398 : vector<8x2xf32>
    %c1_1244 = arith.constant 1 : index
    %c0_1245 = arith.constant 0 : index
    %c0_1246 = arith.constant 0 : index
    %2400 = vector.load %arg1[%c1_1244, %c0_1245, %c0_1246] : memref<20x8x2xf32, #tpu.memory_space<vmem>>, vector<1x8x2xf32>
    %2401 = vector.shape_cast %2400 : vector<1x8x2xf32> to vector<8x2xf32>
    %2402 = arith.cmpf ole, %2401, %2392 : vector<8x2xf32>
    %2403 = arith.extui %2402 : vector<8x2xi1> to vector<8x2xi32>
    %2404 = arith.sitofp %2403 : vector<8x2xi32> to vector<8x2xf32>
    %2405 = arith.addf %2399, %2404 : vector<8x2xf32>
    %c2_1247 = arith.constant 2 : index
    %c0_1248 = arith.constant 0 : index
    %c0_1249 = arith.constant 0 : index
    %2406 = vector.load %arg1[%c2_1247, %c0_1248, %c0_1249] : memref<20x8x2xf32, #tpu.memory_space<vmem>>, vector<1x8x2xf32>
    %2407 = vector.shape_cast %2406 : vector<1x8x2xf32> to vector<8x2xf32>
    %2408 = arith.cmpf ole, %2407, %2392 : vector<8x2xf32>
    %2409 = arith.extui %2408 : vector<8x2xi1> to vector<8x2xi32>
    %2410 = arith.sitofp %2409 : vector<8x2xi32> to vector<8x2xf32>
    %2411 = arith.addf %2405, %2410 : vector<8x2xf32>
    %c3_1250 = arith.constant 3 : index
    %c0_1251 = arith.constant 0 : index
    %c0_1252 = arith.constant 0 : index
    %2412 = vector.load %arg1[%c3_1250, %c0_1251, %c0_1252] : memref<20x8x2xf32, #tpu.memory_space<vmem>>, vector<1x8x2xf32>
    %2413 = vector.shape_cast %2412 : vector<1x8x2xf32> to vector<8x2xf32>
    %2414 = arith.cmpf ole, %2413, %2392 : vector<8x2xf32>
    %2415 = arith.extui %2414 : vector<8x2xi1> to vector<8x2xi32>
    %2416 = arith.sitofp %2415 : vector<8x2xi32> to vector<8x2xf32>
    %2417 = arith.addf %2411, %2416 : vector<8x2xf32>
    %c4_1253 = arith.constant 4 : index
    %c0_1254 = arith.constant 0 : index
    %c0_1255 = arith.constant 0 : index
    %2418 = vector.load %arg1[%c4_1253, %c0_1254, %c0_1255] : memref<20x8x2xf32, #tpu.memory_space<vmem>>, vector<1x8x2xf32>
    %2419 = vector.shape_cast %2418 : vector<1x8x2xf32> to vector<8x2xf32>
    %2420 = arith.cmpf ole, %2419, %2392 : vector<8x2xf32>
    %2421 = arith.extui %2420 : vector<8x2xi1> to vector<8x2xi32>
    %2422 = arith.sitofp %2421 : vector<8x2xi32> to vector<8x2xf32>
    %2423 = arith.addf %2417, %2422 : vector<8x2xf32>
    %c5_1256 = arith.constant 5 : index
    %c0_1257 = arith.constant 0 : index
    %c0_1258 = arith.constant 0 : index
    %2424 = vector.load %arg1[%c5_1256, %c0_1257, %c0_1258] : memref<20x8x2xf32, #tpu.memory_space<vmem>>, vector<1x8x2xf32>
    %2425 = vector.shape_cast %2424 : vector<1x8x2xf32> to vector<8x2xf32>
    %2426 = arith.cmpf ole, %2425, %2392 : vector<8x2xf32>
    %2427 = arith.extui %2426 : vector<8x2xi1> to vector<8x2xi32>
    %2428 = arith.sitofp %2427 : vector<8x2xi32> to vector<8x2xf32>
    %2429 = arith.addf %2423, %2428 : vector<8x2xf32>
    %c6_1259 = arith.constant 6 : index
    %c0_1260 = arith.constant 0 : index
    %c0_1261 = arith.constant 0 : index
    %2430 = vector.load %arg1[%c6_1259, %c0_1260, %c0_1261] : memref<20x8x2xf32, #tpu.memory_space<vmem>>, vector<1x8x2xf32>
    %2431 = vector.shape_cast %2430 : vector<1x8x2xf32> to vector<8x2xf32>
    %2432 = arith.cmpf ole, %2431, %2392 : vector<8x2xf32>
    %2433 = arith.extui %2432 : vector<8x2xi1> to vector<8x2xi32>
    %2434 = arith.sitofp %2433 : vector<8x2xi32> to vector<8x2xf32>
    %2435 = arith.addf %2429, %2434 : vector<8x2xf32>
    %c7_1262 = arith.constant 7 : index
    %c0_1263 = arith.constant 0 : index
    %c0_1264 = arith.constant 0 : index
    %2436 = vector.load %arg1[%c7_1262, %c0_1263, %c0_1264] : memref<20x8x2xf32, #tpu.memory_space<vmem>>, vector<1x8x2xf32>
    %2437 = vector.shape_cast %2436 : vector<1x8x2xf32> to vector<8x2xf32>
    %2438 = arith.cmpf ole, %2437, %2392 : vector<8x2xf32>
    %2439 = arith.extui %2438 : vector<8x2xi1> to vector<8x2xi32>
    %2440 = arith.sitofp %2439 : vector<8x2xi32> to vector<8x2xf32>
    %2441 = arith.addf %2435, %2440 : vector<8x2xf32>
    %c8_1265 = arith.constant 8 : index
    %c0_1266 = arith.constant 0 : index
    %c0_1267 = arith.constant 0 : index
    %2442 = vector.load %arg1[%c8_1265, %c0_1266, %c0_1267] : memref<20x8x2xf32, #tpu.memory_space<vmem>>, vector<1x8x2xf32>
    %2443 = vector.shape_cast %2442 : vector<1x8x2xf32> to vector<8x2xf32>
    %2444 = arith.cmpf ole, %2443, %2392 : vector<8x2xf32>
    %2445 = arith.extui %2444 : vector<8x2xi1> to vector<8x2xi32>
    %2446 = arith.sitofp %2445 : vector<8x2xi32> to vector<8x2xf32>
    %2447 = arith.addf %2441, %2446 : vector<8x2xf32>
    %c9_1268 = arith.constant 9 : index
    %c0_1269 = arith.constant 0 : index
    %c0_1270 = arith.constant 0 : index
    %2448 = vector.load %arg1[%c9_1268, %c0_1269, %c0_1270] : memref<20x8x2xf32, #tpu.memory_space<vmem>>, vector<1x8x2xf32>
    %2449 = vector.shape_cast %2448 : vector<1x8x2xf32> to vector<8x2xf32>
    %2450 = arith.cmpf ole, %2449, %2392 : vector<8x2xf32>
    %2451 = arith.extui %2450 : vector<8x2xi1> to vector<8x2xi32>
    %2452 = arith.sitofp %2451 : vector<8x2xi32> to vector<8x2xf32>
    %2453 = arith.addf %2447, %2452 : vector<8x2xf32>
    %c10_1271 = arith.constant 10 : index
    %c0_1272 = arith.constant 0 : index
    %c0_1273 = arith.constant 0 : index
    %2454 = vector.load %arg1[%c10_1271, %c0_1272, %c0_1273] : memref<20x8x2xf32, #tpu.memory_space<vmem>>, vector<1x8x2xf32>
    %2455 = vector.shape_cast %2454 : vector<1x8x2xf32> to vector<8x2xf32>
    %2456 = arith.cmpf ole, %2455, %2392 : vector<8x2xf32>
    %2457 = arith.extui %2456 : vector<8x2xi1> to vector<8x2xi32>
    %2458 = arith.sitofp %2457 : vector<8x2xi32> to vector<8x2xf32>
    %2459 = arith.addf %2453, %2458 : vector<8x2xf32>
    %c11_1274 = arith.constant 11 : index
    %c0_1275 = arith.constant 0 : index
    %c0_1276 = arith.constant 0 : index
    %2460 = vector.load %arg1[%c11_1274, %c0_1275, %c0_1276] : memref<20x8x2xf32, #tpu.memory_space<vmem>>, vector<1x8x2xf32>
    %2461 = vector.shape_cast %2460 : vector<1x8x2xf32> to vector<8x2xf32>
    %2462 = arith.cmpf ole, %2461, %2392 : vector<8x2xf32>
    %2463 = arith.extui %2462 : vector<8x2xi1> to vector<8x2xi32>
    %2464 = arith.sitofp %2463 : vector<8x2xi32> to vector<8x2xf32>
    %2465 = arith.addf %2459, %2464 : vector<8x2xf32>
    %c12_1277 = arith.constant 12 : index
    %c0_1278 = arith.constant 0 : index
    %c0_1279 = arith.constant 0 : index
    %2466 = vector.load %arg1[%c12_1277, %c0_1278, %c0_1279] : memref<20x8x2xf32, #tpu.memory_space<vmem>>, vector<1x8x2xf32>
    %2467 = vector.shape_cast %2466 : vector<1x8x2xf32> to vector<8x2xf32>
    %2468 = arith.cmpf ole, %2467, %2392 : vector<8x2xf32>
    %2469 = arith.extui %2468 : vector<8x2xi1> to vector<8x2xi32>
    %2470 = arith.sitofp %2469 : vector<8x2xi32> to vector<8x2xf32>
    %2471 = arith.addf %2465, %2470 : vector<8x2xf32>
    %c13_1280 = arith.constant 13 : index
    %c0_1281 = arith.constant 0 : index
    %c0_1282 = arith.constant 0 : index
    %2472 = vector.load %arg1[%c13_1280, %c0_1281, %c0_1282] : memref<20x8x2xf32, #tpu.memory_space<vmem>>, vector<1x8x2xf32>
    %2473 = vector.shape_cast %2472 : vector<1x8x2xf32> to vector<8x2xf32>
    %2474 = arith.cmpf ole, %2473, %2392 : vector<8x2xf32>
    %2475 = arith.extui %2474 : vector<8x2xi1> to vector<8x2xi32>
    %2476 = arith.sitofp %2475 : vector<8x2xi32> to vector<8x2xf32>
    %2477 = arith.addf %2471, %2476 : vector<8x2xf32>
    %c14_1283 = arith.constant 14 : index
    %c0_1284 = arith.constant 0 : index
    %c0_1285 = arith.constant 0 : index
    %2478 = vector.load %arg1[%c14_1283, %c0_1284, %c0_1285] : memref<20x8x2xf32, #tpu.memory_space<vmem>>, vector<1x8x2xf32>
    %2479 = vector.shape_cast %2478 : vector<1x8x2xf32> to vector<8x2xf32>
    %2480 = arith.cmpf ole, %2479, %2392 : vector<8x2xf32>
    %2481 = arith.extui %2480 : vector<8x2xi1> to vector<8x2xi32>
    %2482 = arith.sitofp %2481 : vector<8x2xi32> to vector<8x2xf32>
    %2483 = arith.addf %2477, %2482 : vector<8x2xf32>
    %c15_1286 = arith.constant 15 : index
    %c0_1287 = arith.constant 0 : index
    %c0_1288 = arith.constant 0 : index
    %2484 = vector.load %arg1[%c15_1286, %c0_1287, %c0_1288] : memref<20x8x2xf32, #tpu.memory_space<vmem>>, vector<1x8x2xf32>
    %2485 = vector.shape_cast %2484 : vector<1x8x2xf32> to vector<8x2xf32>
    %2486 = arith.cmpf ole, %2485, %2392 : vector<8x2xf32>
    %2487 = arith.extui %2486 : vector<8x2xi1> to vector<8x2xi32>
    %2488 = arith.sitofp %2487 : vector<8x2xi32> to vector<8x2xf32>
    %2489 = arith.addf %2483, %2488 : vector<8x2xf32>
    %c16_1289 = arith.constant 16 : index
    %c0_1290 = arith.constant 0 : index
    %c0_1291 = arith.constant 0 : index
    %2490 = vector.load %arg1[%c16_1289, %c0_1290, %c0_1291] : memref<20x8x2xf32, #tpu.memory_space<vmem>>, vector<1x8x2xf32>
    %2491 = vector.shape_cast %2490 : vector<1x8x2xf32> to vector<8x2xf32>
    %2492 = arith.cmpf ole, %2491, %2392 : vector<8x2xf32>
    %2493 = arith.extui %2492 : vector<8x2xi1> to vector<8x2xi32>
    %2494 = arith.sitofp %2493 : vector<8x2xi32> to vector<8x2xf32>
    %2495 = arith.addf %2489, %2494 : vector<8x2xf32>
    %c17_1292 = arith.constant 17 : index
    %c0_1293 = arith.constant 0 : index
    %c0_1294 = arith.constant 0 : index
    %2496 = vector.load %arg1[%c17_1292, %c0_1293, %c0_1294] : memref<20x8x2xf32, #tpu.memory_space<vmem>>, vector<1x8x2xf32>
    %2497 = vector.shape_cast %2496 : vector<1x8x2xf32> to vector<8x2xf32>
    %2498 = arith.cmpf ole, %2497, %2392 : vector<8x2xf32>
    %2499 = arith.extui %2498 : vector<8x2xi1> to vector<8x2xi32>
    %2500 = arith.sitofp %2499 : vector<8x2xi32> to vector<8x2xf32>
    %2501 = arith.addf %2495, %2500 : vector<8x2xf32>
    %c18_1295 = arith.constant 18 : index
    %c0_1296 = arith.constant 0 : index
    %c0_1297 = arith.constant 0 : index
    %2502 = vector.load %arg1[%c18_1295, %c0_1296, %c0_1297] : memref<20x8x2xf32, #tpu.memory_space<vmem>>, vector<1x8x2xf32>
    %2503 = vector.shape_cast %2502 : vector<1x8x2xf32> to vector<8x2xf32>
    %2504 = arith.cmpf ole, %2503, %2392 : vector<8x2xf32>
    %2505 = arith.extui %2504 : vector<8x2xi1> to vector<8x2xi32>
    %2506 = arith.sitofp %2505 : vector<8x2xi32> to vector<8x2xf32>
    %2507 = arith.addf %2501, %2506 : vector<8x2xf32>
    %c19_1298 = arith.constant 19 : index
    %c0_1299 = arith.constant 0 : index
    %c0_1300 = arith.constant 0 : index
    %2508 = vector.load %arg1[%c19_1298, %c0_1299, %c0_1300] : memref<20x8x2xf32, #tpu.memory_space<vmem>>, vector<1x8x2xf32>
    %2509 = vector.shape_cast %2508 : vector<1x8x2xf32> to vector<8x2xf32>
    %2510 = arith.cmpf ole, %2509, %2392 : vector<8x2xf32>
    %2511 = arith.extui %2510 : vector<8x2xi1> to vector<8x2xi32>
    %2512 = arith.sitofp %2511 : vector<8x2xi32> to vector<8x2xf32>
    %2513 = arith.addf %2507, %2512 : vector<8x2xf32>
    %cst_1301 = arith.constant 1.000000e+01 : f32
    %2514 = vector.broadcast %cst_1301 : f32 to vector<8x2xf32>
    %2515 = arith.cmpf oge, %2513, %2514 : vector<8x2xf32>
    %cst_1302 = arith.constant 0x7F800000 : f32
    %2516 = vector.broadcast %cst_1302 : f32 to vector<8x2xf32>
    %2517 = arith.select %2515, %2392, %2516 : vector<8x2xi1>, vector<8x2xf32>
    %2518 = arith.minimumf %2390, %2517 : vector<8x2xf32>
    %c18_1303 = arith.constant 18 : index
    %c0_1304 = arith.constant 0 : index
    %c0_1305 = arith.constant 0 : index
    %2519 = vector.load %arg1[%c18_1303, %c0_1304, %c0_1305] : memref<20x8x2xf32, #tpu.memory_space<vmem>>, vector<1x8x2xf32>
    %2520 = vector.shape_cast %2519 : vector<1x8x2xf32> to vector<8x2xf32>
    %cst_1306 = arith.constant 0.000000e+00 : f32
    %2521 = vector.broadcast %cst_1306 : f32 to vector<8x2xf32>
    %c0_1307 = arith.constant 0 : index
    %c0_1308 = arith.constant 0 : index
    %c0_1309 = arith.constant 0 : index
    %2522 = vector.load %arg1[%c0_1307, %c0_1308, %c0_1309] : memref<20x8x2xf32, #tpu.memory_space<vmem>>, vector<1x8x2xf32>
    %2523 = vector.shape_cast %2522 : vector<1x8x2xf32> to vector<8x2xf32>
    %2524 = arith.cmpf ole, %2523, %2520 : vector<8x2xf32>
    %2525 = arith.extui %2524 : vector<8x2xi1> to vector<8x2xi32>
    %2526 = arith.sitofp %2525 : vector<8x2xi32> to vector<8x2xf32>
    %2527 = arith.addf %2521, %2526 : vector<8x2xf32>
    %c1_1310 = arith.constant 1 : index
    %c0_1311 = arith.constant 0 : index
    %c0_1312 = arith.constant 0 : index
    %2528 = vector.load %arg1[%c1_1310, %c0_1311, %c0_1312] : memref<20x8x2xf32, #tpu.memory_space<vmem>>, vector<1x8x2xf32>
    %2529 = vector.shape_cast %2528 : vector<1x8x2xf32> to vector<8x2xf32>
    %2530 = arith.cmpf ole, %2529, %2520 : vector<8x2xf32>
    %2531 = arith.extui %2530 : vector<8x2xi1> to vector<8x2xi32>
    %2532 = arith.sitofp %2531 : vector<8x2xi32> to vector<8x2xf32>
    %2533 = arith.addf %2527, %2532 : vector<8x2xf32>
    %c2_1313 = arith.constant 2 : index
    %c0_1314 = arith.constant 0 : index
    %c0_1315 = arith.constant 0 : index
    %2534 = vector.load %arg1[%c2_1313, %c0_1314, %c0_1315] : memref<20x8x2xf32, #tpu.memory_space<vmem>>, vector<1x8x2xf32>
    %2535 = vector.shape_cast %2534 : vector<1x8x2xf32> to vector<8x2xf32>
    %2536 = arith.cmpf ole, %2535, %2520 : vector<8x2xf32>
    %2537 = arith.extui %2536 : vector<8x2xi1> to vector<8x2xi32>
    %2538 = arith.sitofp %2537 : vector<8x2xi32> to vector<8x2xf32>
    %2539 = arith.addf %2533, %2538 : vector<8x2xf32>
    %c3_1316 = arith.constant 3 : index
    %c0_1317 = arith.constant 0 : index
    %c0_1318 = arith.constant 0 : index
    %2540 = vector.load %arg1[%c3_1316, %c0_1317, %c0_1318] : memref<20x8x2xf32, #tpu.memory_space<vmem>>, vector<1x8x2xf32>
    %2541 = vector.shape_cast %2540 : vector<1x8x2xf32> to vector<8x2xf32>
    %2542 = arith.cmpf ole, %2541, %2520 : vector<8x2xf32>
    %2543 = arith.extui %2542 : vector<8x2xi1> to vector<8x2xi32>
    %2544 = arith.sitofp %2543 : vector<8x2xi32> to vector<8x2xf32>
    %2545 = arith.addf %2539, %2544 : vector<8x2xf32>
    %c4_1319 = arith.constant 4 : index
    %c0_1320 = arith.constant 0 : index
    %c0_1321 = arith.constant 0 : index
    %2546 = vector.load %arg1[%c4_1319, %c0_1320, %c0_1321] : memref<20x8x2xf32, #tpu.memory_space<vmem>>, vector<1x8x2xf32>
    %2547 = vector.shape_cast %2546 : vector<1x8x2xf32> to vector<8x2xf32>
    %2548 = arith.cmpf ole, %2547, %2520 : vector<8x2xf32>
    %2549 = arith.extui %2548 : vector<8x2xi1> to vector<8x2xi32>
    %2550 = arith.sitofp %2549 : vector<8x2xi32> to vector<8x2xf32>
    %2551 = arith.addf %2545, %2550 : vector<8x2xf32>
    %c5_1322 = arith.constant 5 : index
    %c0_1323 = arith.constant 0 : index
    %c0_1324 = arith.constant 0 : index
    %2552 = vector.load %arg1[%c5_1322, %c0_1323, %c0_1324] : memref<20x8x2xf32, #tpu.memory_space<vmem>>, vector<1x8x2xf32>
    %2553 = vector.shape_cast %2552 : vector<1x8x2xf32> to vector<8x2xf32>
    %2554 = arith.cmpf ole, %2553, %2520 : vector<8x2xf32>
    %2555 = arith.extui %2554 : vector<8x2xi1> to vector<8x2xi32>
    %2556 = arith.sitofp %2555 : vector<8x2xi32> to vector<8x2xf32>
    %2557 = arith.addf %2551, %2556 : vector<8x2xf32>
    %c6_1325 = arith.constant 6 : index
    %c0_1326 = arith.constant 0 : index
    %c0_1327 = arith.constant 0 : index
    %2558 = vector.load %arg1[%c6_1325, %c0_1326, %c0_1327] : memref<20x8x2xf32, #tpu.memory_space<vmem>>, vector<1x8x2xf32>
    %2559 = vector.shape_cast %2558 : vector<1x8x2xf32> to vector<8x2xf32>
    %2560 = arith.cmpf ole, %2559, %2520 : vector<8x2xf32>
    %2561 = arith.extui %2560 : vector<8x2xi1> to vector<8x2xi32>
    %2562 = arith.sitofp %2561 : vector<8x2xi32> to vector<8x2xf32>
    %2563 = arith.addf %2557, %2562 : vector<8x2xf32>
    %c7_1328 = arith.constant 7 : index
    %c0_1329 = arith.constant 0 : index
    %c0_1330 = arith.constant 0 : index
    %2564 = vector.load %arg1[%c7_1328, %c0_1329, %c0_1330] : memref<20x8x2xf32, #tpu.memory_space<vmem>>, vector<1x8x2xf32>
    %2565 = vector.shape_cast %2564 : vector<1x8x2xf32> to vector<8x2xf32>
    %2566 = arith.cmpf ole, %2565, %2520 : vector<8x2xf32>
    %2567 = arith.extui %2566 : vector<8x2xi1> to vector<8x2xi32>
    %2568 = arith.sitofp %2567 : vector<8x2xi32> to vector<8x2xf32>
    %2569 = arith.addf %2563, %2568 : vector<8x2xf32>
    %c8_1331 = arith.constant 8 : index
    %c0_1332 = arith.constant 0 : index
    %c0_1333 = arith.constant 0 : index
    %2570 = vector.load %arg1[%c8_1331, %c0_1332, %c0_1333] : memref<20x8x2xf32, #tpu.memory_space<vmem>>, vector<1x8x2xf32>
    %2571 = vector.shape_cast %2570 : vector<1x8x2xf32> to vector<8x2xf32>
    %2572 = arith.cmpf ole, %2571, %2520 : vector<8x2xf32>
    %2573 = arith.extui %2572 : vector<8x2xi1> to vector<8x2xi32>
    %2574 = arith.sitofp %2573 : vector<8x2xi32> to vector<8x2xf32>
    %2575 = arith.addf %2569, %2574 : vector<8x2xf32>
    %c9_1334 = arith.constant 9 : index
    %c0_1335 = arith.constant 0 : index
    %c0_1336 = arith.constant 0 : index
    %2576 = vector.load %arg1[%c9_1334, %c0_1335, %c0_1336] : memref<20x8x2xf32, #tpu.memory_space<vmem>>, vector<1x8x2xf32>
    %2577 = vector.shape_cast %2576 : vector<1x8x2xf32> to vector<8x2xf32>
    %2578 = arith.cmpf ole, %2577, %2520 : vector<8x2xf32>
    %2579 = arith.extui %2578 : vector<8x2xi1> to vector<8x2xi32>
    %2580 = arith.sitofp %2579 : vector<8x2xi32> to vector<8x2xf32>
    %2581 = arith.addf %2575, %2580 : vector<8x2xf32>
    %c10_1337 = arith.constant 10 : index
    %c0_1338 = arith.constant 0 : index
    %c0_1339 = arith.constant 0 : index
    %2582 = vector.load %arg1[%c10_1337, %c0_1338, %c0_1339] : memref<20x8x2xf32, #tpu.memory_space<vmem>>, vector<1x8x2xf32>
    %2583 = vector.shape_cast %2582 : vector<1x8x2xf32> to vector<8x2xf32>
    %2584 = arith.cmpf ole, %2583, %2520 : vector<8x2xf32>
    %2585 = arith.extui %2584 : vector<8x2xi1> to vector<8x2xi32>
    %2586 = arith.sitofp %2585 : vector<8x2xi32> to vector<8x2xf32>
    %2587 = arith.addf %2581, %2586 : vector<8x2xf32>
    %c11_1340 = arith.constant 11 : index
    %c0_1341 = arith.constant 0 : index
    %c0_1342 = arith.constant 0 : index
    %2588 = vector.load %arg1[%c11_1340, %c0_1341, %c0_1342] : memref<20x8x2xf32, #tpu.memory_space<vmem>>, vector<1x8x2xf32>
    %2589 = vector.shape_cast %2588 : vector<1x8x2xf32> to vector<8x2xf32>
    %2590 = arith.cmpf ole, %2589, %2520 : vector<8x2xf32>
    %2591 = arith.extui %2590 : vector<8x2xi1> to vector<8x2xi32>
    %2592 = arith.sitofp %2591 : vector<8x2xi32> to vector<8x2xf32>
    %2593 = arith.addf %2587, %2592 : vector<8x2xf32>
    %c12_1343 = arith.constant 12 : index
    %c0_1344 = arith.constant 0 : index
    %c0_1345 = arith.constant 0 : index
    %2594 = vector.load %arg1[%c12_1343, %c0_1344, %c0_1345] : memref<20x8x2xf32, #tpu.memory_space<vmem>>, vector<1x8x2xf32>
    %2595 = vector.shape_cast %2594 : vector<1x8x2xf32> to vector<8x2xf32>
    %2596 = arith.cmpf ole, %2595, %2520 : vector<8x2xf32>
    %2597 = arith.extui %2596 : vector<8x2xi1> to vector<8x2xi32>
    %2598 = arith.sitofp %2597 : vector<8x2xi32> to vector<8x2xf32>
    %2599 = arith.addf %2593, %2598 : vector<8x2xf32>
    %c13_1346 = arith.constant 13 : index
    %c0_1347 = arith.constant 0 : index
    %c0_1348 = arith.constant 0 : index
    %2600 = vector.load %arg1[%c13_1346, %c0_1347, %c0_1348] : memref<20x8x2xf32, #tpu.memory_space<vmem>>, vector<1x8x2xf32>
    %2601 = vector.shape_cast %2600 : vector<1x8x2xf32> to vector<8x2xf32>
    %2602 = arith.cmpf ole, %2601, %2520 : vector<8x2xf32>
    %2603 = arith.extui %2602 : vector<8x2xi1> to vector<8x2xi32>
    %2604 = arith.sitofp %2603 : vector<8x2xi32> to vector<8x2xf32>
    %2605 = arith.addf %2599, %2604 : vector<8x2xf32>
    %c14_1349 = arith.constant 14 : index
    %c0_1350 = arith.constant 0 : index
    %c0_1351 = arith.constant 0 : index
    %2606 = vector.load %arg1[%c14_1349, %c0_1350, %c0_1351] : memref<20x8x2xf32, #tpu.memory_space<vmem>>, vector<1x8x2xf32>
    %2607 = vector.shape_cast %2606 : vector<1x8x2xf32> to vector<8x2xf32>
    %2608 = arith.cmpf ole, %2607, %2520 : vector<8x2xf32>
    %2609 = arith.extui %2608 : vector<8x2xi1> to vector<8x2xi32>
    %2610 = arith.sitofp %2609 : vector<8x2xi32> to vector<8x2xf32>
    %2611 = arith.addf %2605, %2610 : vector<8x2xf32>
    %c15_1352 = arith.constant 15 : index
    %c0_1353 = arith.constant 0 : index
    %c0_1354 = arith.constant 0 : index
    %2612 = vector.load %arg1[%c15_1352, %c0_1353, %c0_1354] : memref<20x8x2xf32, #tpu.memory_space<vmem>>, vector<1x8x2xf32>
    %2613 = vector.shape_cast %2612 : vector<1x8x2xf32> to vector<8x2xf32>
    %2614 = arith.cmpf ole, %2613, %2520 : vector<8x2xf32>
    %2615 = arith.extui %2614 : vector<8x2xi1> to vector<8x2xi32>
    %2616 = arith.sitofp %2615 : vector<8x2xi32> to vector<8x2xf32>
    %2617 = arith.addf %2611, %2616 : vector<8x2xf32>
    %c16_1355 = arith.constant 16 : index
    %c0_1356 = arith.constant 0 : index
    %c0_1357 = arith.constant 0 : index
    %2618 = vector.load %arg1[%c16_1355, %c0_1356, %c0_1357] : memref<20x8x2xf32, #tpu.memory_space<vmem>>, vector<1x8x2xf32>
    %2619 = vector.shape_cast %2618 : vector<1x8x2xf32> to vector<8x2xf32>
    %2620 = arith.cmpf ole, %2619, %2520 : vector<8x2xf32>
    %2621 = arith.extui %2620 : vector<8x2xi1> to vector<8x2xi32>
    %2622 = arith.sitofp %2621 : vector<8x2xi32> to vector<8x2xf32>
    %2623 = arith.addf %2617, %2622 : vector<8x2xf32>
    %c17_1358 = arith.constant 17 : index
    %c0_1359 = arith.constant 0 : index
    %c0_1360 = arith.constant 0 : index
    %2624 = vector.load %arg1[%c17_1358, %c0_1359, %c0_1360] : memref<20x8x2xf32, #tpu.memory_space<vmem>>, vector<1x8x2xf32>
    %2625 = vector.shape_cast %2624 : vector<1x8x2xf32> to vector<8x2xf32>
    %2626 = arith.cmpf ole, %2625, %2520 : vector<8x2xf32>
    %2627 = arith.extui %2626 : vector<8x2xi1> to vector<8x2xi32>
    %2628 = arith.sitofp %2627 : vector<8x2xi32> to vector<8x2xf32>
    %2629 = arith.addf %2623, %2628 : vector<8x2xf32>
    %c18_1361 = arith.constant 18 : index
    %c0_1362 = arith.constant 0 : index
    %c0_1363 = arith.constant 0 : index
    %2630 = vector.load %arg1[%c18_1361, %c0_1362, %c0_1363] : memref<20x8x2xf32, #tpu.memory_space<vmem>>, vector<1x8x2xf32>
    %2631 = vector.shape_cast %2630 : vector<1x8x2xf32> to vector<8x2xf32>
    %2632 = arith.cmpf ole, %2631, %2520 : vector<8x2xf32>
    %2633 = arith.extui %2632 : vector<8x2xi1> to vector<8x2xi32>
    %2634 = arith.sitofp %2633 : vector<8x2xi32> to vector<8x2xf32>
    %2635 = arith.addf %2629, %2634 : vector<8x2xf32>
    %c19_1364 = arith.constant 19 : index
    %c0_1365 = arith.constant 0 : index
    %c0_1366 = arith.constant 0 : index
    %2636 = vector.load %arg1[%c19_1364, %c0_1365, %c0_1366] : memref<20x8x2xf32, #tpu.memory_space<vmem>>, vector<1x8x2xf32>
    %2637 = vector.shape_cast %2636 : vector<1x8x2xf32> to vector<8x2xf32>
    %2638 = arith.cmpf ole, %2637, %2520 : vector<8x2xf32>
    %2639 = arith.extui %2638 : vector<8x2xi1> to vector<8x2xi32>
    %2640 = arith.sitofp %2639 : vector<8x2xi32> to vector<8x2xf32>
    %2641 = arith.addf %2635, %2640 : vector<8x2xf32>
    %cst_1367 = arith.constant 1.000000e+01 : f32
    %2642 = vector.broadcast %cst_1367 : f32 to vector<8x2xf32>
    %2643 = arith.cmpf oge, %2641, %2642 : vector<8x2xf32>
    %cst_1368 = arith.constant 0x7F800000 : f32
    %2644 = vector.broadcast %cst_1368 : f32 to vector<8x2xf32>
    %2645 = arith.select %2643, %2520, %2644 : vector<8x2xi1>, vector<8x2xf32>
    %2646 = arith.minimumf %2518, %2645 : vector<8x2xf32>
    %c19_1369 = arith.constant 19 : index
    %c0_1370 = arith.constant 0 : index
    %c0_1371 = arith.constant 0 : index
    %2647 = vector.load %arg1[%c19_1369, %c0_1370, %c0_1371] : memref<20x8x2xf32, #tpu.memory_space<vmem>>, vector<1x8x2xf32>
    %2648 = vector.shape_cast %2647 : vector<1x8x2xf32> to vector<8x2xf32>
    %cst_1372 = arith.constant 0.000000e+00 : f32
    %2649 = vector.broadcast %cst_1372 : f32 to vector<8x2xf32>
    %c0_1373 = arith.constant 0 : index
    %c0_1374 = arith.constant 0 : index
    %c0_1375 = arith.constant 0 : index
    %2650 = vector.load %arg1[%c0_1373, %c0_1374, %c0_1375] : memref<20x8x2xf32, #tpu.memory_space<vmem>>, vector<1x8x2xf32>
    %2651 = vector.shape_cast %2650 : vector<1x8x2xf32> to vector<8x2xf32>
    %2652 = arith.cmpf ole, %2651, %2648 : vector<8x2xf32>
    %2653 = arith.extui %2652 : vector<8x2xi1> to vector<8x2xi32>
    %2654 = arith.sitofp %2653 : vector<8x2xi32> to vector<8x2xf32>
    %2655 = arith.addf %2649, %2654 : vector<8x2xf32>
    %c1_1376 = arith.constant 1 : index
    %c0_1377 = arith.constant 0 : index
    %c0_1378 = arith.constant 0 : index
    %2656 = vector.load %arg1[%c1_1376, %c0_1377, %c0_1378] : memref<20x8x2xf32, #tpu.memory_space<vmem>>, vector<1x8x2xf32>
    %2657 = vector.shape_cast %2656 : vector<1x8x2xf32> to vector<8x2xf32>
    %2658 = arith.cmpf ole, %2657, %2648 : vector<8x2xf32>
    %2659 = arith.extui %2658 : vector<8x2xi1> to vector<8x2xi32>
    %2660 = arith.sitofp %2659 : vector<8x2xi32> to vector<8x2xf32>
    %2661 = arith.addf %2655, %2660 : vector<8x2xf32>
    %c2_1379 = arith.constant 2 : index
    %c0_1380 = arith.constant 0 : index
    %c0_1381 = arith.constant 0 : index
    %2662 = vector.load %arg1[%c2_1379, %c0_1380, %c0_1381] : memref<20x8x2xf32, #tpu.memory_space<vmem>>, vector<1x8x2xf32>
    %2663 = vector.shape_cast %2662 : vector<1x8x2xf32> to vector<8x2xf32>
    %2664 = arith.cmpf ole, %2663, %2648 : vector<8x2xf32>
    %2665 = arith.extui %2664 : vector<8x2xi1> to vector<8x2xi32>
    %2666 = arith.sitofp %2665 : vector<8x2xi32> to vector<8x2xf32>
    %2667 = arith.addf %2661, %2666 : vector<8x2xf32>
    %c3_1382 = arith.constant 3 : index
    %c0_1383 = arith.constant 0 : index
    %c0_1384 = arith.constant 0 : index
    %2668 = vector.load %arg1[%c3_1382, %c0_1383, %c0_1384] : memref<20x8x2xf32, #tpu.memory_space<vmem>>, vector<1x8x2xf32>
    %2669 = vector.shape_cast %2668 : vector<1x8x2xf32> to vector<8x2xf32>
    %2670 = arith.cmpf ole, %2669, %2648 : vector<8x2xf32>
    %2671 = arith.extui %2670 : vector<8x2xi1> to vector<8x2xi32>
    %2672 = arith.sitofp %2671 : vector<8x2xi32> to vector<8x2xf32>
    %2673 = arith.addf %2667, %2672 : vector<8x2xf32>
    %c4_1385 = arith.constant 4 : index
    %c0_1386 = arith.constant 0 : index
    %c0_1387 = arith.constant 0 : index
    %2674 = vector.load %arg1[%c4_1385, %c0_1386, %c0_1387] : memref<20x8x2xf32, #tpu.memory_space<vmem>>, vector<1x8x2xf32>
    %2675 = vector.shape_cast %2674 : vector<1x8x2xf32> to vector<8x2xf32>
    %2676 = arith.cmpf ole, %2675, %2648 : vector<8x2xf32>
    %2677 = arith.extui %2676 : vector<8x2xi1> to vector<8x2xi32>
    %2678 = arith.sitofp %2677 : vector<8x2xi32> to vector<8x2xf32>
    %2679 = arith.addf %2673, %2678 : vector<8x2xf32>
    %c5_1388 = arith.constant 5 : index
    %c0_1389 = arith.constant 0 : index
    %c0_1390 = arith.constant 0 : index
    %2680 = vector.load %arg1[%c5_1388, %c0_1389, %c0_1390] : memref<20x8x2xf32, #tpu.memory_space<vmem>>, vector<1x8x2xf32>
    %2681 = vector.shape_cast %2680 : vector<1x8x2xf32> to vector<8x2xf32>
    %2682 = arith.cmpf ole, %2681, %2648 : vector<8x2xf32>
    %2683 = arith.extui %2682 : vector<8x2xi1> to vector<8x2xi32>
    %2684 = arith.sitofp %2683 : vector<8x2xi32> to vector<8x2xf32>
    %2685 = arith.addf %2679, %2684 : vector<8x2xf32>
    %c6_1391 = arith.constant 6 : index
    %c0_1392 = arith.constant 0 : index
    %c0_1393 = arith.constant 0 : index
    %2686 = vector.load %arg1[%c6_1391, %c0_1392, %c0_1393] : memref<20x8x2xf32, #tpu.memory_space<vmem>>, vector<1x8x2xf32>
    %2687 = vector.shape_cast %2686 : vector<1x8x2xf32> to vector<8x2xf32>
    %2688 = arith.cmpf ole, %2687, %2648 : vector<8x2xf32>
    %2689 = arith.extui %2688 : vector<8x2xi1> to vector<8x2xi32>
    %2690 = arith.sitofp %2689 : vector<8x2xi32> to vector<8x2xf32>
    %2691 = arith.addf %2685, %2690 : vector<8x2xf32>
    %c7_1394 = arith.constant 7 : index
    %c0_1395 = arith.constant 0 : index
    %c0_1396 = arith.constant 0 : index
    %2692 = vector.load %arg1[%c7_1394, %c0_1395, %c0_1396] : memref<20x8x2xf32, #tpu.memory_space<vmem>>, vector<1x8x2xf32>
    %2693 = vector.shape_cast %2692 : vector<1x8x2xf32> to vector<8x2xf32>
    %2694 = arith.cmpf ole, %2693, %2648 : vector<8x2xf32>
    %2695 = arith.extui %2694 : vector<8x2xi1> to vector<8x2xi32>
    %2696 = arith.sitofp %2695 : vector<8x2xi32> to vector<8x2xf32>
    %2697 = arith.addf %2691, %2696 : vector<8x2xf32>
    %c8_1397 = arith.constant 8 : index
    %c0_1398 = arith.constant 0 : index
    %c0_1399 = arith.constant 0 : index
    %2698 = vector.load %arg1[%c8_1397, %c0_1398, %c0_1399] : memref<20x8x2xf32, #tpu.memory_space<vmem>>, vector<1x8x2xf32>
    %2699 = vector.shape_cast %2698 : vector<1x8x2xf32> to vector<8x2xf32>
    %2700 = arith.cmpf ole, %2699, %2648 : vector<8x2xf32>
    %2701 = arith.extui %2700 : vector<8x2xi1> to vector<8x2xi32>
    %2702 = arith.sitofp %2701 : vector<8x2xi32> to vector<8x2xf32>
    %2703 = arith.addf %2697, %2702 : vector<8x2xf32>
    %c9_1400 = arith.constant 9 : index
    %c0_1401 = arith.constant 0 : index
    %c0_1402 = arith.constant 0 : index
    %2704 = vector.load %arg1[%c9_1400, %c0_1401, %c0_1402] : memref<20x8x2xf32, #tpu.memory_space<vmem>>, vector<1x8x2xf32>
    %2705 = vector.shape_cast %2704 : vector<1x8x2xf32> to vector<8x2xf32>
    %2706 = arith.cmpf ole, %2705, %2648 : vector<8x2xf32>
    %2707 = arith.extui %2706 : vector<8x2xi1> to vector<8x2xi32>
    %2708 = arith.sitofp %2707 : vector<8x2xi32> to vector<8x2xf32>
    %2709 = arith.addf %2703, %2708 : vector<8x2xf32>
    %c10_1403 = arith.constant 10 : index
    %c0_1404 = arith.constant 0 : index
    %c0_1405 = arith.constant 0 : index
    %2710 = vector.load %arg1[%c10_1403, %c0_1404, %c0_1405] : memref<20x8x2xf32, #tpu.memory_space<vmem>>, vector<1x8x2xf32>
    %2711 = vector.shape_cast %2710 : vector<1x8x2xf32> to vector<8x2xf32>
    %2712 = arith.cmpf ole, %2711, %2648 : vector<8x2xf32>
    %2713 = arith.extui %2712 : vector<8x2xi1> to vector<8x2xi32>
    %2714 = arith.sitofp %2713 : vector<8x2xi32> to vector<8x2xf32>
    %2715 = arith.addf %2709, %2714 : vector<8x2xf32>
    %c11_1406 = arith.constant 11 : index
    %c0_1407 = arith.constant 0 : index
    %c0_1408 = arith.constant 0 : index
    %2716 = vector.load %arg1[%c11_1406, %c0_1407, %c0_1408] : memref<20x8x2xf32, #tpu.memory_space<vmem>>, vector<1x8x2xf32>
    %2717 = vector.shape_cast %2716 : vector<1x8x2xf32> to vector<8x2xf32>
    %2718 = arith.cmpf ole, %2717, %2648 : vector<8x2xf32>
    %2719 = arith.extui %2718 : vector<8x2xi1> to vector<8x2xi32>
    %2720 = arith.sitofp %2719 : vector<8x2xi32> to vector<8x2xf32>
    %2721 = arith.addf %2715, %2720 : vector<8x2xf32>
    %c12_1409 = arith.constant 12 : index
    %c0_1410 = arith.constant 0 : index
    %c0_1411 = arith.constant 0 : index
    %2722 = vector.load %arg1[%c12_1409, %c0_1410, %c0_1411] : memref<20x8x2xf32, #tpu.memory_space<vmem>>, vector<1x8x2xf32>
    %2723 = vector.shape_cast %2722 : vector<1x8x2xf32> to vector<8x2xf32>
    %2724 = arith.cmpf ole, %2723, %2648 : vector<8x2xf32>
    %2725 = arith.extui %2724 : vector<8x2xi1> to vector<8x2xi32>
    %2726 = arith.sitofp %2725 : vector<8x2xi32> to vector<8x2xf32>
    %2727 = arith.addf %2721, %2726 : vector<8x2xf32>
    %c13_1412 = arith.constant 13 : index
    %c0_1413 = arith.constant 0 : index
    %c0_1414 = arith.constant 0 : index
    %2728 = vector.load %arg1[%c13_1412, %c0_1413, %c0_1414] : memref<20x8x2xf32, #tpu.memory_space<vmem>>, vector<1x8x2xf32>
    %2729 = vector.shape_cast %2728 : vector<1x8x2xf32> to vector<8x2xf32>
    %2730 = arith.cmpf ole, %2729, %2648 : vector<8x2xf32>
    %2731 = arith.extui %2730 : vector<8x2xi1> to vector<8x2xi32>
    %2732 = arith.sitofp %2731 : vector<8x2xi32> to vector<8x2xf32>
    %2733 = arith.addf %2727, %2732 : vector<8x2xf32>
    %c14_1415 = arith.constant 14 : index
    %c0_1416 = arith.constant 0 : index
    %c0_1417 = arith.constant 0 : index
    %2734 = vector.load %arg1[%c14_1415, %c0_1416, %c0_1417] : memref<20x8x2xf32, #tpu.memory_space<vmem>>, vector<1x8x2xf32>
    %2735 = vector.shape_cast %2734 : vector<1x8x2xf32> to vector<8x2xf32>
    %2736 = arith.cmpf ole, %2735, %2648 : vector<8x2xf32>
    %2737 = arith.extui %2736 : vector<8x2xi1> to vector<8x2xi32>
    %2738 = arith.sitofp %2737 : vector<8x2xi32> to vector<8x2xf32>
    %2739 = arith.addf %2733, %2738 : vector<8x2xf32>
    %c15_1418 = arith.constant 15 : index
    %c0_1419 = arith.constant 0 : index
    %c0_1420 = arith.constant 0 : index
    %2740 = vector.load %arg1[%c15_1418, %c0_1419, %c0_1420] : memref<20x8x2xf32, #tpu.memory_space<vmem>>, vector<1x8x2xf32>
    %2741 = vector.shape_cast %2740 : vector<1x8x2xf32> to vector<8x2xf32>
    %2742 = arith.cmpf ole, %2741, %2648 : vector<8x2xf32>
    %2743 = arith.extui %2742 : vector<8x2xi1> to vector<8x2xi32>
    %2744 = arith.sitofp %2743 : vector<8x2xi32> to vector<8x2xf32>
    %2745 = arith.addf %2739, %2744 : vector<8x2xf32>
    %c16_1421 = arith.constant 16 : index
    %c0_1422 = arith.constant 0 : index
    %c0_1423 = arith.constant 0 : index
    %2746 = vector.load %arg1[%c16_1421, %c0_1422, %c0_1423] : memref<20x8x2xf32, #tpu.memory_space<vmem>>, vector<1x8x2xf32>
    %2747 = vector.shape_cast %2746 : vector<1x8x2xf32> to vector<8x2xf32>
    %2748 = arith.cmpf ole, %2747, %2648 : vector<8x2xf32>
    %2749 = arith.extui %2748 : vector<8x2xi1> to vector<8x2xi32>
    %2750 = arith.sitofp %2749 : vector<8x2xi32> to vector<8x2xf32>
    %2751 = arith.addf %2745, %2750 : vector<8x2xf32>
    %c17_1424 = arith.constant 17 : index
    %c0_1425 = arith.constant 0 : index
    %c0_1426 = arith.constant 0 : index
    %2752 = vector.load %arg1[%c17_1424, %c0_1425, %c0_1426] : memref<20x8x2xf32, #tpu.memory_space<vmem>>, vector<1x8x2xf32>
    %2753 = vector.shape_cast %2752 : vector<1x8x2xf32> to vector<8x2xf32>
    %2754 = arith.cmpf ole, %2753, %2648 : vector<8x2xf32>
    %2755 = arith.extui %2754 : vector<8x2xi1> to vector<8x2xi32>
    %2756 = arith.sitofp %2755 : vector<8x2xi32> to vector<8x2xf32>
    %2757 = arith.addf %2751, %2756 : vector<8x2xf32>
    %c18_1427 = arith.constant 18 : index
    %c0_1428 = arith.constant 0 : index
    %c0_1429 = arith.constant 0 : index
    %2758 = vector.load %arg1[%c18_1427, %c0_1428, %c0_1429] : memref<20x8x2xf32, #tpu.memory_space<vmem>>, vector<1x8x2xf32>
    %2759 = vector.shape_cast %2758 : vector<1x8x2xf32> to vector<8x2xf32>
    %2760 = arith.cmpf ole, %2759, %2648 : vector<8x2xf32>
    %2761 = arith.extui %2760 : vector<8x2xi1> to vector<8x2xi32>
    %2762 = arith.sitofp %2761 : vector<8x2xi32> to vector<8x2xf32>
    %2763 = arith.addf %2757, %2762 : vector<8x2xf32>
    %c19_1430 = arith.constant 19 : index
    %c0_1431 = arith.constant 0 : index
    %c0_1432 = arith.constant 0 : index
    %2764 = vector.load %arg1[%c19_1430, %c0_1431, %c0_1432] : memref<20x8x2xf32, #tpu.memory_space<vmem>>, vector<1x8x2xf32>
    %2765 = vector.shape_cast %2764 : vector<1x8x2xf32> to vector<8x2xf32>
    %2766 = arith.cmpf ole, %2765, %2648 : vector<8x2xf32>
    %2767 = arith.extui %2766 : vector<8x2xi1> to vector<8x2xi32>
    %2768 = arith.sitofp %2767 : vector<8x2xi32> to vector<8x2xf32>
    %2769 = arith.addf %2763, %2768 : vector<8x2xf32>
    %cst_1433 = arith.constant 1.000000e+01 : f32
    %2770 = vector.broadcast %cst_1433 : f32 to vector<8x2xf32>
    %2771 = arith.cmpf oge, %2769, %2770 : vector<8x2xf32>
    %cst_1434 = arith.constant 0x7F800000 : f32
    %2772 = vector.broadcast %cst_1434 : f32 to vector<8x2xf32>
    %2773 = arith.select %2771, %2648, %2772 : vector<8x2xi1>, vector<8x2xf32>
    %2774 = arith.minimumf %2646, %2773 : vector<8x2xf32>
    %c4_1435 = arith.constant 4 : index
    %c0_1436 = arith.constant 0 : index
    %c0_1437 = arith.constant 0 : index
    %2775 = vector.load %arg2[%c4_1435, %c0_1436, %c0_1437] : memref<5x8x2xf32, #tpu.memory_space<vmem>>, vector<1x8x2xf32>
    %2776 = vector.shape_cast %2775 : vector<1x8x2xf32> to vector<8x2xf32>
    %2777 = vector.shape_cast %2774 : vector<8x2xf32> to vector<1x8x2xf32>
    tpu.vector_store %arg2[%c4_1435, %c0_1436, %c0_1437], %2777 {strides = array<i32>} : memref<5x8x2xf32, #tpu.memory_space<vmem>>, vector<1x8x2xf32>,
    return
  }
  func.func @transform_0(%arg0: i32) -> (i32, i32, i32) {
    %c0_i32 = arith.constant 0 : i32
    %c0_i32_0 = arith.constant 0 : i32
    %c0_i32_1 = arith.constant 0 : i32
    return %c0_i32, %c0_i32_0, %arg0 : i32, i32, i32
  }
  func.func @transform_1(%arg0: i32) -> (i32, i32, i32) {
    %c0_i32 = arith.constant 0 : i32
    %c0_i32_0 = arith.constant 0 : i32
    %c0_i32_1 = arith.constant 0 : i32
    return %c0_i32, %c0_i32_0, %arg0 : i32, i32, i32
  }
}

</mosaic_0001>

<llo_original>
// kernel: tpu_custom_call.1
$region0: #{tpu_custom_call.1}
  #allocation0 [shape = 'u32[]', space=smem, size = 0x4, offset = 0x4, fixed_abs, tag = 'smem constant byte address 0x4 - core index']
  #allocation1 [shape = 'u32[144,128]{1,0:T(1,128)}', space=vmem, size = 0x12000, scoped, tag = 'internal scratch']
  %s0 = inlined_call_operand.vmem [shape: f32[20,8,2], index: 0, kind: input, shape index: {}]
  %s1 = inlined_call_operand.vmem [shape: f32[5,8,2], index: 1, kind: output, shape index: {}]
  %s2 = sld [smem:[#allocation0]]
  $region14: #{tpu_custom_call.1} parent=0
    _
  %s4 = ssub.s32 1, %s2
  %s5 = scalar_select 0, %s4, %s2
  // Predicated region
  $region2: #{tpu_custom_call.1} parent=0 // pred_check
    _
  $region3: #{tpu_custom_call.1} parent=0 // pred_check_branch
    %7 = sbr.rel (0) target = $region5
  $region4: #{tpu_custom_call.1} parent=0 // pred_region
    _
  $region5: #{tpu_custom_call.1} parent=0 // pred_fallthru
    _
  %v8 = vld [vmem:[%s0] sm:$0xff]
  %s9 = scalar_lea.vmem %s0, 8
  %v10 = vld [vmem:[%s9] sm:$0xff]
  %v11 = vadd.f32 %v8, %v10
  %v12 = vmax.f32 %v8, %v10
  %v13 = vmin.f32 %v8, %v10
  %s14 = scalar_lea.vmem %s0, 16
  %v15 = vld [vmem:[%s14] sm:$0xff]
  %v16 = vadd.f32 %v11, %v15
  %v17 = vmax.f32 %v12, %v15
  %v18 = vmin.f32 %v13, %v15
  %s19 = scalar_lea.vmem %s0, 24
  %v20 = vld [vmem:[%s19] sm:$0xff]
  %v21 = vadd.f32 %v16, %v20
  %v22 = vmax.f32 %v17, %v20
  %v23 = vmin.f32 %v18, %v20
  %s24 = scalar_lea.vmem %s0, 32
  %v25 = vld [vmem:[%s24] sm:$0xff]
  %v26 = vadd.f32 %v21, %v25
  %v27 = vmax.f32 %v22, %v25
  %v28 = vmin.f32 %v23, %v25
  %s29 = scalar_lea.vmem %s0, 40
  %v30 = vld [vmem:[%s29] sm:$0xff]
  %v31 = vadd.f32 %v26, %v30
  %v32 = vmax.f32 %v27, %v30
  %v33 = vmin.f32 %v28, %v30
  %s34 = scalar_lea.vmem %s0, 48
  %v35 = vld [vmem:[%s34] sm:$0xff]
  %v36 = vadd.f32 %v31, %v35
  %v37 = vmax.f32 %v32, %v35
  %v38 = vmin.f32 %v33, %v35
  %s39 = scalar_lea.vmem %s0, 56
  %v40 = vld [vmem:[%s39] sm:$0xff]
  %v41 = vadd.f32 %v36, %v40
  %v42 = vmax.f32 %v37, %v40
  %v43 = vmin.f32 %v38, %v40
  %s44 = scalar_lea.vmem %s0, 64
  %v45 = vld [vmem:[%s44] sm:$0xff]
  %v46 = vadd.f32 %v41, %v45
  %v47 = vmax.f32 %v42, %v45
  %v48 = vmin.f32 %v43, %v45
  %s49 = scalar_lea.vmem %s0, 72
  %v50 = vld [vmem:[%s49] sm:$0xff]
  %v51 = vadd.f32 %v46, %v50
  %v52 = vmax.f32 %v47, %v50
  %v53 = vmin.f32 %v48, %v50
  %s54 = scalar_lea.vmem %s0, 80
  %v55 = vld [vmem:[%s54] sm:$0xff]
  %v56 = vadd.f32 %v51, %v55
  %v57 = vmax.f32 %v52, %v55
  %v58 = vmin.f32 %v53, %v55
  %s59 = scalar_lea.vmem %s0, 88
  %v60 = vld [vmem:[%s59] sm:$0xff]
  %v61 = vadd.f32 %v56, %v60
  %v62 = vmax.f32 %v57, %v60
  %v63 = vmin.f32 %v58, %v60
  %s64 = scalar_lea.vmem %s0, 96
  %v65 = vld [vmem:[%s64] sm:$0xff]
  %v66 = vadd.f32 %v61, %v65
  %v67 = vmax.f32 %v62, %v65
  %v68 = vmin.f32 %v63, %v65
  %s69 = scalar_lea.vmem %s0, 104
  %v70 = vld [vmem:[%s69] sm:$0xff]
  %v71 = vadd.f32 %v66, %v70
  %v72 = vmax.f32 %v67, %v70
  %v73 = vmin.f32 %v68, %v70
  %s74 = scalar_lea.vmem %s0, 112
  %v75 = vld [vmem:[%s74] sm:$0xff]
  %v76 = vadd.f32 %v71, %v75
  %v77 = vmax.f32 %v72, %v75
  %v78 = vmin.f32 %v73, %v75
  %s79 = scalar_lea.vmem %s0, 120
  %v80 = vld [vmem:[%s79] sm:$0xff]
  %v81 = vadd.f32 %v76, %v80
  %v82 = vmax.f32 %v77, %v80
  %v83 = vmin.f32 %v78, %v80
  %s84 = scalar_lea.vmem %s0, 128
  %v85 = vld [vmem:[%s84] sm:$0xff]
  %v86 = vadd.f32 %v81, %v85
  %v87 = vmax.f32 %v82, %v85
  %v88 = vmin.f32 %v83, %v85
  %s89 = scalar_lea.vmem %s0, 136
  %v90 = vld [vmem:[%s89] sm:$0xff]
  %v91 = vadd.f32 %v86, %v90
  %v92 = vmax.f32 %v87, %v90
  %v93 = vmin.f32 %v88, %v90
  %s94 = scalar_lea.vmem %s0, 144
  %v95 = vld [vmem:[%s94] sm:$0xff]
  %v96 = vadd.f32 %v91, %v95
  %v97 = vmax.f32 %v92, %v95
  %v98 = vmin.f32 %v93, %v95
  %s99 = scalar_lea.vmem %s0, 152
  %v100 = vld [vmem:[%s99] sm:$0xff]
  %v101 = vadd.f32 %v96, %v100
  %v102 = vmax.f32 %v97, %v100
  %v103 = vmin.f32 %v98, %v100
  %v104 = vmul.f32 %v101, 0.05
  %v105 = vsub.f32 %v8, %v104
  %v106 = vmul.f32 %v105, %v105
  %v107 = vadd.f32 %v106, 0.0
  %v108 = vsub.f32 %v10, %v104
  %v109 = vmul.f32 %v108, %v108
  %v110 = vadd.f32 %v107, %v109
  %v111 = vsub.f32 %v15, %v104
  %v112 = vmul.f32 %v111, %v111
  %v113 = vadd.f32 %v110, %v112
  %v114 = vsub.f32 %v20, %v104
  %v115 = vmul.f32 %v114, %v114
  %v116 = vadd.f32 %v113, %v115
  %v117 = vsub.f32 %v25, %v104
  %v118 = vmul.f32 %v117, %v117
  %v119 = vadd.f32 %v116, %v118
  %v120 = vsub.f32 %v30, %v104
  %v121 = vmul.f32 %v120, %v120
  %v122 = vadd.f32 %v119, %v121
  %v123 = vsub.f32 %v35, %v104
  %v124 = vmul.f32 %v123, %v123
  %v125 = vadd.f32 %v122, %v124
  %v126 = vsub.f32 %v40, %v104
  %v127 = vmul.f32 %v126, %v126
  %v128 = vadd.f32 %v125, %v127
  %v129 = vsub.f32 %v45, %v104
  %v130 = vmul.f32 %v129, %v129
  %v131 = vadd.f32 %v128, %v130
  %v132 = vsub.f32 %v50, %v104
  %v133 = vmul.f32 %v132, %v132
  %v134 = vadd.f32 %v131, %v133
  %v135 = vsub.f32 %v55, %v104
  %v136 = vmul.f32 %v135, %v135
  %v137 = vadd.f32 %v134, %v136
  %v138 = vsub.f32 %v60, %v104
  %v139 = vmul.f32 %v138, %v138
  %v140 = vadd.f32 %v137, %v139
  %v141 = vsub.f32 %v65, %v104
  %v142 = vmul.f32 %v141, %v141
  %v143 = vadd.f32 %v140, %v142
  %v144 = vsub.f32 %v70, %v104
  %v145 = vmul.f32 %v144, %v144
  %v146 = vadd.f32 %v143, %v145
  %v147 = vsub.f32 %v75, %v104
  %v148 = vmul.f32 %v147, %v147
  %v149 = vadd.f32 %v146, %v148
  %v150 = vsub.f32 %v80, %v104
  %v151 = vmul.f32 %v150, %v150
  %v152 = vadd.f32 %v149, %v151
  %v153 = vsub.f32 %v85, %v104
  %v154 = vmul.f32 %v153, %v153
  %v155 = vadd.f32 %v152, %v154
  %v156 = vsub.f32 %v90, %v104
  %v157 = vmul.f32 %v156, %v156
  %v158 = vadd.f32 %v155, %v157
  %v159 = vsub.f32 %v95, %v104
  %v160 = vmul.f32 %v159, %v159
  %v161 = vadd.f32 %v158, %v160
  %v162 = vsub.f32 %v100, %v104
  %v163 = vmul.f32 %v162, %v162
  %v164 = vadd.f32 %v161, %v163
  %v165 = vmul.f32 %v164, 0.05263158
  %vm166 = vcmask 15360
  %167 = vst.msk [vmem:[%s1] sm:$0xff] %vm166, %v104
  %s168 = scalar_lea.vmem %s1, 8
  %169 = vst.msk [vmem:[%s168] sm:$0xff] %vm166, %v165
  %s170 = scalar_lea.vmem %s1, 16
  %171 = vst.msk [vmem:[%s170] sm:$0xff] %vm166, %v102
  %s172 = scalar_lea.vmem %s1, 24
  %173 = vst.msk [vmem:[%s172] sm:$0xff] %vm166, %v103
  %v174 = vld [vmem:[%s0] sm:$0xff]
  %vm175 = vcmp.le.f32.partialorder %v174, %v174
  %v176 = vsel %vm175, 1, 0
  %v177 = vcvt.s32.f32 %v176
  %v178 = vadd.f32 %v177, 0.0
  %v179 = vld [vmem:[%s9] sm:$0xff]
  %vm180 = vcmp.le.f32.partialorder %v179, %v174
  %v181 = vsel %vm180, 1, 0
  %v182 = vcvt.s32.f32 %v181
  %v183 = vadd.f32 %v178, %v182
  %v184 = vld [vmem:[%s14] sm:$0xff]
  %vm185 = vcmp.le.f32.partialorder %v184, %v174
  %v186 = vsel %vm185, 1, 0
  %v187 = vcvt.s32.f32 %v186
  %v188 = vadd.f32 %v183, %v187
  %v189 = vld [vmem:[%s19] sm:$0xff]
  %vm190 = vcmp.le.f32.partialorder %v189, %v174
  %v191 = vsel %vm190, 1, 0
  %v192 = vcvt.s32.f32 %v191
  %v193 = vadd.f32 %v188, %v192
  %v194 = vld [vmem:[%s24] sm:$0xff]
  %vm195 = vcmp.le.f32.partialorder %v194, %v174
  %v196 = vsel %vm195, 1, 0
  %v197 = vcvt.s32.f32 %v196
  %v198 = vadd.f32 %v193, %v197
  %v199 = vld [vmem:[%s29] sm:$0xff]
  %vm200 = vcmp.le.f32.partialorder %v199, %v174
  %v201 = vsel %vm200, 1, 0
  %v202 = vcvt.s32.f32 %v201
  %v203 = vadd.f32 %v198, %v202
  %v204 = vld [vmem:[%s34] sm:$0xff]
  %vm205 = vcmp.le.f32.partialorder %v204, %v174
  %v206 = vsel %vm205, 1, 0
  %v207 = vcvt.s32.f32 %v206
  %v208 = vadd.f32 %v203, %v207
  %v209 = vld [vmem:[%s39] sm:$0xff]
  %vm210 = vcmp.le.f32.partialorder %v209, %v174
  %v211 = vsel %vm210, 1, 0
  %v212 = vcvt.s32.f32 %v211
  %v213 = vadd.f32 %v208, %v212
  %v214 = vld [vmem:[%s44] sm:$0xff]
  %vm215 = vcmp.le.f32.partialorder %v214, %v174
  %v216 = vsel %vm215, 1, 0
  %v217 = vcvt.s32.f32 %v216
  %v218 = vadd.f32 %v213, %v217
  %v219 = vld [vmem:[%s49] sm:$0xff]
  %vm220 = vcmp.le.f32.partialorder %v219, %v174
  %v221 = vsel %vm220, 1, 0
  %v222 = vcvt.s32.f32 %v221
  %v223 = vadd.f32 %v218, %v222
  %v224 = vld [vmem:[%s54] sm:$0xff]
  %vm225 = vcmp.le.f32.partialorder %v224, %v174
  %v226 = vsel %vm225, 1, 0
  %v227 = vcvt.s32.f32 %v226
  %v228 = vadd.f32 %v223, %v227
  %v229 = vld [vmem:[%s59] sm:$0xff]
  %vm230 = vcmp.le.f32.partialorder %v229, %v174
  %v231 = vsel %vm230, 1, 0
  %v232 = vcvt.s32.f32 %v231
  %v233 = vadd.f32 %v228, %v232
  %v234 = vld [vmem:[%s64] sm:$0xff]
  %vm235 = vcmp.le.f32.partialorder %v234, %v174
  %v236 = vsel %vm235, 1, 0
  %v237 = vcvt.s32.f32 %v236
  %v238 = vadd.f32 %v233, %v237
  %v239 = vld [vmem:[%s69] sm:$0xff]
  %vm240 = vcmp.le.f32.partialorder %v239, %v174
  %v241 = vsel %vm240, 1, 0
  %v242 = vcvt.s32.f32 %v241
  %v243 = vadd.f32 %v238, %v242
  %v244 = vld [vmem:[%s74] sm:$0xff]
  %vm245 = vcmp.le.f32.partialorder %v244, %v174
  %v246 = vsel %vm245, 1, 0
  %v247 = vcvt.s32.f32 %v246
  %v248 = vadd.f32 %v243, %v247
  %v249 = vld [vmem:[%s79] sm:$0xff]
  %vm250 = vcmp.le.f32.partialorder %v249, %v174
  %v251 = vsel %vm250, 1, 0
  %v252 = vcvt.s32.f32 %v251
  %v253 = vadd.f32 %v248, %v252
  %v254 = vld [vmem:[%s84] sm:$0xff]
  %vm255 = vcmp.le.f32.partialorder %v254, %v174
  %v256 = vsel %vm255, 1, 0
  %v257 = vcvt.s32.f32 %v256
  %v258 = vadd.f32 %v253, %v257
  %v259 = vld [vmem:[%s89] sm:$0xff]
  %vm260 = vcmp.le.f32.partialorder %v259, %v174
  %v261 = vsel %vm260, 1, 0
  %v262 = vcvt.s32.f32 %v261
  %v263 = vadd.f32 %v258, %v262
  %v264 = vld [vmem:[%s94] sm:$0xff]
  %vm265 = vcmp.le.f32.partialorder %v264, %v174
  %v266 = vsel %vm265, 1, 0
  %v267 = vcvt.s32.f32 %v266
  %v268 = vadd.f32 %v263, %v267
  %v269 = vld [vmem:[%s99] sm:$0xff]
  %vm270 = vcmp.le.f32.partialorder %v269, %v174
  %v271 = vsel %vm270, 1, 0
  %v272 = vcvt.s32.f32 %v271
  %v273 = vadd.f32 %v268, %v272
  %vm274 = vcmp.ge.f32.partialorder %v273, 10.0
  %v275 = vsel %vm274, %v174, inf
  %vm276 = vcmp.le.f32.partialorder %v174, %v179
  %v277 = vsel %vm276, 1, 0
  %v278 = vcvt.s32.f32 %v277
  %v279 = vadd.f32 %v278, 0.0
  %vm280 = vcmp.le.f32.partialorder %v179, %v179
  %v281 = vsel %vm280, 1, 0
  %v282 = vcvt.s32.f32 %v281
  %v283 = vadd.f32 %v279, %v282
  %vm284 = vcmp.le.f32.partialorder %v184, %v179
  %v285 = vsel %vm284, 1, 0
  %v286 = vcvt.s32.f32 %v285
  %v287 = vadd.f32 %v283, %v286
  %vm288 = vcmp.le.f32.partialorder %v189, %v179
  %v289 = vsel %vm288, 1, 0
  %v290 = vcvt.s32.f32 %v289
  %v291 = vadd.f32 %v287, %v290
  %vm292 = vcmp.le.f32.partialorder %v194, %v179
  %v293 = vsel %vm292, 1, 0
  %v294 = vcvt.s32.f32 %v293
  %v295 = vadd.f32 %v291, %v294
  %vm296 = vcmp.le.f32.partialorder %v199, %v179
  %v297 = vsel %vm296, 1, 0
  %v298 = vcvt.s32.f32 %v297
  %v299 = vadd.f32 %v295, %v298
  %vm300 = vcmp.le.f32.partialorder %v204, %v179
  %v301 = vsel %vm300, 1, 0
  %v302 = vcvt.s32.f32 %v301
  %v303 = vadd.f32 %v299, %v302
  %vm304 = vcmp.le.f32.partialorder %v209, %v179
  %v305 = vsel %vm304, 1, 0
  %v306 = vcvt.s32.f32 %v305
  %v307 = vadd.f32 %v303, %v306
  %vm308 = vcmp.le.f32.partialorder %v214, %v179
  %v309 = vsel %vm308, 1, 0
  %v310 = vcvt.s32.f32 %v309
  %v311 = vadd.f32 %v307, %v310
  %vm312 = vcmp.le.f32.partialorder %v219, %v179
  %v313 = vsel %vm312, 1, 0
  %v314 = vcvt.s32.f32 %v313
  %v315 = vadd.f32 %v311, %v314
  %vm316 = vcmp.le.f32.partialorder %v224, %v179
  %v317 = vsel %vm316, 1, 0
  %v318 = vcvt.s32.f32 %v317
  %v319 = vadd.f32 %v315, %v318
  %vm320 = vcmp.le.f32.partialorder %v229, %v179
  %v321 = vsel %vm320, 1, 0
  %v322 = vcvt.s32.f32 %v321
  %v323 = vadd.f32 %v319, %v322
  %vm324 = vcmp.le.f32.partialorder %v234, %v179
  %v325 = vsel %vm324, 1, 0
  %v326 = vcvt.s32.f32 %v325
  %v327 = vadd.f32 %v323, %v326
  %vm328 = vcmp.le.f32.partialorder %v239, %v179
  %v329 = vsel %vm328, 1, 0
  %v330 = vcvt.s32.f32 %v329
  %v331 = vadd.f32 %v327, %v330
  %vm332 = vcmp.le.f32.partialorder %v244, %v179
  %v333 = vsel %vm332, 1, 0
  %v334 = vcvt.s32.f32 %v333
  %v335 = vadd.f32 %v331, %v334
  %vm336 = vcmp.le.f32.partialorder %v249, %v179
  %v337 = vsel %vm336, 1, 0
  %v338 = vcvt.s32.f32 %v337
  %v339 = vadd.f32 %v335, %v338
  %vm340 = vcmp.le.f32.partialorder %v254, %v179
  %v341 = vsel %vm340, 1, 0
  %v342 = vcvt.s32.f32 %v341
  %v343 = vadd.f32 %v339, %v342
  %vm344 = vcmp.le.f32.partialorder %v259, %v179
  %v345 = vsel %vm344, 1, 0
  %v346 = vcvt.s32.f32 %v345
  %v347 = vadd.f32 %v343, %v346
  %vm348 = vcmp.le.f32.partialorder %v264, %v179
  %v349 = vsel %vm348, 1, 0
  %v350 = vcvt.s32.f32 %v349
  %v351 = vadd.f32 %v347, %v350
  %vm352 = vcmp.le.f32.partialorder %v269, %v179
  %v353 = vsel %vm352, 1, 0
  %v354 = vcvt.s32.f32 %v353
  %v355 = vadd.f32 %v351, %v354
  %vm356 = vcmp.ge.f32.partialorder %v355, 10.0
  %v357 = vsel %vm356, %v179, inf
  %v358 = vmin.f32 %v275, %v357
  %vm359 = vcmp.le.f32.partialorder %v174, %v184
  %v360 = vsel %vm359, 1, 0
  %v361 = vcvt.s32.f32 %v360
  %v362 = vadd.f32 %v361, 0.0
  %vm363 = vcmp.le.f32.partialorder %v179, %v184
  %v364 = vsel %vm363, 1, 0
  %v365 = vcvt.s32.f32 %v364
  %v366 = vadd.f32 %v362, %v365
  %vm367 = vcmp.le.f32.partialorder %v184, %v184
  %v368 = vsel %vm367, 1, 0
  %v369 = vcvt.s32.f32 %v368
  %v370 = vadd.f32 %v366, %v369
  %vm371 = vcmp.le.f32.partialorder %v189, %v184
  %v372 = vsel %vm371, 1, 0
  %v373 = vcvt.s32.f32 %v372
  %v374 = vadd.f32 %v370, %v373
  %vm375 = vcmp.le.f32.partialorder %v194, %v184
  %v376 = vsel %vm375, 1, 0
  %v377 = vcvt.s32.f32 %v376
  %v378 = vadd.f32 %v374, %v377
  %vm379 = vcmp.le.f32.partialorder %v199, %v184
  %v380 = vsel %vm379, 1, 0
  %v381 = vcvt.s32.f32 %v380
  %v382 = vadd.f32 %v378, %v381
  %vm383 = vcmp.le.f32.partialorder %v204, %v184
  %v384 = vsel %vm383, 1, 0
  %v385 = vcvt.s32.f32 %v384
  %v386 = vadd.f32 %v382, %v385
  %vm387 = vcmp.le.f32.partialorder %v209, %v184
  %v388 = vsel %vm387, 1, 0
  %v389 = vcvt.s32.f32 %v388
  %v390 = vadd.f32 %v386, %v389
  %vm391 = vcmp.le.f32.partialorder %v214, %v184
  %v392 = vsel %vm391, 1, 0
  %v393 = vcvt.s32.f32 %v392
  %v394 = vadd.f32 %v390, %v393
  %vm395 = vcmp.le.f32.partialorder %v219, %v184
  %v396 = vsel %vm395, 1, 0
  %v397 = vcvt.s32.f32 %v396
  %v398 = vadd.f32 %v394, %v397
  %vm399 = vcmp.le.f32.partialorder %v224, %v184
  %v400 = vsel %vm399, 1, 0
  %v401 = vcvt.s32.f32 %v400
  %v402 = vadd.f32 %v398, %v401
  %vm403 = vcmp.le.f32.partialorder %v229, %v184
  %v404 = vsel %vm403, 1, 0
  %v405 = vcvt.s32.f32 %v404
  %v406 = vadd.f32 %v402, %v405
  %vm407 = vcmp.le.f32.partialorder %v234, %v184
  %v408 = vsel %vm407, 1, 0
  %v409 = vcvt.s32.f32 %v408
  %v410 = vadd.f32 %v406, %v409
  %vm411 = vcmp.le.f32.partialorder %v239, %v184
  %v412 = vsel %vm411, 1, 0
  %v413 = vcvt.s32.f32 %v412
  %v414 = vadd.f32 %v410, %v413
  %vm415 = vcmp.le.f32.partialorder %v244, %v184
  %v416 = vsel %vm415, 1, 0
  %v417 = vcvt.s32.f32 %v416
  %v418 = vadd.f32 %v414, %v417
  %vm419 = vcmp.le.f32.partialorder %v249, %v184
  %v420 = vsel %vm419, 1, 0
  %v421 = vcvt.s32.f32 %v420
  %v422 = vadd.f32 %v418, %v421
  %vm423 = vcmp.le.f32.partialorder %v254, %v184
  %v424 = vsel %vm423, 1, 0
  %v425 = vcvt.s32.f32 %v424
  %v426 = vadd.f32 %v422, %v425
  %vm427 = vcmp.le.f32.partialorder %v259, %v184
  %v428 = vsel %vm427, 1, 0
  %v429 = vcvt.s32.f32 %v428
  %v430 = vadd.f32 %v426, %v429
  %vm431 = vcmp.le.f32.partialorder %v264, %v184
  %v432 = vsel %vm431, 1, 0
  %v433 = vcvt.s32.f32 %v432
  %v434 = vadd.f32 %v430, %v433
  %vm435 = vcmp.le.f32.partialorder %v269, %v184
  %v436 = vsel %vm435, 1, 0
  %v437 = vcvt.s32.f32 %v436
  %v438 = vadd.f32 %v434, %v437
  %vm439 = vcmp.ge.f32.partialorder %v438, 10.0
  %v440 = vsel %vm439, %v184, inf
  %v441 = vmin.f32 %v358, %v440
  %vm442 = vcmp.le.f32.partialorder %v174, %v189
  %v443 = vsel %vm442, 1, 0
  %v444 = vcvt.s32.f32 %v443
  %v445 = vadd.f32 %v444, 0.0
  %vm446 = vcmp.le.f32.partialorder %v179, %v189
  %v447 = vsel %vm446, 1, 0
  %v448 = vcvt.s32.f32 %v447
  %v449 = vadd.f32 %v445, %v448
  %vm450 = vcmp.le.f32.partialorder %v184, %v189
  %v451 = vsel %vm450, 1, 0
  %v452 = vcvt.s32.f32 %v451
  %v453 = vadd.f32 %v449, %v452
  %vm454 = vcmp.le.f32.partialorder %v189, %v189
  %v455 = vsel %vm454, 1, 0
  %v456 = vcvt.s32.f32 %v455
  %v457 = vadd.f32 %v453, %v456
  %vm458 = vcmp.le.f32.partialorder %v194, %v189
  %v459 = vsel %vm458, 1, 0
  %v460 = vcvt.s32.f32 %v459
  %v461 = vadd.f32 %v457, %v460
  %vm462 = vcmp.le.f32.partialorder %v199, %v189
  %v463 = vsel %vm462, 1, 0
  %v464 = vcvt.s32.f32 %v463
  %v465 = vadd.f32 %v461, %v464
  %vm466 = vcmp.le.f32.partialorder %v204, %v189
  %v467 = vsel %vm466, 1, 0
  %v468 = vcvt.s32.f32 %v467
  %v469 = vadd.f32 %v465, %v468
  %vm470 = vcmp.le.f32.partialorder %v209, %v189
  %v471 = vsel %vm470, 1, 0
  %v472 = vcvt.s32.f32 %v471
  %v473 = vadd.f32 %v469, %v472
  %vm474 = vcmp.le.f32.partialorder %v214, %v189
  %v475 = vsel %vm474, 1, 0
  %v476 = vcvt.s32.f32 %v475
  %v477 = vadd.f32 %v473, %v476
  %vm478 = vcmp.le.f32.partialorder %v219, %v189
  %v479 = vsel %vm478, 1, 0
  %v480 = vcvt.s32.f32 %v479
  %v481 = vadd.f32 %v477, %v480
  %vm482 = vcmp.le.f32.partialorder %v224, %v189
  %v483 = vsel %vm482, 1, 0
  %v484 = vcvt.s32.f32 %v483
  %v485 = vadd.f32 %v481, %v484
  %vm486 = vcmp.le.f32.partialorder %v229, %v189
  %v487 = vsel %vm486, 1, 0
  %v488 = vcvt.s32.f32 %v487
  %v489 = vadd.f32 %v485, %v488
  %vm490 = vcmp.le.f32.partialorder %v234, %v189
  %v491 = vsel %vm490, 1, 0
  %v492 = vcvt.s32.f32 %v491
  %v493 = vadd.f32 %v489, %v492
  %vm494 = vcmp.le.f32.partialorder %v239, %v189
  %v495 = vsel %vm494, 1, 0
  %v496 = vcvt.s32.f32 %v495
  %v497 = vadd.f32 %v493, %v496
  %vm498 = vcmp.le.f32.partialorder %v244, %v189
  %v499 = vsel %vm498, 1, 0
  %v500 = vcvt.s32.f32 %v499
  %v501 = vadd.f32 %v497, %v500
  %vm502 = vcmp.le.f32.partialorder %v249, %v189
  %v503 = vsel %vm502, 1, 0
  %v504 = vcvt.s32.f32 %v503
  %v505 = vadd.f32 %v501, %v504
  %vm506 = vcmp.le.f32.partialorder %v254, %v189
  %v507 = vsel %vm506, 1, 0
  %v508 = vcvt.s32.f32 %v507
  %v509 = vadd.f32 %v505, %v508
  %vm510 = vcmp.le.f32.partialorder %v259, %v189
  %v511 = vsel %vm510, 1, 0
  %v512 = vcvt.s32.f32 %v511
  %v513 = vadd.f32 %v509, %v512
  %vm514 = vcmp.le.f32.partialorder %v264, %v189
  %v515 = vsel %vm514, 1, 0
  %v516 = vcvt.s32.f32 %v515
  %v517 = vadd.f32 %v513, %v516
  %vm518 = vcmp.le.f32.partialorder %v269, %v189
  %v519 = vsel %vm518, 1, 0
  %v520 = vcvt.s32.f32 %v519
  %v521 = vadd.f32 %v517, %v520
  %vm522 = vcmp.ge.f32.partialorder %v521, 10.0
  %v523 = vsel %vm522, %v189, inf
  %v524 = vmin.f32 %v441, %v523
  %vm525 = vcmp.le.f32.partialorder %v174, %v194
  %v526 = vsel %vm525, 1, 0
  %v527 = vcvt.s32.f32 %v526
  %v528 = vadd.f32 %v527, 0.0
  %vm529 = vcmp.le.f32.partialorder %v179, %v194
  %v530 = vsel %vm529, 1, 0
  %v531 = vcvt.s32.f32 %v530
  %v532 = vadd.f32 %v528, %v531
  %vm533 = vcmp.le.f32.partialorder %v184, %v194
  %v534 = vsel %vm533, 1, 0
  %v535 = vcvt.s32.f32 %v534
  %v536 = vadd.f32 %v532, %v535
  %vm537 = vcmp.le.f32.partialorder %v189, %v194
  %v538 = vsel %vm537, 1, 0
  %v539 = vcvt.s32.f32 %v538
  %v540 = vadd.f32 %v536, %v539
  %vm541 = vcmp.le.f32.partialorder %v194, %v194
  %v542 = vsel %vm541, 1, 0
  %v543 = vcvt.s32.f32 %v542
  %v544 = vadd.f32 %v540, %v543
  %vm545 = vcmp.le.f32.partialorder %v199, %v194
  %v546 = vsel %vm545, 1, 0
  %v547 = vcvt.s32.f32 %v546
  %v548 = vadd.f32 %v544, %v547
  %vm549 = vcmp.le.f32.partialorder %v204, %v194
  %v550 = vsel %vm549, 1, 0
  %v551 = vcvt.s32.f32 %v550
  %v552 = vadd.f32 %v548, %v551
  %vm553 = vcmp.le.f32.partialorder %v209, %v194
  %v554 = vsel %vm553, 1, 0
  %v555 = vcvt.s32.f32 %v554
  %v556 = vadd.f32 %v552, %v555
  %vm557 = vcmp.le.f32.partialorder %v214, %v194
  %v558 = vsel %vm557, 1, 0
  %v559 = vcvt.s32.f32 %v558
  %v560 = vadd.f32 %v556, %v559
  %vm561 = vcmp.le.f32.partialorder %v219, %v194
  %v562 = vsel %vm561, 1, 0
  %v563 = vcvt.s32.f32 %v562
  %v564 = vadd.f32 %v560, %v563
  %vm565 = vcmp.le.f32.partialorder %v224, %v194
  %v566 = vsel %vm565, 1, 0
  %v567 = vcvt.s32.f32 %v566
  %v568 = vadd.f32 %v564, %v567
  %vm569 = vcmp.le.f32.partialorder %v229, %v194
  %v570 = vsel %vm569, 1, 0
  %v571 = vcvt.s32.f32 %v570
  %v572 = vadd.f32 %v568, %v571
  %vm573 = vcmp.le.f32.partialorder %v234, %v194
  %v574 = vsel %vm573, 1, 0
  %v575 = vcvt.s32.f32 %v574
  %v576 = vadd.f32 %v572, %v575
  %vm577 = vcmp.le.f32.partialorder %v239, %v194
  %v578 = vsel %vm577, 1, 0
  %v579 = vcvt.s32.f32 %v578
  %v580 = vadd.f32 %v576, %v579
  %vm581 = vcmp.le.f32.partialorder %v244, %v194
  %v582 = vsel %vm581, 1, 0
  %v583 = vcvt.s32.f32 %v582
  %v584 = vadd.f32 %v580, %v583
  %vm585 = vcmp.le.f32.partialorder %v249, %v194
  %v586 = vsel %vm585, 1, 0
  %v587 = vcvt.s32.f32 %v586
  %v588 = vadd.f32 %v584, %v587
  %vm589 = vcmp.le.f32.partialorder %v254, %v194
  %v590 = vsel %vm589, 1, 0
  %v591 = vcvt.s32.f32 %v590
  %v592 = vadd.f32 %v588, %v591
  %vm593 = vcmp.le.f32.partialorder %v259, %v194
  %v594 = vsel %vm593, 1, 0
  %v595 = vcvt.s32.f32 %v594
  %v596 = vadd.f32 %v592, %v595
  %vm597 = vcmp.le.f32.partialorder %v264, %v194
  %v598 = vsel %vm597, 1, 0
  %v599 = vcvt.s32.f32 %v598
  %v600 = vadd.f32 %v596, %v599
  %vm601 = vcmp.le.f32.partialorder %v269, %v194
  %v602 = vsel %vm601, 1, 0
  %v603 = vcvt.s32.f32 %v602
  %v604 = vadd.f32 %v600, %v603
  %vm605 = vcmp.ge.f32.partialorder %v604, 10.0
  %v606 = vsel %vm605, %v194, inf
  %v607 = vmin.f32 %v524, %v606
  %vm608 = vcmp.le.f32.partialorder %v174, %v199
  %v609 = vsel %vm608, 1, 0
  %v610 = vcvt.s32.f32 %v609
  %v611 = vadd.f32 %v610, 0.0
  %vm612 = vcmp.le.f32.partialorder %v179, %v199
  %v613 = vsel %vm612, 1, 0
  %v614 = vcvt.s32.f32 %v613
  %v615 = vadd.f32 %v611, %v614
  %vm616 = vcmp.le.f32.partialorder %v184, %v199
  %v617 = vsel %vm616, 1, 0
  %v618 = vcvt.s32.f32 %v617
  %v619 = vadd.f32 %v615, %v618
  %vm620 = vcmp.le.f32.partialorder %v189, %v199
  %v621 = vsel %vm620, 1, 0
  %v622 = vcvt.s32.f32 %v621
  %v623 = vadd.f32 %v619, %v622
  %vm624 = vcmp.le.f32.partialorder %v194, %v199
  %v625 = vsel %vm624, 1, 0
  %v626 = vcvt.s32.f32 %v625
  %v627 = vadd.f32 %v623, %v626
  %vm628 = vcmp.le.f32.partialorder %v199, %v199
  %v629 = vsel %vm628, 1, 0
  %v630 = vcvt.s32.f32 %v629
  %v631 = vadd.f32 %v627, %v630
  %vm632 = vcmp.le.f32.partialorder %v204, %v199
  %v633 = vsel %vm632, 1, 0
  %v634 = vcvt.s32.f32 %v633
  %v635 = vadd.f32 %v631, %v634
  %vm636 = vcmp.le.f32.partialorder %v209, %v199
  %v637 = vsel %vm636, 1, 0
  %v638 = vcvt.s32.f32 %v637
  %v639 = vadd.f32 %v635, %v638
  %vm640 = vcmp.le.f32.partialorder %v214, %v199
  %v641 = vsel %vm640, 1, 0
  %v642 = vcvt.s32.f32 %v641
  %v643 = vadd.f32 %v639, %v642
  %vm644 = vcmp.le.f32.partialorder %v219, %v199
  %v645 = vsel %vm644, 1, 0
  %v646 = vcvt.s32.f32 %v645
  %v647 = vadd.f32 %v643, %v646
  %vm648 = vcmp.le.f32.partialorder %v224, %v199
  %v649 = vsel %vm648, 1, 0
  %v650 = vcvt.s32.f32 %v649
  %v651 = vadd.f32 %v647, %v650
  %vm652 = vcmp.le.f32.partialorder %v229, %v199
  %v653 = vsel %vm652, 1, 0
  %v654 = vcvt.s32.f32 %v653
  %v655 = vadd.f32 %v651, %v654
  %vm656 = vcmp.le.f32.partialorder %v234, %v199
  %v657 = vsel %vm656, 1, 0
  %v658 = vcvt.s32.f32 %v657
  %v659 = vadd.f32 %v655, %v658
  %vm660 = vcmp.le.f32.partialorder %v239, %v199
  %v661 = vsel %vm660, 1, 0
  %v662 = vcvt.s32.f32 %v661
  %v663 = vadd.f32 %v659, %v662
  %vm664 = vcmp.le.f32.partialorder %v244, %v199
  %v665 = vsel %vm664, 1, 0
  %v666 = vcvt.s32.f32 %v665
  %v667 = vadd.f32 %v663, %v666
  %vm668 = vcmp.le.f32.partialorder %v249, %v199
  %v669 = vsel %vm668, 1, 0
  %v670 = vcvt.s32.f32 %v669
  %v671 = vadd.f32 %v667, %v670
  %vm672 = vcmp.le.f32.partialorder %v254, %v199
  %v673 = vsel %vm672, 1, 0
  %v674 = vcvt.s32.f32 %v673
  %v675 = vadd.f32 %v671, %v674
  %vm676 = vcmp.le.f32.partialorder %v259, %v199
  %v677 = vsel %vm676, 1, 0
  %v678 = vcvt.s32.f32 %v677
  %v679 = vadd.f32 %v675, %v678
  %vm680 = vcmp.le.f32.partialorder %v264, %v199
  %v681 = vsel %vm680, 1, 0
  %v682 = vcvt.s32.f32 %v681
  %v683 = vadd.f32 %v679, %v682
  %vm684 = vcmp.le.f32.partialorder %v269, %v199
  %v685 = vsel %vm684, 1, 0
  %v686 = vcvt.s32.f32 %v685
  %v687 = vadd.f32 %v683, %v686
  %vm688 = vcmp.ge.f32.partialorder %v687, 10.0
  %v689 = vsel %vm688, %v199, inf
  %v690 = vmin.f32 %v607, %v689
  %vm691 = vcmp.le.f32.partialorder %v174, %v204
  %v692 = vsel %vm691, 1, 0
  %v693 = vcvt.s32.f32 %v692
  %v694 = vadd.f32 %v693, 0.0
  %vm695 = vcmp.le.f32.partialorder %v179, %v204
  %v696 = vsel %vm695, 1, 0
  %v697 = vcvt.s32.f32 %v696
  %v698 = vadd.f32 %v694, %v697
  %vm699 = vcmp.le.f32.partialorder %v184, %v204
  %v700 = vsel %vm699, 1, 0
  %v701 = vcvt.s32.f32 %v700
  %v702 = vadd.f32 %v698, %v701
  %vm703 = vcmp.le.f32.partialorder %v189, %v204
  %v704 = vsel %vm703, 1, 0
  %v705 = vcvt.s32.f32 %v704
  %v706 = vadd.f32 %v702, %v705
  %vm707 = vcmp.le.f32.partialorder %v194, %v204
  %v708 = vsel %vm707, 1, 0
  %v709 = vcvt.s32.f32 %v708
  %v710 = vadd.f32 %v706, %v709
  %vm711 = vcmp.le.f32.partialorder %v199, %v204
  %v712 = vsel %vm711, 1, 0
  %v713 = vcvt.s32.f32 %v712
  %v714 = vadd.f32 %v710, %v713
  %vm715 = vcmp.le.f32.partialorder %v204, %v204
  %v716 = vsel %vm715, 1, 0
  %v717 = vcvt.s32.f32 %v716
  %v718 = vadd.f32 %v714, %v717
  %vm719 = vcmp.le.f32.partialorder %v209, %v204
  %v720 = vsel %vm719, 1, 0
  %v721 = vcvt.s32.f32 %v720
  %v722 = vadd.f32 %v718, %v721
  %vm723 = vcmp.le.f32.partialorder %v214, %v204
  %v724 = vsel %vm723, 1, 0
  %v725 = vcvt.s32.f32 %v724
  %v726 = vadd.f32 %v722, %v725
  %vm727 = vcmp.le.f32.partialorder %v219, %v204
  %v728 = vsel %vm727, 1, 0
  %v729 = vcvt.s32.f32 %v728
  %v730 = vadd.f32 %v726, %v729
  %vm731 = vcmp.le.f32.partialorder %v224, %v204
  %v732 = vsel %vm731, 1, 0
  %v733 = vcvt.s32.f32 %v732
  %v734 = vadd.f32 %v730, %v733
  %vm735 = vcmp.le.f32.partialorder %v229, %v204
  %v736 = vsel %vm735, 1, 0
  %v737 = vcvt.s32.f32 %v736
  %v738 = vadd.f32 %v734, %v737
  %vm739 = vcmp.le.f32.partialorder %v234, %v204
  %v740 = vsel %vm739, 1, 0
  %v741 = vcvt.s32.f32 %v740
  %v742 = vadd.f32 %v738, %v741
  %vm743 = vcmp.le.f32.partialorder %v239, %v204
  %v744 = vsel %vm743, 1, 0
  %v745 = vcvt.s32.f32 %v744
  %v746 = vadd.f32 %v742, %v745
  %vm747 = vcmp.le.f32.partialorder %v244, %v204
  %v748 = vsel %vm747, 1, 0
  %v749 = vcvt.s32.f32 %v748
  %v750 = vadd.f32 %v746, %v749
  %vm751 = vcmp.le.f32.partialorder %v249, %v204
  %v752 = vsel %vm751, 1, 0
  %v753 = vcvt.s32.f32 %v752
  %v754 = vadd.f32 %v750, %v753
  %vm755 = vcmp.le.f32.partialorder %v254, %v204
  %v756 = vsel %vm755, 1, 0
  %v757 = vcvt.s32.f32 %v756
  %v758 = vadd.f32 %v754, %v757
  %vm759 = vcmp.le.f32.partialorder %v259, %v204
  %v760 = vsel %vm759, 1, 0
  %v761 = vcvt.s32.f32 %v760
  %v762 = vadd.f32 %v758, %v761
  %vm763 = vcmp.le.f32.partialorder %v264, %v204
  %v764 = vsel %vm763, 1, 0
  %v765 = vcvt.s32.f32 %v764
  %v766 = vadd.f32 %v762, %v765
  %vm767 = vcmp.le.f32.partialorder %v269, %v204
  %v768 = vsel %vm767, 1, 0
  %v769 = vcvt.s32.f32 %v768
  %v770 = vadd.f32 %v766, %v769
  %vm771 = vcmp.ge.f32.partialorder %v770, 10.0
  %v772 = vsel %vm771, %v204, inf
  %v773 = vmin.f32 %v690, %v772
  %vm774 = vcmp.le.f32.partialorder %v174, %v209
  %v775 = vsel %vm774, 1, 0
  %v776 = vcvt.s32.f32 %v775
  %v777 = vadd.f32 %v776, 0.0
  %vm778 = vcmp.le.f32.partialorder %v179, %v209
  %v779 = vsel %vm778, 1, 0
  %v780 = vcvt.s32.f32 %v779
  %v781 = vadd.f32 %v777, %v780
  %vm782 = vcmp.le.f32.partialorder %v184, %v209
  %v783 = vsel %vm782, 1, 0
  %v784 = vcvt.s32.f32 %v783
  %v785 = vadd.f32 %v781, %v784
  %vm786 = vcmp.le.f32.partialorder %v189, %v209
  %v787 = vsel %vm786, 1, 0
  %v788 = vcvt.s32.f32 %v787
  %v789 = vadd.f32 %v785, %v788
  %vm790 = vcmp.le.f32.partialorder %v194, %v209
  %v791 = vsel %vm790, 1, 0
  %v792 = vcvt.s32.f32 %v791
  %v793 = vadd.f32 %v789, %v792
  %vm794 = vcmp.le.f32.partialorder %v199, %v209
  %v795 = vsel %vm794, 1, 0
  %v796 = vcvt.s32.f32 %v795
  %v797 = vadd.f32 %v793, %v796
  %vm798 = vcmp.le.f32.partialorder %v204, %v209
  %v799 = vsel %vm798, 1, 0
  %v800 = vcvt.s32.f32 %v799
  %v801 = vadd.f32 %v797, %v800
  %vm802 = vcmp.le.f32.partialorder %v209, %v209
  %v803 = vsel %vm802, 1, 0
  %v804 = vcvt.s32.f32 %v803
  %v805 = vadd.f32 %v801, %v804
  %vm806 = vcmp.le.f32.partialorder %v214, %v209
  %v807 = vsel %vm806, 1, 0
  %v808 = vcvt.s32.f32 %v807
  %v809 = vadd.f32 %v805, %v808
  %vm810 = vcmp.le.f32.partialorder %v219, %v209
  %v811 = vsel %vm810, 1, 0
  %v812 = vcvt.s32.f32 %v811
  %v813 = vadd.f32 %v809, %v812
  %vm814 = vcmp.le.f32.partialorder %v224, %v209
  %v815 = vsel %vm814, 1, 0
  %v816 = vcvt.s32.f32 %v815
  %v817 = vadd.f32 %v813, %v816
  %vm818 = vcmp.le.f32.partialorder %v229, %v209
  %v819 = vsel %vm818, 1, 0
  %v820 = vcvt.s32.f32 %v819
  %v821 = vadd.f32 %v817, %v820
  %vm822 = vcmp.le.f32.partialorder %v234, %v209
  %v823 = vsel %vm822, 1, 0
  %v824 = vcvt.s32.f32 %v823
  %v825 = vadd.f32 %v821, %v824
  %vm826 = vcmp.le.f32.partialorder %v239, %v209
  %v827 = vsel %vm826, 1, 0
  %v828 = vcvt.s32.f32 %v827
  %v829 = vadd.f32 %v825, %v828
  %vm830 = vcmp.le.f32.partialorder %v244, %v209
  %v831 = vsel %vm830, 1, 0
  %v832 = vcvt.s32.f32 %v831
  %v833 = vadd.f32 %v829, %v832
  %vm834 = vcmp.le.f32.partialorder %v249, %v209
  %v835 = vsel %vm834, 1, 0
  %v836 = vcvt.s32.f32 %v835
  %v837 = vadd.f32 %v833, %v836
  %vm838 = vcmp.le.f32.partialorder %v254, %v209
  %v839 = vsel %vm838, 1, 0
  %v840 = vcvt.s32.f32 %v839
  %v841 = vadd.f32 %v837, %v840
  %vm842 = vcmp.le.f32.partialorder %v259, %v209
  %v843 = vsel %vm842, 1, 0
  %v844 = vcvt.s32.f32 %v843
  %v845 = vadd.f32 %v841, %v844
  %vm846 = vcmp.le.f32.partialorder %v264, %v209
  %v847 = vsel %vm846, 1, 0
  %v848 = vcvt.s32.f32 %v847
  %v849 = vadd.f32 %v845, %v848
  %vm850 = vcmp.le.f32.partialorder %v269, %v209
  %v851 = vsel %vm850, 1, 0
  %v852 = vcvt.s32.f32 %v851
  %v853 = vadd.f32 %v849, %v852
  %vm854 = vcmp.ge.f32.partialorder %v853, 10.0
  %v855 = vsel %vm854, %v209, inf
  %v856 = vmin.f32 %v773, %v855
  %vm857 = vcmp.le.f32.partialorder %v174, %v214
  %v858 = vsel %vm857, 1, 0
  %v859 = vcvt.s32.f32 %v858
  %v860 = vadd.f32 %v859, 0.0
  %vm861 = vcmp.le.f32.partialorder %v179, %v214
  %v862 = vsel %vm861, 1, 0
  %v863 = vcvt.s32.f32 %v862
  %v864 = vadd.f32 %v860, %v863
  %vm865 = vcmp.le.f32.partialorder %v184, %v214
  %v866 = vsel %vm865, 1, 0
  %v867 = vcvt.s32.f32 %v866
  %v868 = vadd.f32 %v864, %v867
  %vm869 = vcmp.le.f32.partialorder %v189, %v214
  %v870 = vsel %vm869, 1, 0
  %v871 = vcvt.s32.f32 %v870
  %v872 = vadd.f32 %v868, %v871
  %vm873 = vcmp.le.f32.partialorder %v194, %v214
  %v874 = vsel %vm873, 1, 0
  %v875 = vcvt.s32.f32 %v874
  %v876 = vadd.f32 %v872, %v875
  %vm877 = vcmp.le.f32.partialorder %v199, %v214
  %v878 = vsel %vm877, 1, 0
  %v879 = vcvt.s32.f32 %v878
  %v880 = vadd.f32 %v876, %v879
  %vm881 = vcmp.le.f32.partialorder %v204, %v214
  %v882 = vsel %vm881, 1, 0
  %v883 = vcvt.s32.f32 %v882
  %v884 = vadd.f32 %v880, %v883
  %vm885 = vcmp.le.f32.partialorder %v209, %v214
  %v886 = vsel %vm885, 1, 0
  %v887 = vcvt.s32.f32 %v886
  %v888 = vadd.f32 %v884, %v887
  %vm889 = vcmp.le.f32.partialorder %v214, %v214
  %v890 = vsel %vm889, 1, 0
  %v891 = vcvt.s32.f32 %v890
  %v892 = vadd.f32 %v888, %v891
  %vm893 = vcmp.le.f32.partialorder %v219, %v214
  %v894 = vsel %vm893, 1, 0
  %v895 = vcvt.s32.f32 %v894
  %v896 = vadd.f32 %v892, %v895
  %vm897 = vcmp.le.f32.partialorder %v224, %v214
  %v898 = vsel %vm897, 1, 0
  %v899 = vcvt.s32.f32 %v898
  %v900 = vadd.f32 %v896, %v899
  %vm901 = vcmp.le.f32.partialorder %v229, %v214
  %v902 = vsel %vm901, 1, 0
  %v903 = vcvt.s32.f32 %v902
  %v904 = vadd.f32 %v900, %v903
  %vm905 = vcmp.le.f32.partialorder %v234, %v214
  %v906 = vsel %vm905, 1, 0
  %v907 = vcvt.s32.f32 %v906
  %v908 = vadd.f32 %v904, %v907
  %vm909 = vcmp.le.f32.partialorder %v239, %v214
  %v910 = vsel %vm909, 1, 0
  %v911 = vcvt.s32.f32 %v910
  %v912 = vadd.f32 %v908, %v911
  %vm913 = vcmp.le.f32.partialorder %v244, %v214
  %v914 = vsel %vm913, 1, 0
  %v915 = vcvt.s32.f32 %v914
  %v916 = vadd.f32 %v912, %v915
  %vm917 = vcmp.le.f32.partialorder %v249, %v214
  %v918 = vsel %vm917, 1, 0
  %v919 = vcvt.s32.f32 %v918
  %v920 = vadd.f32 %v916, %v919
  %vm921 = vcmp.le.f32.partialorder %v254, %v214
  %v922 = vsel %vm921, 1, 0
  %v923 = vcvt.s32.f32 %v922
  %v924 = vadd.f32 %v920, %v923
  %vm925 = vcmp.le.f32.partialorder %v259, %v214
  %v926 = vsel %vm925, 1, 0
  %v927 = vcvt.s32.f32 %v926
  %v928 = vadd.f32 %v924, %v927
  %vm929 = vcmp.le.f32.partialorder %v264, %v214
  %v930 = vsel %vm929, 1, 0
  %v931 = vcvt.s32.f32 %v930
  %v932 = vadd.f32 %v928, %v931
  %vm933 = vcmp.le.f32.partialorder %v269, %v214
  %v934 = vsel %vm933, 1, 0
  %v935 = vcvt.s32.f32 %v934
  %v936 = vadd.f32 %v932, %v935
  %vm937 = vcmp.ge.f32.partialorder %v936, 10.0
  %v938 = vsel %vm937, %v214, inf
  %v939 = vmin.f32 %v856, %v938
  %vm940 = vcmp.le.f32.partialorder %v174, %v219
  %v941 = vsel %vm940, 1, 0
  %v942 = vcvt.s32.f32 %v941
  %v943 = vadd.f32 %v942, 0.0
  %vm944 = vcmp.le.f32.partialorder %v179, %v219
  %v945 = vsel %vm944, 1, 0
  %v946 = vcvt.s32.f32 %v945
  %v947 = vadd.f32 %v943, %v946
  %vm948 = vcmp.le.f32.partialorder %v184, %v219
  %v949 = vsel %vm948, 1, 0
  %v950 = vcvt.s32.f32 %v949
  %v951 = vadd.f32 %v947, %v950
  %vm952 = vcmp.le.f32.partialorder %v189, %v219
  %v953 = vsel %vm952, 1, 0
  %v954 = vcvt.s32.f32 %v953
  %v955 = vadd.f32 %v951, %v954
  %vm956 = vcmp.le.f32.partialorder %v194, %v219
  %v957 = vsel %vm956, 1, 0
  %v958 = vcvt.s32.f32 %v957
  %v959 = vadd.f32 %v955, %v958
  %vm960 = vcmp.le.f32.partialorder %v199, %v219
  %v961 = vsel %vm960, 1, 0
  %v962 = vcvt.s32.f32 %v961
  %v963 = vadd.f32 %v959, %v962
  %vm964 = vcmp.le.f32.partialorder %v204, %v219
  %v965 = vsel %vm964, 1, 0
  %v966 = vcvt.s32.f32 %v965
  %v967 = vadd.f32 %v963, %v966
  %vm968 = vcmp.le.f32.partialorder %v209, %v219
  %v969 = vsel %vm968, 1, 0
  %v970 = vcvt.s32.f32 %v969
  %v971 = vadd.f32 %v967, %v970
  %vm972 = vcmp.le.f32.partialorder %v214, %v219
  %v973 = vsel %vm972, 1, 0
  %v974 = vcvt.s32.f32 %v973
  %v975 = vadd.f32 %v971, %v974
  %vm976 = vcmp.le.f32.partialorder %v219, %v219
  %v977 = vsel %vm976, 1, 0
  %v978 = vcvt.s32.f32 %v977
  %v979 = vadd.f32 %v975, %v978
  %vm980 = vcmp.le.f32.partialorder %v224, %v219
  %v981 = vsel %vm980, 1, 0
  %v982 = vcvt.s32.f32 %v981
  %v983 = vadd.f32 %v979, %v982
  %vm984 = vcmp.le.f32.partialorder %v229, %v219
  %v985 = vsel %vm984, 1, 0
  %v986 = vcvt.s32.f32 %v985
  %v987 = vadd.f32 %v983, %v986
  %vm988 = vcmp.le.f32.partialorder %v234, %v219
  %v989 = vsel %vm988, 1, 0
  %v990 = vcvt.s32.f32 %v989
  %v991 = vadd.f32 %v987, %v990
  %vm992 = vcmp.le.f32.partialorder %v239, %v219
  %v993 = vsel %vm992, 1, 0
  %v994 = vcvt.s32.f32 %v993
  %v995 = vadd.f32 %v991, %v994
  %vm996 = vcmp.le.f32.partialorder %v244, %v219
  %v997 = vsel %vm996, 1, 0
  %v998 = vcvt.s32.f32 %v997
  %v999 = vadd.f32 %v995, %v998
  %vm1000 = vcmp.le.f32.partialorder %v249, %v219
  %v1001 = vsel %vm1000, 1, 0
  %v1002 = vcvt.s32.f32 %v1001
  %v1003 = vadd.f32 %v999, %v1002
  %vm1004 = vcmp.le.f32.partialorder %v254, %v219
  %v1005 = vsel %vm1004, 1, 0
  %v1006 = vcvt.s32.f32 %v1005
  %v1007 = vadd.f32 %v1003, %v1006
  %vm1008 = vcmp.le.f32.partialorder %v259, %v219
  %v1009 = vsel %vm1008, 1, 0
  %v1010 = vcvt.s32.f32 %v1009
  %v1011 = vadd.f32 %v1007, %v1010
  %vm1012 = vcmp.le.f32.partialorder %v264, %v219
  %v1013 = vsel %vm1012, 1, 0
  %v1014 = vcvt.s32.f32 %v1013
  %v1015 = vadd.f32 %v1011, %v1014
  %vm1016 = vcmp.le.f32.partialorder %v269, %v219
  %v1017 = vsel %vm1016, 1, 0
  %v1018 = vcvt.s32.f32 %v1017
  %v1019 = vadd.f32 %v1015, %v1018
  %vm1020 = vcmp.ge.f32.partialorder %v1019, 10.0
  %v1021 = vsel %vm1020, %v219, inf
  %v1022 = vmin.f32 %v939, %v1021
  %vm1023 = vcmp.le.f32.partialorder %v174, %v224
  %v1024 = vsel %vm1023, 1, 0
  %v1025 = vcvt.s32.f32 %v1024
  %v1026 = vadd.f32 %v1025, 0.0
  %vm1027 = vcmp.le.f32.partialorder %v179, %v224
  %v1028 = vsel %vm1027, 1, 0
  %v1029 = vcvt.s32.f32 %v1028
  %v1030 = vadd.f32 %v1026, %v1029
  %vm1031 = vcmp.le.f32.partialorder %v184, %v224
  %v1032 = vsel %vm1031, 1, 0
  %v1033 = vcvt.s32.f32 %v1032
  %v1034 = vadd.f32 %v1030, %v1033
  %vm1035 = vcmp.le.f32.partialorder %v189, %v224
  %v1036 = vsel %vm1035, 1, 0
  %v1037 = vcvt.s32.f32 %v1036
  %v1038 = vadd.f32 %v1034, %v1037
  %vm1039 = vcmp.le.f32.partialorder %v194, %v224
  %v1040 = vsel %vm1039, 1, 0
  %v1041 = vcvt.s32.f32 %v1040
  %v1042 = vadd.f32 %v1038, %v1041
  %vm1043 = vcmp.le.f32.partialorder %v199, %v224
  %v1044 = vsel %vm1043, 1, 0
  %v1045 = vcvt.s32.f32 %v1044
  %v1046 = vadd.f32 %v1042, %v1045
  %vm1047 = vcmp.le.f32.partialorder %v204, %v224
  %v1048 = vsel %vm1047, 1, 0
  %v1049 = vcvt.s32.f32 %v1048
  %v1050 = vadd.f32 %v1046, %v1049
  %vm1051 = vcmp.le.f32.partialorder %v209, %v224
  %v1052 = vsel %vm1051, 1, 0
  %v1053 = vcvt.s32.f32 %v1052
  %v1054 = vadd.f32 %v1050, %v1053
  %vm1055 = vcmp.le.f32.partialorder %v214, %v224
  %v1056 = vsel %vm1055, 1, 0
  %v1057 = vcvt.s32.f32 %v1056
  %v1058 = vadd.f32 %v1054, %v1057
  %vm1059 = vcmp.le.f32.partialorder %v219, %v224
  %v1060 = vsel %vm1059, 1, 0
  %v1061 = vcvt.s32.f32 %v1060
  %v1062 = vadd.f32 %v1058, %v1061
  %vm1063 = vcmp.le.f32.partialorder %v224, %v224
  %v1064 = vsel %vm1063, 1, 0
  %v1065 = vcvt.s32.f32 %v1064
  %v1066 = vadd.f32 %v1062, %v1065
  %vm1067 = vcmp.le.f32.partialorder %v229, %v224
  %v1068 = vsel %vm1067, 1, 0
  %v1069 = vcvt.s32.f32 %v1068
  %v1070 = vadd.f32 %v1066, %v1069
  %vm1071 = vcmp.le.f32.partialorder %v234, %v224
  %v1072 = vsel %vm1071, 1, 0
  %v1073 = vcvt.s32.f32 %v1072
  %v1074 = vadd.f32 %v1070, %v1073
  %vm1075 = vcmp.le.f32.partialorder %v239, %v224
  %v1076 = vsel %vm1075, 1, 0
  %v1077 = vcvt.s32.f32 %v1076
  %v1078 = vadd.f32 %v1074, %v1077
  %vm1079 = vcmp.le.f32.partialorder %v244, %v224
  %v1080 = vsel %vm1079, 1, 0
  %v1081 = vcvt.s32.f32 %v1080
  %v1082 = vadd.f32 %v1078, %v1081
  %vm1083 = vcmp.le.f32.partialorder %v249, %v224
  %v1084 = vsel %vm1083, 1, 0
  %v1085 = vcvt.s32.f32 %v1084
  %v1086 = vadd.f32 %v1082, %v1085
  %vm1087 = vcmp.le.f32.partialorder %v254, %v224
  %v1088 = vsel %vm1087, 1, 0
  %v1089 = vcvt.s32.f32 %v1088
  %v1090 = vadd.f32 %v1086, %v1089
  %vm1091 = vcmp.le.f32.partialorder %v259, %v224
  %v1092 = vsel %vm1091, 1, 0
  %v1093 = vcvt.s32.f32 %v1092
  %v1094 = vadd.f32 %v1090, %v1093
  %vm1095 = vcmp.le.f32.partialorder %v264, %v224
  %v1096 = vsel %vm1095, 1, 0
  %v1097 = vcvt.s32.f32 %v1096
  %v1098 = vadd.f32 %v1094, %v1097
  %vm1099 = vcmp.le.f32.partialorder %v269, %v224
  %v1100 = vsel %vm1099, 1, 0
  %v1101 = vcvt.s32.f32 %v1100
  %v1102 = vadd.f32 %v1098, %v1101
  %vm1103 = vcmp.ge.f32.partialorder %v1102, 10.0
  %v1104 = vsel %vm1103, %v224, inf
  %v1105 = vmin.f32 %v1022, %v1104
  %vm1106 = vcmp.le.f32.partialorder %v174, %v229
  %v1107 = vsel %vm1106, 1, 0
  %v1108 = vcvt.s32.f32 %v1107
  %v1109 = vadd.f32 %v1108, 0.0
  %vm1110 = vcmp.le.f32.partialorder %v179, %v229
  %v1111 = vsel %vm1110, 1, 0
  %v1112 = vcvt.s32.f32 %v1111
  %v1113 = vadd.f32 %v1109, %v1112
  %vm1114 = vcmp.le.f32.partialorder %v184, %v229
  %v1115 = vsel %vm1114, 1, 0
  %v1116 = vcvt.s32.f32 %v1115
  %v1117 = vadd.f32 %v1113, %v1116
  %vm1118 = vcmp.le.f32.partialorder %v189, %v229
  %v1119 = vsel %vm1118, 1, 0
  %v1120 = vcvt.s32.f32 %v1119
  %v1121 = vadd.f32 %v1117, %v1120
  %vm1122 = vcmp.le.f32.partialorder %v194, %v229
  %v1123 = vsel %vm1122, 1, 0
  %v1124 = vcvt.s32.f32 %v1123
  %v1125 = vadd.f32 %v1121, %v1124
  %vm1126 = vcmp.le.f32.partialorder %v199, %v229
  %v1127 = vsel %vm1126, 1, 0
  %v1128 = vcvt.s32.f32 %v1127
  %v1129 = vadd.f32 %v1125, %v1128
  %vm1130 = vcmp.le.f32.partialorder %v204, %v229
  %v1131 = vsel %vm1130, 1, 0
  %v1132 = vcvt.s32.f32 %v1131
  %v1133 = vadd.f32 %v1129, %v1132
  %vm1134 = vcmp.le.f32.partialorder %v209, %v229
  %v1135 = vsel %vm1134, 1, 0
  %v1136 = vcvt.s32.f32 %v1135
  %v1137 = vadd.f32 %v1133, %v1136
  %vm1138 = vcmp.le.f32.partialorder %v214, %v229
  %v1139 = vsel %vm1138, 1, 0
  %v1140 = vcvt.s32.f32 %v1139
  %v1141 = vadd.f32 %v1137, %v1140
  %vm1142 = vcmp.le.f32.partialorder %v219, %v229
  %v1143 = vsel %vm1142, 1, 0
  %v1144 = vcvt.s32.f32 %v1143
  %v1145 = vadd.f32 %v1141, %v1144
  %vm1146 = vcmp.le.f32.partialorder %v224, %v229
  %v1147 = vsel %vm1146, 1, 0
  %v1148 = vcvt.s32.f32 %v1147
  %v1149 = vadd.f32 %v1145, %v1148
  %vm1150 = vcmp.le.f32.partialorder %v229, %v229
  %v1151 = vsel %vm1150, 1, 0
  %v1152 = vcvt.s32.f32 %v1151
  %v1153 = vadd.f32 %v1149, %v1152
  %vm1154 = vcmp.le.f32.partialorder %v234, %v229
  %v1155 = vsel %vm1154, 1, 0
  %v1156 = vcvt.s32.f32 %v1155
  %v1157 = vadd.f32 %v1153, %v1156
  %vm1158 = vcmp.le.f32.partialorder %v239, %v229
  %v1159 = vsel %vm1158, 1, 0
  %v1160 = vcvt.s32.f32 %v1159
  %v1161 = vadd.f32 %v1157, %v1160
  %vm1162 = vcmp.le.f32.partialorder %v244, %v229
  %v1163 = vsel %vm1162, 1, 0
  %v1164 = vcvt.s32.f32 %v1163
  %v1165 = vadd.f32 %v1161, %v1164
  %vm1166 = vcmp.le.f32.partialorder %v249, %v229
  %v1167 = vsel %vm1166, 1, 0
  %v1168 = vcvt.s32.f32 %v1167
  %v1169 = vadd.f32 %v1165, %v1168
  %vm1170 = vcmp.le.f32.partialorder %v254, %v229
  %v1171 = vsel %vm1170, 1, 0
  %v1172 = vcvt.s32.f32 %v1171
  %v1173 = vadd.f32 %v1169, %v1172
  %vm1174 = vcmp.le.f32.partialorder %v259, %v229
  %v1175 = vsel %vm1174, 1, 0
  %v1176 = vcvt.s32.f32 %v1175
  %v1177 = vadd.f32 %v1173, %v1176
  %vm1178 = vcmp.le.f32.partialorder %v264, %v229
  %v1179 = vsel %vm1178, 1, 0
  %v1180 = vcvt.s32.f32 %v1179
  %v1181 = vadd.f32 %v1177, %v1180
  %vm1182 = vcmp.le.f32.partialorder %v269, %v229
  %v1183 = vsel %vm1182, 1, 0
  %v1184 = vcvt.s32.f32 %v1183
  %v1185 = vadd.f32 %v1181, %v1184
  %vm1186 = vcmp.ge.f32.partialorder %v1185, 10.0
  %v1187 = vsel %vm1186, %v229, inf
  %v1188 = vmin.f32 %v1105, %v1187
  %vm1189 = vcmp.le.f32.partialorder %v174, %v234
  %v1190 = vsel %vm1189, 1, 0
  %v1191 = vcvt.s32.f32 %v1190
  %v1192 = vadd.f32 %v1191, 0.0
  %vm1193 = vcmp.le.f32.partialorder %v179, %v234
  %v1194 = vsel %vm1193, 1, 0
  %v1195 = vcvt.s32.f32 %v1194
  %v1196 = vadd.f32 %v1192, %v1195
  %vm1197 = vcmp.le.f32.partialorder %v184, %v234
  %v1198 = vsel %vm1197, 1, 0
  %v1199 = vcvt.s32.f32 %v1198
  %v1200 = vadd.f32 %v1196, %v1199
  %vm1201 = vcmp.le.f32.partialorder %v189, %v234
  %v1202 = vsel %vm1201, 1, 0
  %v1203 = vcvt.s32.f32 %v1202
  %v1204 = vadd.f32 %v1200, %v1203
  %vm1205 = vcmp.le.f32.partialorder %v194, %v234
  %v1206 = vsel %vm1205, 1, 0
  %v1207 = vcvt.s32.f32 %v1206
  %v1208 = vadd.f32 %v1204, %v1207
  %vm1209 = vcmp.le.f32.partialorder %v199, %v234
  %v1210 = vsel %vm1209, 1, 0
  %v1211 = vcvt.s32.f32 %v1210
  %v1212 = vadd.f32 %v1208, %v1211
  %vm1213 = vcmp.le.f32.partialorder %v204, %v234
  %v1214 = vsel %vm1213, 1, 0
  %v1215 = vcvt.s32.f32 %v1214
  %v1216 = vadd.f32 %v1212, %v1215
  %vm1217 = vcmp.le.f32.partialorder %v209, %v234
  %v1218 = vsel %vm1217, 1, 0
  %v1219 = vcvt.s32.f32 %v1218
  %v1220 = vadd.f32 %v1216, %v1219
  %vm1221 = vcmp.le.f32.partialorder %v214, %v234
  %v1222 = vsel %vm1221, 1, 0
  %v1223 = vcvt.s32.f32 %v1222
  %v1224 = vadd.f32 %v1220, %v1223
  %vm1225 = vcmp.le.f32.partialorder %v219, %v234
  %v1226 = vsel %vm1225, 1, 0
  %v1227 = vcvt.s32.f32 %v1226
  %v1228 = vadd.f32 %v1224, %v1227
  %vm1229 = vcmp.le.f32.partialorder %v224, %v234
  %v1230 = vsel %vm1229, 1, 0
  %v1231 = vcvt.s32.f32 %v1230
  %v1232 = vadd.f32 %v1228, %v1231
  %vm1233 = vcmp.le.f32.partialorder %v229, %v234
  %v1234 = vsel %vm1233, 1, 0
  %v1235 = vcvt.s32.f32 %v1234
  %v1236 = vadd.f32 %v1232, %v1235
  %vm1237 = vcmp.le.f32.partialorder %v234, %v234
  %v1238 = vsel %vm1237, 1, 0
  %v1239 = vcvt.s32.f32 %v1238
  %v1240 = vadd.f32 %v1236, %v1239
  %vm1241 = vcmp.le.f32.partialorder %v239, %v234
  %v1242 = vsel %vm1241, 1, 0
  %v1243 = vcvt.s32.f32 %v1242
  %v1244 = vadd.f32 %v1240, %v1243
  %vm1245 = vcmp.le.f32.partialorder %v244, %v234
  %v1246 = vsel %vm1245, 1, 0
  %v1247 = vcvt.s32.f32 %v1246
  %v1248 = vadd.f32 %v1244, %v1247
  %vm1249 = vcmp.le.f32.partialorder %v249, %v234
  %v1250 = vsel %vm1249, 1, 0
  %v1251 = vcvt.s32.f32 %v1250
  %v1252 = vadd.f32 %v1248, %v1251
  %vm1253 = vcmp.le.f32.partialorder %v254, %v234
  %v1254 = vsel %vm1253, 1, 0
  %v1255 = vcvt.s32.f32 %v1254
  %v1256 = vadd.f32 %v1252, %v1255
  %vm1257 = vcmp.le.f32.partialorder %v259, %v234
  %v1258 = vsel %vm1257, 1, 0
  %v1259 = vcvt.s32.f32 %v1258
  %v1260 = vadd.f32 %v1256, %v1259
  %vm1261 = vcmp.le.f32.partialorder %v264, %v234
  %v1262 = vsel %vm1261, 1, 0
  %v1263 = vcvt.s32.f32 %v1262
  %v1264 = vadd.f32 %v1260, %v1263
  %vm1265 = vcmp.le.f32.partialorder %v269, %v234
  %v1266 = vsel %vm1265, 1, 0
  %v1267 = vcvt.s32.f32 %v1266
  %v1268 = vadd.f32 %v1264, %v1267
  %vm1269 = vcmp.ge.f32.partialorder %v1268, 10.0
  %v1270 = vsel %vm1269, %v234, inf
  %v1271 = vmin.f32 %v1188, %v1270
  %vm1272 = vcmp.le.f32.partialorder %v174, %v239
  %v1273 = vsel %vm1272, 1, 0
  %v1274 = vcvt.s32.f32 %v1273
  %v1275 = vadd.f32 %v1274, 0.0
  %vm1276 = vcmp.le.f32.partialorder %v179, %v239
  %v1277 = vsel %vm1276, 1, 0
  %v1278 = vcvt.s32.f32 %v1277
  %v1279 = vadd.f32 %v1275, %v1278
  %vm1280 = vcmp.le.f32.partialorder %v184, %v239
  %v1281 = vsel %vm1280, 1, 0
  %v1282 = vcvt.s32.f32 %v1281
  %v1283 = vadd.f32 %v1279, %v1282
  %vm1284 = vcmp.le.f32.partialorder %v189, %v239
  %v1285 = vsel %vm1284, 1, 0
  %v1286 = vcvt.s32.f32 %v1285
  %v1287 = vadd.f32 %v1283, %v1286
  %vm1288 = vcmp.le.f32.partialorder %v194, %v239
  %v1289 = vsel %vm1288, 1, 0
  %v1290 = vcvt.s32.f32 %v1289
  %v1291 = vadd.f32 %v1287, %v1290
  %vm1292 = vcmp.le.f32.partialorder %v199, %v239
  %v1293 = vsel %vm1292, 1, 0
  %v1294 = vcvt.s32.f32 %v1293
  %v1295 = vadd.f32 %v1291, %v1294
  %vm1296 = vcmp.le.f32.partialorder %v204, %v239
  %v1297 = vsel %vm1296, 1, 0
  %v1298 = vcvt.s32.f32 %v1297
  %v1299 = vadd.f32 %v1295, %v1298
  %vm1300 = vcmp.le.f32.partialorder %v209, %v239
  %v1301 = vsel %vm1300, 1, 0
  %v1302 = vcvt.s32.f32 %v1301
  %v1303 = vadd.f32 %v1299, %v1302
  %vm1304 = vcmp.le.f32.partialorder %v214, %v239
  %v1305 = vsel %vm1304, 1, 0
  %v1306 = vcvt.s32.f32 %v1305
  %v1307 = vadd.f32 %v1303, %v1306
  %vm1308 = vcmp.le.f32.partialorder %v219, %v239
  %v1309 = vsel %vm1308, 1, 0
  %v1310 = vcvt.s32.f32 %v1309
  %v1311 = vadd.f32 %v1307, %v1310
  %vm1312 = vcmp.le.f32.partialorder %v224, %v239
  %v1313 = vsel %vm1312, 1, 0
  %v1314 = vcvt.s32.f32 %v1313
  %v1315 = vadd.f32 %v1311, %v1314
  %vm1316 = vcmp.le.f32.partialorder %v229, %v239
  %v1317 = vsel %vm1316, 1, 0
  %v1318 = vcvt.s32.f32 %v1317
  %v1319 = vadd.f32 %v1315, %v1318
  %vm1320 = vcmp.le.f32.partialorder %v234, %v239
  %v1321 = vsel %vm1320, 1, 0
  %v1322 = vcvt.s32.f32 %v1321
  %v1323 = vadd.f32 %v1319, %v1322
  %vm1324 = vcmp.le.f32.partialorder %v239, %v239
  %v1325 = vsel %vm1324, 1, 0
  %v1326 = vcvt.s32.f32 %v1325
  %v1327 = vadd.f32 %v1323, %v1326
  %vm1328 = vcmp.le.f32.partialorder %v244, %v239
  %v1329 = vsel %vm1328, 1, 0
  %v1330 = vcvt.s32.f32 %v1329
  %v1331 = vadd.f32 %v1327, %v1330
  %vm1332 = vcmp.le.f32.partialorder %v249, %v239
  %v1333 = vsel %vm1332, 1, 0
  %v1334 = vcvt.s32.f32 %v1333
  %v1335 = vadd.f32 %v1331, %v1334
  %vm1336 = vcmp.le.f32.partialorder %v254, %v239
  %v1337 = vsel %vm1336, 1, 0
  %v1338 = vcvt.s32.f32 %v1337
  %v1339 = vadd.f32 %v1335, %v1338
  %vm1340 = vcmp.le.f32.partialorder %v259, %v239
  %v1341 = vsel %vm1340, 1, 0
  %v1342 = vcvt.s32.f32 %v1341
  %v1343 = vadd.f32 %v1339, %v1342
  %vm1344 = vcmp.le.f32.partialorder %v264, %v239
  %v1345 = vsel %vm1344, 1, 0
  %v1346 = vcvt.s32.f32 %v1345
  %v1347 = vadd.f32 %v1343, %v1346
  %vm1348 = vcmp.le.f32.partialorder %v269, %v239
  %v1349 = vsel %vm1348, 1, 0
  %v1350 = vcvt.s32.f32 %v1349
  %v1351 = vadd.f32 %v1347, %v1350
  %vm1352 = vcmp.ge.f32.partialorder %v1351, 10.0
  %v1353 = vsel %vm1352, %v239, inf
  %v1354 = vmin.f32 %v1271, %v1353
  %vm1355 = vcmp.le.f32.partialorder %v174, %v244
  %v1356 = vsel %vm1355, 1, 0
  %v1357 = vcvt.s32.f32 %v1356
  %v1358 = vadd.f32 %v1357, 0.0
  %vm1359 = vcmp.le.f32.partialorder %v179, %v244
  %v1360 = vsel %vm1359, 1, 0
  %v1361 = vcvt.s32.f32 %v1360
  %v1362 = vadd.f32 %v1358, %v1361
  %vm1363 = vcmp.le.f32.partialorder %v184, %v244
  %v1364 = vsel %vm1363, 1, 0
  %v1365 = vcvt.s32.f32 %v1364
  %v1366 = vadd.f32 %v1362, %v1365
  %vm1367 = vcmp.le.f32.partialorder %v189, %v244
  %v1368 = vsel %vm1367, 1, 0
  %v1369 = vcvt.s32.f32 %v1368
  %v1370 = vadd.f32 %v1366, %v1369
  %vm1371 = vcmp.le.f32.partialorder %v194, %v244
  %v1372 = vsel %vm1371, 1, 0
  %v1373 = vcvt.s32.f32 %v1372
  %v1374 = vadd.f32 %v1370, %v1373
  %vm1375 = vcmp.le.f32.partialorder %v199, %v244
  %v1376 = vsel %vm1375, 1, 0
  %v1377 = vcvt.s32.f32 %v1376
  %v1378 = vadd.f32 %v1374, %v1377
  %vm1379 = vcmp.le.f32.partialorder %v204, %v244
  %v1380 = vsel %vm1379, 1, 0
  %v1381 = vcvt.s32.f32 %v1380
  %v1382 = vadd.f32 %v1378, %v1381
  %vm1383 = vcmp.le.f32.partialorder %v209, %v244
  %v1384 = vsel %vm1383, 1, 0
  %v1385 = vcvt.s32.f32 %v1384
  %v1386 = vadd.f32 %v1382, %v1385
  %vm1387 = vcmp.le.f32.partialorder %v214, %v244
  %v1388 = vsel %vm1387, 1, 0
  %v1389 = vcvt.s32.f32 %v1388
  %v1390 = vadd.f32 %v1386, %v1389
  %vm1391 = vcmp.le.f32.partialorder %v219, %v244
  %v1392 = vsel %vm1391, 1, 0
  %v1393 = vcvt.s32.f32 %v1392
  %v1394 = vadd.f32 %v1390, %v1393
  %vm1395 = vcmp.le.f32.partialorder %v224, %v244
  %v1396 = vsel %vm1395, 1, 0
  %v1397 = vcvt.s32.f32 %v1396
  %v1398 = vadd.f32 %v1394, %v1397
  %vm1399 = vcmp.le.f32.partialorder %v229, %v244
  %v1400 = vsel %vm1399, 1, 0
  %v1401 = vcvt.s32.f32 %v1400
  %v1402 = vadd.f32 %v1398, %v1401
  %vm1403 = vcmp.le.f32.partialorder %v234, %v244
  %v1404 = vsel %vm1403, 1, 0
  %v1405 = vcvt.s32.f32 %v1404
  %v1406 = vadd.f32 %v1402, %v1405
  %vm1407 = vcmp.le.f32.partialorder %v239, %v244
  %v1408 = vsel %vm1407, 1, 0
  %v1409 = vcvt.s32.f32 %v1408
  %v1410 = vadd.f32 %v1406, %v1409
  %vm1411 = vcmp.le.f32.partialorder %v244, %v244
  %v1412 = vsel %vm1411, 1, 0
  %v1413 = vcvt.s32.f32 %v1412
  %v1414 = vadd.f32 %v1410, %v1413
  %vm1415 = vcmp.le.f32.partialorder %v249, %v244
  %v1416 = vsel %vm1415, 1, 0
  %v1417 = vcvt.s32.f32 %v1416
  %v1418 = vadd.f32 %v1414, %v1417
  %vm1419 = vcmp.le.f32.partialorder %v254, %v244
  %v1420 = vsel %vm1419, 1, 0
  %v1421 = vcvt.s32.f32 %v1420
  %v1422 = vadd.f32 %v1418, %v1421
  %vm1423 = vcmp.le.f32.partialorder %v259, %v244
  %v1424 = vsel %vm1423, 1, 0
  %v1425 = vcvt.s32.f32 %v1424
  %v1426 = vadd.f32 %v1422, %v1425
  %vm1427 = vcmp.le.f32.partialorder %v264, %v244
  %v1428 = vsel %vm1427, 1, 0
  %v1429 = vcvt.s32.f32 %v1428
  %v1430 = vadd.f32 %v1426, %v1429
  %vm1431 = vcmp.le.f32.partialorder %v269, %v244
  %v1432 = vsel %vm1431, 1, 0
  %v1433 = vcvt.s32.f32 %v1432
  %v1434 = vadd.f32 %v1430, %v1433
  %vm1435 = vcmp.ge.f32.partialorder %v1434, 10.0
  %v1436 = vsel %vm1435, %v244, inf
  %v1437 = vmin.f32 %v1354, %v1436
  %vm1438 = vcmp.le.f32.partialorder %v174, %v249
  %v1439 = vsel %vm1438, 1, 0
  %v1440 = vcvt.s32.f32 %v1439
  %v1441 = vadd.f32 %v1440, 0.0
  %vm1442 = vcmp.le.f32.partialorder %v179, %v249
  %v1443 = vsel %vm1442, 1, 0
  %v1444 = vcvt.s32.f32 %v1443
  %v1445 = vadd.f32 %v1441, %v1444
  %vm1446 = vcmp.le.f32.partialorder %v184, %v249
  %v1447 = vsel %vm1446, 1, 0
  %v1448 = vcvt.s32.f32 %v1447
  %v1449 = vadd.f32 %v1445, %v1448
  %vm1450 = vcmp.le.f32.partialorder %v189, %v249
  %v1451 = vsel %vm1450, 1, 0
  %v1452 = vcvt.s32.f32 %v1451
  %v1453 = vadd.f32 %v1449, %v1452
  %vm1454 = vcmp.le.f32.partialorder %v194, %v249
  %v1455 = vsel %vm1454, 1, 0
  %v1456 = vcvt.s32.f32 %v1455
  %v1457 = vadd.f32 %v1453, %v1456
  %vm1458 = vcmp.le.f32.partialorder %v199, %v249
  %v1459 = vsel %vm1458, 1, 0
  %v1460 = vcvt.s32.f32 %v1459
  %v1461 = vadd.f32 %v1457, %v1460
  %vm1462 = vcmp.le.f32.partialorder %v204, %v249
  %v1463 = vsel %vm1462, 1, 0
  %v1464 = vcvt.s32.f32 %v1463
  %v1465 = vadd.f32 %v1461, %v1464
  %vm1466 = vcmp.le.f32.partialorder %v209, %v249
  %v1467 = vsel %vm1466, 1, 0
  %v1468 = vcvt.s32.f32 %v1467
  %v1469 = vadd.f32 %v1465, %v1468
  %vm1470 = vcmp.le.f32.partialorder %v214, %v249
  %v1471 = vsel %vm1470, 1, 0
  %v1472 = vcvt.s32.f32 %v1471
  %v1473 = vadd.f32 %v1469, %v1472
  %vm1474 = vcmp.le.f32.partialorder %v219, %v249
  %v1475 = vsel %vm1474, 1, 0
  %v1476 = vcvt.s32.f32 %v1475
  %v1477 = vadd.f32 %v1473, %v1476
  %vm1478 = vcmp.le.f32.partialorder %v224, %v249
  %v1479 = vsel %vm1478, 1, 0
  %v1480 = vcvt.s32.f32 %v1479
  %v1481 = vadd.f32 %v1477, %v1480
  %vm1482 = vcmp.le.f32.partialorder %v229, %v249
  %v1483 = vsel %vm1482, 1, 0
  %v1484 = vcvt.s32.f32 %v1483
  %v1485 = vadd.f32 %v1481, %v1484
  %vm1486 = vcmp.le.f32.partialorder %v234, %v249
  %v1487 = vsel %vm1486, 1, 0
  %v1488 = vcvt.s32.f32 %v1487
  %v1489 = vadd.f32 %v1485, %v1488
  %vm1490 = vcmp.le.f32.partialorder %v239, %v249
  %v1491 = vsel %vm1490, 1, 0
  %v1492 = vcvt.s32.f32 %v1491
  %v1493 = vadd.f32 %v1489, %v1492
  %vm1494 = vcmp.le.f32.partialorder %v244, %v249
  %v1495 = vsel %vm1494, 1, 0
  %v1496 = vcvt.s32.f32 %v1495
  %v1497 = vadd.f32 %v1493, %v1496
  %vm1498 = vcmp.le.f32.partialorder %v249, %v249
  %v1499 = vsel %vm1498, 1, 0
  %v1500 = vcvt.s32.f32 %v1499
  %v1501 = vadd.f32 %v1497, %v1500
  %vm1502 = vcmp.le.f32.partialorder %v254, %v249
  %v1503 = vsel %vm1502, 1, 0
  %v1504 = vcvt.s32.f32 %v1503
  %v1505 = vadd.f32 %v1501, %v1504
  %vm1506 = vcmp.le.f32.partialorder %v259, %v249
  %v1507 = vsel %vm1506, 1, 0
  %v1508 = vcvt.s32.f32 %v1507
  %v1509 = vadd.f32 %v1505, %v1508
  %vm1510 = vcmp.le.f32.partialorder %v264, %v249
  %v1511 = vsel %vm1510, 1, 0
  %v1512 = vcvt.s32.f32 %v1511
  %v1513 = vadd.f32 %v1509, %v1512
  %vm1514 = vcmp.le.f32.partialorder %v269, %v249
  %v1515 = vsel %vm1514, 1, 0
  %v1516 = vcvt.s32.f32 %v1515
  %v1517 = vadd.f32 %v1513, %v1516
  %vm1518 = vcmp.ge.f32.partialorder %v1517, 10.0
  %v1519 = vsel %vm1518, %v249, inf
  %v1520 = vmin.f32 %v1437, %v1519
  %vm1521 = vcmp.le.f32.partialorder %v174, %v254
  %v1522 = vsel %vm1521, 1, 0
  %v1523 = vcvt.s32.f32 %v1522
  %v1524 = vadd.f32 %v1523, 0.0
  %vm1525 = vcmp.le.f32.partialorder %v179, %v254
  %v1526 = vsel %vm1525, 1, 0
  %v1527 = vcvt.s32.f32 %v1526
  %v1528 = vadd.f32 %v1524, %v1527
  %vm1529 = vcmp.le.f32.partialorder %v184, %v254
  %v1530 = vsel %vm1529, 1, 0
  %v1531 = vcvt.s32.f32 %v1530
  %v1532 = vadd.f32 %v1528, %v1531
  %vm1533 = vcmp.le.f32.partialorder %v189, %v254
  %v1534 = vsel %vm1533, 1, 0
  %v1535 = vcvt.s32.f32 %v1534
  %v1536 = vadd.f32 %v1532, %v1535
  %vm1537 = vcmp.le.f32.partialorder %v194, %v254
  %v1538 = vsel %vm1537, 1, 0
  %v1539 = vcvt.s32.f32 %v1538
  %v1540 = vadd.f32 %v1536, %v1539
  %vm1541 = vcmp.le.f32.partialorder %v199, %v254
  %v1542 = vsel %vm1541, 1, 0
  %v1543 = vcvt.s32.f32 %v1542
  %v1544 = vadd.f32 %v1540, %v1543
  %vm1545 = vcmp.le.f32.partialorder %v204, %v254
  %v1546 = vsel %vm1545, 1, 0
  %v1547 = vcvt.s32.f32 %v1546
  %v1548 = vadd.f32 %v1544, %v1547
  %vm1549 = vcmp.le.f32.partialorder %v209, %v254
  %v1550 = vsel %vm1549, 1, 0
  %v1551 = vcvt.s32.f32 %v1550
  %v1552 = vadd.f32 %v1548, %v1551
  %vm1553 = vcmp.le.f32.partialorder %v214, %v254
  %v1554 = vsel %vm1553, 1, 0
  %v1555 = vcvt.s32.f32 %v1554
  %v1556 = vadd.f32 %v1552, %v1555
  %vm1557 = vcmp.le.f32.partialorder %v219, %v254
  %v1558 = vsel %vm1557, 1, 0
  %v1559 = vcvt.s32.f32 %v1558
  %v1560 = vadd.f32 %v1556, %v1559
  %vm1561 = vcmp.le.f32.partialorder %v224, %v254
  %v1562 = vsel %vm1561, 1, 0
  %v1563 = vcvt.s32.f32 %v1562
  %v1564 = vadd.f32 %v1560, %v1563
  %vm1565 = vcmp.le.f32.partialorder %v229, %v254
  %v1566 = vsel %vm1565, 1, 0
  %v1567 = vcvt.s32.f32 %v1566
  %v1568 = vadd.f32 %v1564, %v1567
  %vm1569 = vcmp.le.f32.partialorder %v234, %v254
  %v1570 = vsel %vm1569, 1, 0
  %v1571 = vcvt.s32.f32 %v1570
  %v1572 = vadd.f32 %v1568, %v1571
  %vm1573 = vcmp.le.f32.partialorder %v239, %v254
  %v1574 = vsel %vm1573, 1, 0
  %v1575 = vcvt.s32.f32 %v1574
  %v1576 = vadd.f32 %v1572, %v1575
  %vm1577 = vcmp.le.f32.partialorder %v244, %v254
  %v1578 = vsel %vm1577, 1, 0
  %v1579 = vcvt.s32.f32 %v1578
  %v1580 = vadd.f32 %v1576, %v1579
  %vm1581 = vcmp.le.f32.partialorder %v249, %v254
  %v1582 = vsel %vm1581, 1, 0
  %v1583 = vcvt.s32.f32 %v1582
  %v1584 = vadd.f32 %v1580, %v1583
  %vm1585 = vcmp.le.f32.partialorder %v254, %v254
  %v1586 = vsel %vm1585, 1, 0
  %v1587 = vcvt.s32.f32 %v1586
  %v1588 = vadd.f32 %v1584, %v1587
  %vm1589 = vcmp.le.f32.partialorder %v259, %v254
  %v1590 = vsel %vm1589, 1, 0
  %v1591 = vcvt.s32.f32 %v1590
  %v1592 = vadd.f32 %v1588, %v1591
  %vm1593 = vcmp.le.f32.partialorder %v264, %v254
  %v1594 = vsel %vm1593, 1, 0
  %v1595 = vcvt.s32.f32 %v1594
  %v1596 = vadd.f32 %v1592, %v1595
  %vm1597 = vcmp.le.f32.partialorder %v269, %v254
  %v1598 = vsel %vm1597, 1, 0
  %v1599 = vcvt.s32.f32 %v1598
  %v1600 = vadd.f32 %v1596, %v1599
  %vm1601 = vcmp.ge.f32.partialorder %v1600, 10.0
  %v1602 = vsel %vm1601, %v254, inf
  %v1603 = vmin.f32 %v1520, %v1602
  %vm1604 = vcmp.le.f32.partialorder %v174, %v259
  %v1605 = vsel %vm1604, 1, 0
  %v1606 = vcvt.s32.f32 %v1605
  %v1607 = vadd.f32 %v1606, 0.0
  %vm1608 = vcmp.le.f32.partialorder %v179, %v259
  %v1609 = vsel %vm1608, 1, 0
  %v1610 = vcvt.s32.f32 %v1609
  %v1611 = vadd.f32 %v1607, %v1610
  %vm1612 = vcmp.le.f32.partialorder %v184, %v259
  %v1613 = vsel %vm1612, 1, 0
  %v1614 = vcvt.s32.f32 %v1613
  %v1615 = vadd.f32 %v1611, %v1614
  %vm1616 = vcmp.le.f32.partialorder %v189, %v259
  %v1617 = vsel %vm1616, 1, 0
  %v1618 = vcvt.s32.f32 %v1617
  %v1619 = vadd.f32 %v1615, %v1618
  %vm1620 = vcmp.le.f32.partialorder %v194, %v259
  %v1621 = vsel %vm1620, 1, 0
  %v1622 = vcvt.s32.f32 %v1621
  %v1623 = vadd.f32 %v1619, %v1622
  %vm1624 = vcmp.le.f32.partialorder %v199, %v259
  %v1625 = vsel %vm1624, 1, 0
  %v1626 = vcvt.s32.f32 %v1625
  %v1627 = vadd.f32 %v1623, %v1626
  %vm1628 = vcmp.le.f32.partialorder %v204, %v259
  %v1629 = vsel %vm1628, 1, 0
  %v1630 = vcvt.s32.f32 %v1629
  %v1631 = vadd.f32 %v1627, %v1630
  %vm1632 = vcmp.le.f32.partialorder %v209, %v259
  %v1633 = vsel %vm1632, 1, 0
  %v1634 = vcvt.s32.f32 %v1633
  %v1635 = vadd.f32 %v1631, %v1634
  %vm1636 = vcmp.le.f32.partialorder %v214, %v259
  %v1637 = vsel %vm1636, 1, 0
  %v1638 = vcvt.s32.f32 %v1637
  %v1639 = vadd.f32 %v1635, %v1638
  %vm1640 = vcmp.le.f32.partialorder %v219, %v259
  %v1641 = vsel %vm1640, 1, 0
  %v1642 = vcvt.s32.f32 %v1641
  %v1643 = vadd.f32 %v1639, %v1642
  %vm1644 = vcmp.le.f32.partialorder %v224, %v259
  %v1645 = vsel %vm1644, 1, 0
  %v1646 = vcvt.s32.f32 %v1645
  %v1647 = vadd.f32 %v1643, %v1646
  %vm1648 = vcmp.le.f32.partialorder %v229, %v259
  %v1649 = vsel %vm1648, 1, 0
  %v1650 = vcvt.s32.f32 %v1649
  %v1651 = vadd.f32 %v1647, %v1650
  %vm1652 = vcmp.le.f32.partialorder %v234, %v259
  %v1653 = vsel %vm1652, 1, 0
  %v1654 = vcvt.s32.f32 %v1653
  %v1655 = vadd.f32 %v1651, %v1654
  %vm1656 = vcmp.le.f32.partialorder %v239, %v259
  %v1657 = vsel %vm1656, 1, 0
  %v1658 = vcvt.s32.f32 %v1657
  %v1659 = vadd.f32 %v1655, %v1658
  %vm1660 = vcmp.le.f32.partialorder %v244, %v259
  %v1661 = vsel %vm1660, 1, 0
  %v1662 = vcvt.s32.f32 %v1661
  %v1663 = vadd.f32 %v1659, %v1662
  %vm1664 = vcmp.le.f32.partialorder %v249, %v259
  %v1665 = vsel %vm1664, 1, 0
  %v1666 = vcvt.s32.f32 %v1665
  %v1667 = vadd.f32 %v1663, %v1666
  %vm1668 = vcmp.le.f32.partialorder %v254, %v259
  %v1669 = vsel %vm1668, 1, 0
  %v1670 = vcvt.s32.f32 %v1669
  %v1671 = vadd.f32 %v1667, %v1670
  %vm1672 = vcmp.le.f32.partialorder %v259, %v259
  %v1673 = vsel %vm1672, 1, 0
  %v1674 = vcvt.s32.f32 %v1673
  %v1675 = vadd.f32 %v1671, %v1674
  %vm1676 = vcmp.le.f32.partialorder %v264, %v259
  %v1677 = vsel %vm1676, 1, 0
  %v1678 = vcvt.s32.f32 %v1677
  %v1679 = vadd.f32 %v1675, %v1678
  %vm1680 = vcmp.le.f32.partialorder %v269, %v259
  %v1681 = vsel %vm1680, 1, 0
  %v1682 = vcvt.s32.f32 %v1681
  %v1683 = vadd.f32 %v1679, %v1682
  %vm1684 = vcmp.ge.f32.partialorder %v1683, 10.0
  %v1685 = vsel %vm1684, %v259, inf
  %v1686 = vmin.f32 %v1603, %v1685
  %vm1687 = vcmp.le.f32.partialorder %v174, %v264
  %v1688 = vsel %vm1687, 1, 0
  %v1689 = vcvt.s32.f32 %v1688
  %v1690 = vadd.f32 %v1689, 0.0
  %vm1691 = vcmp.le.f32.partialorder %v179, %v264
  %v1692 = vsel %vm1691, 1, 0
  %v1693 = vcvt.s32.f32 %v1692
  %v1694 = vadd.f32 %v1690, %v1693
  %vm1695 = vcmp.le.f32.partialorder %v184, %v264
  %v1696 = vsel %vm1695, 1, 0
  %v1697 = vcvt.s32.f32 %v1696
  %v1698 = vadd.f32 %v1694, %v1697
  %vm1699 = vcmp.le.f32.partialorder %v189, %v264
  %v1700 = vsel %vm1699, 1, 0
  %v1701 = vcvt.s32.f32 %v1700
  %v1702 = vadd.f32 %v1698, %v1701
  %vm1703 = vcmp.le.f32.partialorder %v194, %v264
  %v1704 = vsel %vm1703, 1, 0
  %v1705 = vcvt.s32.f32 %v1704
  %v1706 = vadd.f32 %v1702, %v1705
  %vm1707 = vcmp.le.f32.partialorder %v199, %v264
  %v1708 = vsel %vm1707, 1, 0
  %v1709 = vcvt.s32.f32 %v1708
  %v1710 = vadd.f32 %v1706, %v1709
  %vm1711 = vcmp.le.f32.partialorder %v204, %v264
  %v1712 = vsel %vm1711, 1, 0
  %v1713 = vcvt.s32.f32 %v1712
  %v1714 = vadd.f32 %v1710, %v1713
  %vm1715 = vcmp.le.f32.partialorder %v209, %v264
  %v1716 = vsel %vm1715, 1, 0
  %v1717 = vcvt.s32.f32 %v1716
  %v1718 = vadd.f32 %v1714, %v1717
  %vm1719 = vcmp.le.f32.partialorder %v214, %v264
  %v1720 = vsel %vm1719, 1, 0
  %v1721 = vcvt.s32.f32 %v1720
  %v1722 = vadd.f32 %v1718, %v1721
  %vm1723 = vcmp.le.f32.partialorder %v219, %v264
  %v1724 = vsel %vm1723, 1, 0
  %v1725 = vcvt.s32.f32 %v1724
  %v1726 = vadd.f32 %v1722, %v1725
  %vm1727 = vcmp.le.f32.partialorder %v224, %v264
  %v1728 = vsel %vm1727, 1, 0
  %v1729 = vcvt.s32.f32 %v1728
  %v1730 = vadd.f32 %v1726, %v1729
  %vm1731 = vcmp.le.f32.partialorder %v229, %v264
  %v1732 = vsel %vm1731, 1, 0
  %v1733 = vcvt.s32.f32 %v1732
  %v1734 = vadd.f32 %v1730, %v1733
  %vm1735 = vcmp.le.f32.partialorder %v234, %v264
  %v1736 = vsel %vm1735, 1, 0
  %v1737 = vcvt.s32.f32 %v1736
  %v1738 = vadd.f32 %v1734, %v1737
  %vm1739 = vcmp.le.f32.partialorder %v239, %v264
  %v1740 = vsel %vm1739, 1, 0
  %v1741 = vcvt.s32.f32 %v1740
  %v1742 = vadd.f32 %v1738, %v1741
  %vm1743 = vcmp.le.f32.partialorder %v244, %v264
  %v1744 = vsel %vm1743, 1, 0
  %v1745 = vcvt.s32.f32 %v1744
  %v1746 = vadd.f32 %v1742, %v1745
  %vm1747 = vcmp.le.f32.partialorder %v249, %v264
  %v1748 = vsel %vm1747, 1, 0
  %v1749 = vcvt.s32.f32 %v1748
  %v1750 = vadd.f32 %v1746, %v1749
  %vm1751 = vcmp.le.f32.partialorder %v254, %v264
  %v1752 = vsel %vm1751, 1, 0
  %v1753 = vcvt.s32.f32 %v1752
  %v1754 = vadd.f32 %v1750, %v1753
  %vm1755 = vcmp.le.f32.partialorder %v259, %v264
  %v1756 = vsel %vm1755, 1, 0
  %v1757 = vcvt.s32.f32 %v1756
  %v1758 = vadd.f32 %v1754, %v1757
  %vm1759 = vcmp.le.f32.partialorder %v264, %v264
  %v1760 = vsel %vm1759, 1, 0
  %v1761 = vcvt.s32.f32 %v1760
  %v1762 = vadd.f32 %v1758, %v1761
  %vm1763 = vcmp.le.f32.partialorder %v269, %v264
  %v1764 = vsel %vm1763, 1, 0
  %v1765 = vcvt.s32.f32 %v1764
  %v1766 = vadd.f32 %v1762, %v1765
  %vm1767 = vcmp.ge.f32.partialorder %v1766, 10.0
  %v1768 = vsel %vm1767, %v264, inf
  %v1769 = vmin.f32 %v1686, %v1768
  %vm1770 = vcmp.le.f32.partialorder %v174, %v269
  %v1771 = vsel %vm1770, 1, 0
  %v1772 = vcvt.s32.f32 %v1771
  %v1773 = vadd.f32 %v1772, 0.0
  %vm1774 = vcmp.le.f32.partialorder %v179, %v269
  %v1775 = vsel %vm1774, 1, 0
  %v1776 = vcvt.s32.f32 %v1775
  %v1777 = vadd.f32 %v1773, %v1776
  %vm1778 = vcmp.le.f32.partialorder %v184, %v269
  %v1779 = vsel %vm1778, 1, 0
  %v1780 = vcvt.s32.f32 %v1779
  %v1781 = vadd.f32 %v1777, %v1780
  %vm1782 = vcmp.le.f32.partialorder %v189, %v269
  %v1783 = vsel %vm1782, 1, 0
  %v1784 = vcvt.s32.f32 %v1783
  %v1785 = vadd.f32 %v1781, %v1784
  %vm1786 = vcmp.le.f32.partialorder %v194, %v269
  %v1787 = vsel %vm1786, 1, 0
  %v1788 = vcvt.s32.f32 %v1787
  %v1789 = vadd.f32 %v1785, %v1788
  %vm1790 = vcmp.le.f32.partialorder %v199, %v269
  %v1791 = vsel %vm1790, 1, 0
  %v1792 = vcvt.s32.f32 %v1791
  %v1793 = vadd.f32 %v1789, %v1792
  %vm1794 = vcmp.le.f32.partialorder %v204, %v269
  %v1795 = vsel %vm1794, 1, 0
  %v1796 = vcvt.s32.f32 %v1795
  %v1797 = vadd.f32 %v1793, %v1796
  %vm1798 = vcmp.le.f32.partialorder %v209, %v269
  %v1799 = vsel %vm1798, 1, 0
  %v1800 = vcvt.s32.f32 %v1799
  %v1801 = vadd.f32 %v1797, %v1800
  %vm1802 = vcmp.le.f32.partialorder %v214, %v269
  %v1803 = vsel %vm1802, 1, 0
  %v1804 = vcvt.s32.f32 %v1803
  %v1805 = vadd.f32 %v1801, %v1804
  %vm1806 = vcmp.le.f32.partialorder %v219, %v269
  %v1807 = vsel %vm1806, 1, 0
  %v1808 = vcvt.s32.f32 %v1807
  %v1809 = vadd.f32 %v1805, %v1808
  %vm1810 = vcmp.le.f32.partialorder %v224, %v269
  %v1811 = vsel %vm1810, 1, 0
  %v1812 = vcvt.s32.f32 %v1811
  %v1813 = vadd.f32 %v1809, %v1812
  %vm1814 = vcmp.le.f32.partialorder %v229, %v269
  %v1815 = vsel %vm1814, 1, 0
  %v1816 = vcvt.s32.f32 %v1815
  %v1817 = vadd.f32 %v1813, %v1816
  %vm1818 = vcmp.le.f32.partialorder %v234, %v269
  %v1819 = vsel %vm1818, 1, 0
  %v1820 = vcvt.s32.f32 %v1819
  %v1821 = vadd.f32 %v1817, %v1820
  %vm1822 = vcmp.le.f32.partialorder %v239, %v269
  %v1823 = vsel %vm1822, 1, 0
  %v1824 = vcvt.s32.f32 %v1823
  %v1825 = vadd.f32 %v1821, %v1824
  %vm1826 = vcmp.le.f32.partialorder %v244, %v269
  %v1827 = vsel %vm1826, 1, 0
  %v1828 = vcvt.s32.f32 %v1827
  %v1829 = vadd.f32 %v1825, %v1828
  %vm1830 = vcmp.le.f32.partialorder %v249, %v269
  %v1831 = vsel %vm1830, 1, 0
  %v1832 = vcvt.s32.f32 %v1831
  %v1833 = vadd.f32 %v1829, %v1832
  %vm1834 = vcmp.le.f32.partialorder %v254, %v269
  %v1835 = vsel %vm1834, 1, 0
  %v1836 = vcvt.s32.f32 %v1835
  %v1837 = vadd.f32 %v1833, %v1836
  %vm1838 = vcmp.le.f32.partialorder %v259, %v269
  %v1839 = vsel %vm1838, 1, 0
  %v1840 = vcvt.s32.f32 %v1839
  %v1841 = vadd.f32 %v1837, %v1840
  %vm1842 = vcmp.le.f32.partialorder %v264, %v269
  %v1843 = vsel %vm1842, 1, 0
  %v1844 = vcvt.s32.f32 %v1843
  %v1845 = vadd.f32 %v1841, %v1844
  %vm1846 = vcmp.le.f32.partialorder %v269, %v269
  %v1847 = vsel %vm1846, 1, 0
  %v1848 = vcvt.s32.f32 %v1847
  %v1849 = vadd.f32 %v1845, %v1848
  %vm1850 = vcmp.ge.f32.partialorder %v1849, 10.0
  %v1851 = vsel %vm1850, %v269, inf
  %v1852 = vmin.f32 %v1769, %v1851
  %s1853 = scalar_lea.vmem %s1, 32
  %1854 = vst.msk [vmem:[%s1853] sm:$0xff] %vm166, %v1852
  // Predicated region
  $region6: #{tpu_custom_call.1} parent=0 // pred_check
    _
  $region7: #{tpu_custom_call.1} parent=0 // pred_check_branch
    %1856 = sbr.rel (0) target = $region9
  $region8: #{tpu_custom_call.1} parent=0 // pred_region
    _
  $region9: #{tpu_custom_call.1} parent=0 // pred_fallthru
    _
  // Predicated region
  $region10: #{tpu_custom_call.1} parent=0 // pred_check
    _
  $region11: #{tpu_custom_call.1} parent=0 // pred_check_branch
    %1858 = sbr.rel (0) target = $region13
  $region12: #{tpu_custom_call.1} parent=0 // pred_region
    _
  $region13: #{tpu_custom_call.1} parent=0 // pred_fallthru
    _

</llo_original>
